<compile_context>
chip_gen: v7x
topology: tpu7x:2x2x1
jax: 0.10.0
libtpu: 0.0.40
codegen_flags: <defaults>
</compile_context>

<pallas_src>
import functools

import jax
import jax.numpy as jnp
from jax import lax
from jax.experimental import pallas as pl
from jax.experimental.pallas import tpu as pltpu

EPS = 1e-5


# ------------------------- in-kernel helper functions ------------------------

def _layernorm(x, g, b):
    mean = jnp.mean(x, axis=-1, keepdims=True)
    xc = x - mean
    var = jnp.mean(xc * xc, axis=-1, keepdims=True)
    return xc * lax.rsqrt(var + EPS) * g + b


def _softmax_rows(s):
    m = jnp.max(s, axis=-1, keepdims=True)
    p = jnp.exp(s - m)
    return p / jnp.sum(p, axis=-1, keepdims=True)


def _mha_into(attn_ref, q, k, v, *, H):
    """Multi-head attention for one batch element.

    q: (Sq, E), k/v: (Sk, E).  Head outputs are written to static column offsets of
    the VMEM scratch `attn_ref` (shape (Sq, E)) -- no concatenates, no transposes.
    """
    Dh = q.shape[1] // H
    scale = 1.0 / (Dh ** 0.5)
    dn = (((1,), (1,)), ((), ()))          # contract Dh of both operands (no kh.T)
    for h in range(H):
        lo, hi = h * Dh, (h + 1) * Dh
        qh = q[:, lo:hi].astype(jnp.bfloat16)
        kh = k[:, lo:hi].astype(jnp.bfloat16)
        vh = v[:, lo:hi].astype(jnp.bfloat16)
        s = lax.dot_general(qh, kh, dn, preferred_element_type=jnp.float32) * scale
        p = _softmax_rows(s)
        attn_ref[:, lo:hi] = jnp.dot(p.astype(jnp.bfloat16), vh,
                                     preferred_element_type=jnp.float32)


# ------------------------------ fused kernels --------------------------------

def _encoder_stack_kernel(x_ref,
                          wq, wk, wv, bq, bk, bv, wo, bo, n1g, n1b,
                          w1, b1, w2, b2, n2g, n2b,
                          o_ref, act, attn, *, H):
    l = pl.program_id(1)

    @pl.when(l == 0)
    def _():
        act[...] = x_ref[0].astype(jnp.float32)

    x = act[...]
    xb = x.astype(jnp.bfloat16)

    # self-attention (separate Q/K/V dots against the resident activation)
    q = jnp.dot(xb, wq[0], preferred_element_type=jnp.float32) + bq[0]
    k = jnp.dot(xb, wk[0], preferred_element_type=jnp.float32) + bk[0]
    v = jnp.dot(xb, wv[0], preferred_element_type=jnp.float32) + bv[0]
    _mha_into(attn, q, k, v, H=H)
    sa = jnp.dot(attn[...].astype(jnp.bfloat16), wo[0],
                 preferred_element_type=jnp.float32) + bo[0]
    x1 = _layernorm(x + sa, n1g[0], n1b[0])

    # feed-forward (relu)
    hid = jnp.maximum(jnp.dot(x1.astype(jnp.bfloat16), w1[0],
                              preferred_element_type=jnp.float32) + b1[0], 0.0)
    ff = jnp.dot(hid.astype(jnp.bfloat16), w2[0],
                 preferred_element_type=jnp.float32) + b2[0]
    y = _layernorm(x1 + ff, n2g[0], n2b[0])

    act[...] = y                                     # carry to next layer (stays in VMEM)

    @pl.when(l == pl.num_programs(1) - 1)
    def _():
        o_ref[0] = y.astype(o_ref.dtype)


def _decoder_stack_kernel(x_ref, mem_ref,
                          wq, wk, wv, bq, bk, bv, wo, bo, n1g, n1b,
                          cwq, cwk, cwv, cbq, cbk, cbv, cwo, cbo, n2g, n2b,
                          w1, b1, w2, b2, n3g, n3b,
                          o_ref, act, attn, *, H):
    l = pl.program_id(1)

    @pl.when(l == 0)
    def _():
        act[...] = x_ref[0].astype(jnp.float32)

    x = act[...]
    xb = x.astype(jnp.bfloat16)

    # self-attention
    q = jnp.dot(xb, wq[0], preferred_element_type=jnp.float32) + bq[0]
    k = jnp.dot(xb, wk[0], preferred_element_type=jnp.float32) + bk[0]
    v = jnp.dot(xb, wv[0], preferred_element_type=jnp.float32) + bv[0]
    _mha_into(attn, q, k, v, H=H)
    sa = jnp.dot(attn[...].astype(jnp.bfloat16), wo[0],
                 preferred_element_type=jnp.float32) + bo[0]
    x1 = _layernorm(x + sa, n1g[0], n1b[0])

    # cross-attention (Q from decoder state, K/V from encoder memory)
    memb = mem_ref[0].astype(jnp.bfloat16)
    cq = jnp.dot(x1.astype(jnp.bfloat16), cwq[0],
                 preferred_element_type=jnp.float32) + cbq[0]
    ck = jnp.dot(memb, cwk[0], preferred_element_type=jnp.float32) + cbk[0]
    cv = jnp.dot(memb, cwv[0], preferred_element_type=jnp.float32) + cbv[0]
    _mha_into(attn, cq, ck, cv, H=H)
    ca = jnp.dot(attn[...].astype(jnp.bfloat16), cwo[0],
                 preferred_element_type=jnp.float32) + cbo[0]
    x2 = _layernorm(x1 + ca, n2g[0], n2b[0])

    # feed-forward
    hid = jnp.maximum(jnp.dot(x2.astype(jnp.bfloat16), w1[0],
                              preferred_element_type=jnp.float32) + b1[0], 0.0)
    ff = jnp.dot(hid.astype(jnp.bfloat16), w2[0],
                 preferred_element_type=jnp.float32) + b2[0]
    y = _layernorm(x2 + ff, n3g[0], n3b[0])

    act[...] = y

    @pl.when(l == pl.num_programs(1) - 1)
    def _():
        o_ref[0] = y.astype(o_ref.dtype)


def _fc_logsoftmax_kernel(x_ref, w_ref, b_ref, o_ref):
    logits = jnp.dot(x_ref[...].astype(jnp.bfloat16), w_ref[...],
                     preferred_element_type=jnp.float32) + b_ref[...]
    m = jnp.max(logits, axis=-1, keepdims=True)
    s = logits - m
    lse = jnp.log(jnp.sum(jnp.exp(s), axis=-1, keepdims=True))
    o_ref[...] = (s - lse).astype(o_ref.dtype)


# ------------------------------ layer wrappers --------------------------------

def _xmap(b, l):        # activation / memory / output: one block per batch element
    return (b, 0, 0)


def _wmap(b, l):        # stacked per-layer weights: one block per layer
    return (l, 0, 0)


_ENC_NAMES = ("wq", "wk", "wv", "bq", "bk", "bv", "wo", "bo", "n1g", "n1b",
              "w1", "b1", "w2", "b2", "n2g", "n2b")
_DEC_NAMES = ("wq", "wk", "wv", "bq", "bk", "bv", "wo", "bo", "n1g", "n1b",
              "cwq", "cwk", "cwv", "cbq", "cbk", "cbv", "cwo", "cbo", "n2g", "n2b",
              "w1", "b1", "w2", "b2", "n3g", "n3b")


def encoder_stack(x, p, *, num_heads):
    B, S, E = x.shape
    L = p["wq"].shape[0]
    w_args = [p[n] for n in _ENC_NAMES]
    w_specs = [pl.BlockSpec((1,) + a.shape[1:], _wmap) for a in w_args]
    return pl.pallas_call(
        functools.partial(_encoder_stack_kernel, H=num_heads),
        grid=(B, L),
        in_specs=[pl.BlockSpec((1, S, E), _xmap)] + w_specs,
        out_specs=pl.BlockSpec((1, S, E), _xmap),
        out_shape=jax.ShapeDtypeStruct((B, S, E), jnp.float32),
        scratch_shapes=[pltpu.VMEM((S, E), jnp.float32),   # activation carry
                        pltpu.VMEM((S, E), jnp.float32)],  # per-head attention output
        compiler_params=pltpu.CompilerParams(
            dimension_semantics=("parallel", "arbitrary")),
    )(x, *w_args)


def decoder_stack(x, memory, p, *, num_heads):
    B, St, E = x.shape
    Ss = memory.shape[1]
    L = p["wq"].shape[0]
    w_args = [p[n] for n in _DEC_NAMES]
    w_specs = [pl.BlockSpec((1,) + a.shape[1:], _wmap) for a in w_args]
    return pl.pallas_call(
        functools.partial(_decoder_stack_kernel, H=num_heads),
        grid=(B, L),
        in_specs=[pl.BlockSpec((1, St, E), _xmap),
                  pl.BlockSpec((1, Ss, E), _xmap)] + w_specs,
        out_specs=pl.BlockSpec((1, St, E), _xmap),
        out_shape=jax.ShapeDtypeStruct((B, St, E), jnp.float32),
        scratch_shapes=[pltpu.VMEM((St, E), jnp.float32),
                        pltpu.VMEM((St, E), jnp.float32)],
        compiler_params=pltpu.CompilerParams(
            dimension_semantics=("parallel", "arbitrary")),
    )(x, memory, *w_args)


def fc_log_softmax(x2d, w, b, *, block_rows):
    M, E = x2d.shape
    V = w.shape[1]
    nb = M // block_rows
    return pl.pallas_call(
        _fc_logsoftmax_kernel,
        grid=(nb,),
        in_specs=[pl.BlockSpec((block_rows, E), lambda i: (i, 0)),
                  pl.BlockSpec((E, V), lambda i: (0, 0)),
                  pl.BlockSpec((1, V), lambda i: (0, 0))],
        out_specs=pl.BlockSpec((block_rows, V), lambda i: (i, 0)),
        out_shape=jax.ShapeDtypeStruct((M, V), jnp.float32),
        compiler_params=pltpu.CompilerParams(dimension_semantics=("parallel",)),
    )(x2d, w, b)


# ------------------------------- full forward ---------------------------------

def model_forward(params, src, tgt, *, num_heads):
    # embedding lookups (gather) kept in plain JAX glue
    src_emb = params["embedding"][src]            # (B, Ss, E)  f32
    tgt_emb = params["embedding"][tgt]            # (B, St, E)  f32

    memory = encoder_stack(src_emb, params["encoder"], num_heads=num_heads)
    out = decoder_stack(tgt_emb, memory, params["decoder"], num_heads=num_heads)

    B, St, E = out.shape
    logp = fc_log_softmax(out.reshape(B * St, E), params["fc_w"], params["fc_b"],
                          block_rows=St)
    return logp.reshape(B, St, -1)


# ------------------------------ parameter init ---------------------------------
# Matmul weights: pre-transposed (in, out), stacked over layers, stored bf16.
# Biases / layernorm params: (L, 1, N) f32 (broadcast-ready, no reshapes in the kernel).

def init_params(key, vocab_size, embed_size, num_heads, hidden_dim, num_layers):
    E, Hd, V, L = embed_size, hidden_dim, vocab_size, num_layers
    keys = iter(jax.random.split(key, 1024))

    def dense(shape, scale=0.02):
        return scale * jax.random.normal(next(keys), shape, dtype=jnp.float32)

    def w_stack(shape):
        return jnp.stack([dense(shape) for _ in range(L)]).astype(jnp.bfloat16)

    def b_stack(n):
        return jnp.stack([dense((1, n)) for _ in range(L)])

    def ones_stack(n):
        return jnp.ones((L, 1, n), jnp.float32)

    def zeros_stack(n):
        return jnp.zeros((L, 1, n), jnp.float32)

    emb = dense((V + 1, E))
    emb = emb.at[V].set(0.0)             # padding_idx = vocab_size

    def attn_block(prefix=""):
        return {
            prefix + "wq": w_stack((E, E)), prefix + "wk": w_stack((E, E)),
            prefix + "wv": w_stack((E, E)),
            prefix + "bq": b_stack(E), prefix + "bk": b_stack(E),
            prefix + "bv": b_stack(E),
            prefix + "wo": w_stack((E, E)), prefix + "bo": b_stack(E),
        }

    def ffn_block():
        return {"w1": w_stack((E, Hd)), "b1": b_stack(Hd),
                "w2": w_stack((Hd, E)), "b2": b_stack(E)}

    enc = {}
    enc.update(attn_block())
    enc.update({"n1g": ones_stack(E), "n1b": zeros_stack(E)})
    enc.update(ffn_block())
    enc.update({"n2g": ones_stack(E), "n2b": zeros_stack(E)})

    dec = {}
    dec.update(attn_block())
    dec.update({"n1g": ones_stack(E), "n1b": zeros_stack(E)})
    dec.update(attn_block("c"))
    dec.update({"n2g": ones_stack(E), "n2b": zeros_stack(E)})
    dec.update(ffn_block())
    dec.update({"n3g": ones_stack(E), "n3b": zeros_stack(E)})

    return {
        "embedding": emb,
        "encoder": enc,
        "decoder": dec,
        "fc_w": dense((E, V)).astype(jnp.bfloat16),
        "fc_b": dense((1, V)),
    }


# ----------------------------------- main ---------------------------------------

if __name__ == "__main__":
    vocab_size, embed_size, num_heads, hidden_dim, num_layers = 16, 32, 4, 64, 2
    B, S_src, S_tgt = 2, 8, 8

    key = jax.random.PRNGKey(0)
    kp, ks, kt = jax.random.split(key, 3)

    params = init_params(kp, vocab_size, embed_size, num_heads, hidden_dim, num_layers)
    # tokens in [0, vocab_size]; index == vocab_size is the padding row
    src = jax.random.randint(ks, (B, S_src), 0, vocab_size + 1, dtype=jnp.int32)
    tgt = jax.random.randint(kt, (B, S_tgt), 0, vocab_size, dtype=jnp.int32)

    fwd = jax.jit(functools.partial(model_forward, num_heads=num_heads))
    out = fwd(params, src, tgt)
    jax.block_until_ready(out)

    assert out.shape == (B, S_tgt, vocab_size)
    assert bool(jnp.all(jnp.isfinite(out)))
    # rows of log_softmax should (approximately) sum to 1 after exp
    row_sums = jnp.exp(out).sum(-1)
    assert bool(jnp.allclose(row_sums, 1.0, atol=1e-3))
    print("KERNEL_OK")
</pallas_src>

<mosaic_0001>
module attributes {stable_mosaic.version = 11 : i64} {
  func.func @_fc_logsoftmax_kernel(%arg0: i32, %arg1: memref<8x32xf32, #tpu.memory_space<vmem>>, %arg2: memref<32x16xbf16, #tpu.memory_space<vmem>>, %arg3: memref<1x16xf32, #tpu.memory_space<vmem>>, %arg4: memref<8x16xf32, #tpu.memory_space<vmem>>) attributes {dimension_semantics = [#tpu.dimension_semantics<parallel>], iteration_bounds = array<i64: 2>, scalar_prefetch = 0 : i64, scratch_operands = 0 : i64, tpu.core_type = #tpu.core_type<tc>, window_params = [{transform_indices = @transform_0, window_bounds = array<i64: 8, 32>}, {pipeline_mode = #tpu.pipeline_mode<synchronous>, transform_indices = @transform_1, window_bounds = array<i64: 32, 16>}, {pipeline_mode = #tpu.pipeline_mode<synchronous>, transform_indices = @transform_2, window_bounds = array<i64: 1, 16>}, {transform_indices = @transform_3, window_bounds = array<i64: 8, 16>}]} {
    %c0 = arith.constant 0 : index
    %c0_0 = arith.constant 0 : index
    %0 = vector.load %arg1[%c0, %c0_0] : memref<8x32xf32, #tpu.memory_space<vmem>>, vector<8x32xf32>
    %1 = arith.truncf %0 : vector<8x32xf32> to vector<8x32xbf16>
    %c0_1 = arith.constant 0 : index
    %c0_2 = arith.constant 0 : index
    %2 = vector.load %arg2[%c0_1, %c0_2] : memref<32x16xbf16, #tpu.memory_space<vmem>>, vector<32x16xbf16>
    %cst = arith.constant dense<0.000000e+00> : vector<8x16xf32>
    %3 = tpu.matmul %1, %2, %cst {dimension_numbers = #tpu.dot_dimension_numbers<[1], [0], [0], [1], [0, 0, 1, 1], [], []>} : vector<8x32xbf16>, vector<32x16xbf16>, vector<8x16xf32> -> vector<8x16xf32>
    %c0_3 = arith.constant 0 : index
    %c0_4 = arith.constant 0 : index
    %4 = vector.load %arg3[%c0_3, %c0_4] : memref<1x16xf32, #tpu.memory_space<vmem>>, vector<1x16xf32>
    %5 = vector.broadcast %4 : vector<1x16xf32> to vector<8x16xf32>
    %6 = arith.addf %3, %5 : vector<8x16xf32>
    %cst_5 = arith.constant dense<0xFF800000> : vector<8xf32>
    %7 = vector.multi_reduction <maximumf>, %6, %cst_5 [1] : vector<8x16xf32> to vector<8xf32>
    %8 = vector.shape_cast %7 : vector<8xf32> to vector<8x1xf32>
    %9 = vector.broadcast %8 : vector<8x1xf32> to vector<8x16xf32>
    %10 = arith.subf %6, %9 : vector<8x16xf32>
    %11 = math.exp %10 : vector<8x16xf32>
    %cst_6 = arith.constant dense<0.000000e+00> : vector<8xf32>
    %12 = vector.multi_reduction <add>, %11, %cst_6 [1] : vector<8x16xf32> to vector<8xf32>
    %13 = vector.shape_cast %12 : vector<8xf32> to vector<8x1xf32>
    %14 = math.log %13 : vector<8x1xf32>
    %15 = vector.broadcast %14 : vector<8x1xf32> to vector<8x16xf32>
    %16 = arith.subf %10, %15 : vector<8x16xf32>
    %c0_7 = arith.constant 0 : index
    %c0_8 = arith.constant 0 : index
    %17 = vector.load %arg4[%c0_7, %c0_8] : memref<8x16xf32, #tpu.memory_space<vmem>>, vector<8x16xf32>
    tpu.vector_store %arg4[%c0_7, %c0_8], %16 {strides = array<i32>} : memref<8x16xf32, #tpu.memory_space<vmem>>, vector<8x16xf32>,
    return
  }
  func.func @transform_0(%arg0: i32) -> (i32, i32) {
    %c0_i32 = arith.constant 0 : i32
    %c0_i32_0 = arith.constant 0 : i32
    return %arg0, %c0_i32 : i32, i32
  }
  func.func @transform_1(%arg0: i32) -> (i32, i32) {
    %c0_i32 = arith.constant 0 : i32
    %c0_i32_0 = arith.constant 0 : i32
    %c0_i32_1 = arith.constant 0 : i32
    return %c0_i32, %c0_i32_0 : i32, i32
  }
  func.func @transform_2(%arg0: i32) -> (i32, i32) {
    %c0_i32 = arith.constant 0 : i32
    %c0_i32_0 = arith.constant 0 : i32
    %c0_i32_1 = arith.constant 0 : i32
    return %c0_i32, %c0_i32_0 : i32, i32
  }
  func.func @transform_3(%arg0: i32) -> (i32, i32) {
    %c0_i32 = arith.constant 0 : i32
    %c0_i32_0 = arith.constant 0 : i32
    return %arg0, %c0_i32 : i32, i32
  }
}

module attributes {stable_mosaic.version = 11 : i64} {
  func.func @_encoder_stack_kernel(%arg0: i32, %arg1: i32, %arg2: memref<1x8x32xf32, #tpu.memory_space<vmem>>, %arg3: memref<1x32x32xbf16, #tpu.memory_space<vmem>>, %arg4: memref<1x32x32xbf16, #tpu.memory_space<vmem>>, %arg5: memref<1x32x32xbf16, #tpu.memory_space<vmem>>, %arg6: memref<1x1x32xf32, #tpu.memory_space<vmem>>, %arg7: memref<1x1x32xf32, #tpu.memory_space<vmem>>, %arg8: memref<1x1x32xf32, #tpu.memory_space<vmem>>, %arg9: memref<1x32x32xbf16, #tpu.memory_space<vmem>>, %arg10: memref<1x1x32xf32, #tpu.memory_space<vmem>>, %arg11: memref<1x1x32xf32, #tpu.memory_space<vmem>>, %arg12: memref<1x1x32xf32, #tpu.memory_space<vmem>>, %arg13: memref<1x32x64xbf16, #tpu.memory_space<vmem>>, %arg14: memref<1x1x64xf32, #tpu.memory_space<vmem>>, %arg15: memref<1x64x32xbf16, #tpu.memory_space<vmem>>, %arg16: memref<1x1x32xf32, #tpu.memory_space<vmem>>, %arg17: memref<1x1x32xf32, #tpu.memory_space<vmem>>, %arg18: memref<1x1x32xf32, #tpu.memory_space<vmem>>, %arg19: memref<1x8x32xf32, #tpu.memory_space<vmem>>, %arg20: memref<8x32xf32, #tpu.memory_space<vmem>>, %arg21: memref<8x32xf32, #tpu.memory_space<vmem>>) attributes {dimension_semantics = [#tpu.dimension_semantics<parallel>, #tpu.dimension_semantics<arbitrary>], iteration_bounds = array<i64: 2, 2>, scalar_prefetch = 0 : i64, scratch_operands = 2 : i64, tpu.core_type = #tpu.core_type<tc>, window_params = [{transform_indices = @transform_0, window_bounds = array<i64: 1, 8, 32>}, {transform_indices = @transform_1, window_bounds = array<i64: 1, 32, 32>}, {transform_indices = @transform_2, window_bounds = array<i64: 1, 32, 32>}, {transform_indices = @transform_3, window_bounds = array<i64: 1, 32, 32>}, {transform_indices = @transform_4, window_bounds = array<i64: 1, 1, 32>}, {transform_indices = @transform_5, window_bounds = array<i64: 1, 1, 32>}, {transform_indices = @transform_6, window_bounds = array<i64: 1, 1, 32>}, {transform_indices = @transform_7, window_bounds = array<i64: 1, 32, 32>}, {transform_indices = @transform_8, window_bounds = array<i64: 1, 1, 32>}, {transform_indices = @transform_9, window_bounds = array<i64: 1, 1, 32>}, {transform_indices = @transform_10, window_bounds = array<i64: 1, 1, 32>}, {transform_indices = @transform_11, window_bounds = array<i64: 1, 32, 64>}, {transform_indices = @transform_12, window_bounds = array<i64: 1, 1, 64>}, {transform_indices = @transform_13, window_bounds = array<i64: 1, 64, 32>}, {transform_indices = @transform_14, window_bounds = array<i64: 1, 1, 32>}, {transform_indices = @transform_15, window_bounds = array<i64: 1, 1, 32>}, {transform_indices = @transform_16, window_bounds = array<i64: 1, 1, 32>}, {transform_indices = @transform_17, window_bounds = array<i64: 1, 8, 32>}]} {
    %c0_i32 = arith.constant 0 : i32
    %0 = arith.cmpi eq, %arg1, %c0_i32 : i32
    %1 = arith.extui %0 : i1 to i32
    %c0_i32_0 = arith.constant 0 : i32
    %2 = arith.cmpi ne, %1, %c0_i32_0 : i32
    scf.if %2 {
      %c0_96 = arith.constant 0 : index
      %c0_97 = arith.constant 0 : index
      %c0_98 = arith.constant 0 : index
      %191 = vector.load %arg2[%c0_96, %c0_97, %c0_98] : memref<1x8x32xf32, #tpu.memory_space<vmem>>, vector<1x8x32xf32>
      %192 = vector.shape_cast %191 : vector<1x8x32xf32> to vector<8x32xf32>
      %c0_99 = arith.constant 0 : index
      %c0_100 = arith.constant 0 : index
      %193 = vector.load %arg20[%c0_99, %c0_100] : memref<8x32xf32, #tpu.memory_space<vmem>>, vector<8x32xf32>
      tpu.vector_store %arg20[%c0_99, %c0_100], %192 {strides = array<i32>} : memref<8x32xf32, #tpu.memory_space<vmem>>, vector<8x32xf32>,
    } else {
    }
    %c0 = arith.constant 0 : index
    %c0_1 = arith.constant 0 : index
    %3 = vector.load %arg20[%c0, %c0_1] : memref<8x32xf32, #tpu.memory_space<vmem>>, vector<8x32xf32>
    %4 = arith.truncf %3 : vector<8x32xf32> to vector<8x32xbf16>
    %c0_2 = arith.constant 0 : index
    %c0_3 = arith.constant 0 : index
    %c0_4 = arith.constant 0 : index
    %5 = vector.load %arg3[%c0_2, %c0_3, %c0_4] : memref<1x32x32xbf16, #tpu.memory_space<vmem>>, vector<1x32x32xbf16>
    %6 = vector.shape_cast %5 : vector<1x32x32xbf16> to vector<32x32xbf16>
    %cst = arith.constant dense<0.000000e+00> : vector<8x32xf32>
    %7 = tpu.matmul %4, %6, %cst {dimension_numbers = #tpu.dot_dimension_numbers<[1], [0], [0], [1], [0, 0, 1, 1], [], []>} : vector<8x32xbf16>, vector<32x32xbf16>, vector<8x32xf32> -> vector<8x32xf32>
    %c0_5 = arith.constant 0 : index
    %c0_6 = arith.constant 0 : index
    %c0_7 = arith.constant 0 : index
    %8 = vector.load %arg6[%c0_5, %c0_6, %c0_7] : memref<1x1x32xf32, #tpu.memory_space<vmem>>, vector<1x1x32xf32>
    %9 = vector.shape_cast %8 : vector<1x1x32xf32> to vector<1x32xf32>
    %10 = vector.broadcast %9 : vector<1x32xf32> to vector<8x32xf32>
    %11 = arith.addf %7, %10 : vector<8x32xf32>
    %c0_8 = arith.constant 0 : index
    %c0_9 = arith.constant 0 : index
    %c0_10 = arith.constant 0 : index
    %12 = vector.load %arg4[%c0_8, %c0_9, %c0_10] : memref<1x32x32xbf16, #tpu.memory_space<vmem>>, vector<1x32x32xbf16>
    %13 = vector.shape_cast %12 : vector<1x32x32xbf16> to vector<32x32xbf16>
    %cst_11 = arith.constant dense<0.000000e+00> : vector<8x32xf32>
    %14 = tpu.matmul %4, %13, %cst_11 {dimension_numbers = #tpu.dot_dimension_numbers<[1], [0], [0], [1], [0, 0, 1, 1], [], []>} : vector<8x32xbf16>, vector<32x32xbf16>, vector<8x32xf32> -> vector<8x32xf32>
    %c0_12 = arith.constant 0 : index
    %c0_13 = arith.constant 0 : index
    %c0_14 = arith.constant 0 : index
    %15 = vector.load %arg7[%c0_12, %c0_13, %c0_14] : memref<1x1x32xf32, #tpu.memory_space<vmem>>, vector<1x1x32xf32>
    %16 = vector.shape_cast %15 : vector<1x1x32xf32> to vector<1x32xf32>
    %17 = vector.broadcast %16 : vector<1x32xf32> to vector<8x32xf32>
    %18 = arith.addf %14, %17 : vector<8x32xf32>
    %c0_15 = arith.constant 0 : index
    %c0_16 = arith.constant 0 : index
    %c0_17 = arith.constant 0 : index
    %19 = vector.load %arg5[%c0_15, %c0_16, %c0_17] : memref<1x32x32xbf16, #tpu.memory_space<vmem>>, vector<1x32x32xbf16>
    %20 = vector.shape_cast %19 : vector<1x32x32xbf16> to vector<32x32xbf16>
    %cst_18 = arith.constant dense<0.000000e+00> : vector<8x32xf32>
    %21 = tpu.matmul %4, %20, %cst_18 {dimension_numbers = #tpu.dot_dimension_numbers<[1], [0], [0], [1], [0, 0, 1, 1], [], []>} : vector<8x32xbf16>, vector<32x32xbf16>, vector<8x32xf32> -> vector<8x32xf32>
    %c0_19 = arith.constant 0 : index
    %c0_20 = arith.constant 0 : index
    %c0_21 = arith.constant 0 : index
    %22 = vector.load %arg8[%c0_19, %c0_20, %c0_21] : memref<1x1x32xf32, #tpu.memory_space<vmem>>, vector<1x1x32xf32>
    %23 = vector.shape_cast %22 : vector<1x1x32xf32> to vector<1x32xf32>
    %24 = vector.broadcast %23 : vector<1x32xf32> to vector<8x32xf32>
    %25 = arith.addf %21, %24 : vector<8x32xf32>
    %26 = vector.extract_strided_slice %11 {offsets = [0, 0], sizes = [8, 8], strides = [1, 1]} : vector<8x32xf32> to vector<8x8xf32>
    %27 = arith.truncf %26 : vector<8x8xf32> to vector<8x8xbf16>
    %28 = vector.extract_strided_slice %18 {offsets = [0, 0], sizes = [8, 8], strides = [1, 1]} : vector<8x32xf32> to vector<8x8xf32>
    %29 = arith.truncf %28 : vector<8x8xf32> to vector<8x8xbf16>
    %30 = vector.extract_strided_slice %25 {offsets = [0, 0], sizes = [8, 8], strides = [1, 1]} : vector<8x32xf32> to vector<8x8xf32>
    %31 = arith.truncf %30 : vector<8x8xf32> to vector<8x8xbf16>
    %cst_22 = arith.constant dense<0.000000e+00> : vector<8x8xf32>
    %32 = tpu.matmul %27, %29, %cst_22 {dimension_numbers = #tpu.dot_dimension_numbers<[1], [1], [0], [0], [0, 0, 1, 0], [], []>} : vector<8x8xbf16>, vector<8x8xbf16>, vector<8x8xf32> -> vector<8x8xf32>
    %cst_23 = arith.constant 0.353553385 : f32
    %33 = vector.broadcast %cst_23 : f32 to vector<8x8xf32>
    %34 = arith.mulf %32, %33 : vector<8x8xf32>
    %cst_24 = arith.constant dense<0xFF800000> : vector<8xf32>
    %35 = vector.multi_reduction <maximumf>, %34, %cst_24 [1] : vector<8x8xf32> to vector<8xf32>
    %36 = vector.shape_cast %35 : vector<8xf32> to vector<8x1xf32>
    %37 = vector.broadcast %36 : vector<8x1xf32> to vector<8x8xf32>
    %38 = arith.subf %34, %37 : vector<8x8xf32>
    %39 = math.exp %38 : vector<8x8xf32>
    %cst_25 = arith.constant dense<0.000000e+00> : vector<8xf32>
    %40 = vector.multi_reduction <add>, %39, %cst_25 [1] : vector<8x8xf32> to vector<8xf32>
    %41 = vector.shape_cast %40 : vector<8xf32> to vector<8x1xf32>
    %42 = vector.broadcast %41 : vector<8x1xf32> to vector<8x8xf32>
    %43 = arith.divf %39, %42 : vector<8x8xf32>
    %44 = arith.truncf %43 : vector<8x8xf32> to vector<8x8xbf16>
    %cst_26 = arith.constant dense<0.000000e+00> : vector<8x8xf32>
    %45 = tpu.matmul %44, %31, %cst_26 {dimension_numbers = #tpu.dot_dimension_numbers<[1], [0], [0], [1], [0, 0, 1, 1], [], []>} : vector<8x8xbf16>, vector<8x8xbf16>, vector<8x8xf32> -> vector<8x8xf32>
    %c0_27 = arith.constant 0 : index
    %c0_28 = arith.constant 0 : index
    %46 = vector.load %arg21[%c0_27, %c0_28] : memref<8x32xf32, #tpu.memory_space<vmem>>, vector<8x8xf32>
    tpu.vector_store %arg21[%c0_27, %c0_28], %45 {strides = array<i32>} : memref<8x32xf32, #tpu.memory_space<vmem>>, vector<8x8xf32>,
    %47 = vector.extract_strided_slice %11 {offsets = [0, 8], sizes = [8, 8], strides = [1, 1]} : vector<8x32xf32> to vector<8x8xf32>
    %48 = arith.truncf %47 : vector<8x8xf32> to vector<8x8xbf16>
    %49 = vector.extract_strided_slice %18 {offsets = [0, 8], sizes = [8, 8], strides = [1, 1]} : vector<8x32xf32> to vector<8x8xf32>
    %50 = arith.truncf %49 : vector<8x8xf32> to vector<8x8xbf16>
    %51 = vector.extract_strided_slice %25 {offsets = [0, 8], sizes = [8, 8], strides = [1, 1]} : vector<8x32xf32> to vector<8x8xf32>
    %52 = arith.truncf %51 : vector<8x8xf32> to vector<8x8xbf16>
    %cst_29 = arith.constant dense<0.000000e+00> : vector<8x8xf32>
    %53 = tpu.matmul %48, %50, %cst_29 {dimension_numbers = #tpu.dot_dimension_numbers<[1], [1], [0], [0], [0, 0, 1, 0], [], []>} : vector<8x8xbf16>, vector<8x8xbf16>, vector<8x8xf32> -> vector<8x8xf32>
    %cst_30 = arith.constant 0.353553385 : f32
    %54 = vector.broadcast %cst_30 : f32 to vector<8x8xf32>
    %55 = arith.mulf %53, %54 : vector<8x8xf32>
    %cst_31 = arith.constant dense<0xFF800000> : vector<8xf32>
    %56 = vector.multi_reduction <maximumf>, %55, %cst_31 [1] : vector<8x8xf32> to vector<8xf32>
    %57 = vector.shape_cast %56 : vector<8xf32> to vector<8x1xf32>
    %58 = vector.broadcast %57 : vector<8x1xf32> to vector<8x8xf32>
    %59 = arith.subf %55, %58 : vector<8x8xf32>
    %60 = math.exp %59 : vector<8x8xf32>
    %cst_32 = arith.constant dense<0.000000e+00> : vector<8xf32>
    %61 = vector.multi_reduction <add>, %60, %cst_32 [1] : vector<8x8xf32> to vector<8xf32>
    %62 = vector.shape_cast %61 : vector<8xf32> to vector<8x1xf32>
    %63 = vector.broadcast %62 : vector<8x1xf32> to vector<8x8xf32>
    %64 = arith.divf %60, %63 : vector<8x8xf32>
    %65 = arith.truncf %64 : vector<8x8xf32> to vector<8x8xbf16>
    %cst_33 = arith.constant dense<0.000000e+00> : vector<8x8xf32>
    %66 = tpu.matmul %65, %52, %cst_33 {dimension_numbers = #tpu.dot_dimension_numbers<[1], [0], [0], [1], [0, 0, 1, 1], [], []>} : vector<8x8xbf16>, vector<8x8xbf16>, vector<8x8xf32> -> vector<8x8xf32>
    %c0_34 = arith.constant 0 : index
    %c8 = arith.constant 8 : index
    %67 = vector.load %arg21[%c0_34, %c8] : memref<8x32xf32, #tpu.memory_space<vmem>>, vector<8x8xf32>
    tpu.vector_store %arg21[%c0_34, %c8], %66 {strides = array<i32>} : memref<8x32xf32, #tpu.memory_space<vmem>>, vector<8x8xf32>,
    %68 = vector.extract_strided_slice %11 {offsets = [0, 16], sizes = [8, 8], strides = [1, 1]} : vector<8x32xf32> to vector<8x8xf32>
    %69 = arith.truncf %68 : vector<8x8xf32> to vector<8x8xbf16>
    %70 = vector.extract_strided_slice %18 {offsets = [0, 16], sizes = [8, 8], strides = [1, 1]} : vector<8x32xf32> to vector<8x8xf32>
    %71 = arith.truncf %70 : vector<8x8xf32> to vector<8x8xbf16>
    %72 = vector.extract_strided_slice %25 {offsets = [0, 16], sizes = [8, 8], strides = [1, 1]} : vector<8x32xf32> to vector<8x8xf32>
    %73 = arith.truncf %72 : vector<8x8xf32> to vector<8x8xbf16>
    %cst_35 = arith.constant dense<0.000000e+00> : vector<8x8xf32>
    %74 = tpu.matmul %69, %71, %cst_35 {dimension_numbers = #tpu.dot_dimension_numbers<[1], [1], [0], [0], [0, 0, 1, 0], [], []>} : vector<8x8xbf16>, vector<8x8xbf16>, vector<8x8xf32> -> vector<8x8xf32>
    %cst_36 = arith.constant 0.353553385 : f32
    %75 = vector.broadcast %cst_36 : f32 to vector<8x8xf32>
    %76 = arith.mulf %74, %75 : vector<8x8xf32>
    %cst_37 = arith.constant dense<0xFF800000> : vector<8xf32>
    %77 = vector.multi_reduction <maximumf>, %76, %cst_37 [1] : vector<8x8xf32> to vector<8xf32>
    %78 = vector.shape_cast %77 : vector<8xf32> to vector<8x1xf32>
    %79 = vector.broadcast %78 : vector<8x1xf32> to vector<8x8xf32>
    %80 = arith.subf %76, %79 : vector<8x8xf32>
    %81 = math.exp %80 : vector<8x8xf32>
    %cst_38 = arith.constant dense<0.000000e+00> : vector<8xf32>
    %82 = vector.multi_reduction <add>, %81, %cst_38 [1] : vector<8x8xf32> to vector<8xf32>
    %83 = vector.shape_cast %82 : vector<8xf32> to vector<8x1xf32>
    %84 = vector.broadcast %83 : vector<8x1xf32> to vector<8x8xf32>
    %85 = arith.divf %81, %84 : vector<8x8xf32>
    %86 = arith.truncf %85 : vector<8x8xf32> to vector<8x8xbf16>
    %cst_39 = arith.constant dense<0.000000e+00> : vector<8x8xf32>
    %87 = tpu.matmul %86, %73, %cst_39 {dimension_numbers = #tpu.dot_dimension_numbers<[1], [0], [0], [1], [0, 0, 1, 1], [], []>} : vector<8x8xbf16>, vector<8x8xbf16>, vector<8x8xf32> -> vector<8x8xf32>
    %c0_40 = arith.constant 0 : index
    %c16 = arith.constant 16 : index
    %88 = vector.load %arg21[%c0_40, %c16] : memref<8x32xf32, #tpu.memory_space<vmem>>, vector<8x8xf32>
    tpu.vector_store %arg21[%c0_40, %c16], %87 {strides = array<i32>} : memref<8x32xf32, #tpu.memory_space<vmem>>, vector<8x8xf32>,
    %89 = vector.extract_strided_slice %11 {offsets = [0, 24], sizes = [8, 8], strides = [1, 1]} : vector<8x32xf32> to vector<8x8xf32>
    %90 = arith.truncf %89 : vector<8x8xf32> to vector<8x8xbf16>
    %91 = vector.extract_strided_slice %18 {offsets = [0, 24], sizes = [8, 8], strides = [1, 1]} : vector<8x32xf32> to vector<8x8xf32>
    %92 = arith.truncf %91 : vector<8x8xf32> to vector<8x8xbf16>
    %93 = vector.extract_strided_slice %25 {offsets = [0, 24], sizes = [8, 8], strides = [1, 1]} : vector<8x32xf32> to vector<8x8xf32>
    %94 = arith.truncf %93 : vector<8x8xf32> to vector<8x8xbf16>
    %cst_41 = arith.constant dense<0.000000e+00> : vector<8x8xf32>
    %95 = tpu.matmul %90, %92, %cst_41 {dimension_numbers = #tpu.dot_dimension_numbers<[1], [1], [0], [0], [0, 0, 1, 0], [], []>} : vector<8x8xbf16>, vector<8x8xbf16>, vector<8x8xf32> -> vector<8x8xf32>
    %cst_42 = arith.constant 0.353553385 : f32
    %96 = vector.broadcast %cst_42 : f32 to vector<8x8xf32>
    %97 = arith.mulf %95, %96 : vector<8x8xf32>
    %cst_43 = arith.constant dense<0xFF800000> : vector<8xf32>
    %98 = vector.multi_reduction <maximumf>, %97, %cst_43 [1] : vector<8x8xf32> to vector<8xf32>
    %99 = vector.shape_cast %98 : vector<8xf32> to vector<8x1xf32>
    %100 = vector.broadcast %99 : vector<8x1xf32> to vector<8x8xf32>
    %101 = arith.subf %97, %100 : vector<8x8xf32>
    %102 = math.exp %101 : vector<8x8xf32>
    %cst_44 = arith.constant dense<0.000000e+00> : vector<8xf32>
    %103 = vector.multi_reduction <add>, %102, %cst_44 [1] : vector<8x8xf32> to vector<8xf32>
    %104 = vector.shape_cast %103 : vector<8xf32> to vector<8x1xf32>
    %105 = vector.broadcast %104 : vector<8x1xf32> to vector<8x8xf32>
    %106 = arith.divf %102, %105 : vector<8x8xf32>
    %107 = arith.truncf %106 : vector<8x8xf32> to vector<8x8xbf16>
    %cst_45 = arith.constant dense<0.000000e+00> : vector<8x8xf32>
    %108 = tpu.matmul %107, %94, %cst_45 {dimension_numbers = #tpu.dot_dimension_numbers<[1], [0], [0], [1], [0, 0, 1, 1], [], []>} : vector<8x8xbf16>, vector<8x8xbf16>, vector<8x8xf32> -> vector<8x8xf32>
    %c0_46 = arith.constant 0 : index
    %c24 = arith.constant 24 : index
    %109 = vector.load %arg21[%c0_46, %c24] : memref<8x32xf32, #tpu.memory_space<vmem>>, vector<8x8xf32>
    tpu.vector_store %arg21[%c0_46, %c24], %108 {strides = array<i32>} : memref<8x32xf32, #tpu.memory_space<vmem>>, vector<8x8xf32>,
    %c0_47 = arith.constant 0 : index
    %c0_48 = arith.constant 0 : index
    %110 = vector.load %arg21[%c0_47, %c0_48] : memref<8x32xf32, #tpu.memory_space<vmem>>, vector<8x32xf32>
    %111 = arith.truncf %110 : vector<8x32xf32> to vector<8x32xbf16>
    %c0_49 = arith.constant 0 : index
    %c0_50 = arith.constant 0 : index
    %c0_51 = arith.constant 0 : index
    %112 = vector.load %arg9[%c0_49, %c0_50, %c0_51] : memref<1x32x32xbf16, #tpu.memory_space<vmem>>, vector<1x32x32xbf16>
    %113 = vector.shape_cast %112 : vector<1x32x32xbf16> to vector<32x32xbf16>
    %cst_52 = arith.constant dense<0.000000e+00> : vector<8x32xf32>
    %114 = tpu.matmul %111, %113, %cst_52 {dimension_numbers = #tpu.dot_dimension_numbers<[1], [0], [0], [1], [0, 0, 1, 1], [], []>} : vector<8x32xbf16>, vector<32x32xbf16>, vector<8x32xf32> -> vector<8x32xf32>
    %c0_53 = arith.constant 0 : index
    %c0_54 = arith.constant 0 : index
    %c0_55 = arith.constant 0 : index
    %115 = vector.load %arg10[%c0_53, %c0_54, %c0_55] : memref<1x1x32xf32, #tpu.memory_space<vmem>>, vector<1x1x32xf32>
    %116 = vector.shape_cast %115 : vector<1x1x32xf32> to vector<1x32xf32>
    %117 = vector.broadcast %116 : vector<1x32xf32> to vector<8x32xf32>
    %118 = arith.addf %114, %117 : vector<8x32xf32>
    %119 = arith.addf %3, %118 : vector<8x32xf32>
    %c0_56 = arith.constant 0 : index
    %c0_57 = arith.constant 0 : index
    %c0_58 = arith.constant 0 : index
    %120 = vector.load %arg11[%c0_56, %c0_57, %c0_58] : memref<1x1x32xf32, #tpu.memory_space<vmem>>, vector<1x1x32xf32>
    %121 = vector.shape_cast %120 : vector<1x1x32xf32> to vector<1x32xf32>
    %c0_59 = arith.constant 0 : index
    %c0_60 = arith.constant 0 : index
    %c0_61 = arith.constant 0 : index
    %122 = vector.load %arg12[%c0_59, %c0_60, %c0_61] : memref<1x1x32xf32, #tpu.memory_space<vmem>>, vector<1x1x32xf32>
    %123 = vector.shape_cast %122 : vector<1x1x32xf32> to vector<1x32xf32>
    %cst_62 = arith.constant dense<0.000000e+00> : vector<8xf32>
    %124 = vector.multi_reduction <add>, %119, %cst_62 [1] : vector<8x32xf32> to vector<8xf32>
    %125 = vector.shape_cast %124 : vector<8xf32> to vector<8x1xf32>
    %cst_63 = arith.constant 3.200000e+01 : f32
    %126 = vector.broadcast %cst_63 : f32 to vector<8x1xf32>
    %127 = arith.divf %125, %126 : vector<8x1xf32>
    %128 = vector.broadcast %127 : vector<8x1xf32> to vector<8x32xf32>
    %129 = arith.subf %119, %128 : vector<8x32xf32>
    %130 = arith.mulf %129, %129 : vector<8x32xf32>
    %cst_64 = arith.constant dense<0.000000e+00> : vector<8xf32>
    %131 = vector.multi_reduction <add>, %130, %cst_64 [1] : vector<8x32xf32> to vector<8xf32>
    %132 = vector.shape_cast %131 : vector<8xf32> to vector<8x1xf32>
    %cst_65 = arith.constant 3.200000e+01 : f32
    %133 = vector.broadcast %cst_65 : f32 to vector<8x1xf32>
    %134 = arith.divf %132, %133 : vector<8x1xf32>
    %cst_66 = arith.constant 9.99999974E-6 : f32
    %135 = vector.broadcast %cst_66 : f32 to vector<8x1xf32>
    %136 = arith.addf %134, %135 : vector<8x1xf32>
    %137 = math.rsqrt %136 : vector<8x1xf32>
    %138 = vector.broadcast %137 : vector<8x1xf32> to vector<8x32xf32>
    %139 = arith.mulf %129, %138 : vector<8x32xf32>
    %140 = vector.broadcast %121 : vector<1x32xf32> to vector<8x32xf32>
    %141 = arith.mulf %139, %140 : vector<8x32xf32>
    %142 = vector.broadcast %123 : vector<1x32xf32> to vector<8x32xf32>
    %143 = arith.addf %141, %142 : vector<8x32xf32>
    %144 = arith.truncf %143 : vector<8x32xf32> to vector<8x32xbf16>
    %c0_67 = arith.constant 0 : index
    %c0_68 = arith.constant 0 : index
    %c0_69 = arith.constant 0 : index
    %145 = vector.load %arg13[%c0_67, %c0_68, %c0_69] : memref<1x32x64xbf16, #tpu.memory_space<vmem>>, vector<1x32x64xbf16>
    %146 = vector.shape_cast %145 : vector<1x32x64xbf16> to vector<32x64xbf16>
    %cst_70 = arith.constant dense<0.000000e+00> : vector<8x64xf32>
    %147 = tpu.matmul %144, %146, %cst_70 {dimension_numbers = #tpu.dot_dimension_numbers<[1], [0], [0], [1], [0, 0, 1, 1], [], []>} : vector<8x32xbf16>, vector<32x64xbf16>, vector<8x64xf32> -> vector<8x64xf32>
    %c0_71 = arith.constant 0 : index
    %c0_72 = arith.constant 0 : index
    %c0_73 = arith.constant 0 : index
    %148 = vector.load %arg14[%c0_71, %c0_72, %c0_73] : memref<1x1x64xf32, #tpu.memory_space<vmem>>, vector<1x1x64xf32>
    %149 = vector.shape_cast %148 : vector<1x1x64xf32> to vector<1x64xf32>
    %150 = vector.broadcast %149 : vector<1x64xf32> to vector<8x64xf32>
    %151 = arith.addf %147, %150 : vector<8x64xf32>
    %cst_74 = arith.constant 0.000000e+00 : f32
    %152 = vector.broadcast %cst_74 : f32 to vector<8x64xf32>
    %153 = arith.maximumf %151, %152 : vector<8x64xf32>
    %154 = arith.truncf %153 : vector<8x64xf32> to vector<8x64xbf16>
    %c0_75 = arith.constant 0 : index
    %c0_76 = arith.constant 0 : index
    %c0_77 = arith.constant 0 : index
    %155 = vector.load %arg15[%c0_75, %c0_76, %c0_77] : memref<1x64x32xbf16, #tpu.memory_space<vmem>>, vector<1x64x32xbf16>
    %156 = vector.shape_cast %155 : vector<1x64x32xbf16> to vector<64x32xbf16>
    %cst_78 = arith.constant dense<0.000000e+00> : vector<8x32xf32>
    %157 = tpu.matmul %154, %156, %cst_78 {dimension_numbers = #tpu.dot_dimension_numbers<[1], [0], [0], [1], [0, 0, 1, 1], [], []>} : vector<8x64xbf16>, vector<64x32xbf16>, vector<8x32xf32> -> vector<8x32xf32>
    %c0_79 = arith.constant 0 : index
    %c0_80 = arith.constant 0 : index
    %c0_81 = arith.constant 0 : index
    %158 = vector.load %arg16[%c0_79, %c0_80, %c0_81] : memref<1x1x32xf32, #tpu.memory_space<vmem>>, vector<1x1x32xf32>
    %159 = vector.shape_cast %158 : vector<1x1x32xf32> to vector<1x32xf32>
    %160 = vector.broadcast %159 : vector<1x32xf32> to vector<8x32xf32>
    %161 = arith.addf %157, %160 : vector<8x32xf32>
    %162 = arith.addf %143, %161 : vector<8x32xf32>
    %c0_82 = arith.constant 0 : index
    %c0_83 = arith.constant 0 : index
    %c0_84 = arith.constant 0 : index
    %163 = vector.load %arg17[%c0_82, %c0_83, %c0_84] : memref<1x1x32xf32, #tpu.memory_space<vmem>>, vector<1x1x32xf32>
    %164 = vector.shape_cast %163 : vector<1x1x32xf32> to vector<1x32xf32>
    %c0_85 = arith.constant 0 : index
    %c0_86 = arith.constant 0 : index
    %c0_87 = arith.constant 0 : index
    %165 = vector.load %arg18[%c0_85, %c0_86, %c0_87] : memref<1x1x32xf32, #tpu.memory_space<vmem>>, vector<1x1x32xf32>
    %166 = vector.shape_cast %165 : vector<1x1x32xf32> to vector<1x32xf32>
    %cst_88 = arith.constant dense<0.000000e+00> : vector<8xf32>
    %167 = vector.multi_reduction <add>, %162, %cst_88 [1] : vector<8x32xf32> to vector<8xf32>
    %168 = vector.shape_cast %167 : vector<8xf32> to vector<8x1xf32>
    %cst_89 = arith.constant 3.200000e+01 : f32
    %169 = vector.broadcast %cst_89 : f32 to vector<8x1xf32>
    %170 = arith.divf %168, %169 : vector<8x1xf32>
    %171 = vector.broadcast %170 : vector<8x1xf32> to vector<8x32xf32>
    %172 = arith.subf %162, %171 : vector<8x32xf32>
    %173 = arith.mulf %172, %172 : vector<8x32xf32>
    %cst_90 = arith.constant dense<0.000000e+00> : vector<8xf32>
    %174 = vector.multi_reduction <add>, %173, %cst_90 [1] : vector<8x32xf32> to vector<8xf32>
    %175 = vector.shape_cast %174 : vector<8xf32> to vector<8x1xf32>
    %cst_91 = arith.constant 3.200000e+01 : f32
    %176 = vector.broadcast %cst_91 : f32 to vector<8x1xf32>
    %177 = arith.divf %175, %176 : vector<8x1xf32>
    %cst_92 = arith.constant 9.99999974E-6 : f32
    %178 = vector.broadcast %cst_92 : f32 to vector<8x1xf32>
    %179 = arith.addf %177, %178 : vector<8x1xf32>
    %180 = math.rsqrt %179 : vector<8x1xf32>
    %181 = vector.broadcast %180 : vector<8x1xf32> to vector<8x32xf32>
    %182 = arith.mulf %172, %181 : vector<8x32xf32>
    %183 = vector.broadcast %164 : vector<1x32xf32> to vector<8x32xf32>
    %184 = arith.mulf %182, %183 : vector<8x32xf32>
    %185 = vector.broadcast %166 : vector<1x32xf32> to vector<8x32xf32>
    %186 = arith.addf %184, %185 : vector<8x32xf32>
    %c0_93 = arith.constant 0 : index
    %c0_94 = arith.constant 0 : index
    %187 = vector.load %arg20[%c0_93, %c0_94] : memref<8x32xf32, #tpu.memory_space<vmem>>, vector<8x32xf32>
    tpu.vector_store %arg20[%c0_93, %c0_94], %186 {strides = array<i32>} : memref<8x32xf32, #tpu.memory_space<vmem>>, vector<8x32xf32>,
    %c1_i32 = arith.constant 1 : i32
    %188 = arith.cmpi eq, %arg1, %c1_i32 : i32
    %189 = arith.extui %188 : i1 to i32
    %c0_i32_95 = arith.constant 0 : i32
    %190 = arith.cmpi ne, %189, %c0_i32_95 : i32
    scf.if %190 {
      %c0_96 = arith.constant 0 : index
      %c0_97 = arith.constant 0 : index
      %c0_98 = arith.constant 0 : index
      %191 = vector.load %arg19[%c0_96, %c0_97, %c0_98] : memref<1x8x32xf32, #tpu.memory_space<vmem>>, vector<1x8x32xf32>
      %192 = vector.shape_cast %191 : vector<1x8x32xf32> to vector<8x32xf32>
      %193 = vector.shape_cast %186 : vector<8x32xf32> to vector<1x8x32xf32>
      tpu.vector_store %arg19[%c0_96, %c0_97, %c0_98], %193 {strides = array<i32>} : memref<1x8x32xf32, #tpu.memory_space<vmem>>, vector<1x8x32xf32>,
    } else {
    }
    return
  }
  func.func @transform_0(%arg0: i32, %arg1: i32) -> (i32, i32, i32) {
    %c0_i32 = arith.constant 0 : i32
    %c0_i32_0 = arith.constant 0 : i32
    %c0_i32_1 = arith.constant 0 : i32
    return %arg0, %c0_i32, %c0_i32_0 : i32, i32, i32
  }
  func.func @transform_1(%arg0: i32, %arg1: i32) -> (i32, i32, i32) {
    %c0_i32 = arith.constant 0 : i32
    %c0_i32_0 = arith.constant 0 : i32
    %c0_i32_1 = arith.constant 0 : i32
    return %arg1, %c0_i32, %c0_i32_0 : i32, i32, i32
  }
  func.func @transform_2(%arg0: i32, %arg1: i32) -> (i32, i32, i32) {
    %c0_i32 = arith.constant 0 : i32
    %c0_i32_0 = arith.constant 0 : i32
    %c0_i32_1 = arith.constant 0 : i32
    return %arg1, %c0_i32, %c0_i32_0 : i32, i32, i32
  }
  func.func @transform_3(%arg0: i32, %arg1: i32) -> (i32, i32, i32) {
    %c0_i32 = arith.constant 0 : i32
    %c0_i32_0 = arith.constant 0 : i32
    %c0_i32_1 = arith.constant 0 : i32
    return %arg1, %c0_i32, %c0_i32_0 : i32, i32, i32
  }
  func.func @transform_4(%arg0: i32, %arg1: i32) -> (i32, i32, i32) {
    %c0_i32 = arith.constant 0 : i32
    %c0_i32_0 = arith.constant 0 : i32
    %c0_i32_1 = arith.constant 0 : i32
    return %arg1, %c0_i32, %c0_i32_0 : i32, i32, i32
  }
  func.func @transform_5(%arg0: i32, %arg1: i32) -> (i32, i32, i32) {
    %c0_i32 = arith.constant 0 : i32
    %c0_i32_0 = arith.constant 0 : i32
    %c0_i32_1 = arith.constant 0 : i32
    return %arg1, %c0_i32, %c0_i32_0 : i32, i32, i32
  }
  func.func @transform_6(%arg0: i32, %arg1: i32) -> (i32, i32, i32) {
    %c0_i32 = arith.constant 0 : i32
    %c0_i32_0 = arith.constant 0 : i32
    %c0_i32_1 = arith.constant 0 : i32
    return %arg1, %c0_i32, %c0_i32_0 : i32, i32, i32
  }
  func.func @transform_7(%arg0: i32, %arg1: i32) -> (i32, i32, i32) {
    %c0_i32 = arith.constant 0 : i32
    %c0_i32_0 = arith.constant 0 : i32
    %c0_i32_1 = arith.constant 0 : i32
    return %arg1, %c0_i32, %c0_i32_0 : i32, i32, i32
  }
  func.func @transform_8(%arg0: i32, %arg1: i32) -> (i32, i32, i32) {
    %c0_i32 = arith.constant 0 : i32
    %c0_i32_0 = arith.constant 0 : i32
    %c0_i32_1 = arith.constant 0 : i32
    return %arg1, %c0_i32, %c0_i32_0 : i32, i32, i32
  }
  func.func @transform_9(%arg0: i32, %arg1: i32) -> (i32, i32, i32) {
    %c0_i32 = arith.constant 0 : i32
    %c0_i32_0 = arith.constant 0 : i32
    %c0_i32_1 = arith.constant 0 : i32
    return %arg1, %c0_i32, %c0_i32_0 : i32, i32, i32
  }
  func.func @transform_10(%arg0: i32, %arg1: i32) -> (i32, i32, i32) {
    %c0_i32 = arith.constant 0 : i32
    %c0_i32_0 = arith.constant 0 : i32
    %c0_i32_1 = arith.constant 0 : i32
    return %arg1, %c0_i32, %c0_i32_0 : i32, i32, i32
  }
  func.func @transform_11(%arg0: i32, %arg1: i32) -> (i32, i32, i32) {
    %c0_i32 = arith.constant 0 : i32
    %c0_i32_0 = arith.constant 0 : i32
    %c0_i32_1 = arith.constant 0 : i32
    return %arg1, %c0_i32, %c0_i32_0 : i32, i32, i32
  }
  func.func @transform_12(%arg0: i32, %arg1: i32) -> (i32, i32, i32) {
    %c0_i32 = arith.constant 0 : i32
    %c0_i32_0 = arith.constant 0 : i32
    %c0_i32_1 = arith.constant 0 : i32
    return %arg1, %c0_i32, %c0_i32_0 : i32, i32, i32
  }
  func.func @transform_13(%arg0: i32, %arg1: i32) -> (i32, i32, i32) {
    %c0_i32 = arith.constant 0 : i32
    %c0_i32_0 = arith.constant 0 : i32
    %c0_i32_1 = arith.constant 0 : i32
    return %arg1, %c0_i32, %c0_i32_0 : i32, i32, i32
  }
  func.func @transform_14(%arg0: i32, %arg1: i32) -> (i32, i32, i32) {
    %c0_i32 = arith.constant 0 : i32
    %c0_i32_0 = arith.constant 0 : i32
    %c0_i32_1 = arith.constant 0 : i32
    return %arg1, %c0_i32, %c0_i32_0 : i32, i32, i32
  }
  func.func @transform_15(%arg0: i32, %arg1: i32) -> (i32, i32, i32) {
    %c0_i32 = arith.constant 0 : i32
    %c0_i32_0 = arith.constant 0 : i32
    %c0_i32_1 = arith.constant 0 : i32
    return %arg1, %c0_i32, %c0_i32_0 : i32, i32, i32
  }
  func.func @transform_16(%arg0: i32, %arg1: i32) -> (i32, i32, i32) {
    %c0_i32 = arith.constant 0 : i32
    %c0_i32_0 = arith.constant 0 : i32
    %c0_i32_1 = arith.constant 0 : i32
    return %arg1, %c0_i32, %c0_i32_0 : i32, i32, i32
  }
  func.func @transform_17(%arg0: i32, %arg1: i32) -> (i32, i32, i32) {
    %c0_i32 = arith.constant 0 : i32
    %c0_i32_0 = arith.constant 0 : i32
    %c0_i32_1 = arith.constant 0 : i32
    return %arg0, %c0_i32, %c0_i32_0 : i32, i32, i32
  }
}

module attributes {stable_mosaic.version = 11 : i64} {
  func.func @_decoder_stack_kernel(%arg0: i32, %arg1: i32, %arg2: memref<1x8x32xf32, #tpu.memory_space<vmem>>, %arg3: memref<1x8x32xf32, #tpu.memory_space<vmem>>, %arg4: memref<1x32x32xbf16, #tpu.memory_space<vmem>>, %arg5: memref<1x32x32xbf16, #tpu.memory_space<vmem>>, %arg6: memref<1x32x32xbf16, #tpu.memory_space<vmem>>, %arg7: memref<1x1x32xf32, #tpu.memory_space<vmem>>, %arg8: memref<1x1x32xf32, #tpu.memory_space<vmem>>, %arg9: memref<1x1x32xf32, #tpu.memory_space<vmem>>, %arg10: memref<1x32x32xbf16, #tpu.memory_space<vmem>>, %arg11: memref<1x1x32xf32, #tpu.memory_space<vmem>>, %arg12: memref<1x1x32xf32, #tpu.memory_space<vmem>>, %arg13: memref<1x1x32xf32, #tpu.memory_space<vmem>>, %arg14: memref<1x32x32xbf16, #tpu.memory_space<vmem>>, %arg15: memref<1x32x32xbf16, #tpu.memory_space<vmem>>, %arg16: memref<1x32x32xbf16, #tpu.memory_space<vmem>>, %arg17: memref<1x1x32xf32, #tpu.memory_space<vmem>>, %arg18: memref<1x1x32xf32, #tpu.memory_space<vmem>>, %arg19: memref<1x1x32xf32, #tpu.memory_space<vmem>>, %arg20: memref<1x32x32xbf16, #tpu.memory_space<vmem>>, %arg21: memref<1x1x32xf32, #tpu.memory_space<vmem>>, %arg22: memref<1x1x32xf32, #tpu.memory_space<vmem>>, %arg23: memref<1x1x32xf32, #tpu.memory_space<vmem>>, %arg24: memref<1x32x64xbf16, #tpu.memory_space<vmem>>, %arg25: memref<1x1x64xf32, #tpu.memory_space<vmem>>, %arg26: memref<1x64x32xbf16, #tpu.memory_space<vmem>>, %arg27: memref<1x1x32xf32, #tpu.memory_space<vmem>>, %arg28: memref<1x1x32xf32, #tpu.memory_space<vmem>>, %arg29: memref<1x1x32xf32, #tpu.memory_space<vmem>>, %arg30: memref<1x8x32xf32, #tpu.memory_space<vmem>>, %arg31: memref<8x32xf32, #tpu.memory_space<vmem>>, %arg32: memref<8x32xf32, #tpu.memory_space<vmem>>) attributes {dimension_semantics = [#tpu.dimension_semantics<parallel>, #tpu.dimension_semantics<arbitrary>], iteration_bounds = array<i64: 2, 2>, scalar_prefetch = 0 : i64, scratch_operands = 2 : i64, tpu.core_type = #tpu.core_type<tc>, window_params = [{transform_indices = @transform_0, window_bounds = array<i64: 1, 8, 32>}, {transform_indices = @transform_1, window_bounds = array<i64: 1, 8, 32>}, {transform_indices = @transform_2, window_bounds = array<i64: 1, 32, 32>}, {transform_indices = @transform_3, window_bounds = array<i64: 1, 32, 32>}, {transform_indices = @transform_4, window_bounds = array<i64: 1, 32, 32>}, {transform_indices = @transform_5, window_bounds = array<i64: 1, 1, 32>}, {transform_indices = @transform_6, window_bounds = array<i64: 1, 1, 32>}, {transform_indices = @transform_7, window_bounds = array<i64: 1, 1, 32>}, {transform_indices = @transform_8, window_bounds = array<i64: 1, 32, 32>}, {transform_indices = @transform_9, window_bounds = array<i64: 1, 1, 32>}, {transform_indices = @transform_10, window_bounds = array<i64: 1, 1, 32>}, {transform_indices = @transform_11, window_bounds = array<i64: 1, 1, 32>}, {transform_indices = @transform_12, window_bounds = array<i64: 1, 32, 32>}, {transform_indices = @transform_13, window_bounds = array<i64: 1, 32, 32>}, {transform_indices = @transform_14, window_bounds = array<i64: 1, 32, 32>}, {transform_indices = @transform_15, window_bounds = array<i64: 1, 1, 32>}, {transform_indices = @transform_16, window_bounds = array<i64: 1, 1, 32>}, {transform_indices = @transform_17, window_bounds = array<i64: 1, 1, 32>}, {transform_indices = @transform_18, window_bounds = array<i64: 1, 32, 32>}, {transform_indices = @transform_19, window_bounds = array<i64: 1, 1, 32>}, {transform_indices = @transform_20, window_bounds = array<i64: 1, 1, 32>}, {transform_indices = @transform_21, window_bounds = array<i64: 1, 1, 32>}, {transform_indices = @transform_22, window_bounds = array<i64: 1, 32, 64>}, {transform_indices = @transform_23, window_bounds = array<i64: 1, 1, 64>}, {transform_indices = @transform_24, window_bounds = array<i64: 1, 64, 32>}, {transform_indices = @transform_25, window_bounds = array<i64: 1, 1, 32>}, {transform_indices = @transform_26, window_bounds = array<i64: 1, 1, 32>}, {transform_indices = @transform_27, window_bounds = array<i64: 1, 1, 32>}, {transform_indices = @transform_28, window_bounds = array<i64: 1, 8, 32>}]} {
    %c0_i32 = arith.constant 0 : i32
    %0 = arith.cmpi eq, %arg1, %c0_i32 : i32
    %1 = arith.extui %0 : i1 to i32
    %c0_i32_0 = arith.constant 0 : i32
    %2 = arith.cmpi ne, %1, %c0_i32_0 : i32
    scf.if %2 {
      %c0_168 = arith.constant 0 : index
      %c0_169 = arith.constant 0 : index
      %c0_170 = arith.constant 0 : index
      %334 = vector.load %arg2[%c0_168, %c0_169, %c0_170] : memref<1x8x32xf32, #tpu.memory_space<vmem>>, vector<1x8x32xf32>
      %335 = vector.shape_cast %334 : vector<1x8x32xf32> to vector<8x32xf32>
      %c0_171 = arith.constant 0 : index
      %c0_172 = arith.constant 0 : index
      %336 = vector.load %arg31[%c0_171, %c0_172] : memref<8x32xf32, #tpu.memory_space<vmem>>, vector<8x32xf32>
      tpu.vector_store %arg31[%c0_171, %c0_172], %335 {strides = array<i32>} : memref<8x32xf32, #tpu.memory_space<vmem>>, vector<8x32xf32>,
    } else {
    }
    %c0 = arith.constant 0 : index
    %c0_1 = arith.constant 0 : index
    %3 = vector.load %arg31[%c0, %c0_1] : memref<8x32xf32, #tpu.memory_space<vmem>>, vector<8x32xf32>
    %4 = arith.truncf %3 : vector<8x32xf32> to vector<8x32xbf16>
    %c0_2 = arith.constant 0 : index
    %c0_3 = arith.constant 0 : index
    %c0_4 = arith.constant 0 : index
    %5 = vector.load %arg4[%c0_2, %c0_3, %c0_4] : memref<1x32x32xbf16, #tpu.memory_space<vmem>>, vector<1x32x32xbf16>
    %6 = vector.shape_cast %5 : vector<1x32x32xbf16> to vector<32x32xbf16>
    %cst = arith.constant dense<0.000000e+00> : vector<8x32xf32>
    %7 = tpu.matmul %4, %6, %cst {dimension_numbers = #tpu.dot_dimension_numbers<[1], [0], [0], [1], [0, 0, 1, 1], [], []>} : vector<8x32xbf16>, vector<32x32xbf16>, vector<8x32xf32> -> vector<8x32xf32>
    %c0_5 = arith.constant 0 : index
    %c0_6 = arith.constant 0 : index
    %c0_7 = arith.constant 0 : index
    %8 = vector.load %arg7[%c0_5, %c0_6, %c0_7] : memref<1x1x32xf32, #tpu.memory_space<vmem>>, vector<1x1x32xf32>
    %9 = vector.shape_cast %8 : vector<1x1x32xf32> to vector<1x32xf32>
    %10 = vector.broadcast %9 : vector<1x32xf32> to vector<8x32xf32>
    %11 = arith.addf %7, %10 : vector<8x32xf32>
    %c0_8 = arith.constant 0 : index
    %c0_9 = arith.constant 0 : index
    %c0_10 = arith.constant 0 : index
    %12 = vector.load %arg5[%c0_8, %c0_9, %c0_10] : memref<1x32x32xbf16, #tpu.memory_space<vmem>>, vector<1x32x32xbf16>
    %13 = vector.shape_cast %12 : vector<1x32x32xbf16> to vector<32x32xbf16>
    %cst_11 = arith.constant dense<0.000000e+00> : vector<8x32xf32>
    %14 = tpu.matmul %4, %13, %cst_11 {dimension_numbers = #tpu.dot_dimension_numbers<[1], [0], [0], [1], [0, 0, 1, 1], [], []>} : vector<8x32xbf16>, vector<32x32xbf16>, vector<8x32xf32> -> vector<8x32xf32>
    %c0_12 = arith.constant 0 : index
    %c0_13 = arith.constant 0 : index
    %c0_14 = arith.constant 0 : index
    %15 = vector.load %arg8[%c0_12, %c0_13, %c0_14] : memref<1x1x32xf32, #tpu.memory_space<vmem>>, vector<1x1x32xf32>
    %16 = vector.shape_cast %15 : vector<1x1x32xf32> to vector<1x32xf32>
    %17 = vector.broadcast %16 : vector<1x32xf32> to vector<8x32xf32>
    %18 = arith.addf %14, %17 : vector<8x32xf32>
    %c0_15 = arith.constant 0 : index
    %c0_16 = arith.constant 0 : index
    %c0_17 = arith.constant 0 : index
    %19 = vector.load %arg6[%c0_15, %c0_16, %c0_17] : memref<1x32x32xbf16, #tpu.memory_space<vmem>>, vector<1x32x32xbf16>
    %20 = vector.shape_cast %19 : vector<1x32x32xbf16> to vector<32x32xbf16>
    %cst_18 = arith.constant dense<0.000000e+00> : vector<8x32xf32>
    %21 = tpu.matmul %4, %20, %cst_18 {dimension_numbers = #tpu.dot_dimension_numbers<[1], [0], [0], [1], [0, 0, 1, 1], [], []>} : vector<8x32xbf16>, vector<32x32xbf16>, vector<8x32xf32> -> vector<8x32xf32>
    %c0_19 = arith.constant 0 : index
    %c0_20 = arith.constant 0 : index
    %c0_21 = arith.constant 0 : index
    %22 = vector.load %arg9[%c0_19, %c0_20, %c0_21] : memref<1x1x32xf32, #tpu.memory_space<vmem>>, vector<1x1x32xf32>
    %23 = vector.shape_cast %22 : vector<1x1x32xf32> to vector<1x32xf32>
    %24 = vector.broadcast %23 : vector<1x32xf32> to vector<8x32xf32>
    %25 = arith.addf %21, %24 : vector<8x32xf32>
    %26 = vector.extract_strided_slice %11 {offsets = [0, 0], sizes = [8, 8], strides = [1, 1]} : vector<8x32xf32> to vector<8x8xf32>
    %27 = arith.truncf %26 : vector<8x8xf32> to vector<8x8xbf16>
    %28 = vector.extract_strided_slice %18 {offsets = [0, 0], sizes = [8, 8], strides = [1, 1]} : vector<8x32xf32> to vector<8x8xf32>
    %29 = arith.truncf %28 : vector<8x8xf32> to vector<8x8xbf16>
    %30 = vector.extract_strided_slice %25 {offsets = [0, 0], sizes = [8, 8], strides = [1, 1]} : vector<8x32xf32> to vector<8x8xf32>
    %31 = arith.truncf %30 : vector<8x8xf32> to vector<8x8xbf16>
    %cst_22 = arith.constant dense<0.000000e+00> : vector<8x8xf32>
    %32 = tpu.matmul %27, %29, %cst_22 {dimension_numbers = #tpu.dot_dimension_numbers<[1], [1], [0], [0], [0, 0, 1, 0], [], []>} : vector<8x8xbf16>, vector<8x8xbf16>, vector<8x8xf32> -> vector<8x8xf32>
    %cst_23 = arith.constant 0.353553385 : f32
    %33 = vector.broadcast %cst_23 : f32 to vector<8x8xf32>
    %34 = arith.mulf %32, %33 : vector<8x8xf32>
    %cst_24 = arith.constant dense<0xFF800000> : vector<8xf32>
    %35 = vector.multi_reduction <maximumf>, %34, %cst_24 [1] : vector<8x8xf32> to vector<8xf32>
    %36 = vector.shape_cast %35 : vector<8xf32> to vector<8x1xf32>
    %37 = vector.broadcast %36 : vector<8x1xf32> to vector<8x8xf32>
    %38 = arith.subf %34, %37 : vector<8x8xf32>
    %39 = math.exp %38 : vector<8x8xf32>
    %cst_25 = arith.constant dense<0.000000e+00> : vector<8xf32>
    %40 = vector.multi_reduction <add>, %39, %cst_25 [1] : vector<8x8xf32> to vector<8xf32>
    %41 = vector.shape_cast %40 : vector<8xf32> to vector<8x1xf32>
    %42 = vector.broadcast %41 : vector<8x1xf32> to vector<8x8xf32>
    %43 = arith.divf %39, %42 : vector<8x8xf32>
    %44 = arith.truncf %43 : vector<8x8xf32> to vector<8x8xbf16>
    %cst_26 = arith.constant dense<0.000000e+00> : vector<8x8xf32>
    %45 = tpu.matmul %44, %31, %cst_26 {dimension_numbers = #tpu.dot_dimension_numbers<[1], [0], [0], [1], [0, 0, 1, 1], [], []>} : vector<8x8xbf16>, vector<8x8xbf16>, vector<8x8xf32> -> vector<8x8xf32>
    %c0_27 = arith.constant 0 : index
    %c0_28 = arith.constant 0 : index
    %46 = vector.load %arg32[%c0_27, %c0_28] : memref<8x32xf32, #tpu.memory_space<vmem>>, vector<8x8xf32>
    tpu.vector_store %arg32[%c0_27, %c0_28], %45 {strides = array<i32>} : memref<8x32xf32, #tpu.memory_space<vmem>>, vector<8x8xf32>,
    %47 = vector.extract_strided_slice %11 {offsets = [0, 8], sizes = [8, 8], strides = [1, 1]} : vector<8x32xf32> to vector<8x8xf32>
    %48 = arith.truncf %47 : vector<8x8xf32> to vector<8x8xbf16>
    %49 = vector.extract_strided_slice %18 {offsets = [0, 8], sizes = [8, 8], strides = [1, 1]} : vector<8x32xf32> to vector<8x8xf32>
    %50 = arith.truncf %49 : vector<8x8xf32> to vector<8x8xbf16>
    %51 = vector.extract_strided_slice %25 {offsets = [0, 8], sizes = [8, 8], strides = [1, 1]} : vector<8x32xf32> to vector<8x8xf32>
    %52 = arith.truncf %51 : vector<8x8xf32> to vector<8x8xbf16>
    %cst_29 = arith.constant dense<0.000000e+00> : vector<8x8xf32>
    %53 = tpu.matmul %48, %50, %cst_29 {dimension_numbers = #tpu.dot_dimension_numbers<[1], [1], [0], [0], [0, 0, 1, 0], [], []>} : vector<8x8xbf16>, vector<8x8xbf16>, vector<8x8xf32> -> vector<8x8xf32>
    %cst_30 = arith.constant 0.353553385 : f32
    %54 = vector.broadcast %cst_30 : f32 to vector<8x8xf32>
    %55 = arith.mulf %53, %54 : vector<8x8xf32>
    %cst_31 = arith.constant dense<0xFF800000> : vector<8xf32>
    %56 = vector.multi_reduction <maximumf>, %55, %cst_31 [1] : vector<8x8xf32> to vector<8xf32>
    %57 = vector.shape_cast %56 : vector<8xf32> to vector<8x1xf32>
    %58 = vector.broadcast %57 : vector<8x1xf32> to vector<8x8xf32>
    %59 = arith.subf %55, %58 : vector<8x8xf32>
    %60 = math.exp %59 : vector<8x8xf32>
    %cst_32 = arith.constant dense<0.000000e+00> : vector<8xf32>
    %61 = vector.multi_reduction <add>, %60, %cst_32 [1] : vector<8x8xf32> to vector<8xf32>
    %62 = vector.shape_cast %61 : vector<8xf32> to vector<8x1xf32>
    %63 = vector.broadcast %62 : vector<8x1xf32> to vector<8x8xf32>
    %64 = arith.divf %60, %63 : vector<8x8xf32>
    %65 = arith.truncf %64 : vector<8x8xf32> to vector<8x8xbf16>
    %cst_33 = arith.constant dense<0.000000e+00> : vector<8x8xf32>
    %66 = tpu.matmul %65, %52, %cst_33 {dimension_numbers = #tpu.dot_dimension_numbers<[1], [0], [0], [1], [0, 0, 1, 1], [], []>} : vector<8x8xbf16>, vector<8x8xbf16>, vector<8x8xf32> -> vector<8x8xf32>
    %c0_34 = arith.constant 0 : index
    %c8 = arith.constant 8 : index
    %67 = vector.load %arg32[%c0_34, %c8] : memref<8x32xf32, #tpu.memory_space<vmem>>, vector<8x8xf32>
    tpu.vector_store %arg32[%c0_34, %c8], %66 {strides = array<i32>} : memref<8x32xf32, #tpu.memory_space<vmem>>, vector<8x8xf32>,
    %68 = vector.extract_strided_slice %11 {offsets = [0, 16], sizes = [8, 8], strides = [1, 1]} : vector<8x32xf32> to vector<8x8xf32>
    %69 = arith.truncf %68 : vector<8x8xf32> to vector<8x8xbf16>
    %70 = vector.extract_strided_slice %18 {offsets = [0, 16], sizes = [8, 8], strides = [1, 1]} : vector<8x32xf32> to vector<8x8xf32>
    %71 = arith.truncf %70 : vector<8x8xf32> to vector<8x8xbf16>
    %72 = vector.extract_strided_slice %25 {offsets = [0, 16], sizes = [8, 8], strides = [1, 1]} : vector<8x32xf32> to vector<8x8xf32>
    %73 = arith.truncf %72 : vector<8x8xf32> to vector<8x8xbf16>
    %cst_35 = arith.constant dense<0.000000e+00> : vector<8x8xf32>
    %74 = tpu.matmul %69, %71, %cst_35 {dimension_numbers = #tpu.dot_dimension_numbers<[1], [1], [0], [0], [0, 0, 1, 0], [], []>} : vector<8x8xbf16>, vector<8x8xbf16>, vector<8x8xf32> -> vector<8x8xf32>
    %cst_36 = arith.constant 0.353553385 : f32
    %75 = vector.broadcast %cst_36 : f32 to vector<8x8xf32>
    %76 = arith.mulf %74, %75 : vector<8x8xf32>
    %cst_37 = arith.constant dense<0xFF800000> : vector<8xf32>
    %77 = vector.multi_reduction <maximumf>, %76, %cst_37 [1] : vector<8x8xf32> to vector<8xf32>
    %78 = vector.shape_cast %77 : vector<8xf32> to vector<8x1xf32>
    %79 = vector.broadcast %78 : vector<8x1xf32> to vector<8x8xf32>
    %80 = arith.subf %76, %79 : vector<8x8xf32>
    %81 = math.exp %80 : vector<8x8xf32>
    %cst_38 = arith.constant dense<0.000000e+00> : vector<8xf32>
    %82 = vector.multi_reduction <add>, %81, %cst_38 [1] : vector<8x8xf32> to vector<8xf32>
    %83 = vector.shape_cast %82 : vector<8xf32> to vector<8x1xf32>
    %84 = vector.broadcast %83 : vector<8x1xf32> to vector<8x8xf32>
    %85 = arith.divf %81, %84 : vector<8x8xf32>
    %86 = arith.truncf %85 : vector<8x8xf32> to vector<8x8xbf16>
    %cst_39 = arith.constant dense<0.000000e+00> : vector<8x8xf32>
    %87 = tpu.matmul %86, %73, %cst_39 {dimension_numbers = #tpu.dot_dimension_numbers<[1], [0], [0], [1], [0, 0, 1, 1], [], []>} : vector<8x8xbf16>, vector<8x8xbf16>, vector<8x8xf32> -> vector<8x8xf32>
    %c0_40 = arith.constant 0 : index
    %c16 = arith.constant 16 : index
    %88 = vector.load %arg32[%c0_40, %c16] : memref<8x32xf32, #tpu.memory_space<vmem>>, vector<8x8xf32>
    tpu.vector_store %arg32[%c0_40, %c16], %87 {strides = array<i32>} : memref<8x32xf32, #tpu.memory_space<vmem>>, vector<8x8xf32>,
    %89 = vector.extract_strided_slice %11 {offsets = [0, 24], sizes = [8, 8], strides = [1, 1]} : vector<8x32xf32> to vector<8x8xf32>
    %90 = arith.truncf %89 : vector<8x8xf32> to vector<8x8xbf16>
    %91 = vector.extract_strided_slice %18 {offsets = [0, 24], sizes = [8, 8], strides = [1, 1]} : vector<8x32xf32> to vector<8x8xf32>
    %92 = arith.truncf %91 : vector<8x8xf32> to vector<8x8xbf16>
    %93 = vector.extract_strided_slice %25 {offsets = [0, 24], sizes = [8, 8], strides = [1, 1]} : vector<8x32xf32> to vector<8x8xf32>
    %94 = arith.truncf %93 : vector<8x8xf32> to vector<8x8xbf16>
    %cst_41 = arith.constant dense<0.000000e+00> : vector<8x8xf32>
    %95 = tpu.matmul %90, %92, %cst_41 {dimension_numbers = #tpu.dot_dimension_numbers<[1], [1], [0], [0], [0, 0, 1, 0], [], []>} : vector<8x8xbf16>, vector<8x8xbf16>, vector<8x8xf32> -> vector<8x8xf32>
    %cst_42 = arith.constant 0.353553385 : f32
    %96 = vector.broadcast %cst_42 : f32 to vector<8x8xf32>
    %97 = arith.mulf %95, %96 : vector<8x8xf32>
    %cst_43 = arith.constant dense<0xFF800000> : vector<8xf32>
    %98 = vector.multi_reduction <maximumf>, %97, %cst_43 [1] : vector<8x8xf32> to vector<8xf32>
    %99 = vector.shape_cast %98 : vector<8xf32> to vector<8x1xf32>
    %100 = vector.broadcast %99 : vector<8x1xf32> to vector<8x8xf32>
    %101 = arith.subf %97, %100 : vector<8x8xf32>
    %102 = math.exp %101 : vector<8x8xf32>
    %cst_44 = arith.constant dense<0.000000e+00> : vector<8xf32>
    %103 = vector.multi_reduction <add>, %102, %cst_44 [1] : vector<8x8xf32> to vector<8xf32>
    %104 = vector.shape_cast %103 : vector<8xf32> to vector<8x1xf32>
    %105 = vector.broadcast %104 : vector<8x1xf32> to vector<8x8xf32>
    %106 = arith.divf %102, %105 : vector<8x8xf32>
    %107 = arith.truncf %106 : vector<8x8xf32> to vector<8x8xbf16>
    %cst_45 = arith.constant dense<0.000000e+00> : vector<8x8xf32>
    %108 = tpu.matmul %107, %94, %cst_45 {dimension_numbers = #tpu.dot_dimension_numbers<[1], [0], [0], [1], [0, 0, 1, 1], [], []>} : vector<8x8xbf16>, vector<8x8xbf16>, vector<8x8xf32> -> vector<8x8xf32>
    %c0_46 = arith.constant 0 : index
    %c24 = arith.constant 24 : index
    %109 = vector.load %arg32[%c0_46, %c24] : memref<8x32xf32, #tpu.memory_space<vmem>>, vector<8x8xf32>
    tpu.vector_store %arg32[%c0_46, %c24], %108 {strides = array<i32>} : memref<8x32xf32, #tpu.memory_space<vmem>>, vector<8x8xf32>,
    %c0_47 = arith.constant 0 : index
    %c0_48 = arith.constant 0 : index
    %110 = vector.load %arg32[%c0_47, %c0_48] : memref<8x32xf32, #tpu.memory_space<vmem>>, vector<8x32xf32>
    %111 = arith.truncf %110 : vector<8x32xf32> to vector<8x32xbf16>
    %c0_49 = arith.constant 0 : index
    %c0_50 = arith.constant 0 : index
    %c0_51 = arith.constant 0 : index
    %112 = vector.load %arg10[%c0_49, %c0_50, %c0_51] : memref<1x32x32xbf16, #tpu.memory_space<vmem>>, vector<1x32x32xbf16>
    %113 = vector.shape_cast %112 : vector<1x32x32xbf16> to vector<32x32xbf16>
    %cst_52 = arith.constant dense<0.000000e+00> : vector<8x32xf32>
    %114 = tpu.matmul %111, %113, %cst_52 {dimension_numbers = #tpu.dot_dimension_numbers<[1], [0], [0], [1], [0, 0, 1, 1], [], []>} : vector<8x32xbf16>, vector<32x32xbf16>, vector<8x32xf32> -> vector<8x32xf32>
    %c0_53 = arith.constant 0 : index
    %c0_54 = arith.constant 0 : index
    %c0_55 = arith.constant 0 : index
    %115 = vector.load %arg11[%c0_53, %c0_54, %c0_55] : memref<1x1x32xf32, #tpu.memory_space<vmem>>, vector<1x1x32xf32>
    %116 = vector.shape_cast %115 : vector<1x1x32xf32> to vector<1x32xf32>
    %117 = vector.broadcast %116 : vector<1x32xf32> to vector<8x32xf32>
    %118 = arith.addf %114, %117 : vector<8x32xf32>
    %119 = arith.addf %3, %118 : vector<8x32xf32>
    %c0_56 = arith.constant 0 : index
    %c0_57 = arith.constant 0 : index
    %c0_58 = arith.constant 0 : index
    %120 = vector.load %arg12[%c0_56, %c0_57, %c0_58] : memref<1x1x32xf32, #tpu.memory_space<vmem>>, vector<1x1x32xf32>
    %121 = vector.shape_cast %120 : vector<1x1x32xf32> to vector<1x32xf32>
    %c0_59 = arith.constant 0 : index
    %c0_60 = arith.constant 0 : index
    %c0_61 = arith.constant 0 : index
    %122 = vector.load %arg13[%c0_59, %c0_60, %c0_61] : memref<1x1x32xf32, #tpu.memory_space<vmem>>, vector<1x1x32xf32>
    %123 = vector.shape_cast %122 : vector<1x1x32xf32> to vector<1x32xf32>
    %cst_62 = arith.constant dense<0.000000e+00> : vector<8xf32>
    %124 = vector.multi_reduction <add>, %119, %cst_62 [1] : vector<8x32xf32> to vector<8xf32>
    %125 = vector.shape_cast %124 : vector<8xf32> to vector<8x1xf32>
    %cst_63 = arith.constant 3.200000e+01 : f32
    %126 = vector.broadcast %cst_63 : f32 to vector<8x1xf32>
    %127 = arith.divf %125, %126 : vector<8x1xf32>
    %128 = vector.broadcast %127 : vector<8x1xf32> to vector<8x32xf32>
    %129 = arith.subf %119, %128 : vector<8x32xf32>
    %130 = arith.mulf %129, %129 : vector<8x32xf32>
    %cst_64 = arith.constant dense<0.000000e+00> : vector<8xf32>
    %131 = vector.multi_reduction <add>, %130, %cst_64 [1] : vector<8x32xf32> to vector<8xf32>
    %132 = vector.shape_cast %131 : vector<8xf32> to vector<8x1xf32>
    %cst_65 = arith.constant 3.200000e+01 : f32
    %133 = vector.broadcast %cst_65 : f32 to vector<8x1xf32>
    %134 = arith.divf %132, %133 : vector<8x1xf32>
    %cst_66 = arith.constant 9.99999974E-6 : f32
    %135 = vector.broadcast %cst_66 : f32 to vector<8x1xf32>
    %136 = arith.addf %134, %135 : vector<8x1xf32>
    %137 = math.rsqrt %136 : vector<8x1xf32>
    %138 = vector.broadcast %137 : vector<8x1xf32> to vector<8x32xf32>
    %139 = arith.mulf %129, %138 : vector<8x32xf32>
    %140 = vector.broadcast %121 : vector<1x32xf32> to vector<8x32xf32>
    %141 = arith.mulf %139, %140 : vector<8x32xf32>
    %142 = vector.broadcast %123 : vector<1x32xf32> to vector<8x32xf32>
    %143 = arith.addf %141, %142 : vector<8x32xf32>
    %c0_67 = arith.constant 0 : index
    %c0_68 = arith.constant 0 : index
    %c0_69 = arith.constant 0 : index
    %144 = vector.load %arg3[%c0_67, %c0_68, %c0_69] : memref<1x8x32xf32, #tpu.memory_space<vmem>>, vector<1x8x32xf32>
    %145 = vector.shape_cast %144 : vector<1x8x32xf32> to vector<8x32xf32>
    %146 = arith.truncf %145 : vector<8x32xf32> to vector<8x32xbf16>
    %147 = arith.truncf %143 : vector<8x32xf32> to vector<8x32xbf16>
    %c0_70 = arith.constant 0 : index
    %c0_71 = arith.constant 0 : index
    %c0_72 = arith.constant 0 : index
    %148 = vector.load %arg14[%c0_70, %c0_71, %c0_72] : memref<1x32x32xbf16, #tpu.memory_space<vmem>>, vector<1x32x32xbf16>
    %149 = vector.shape_cast %148 : vector<1x32x32xbf16> to vector<32x32xbf16>
    %cst_73 = arith.constant dense<0.000000e+00> : vector<8x32xf32>
    %150 = tpu.matmul %147, %149, %cst_73 {dimension_numbers = #tpu.dot_dimension_numbers<[1], [0], [0], [1], [0, 0, 1, 1], [], []>} : vector<8x32xbf16>, vector<32x32xbf16>, vector<8x32xf32> -> vector<8x32xf32>
    %c0_74 = arith.constant 0 : index
    %c0_75 = arith.constant 0 : index
    %c0_76 = arith.constant 0 : index
    %151 = vector.load %arg17[%c0_74, %c0_75, %c0_76] : memref<1x1x32xf32, #tpu.memory_space<vmem>>, vector<1x1x32xf32>
    %152 = vector.shape_cast %151 : vector<1x1x32xf32> to vector<1x32xf32>
    %153 = vector.broadcast %152 : vector<1x32xf32> to vector<8x32xf32>
    %154 = arith.addf %150, %153 : vector<8x32xf32>
    %c0_77 = arith.constant 0 : index
    %c0_78 = arith.constant 0 : index
    %c0_79 = arith.constant 0 : index
    %155 = vector.load %arg15[%c0_77, %c0_78, %c0_79] : memref<1x32x32xbf16, #tpu.memory_space<vmem>>, vector<1x32x32xbf16>
    %156 = vector.shape_cast %155 : vector<1x32x32xbf16> to vector<32x32xbf16>
    %cst_80 = arith.constant dense<0.000000e+00> : vector<8x32xf32>
    %157 = tpu.matmul %146, %156, %cst_80 {dimension_numbers = #tpu.dot_dimension_numbers<[1], [0], [0], [1], [0, 0, 1, 1], [], []>} : vector<8x32xbf16>, vector<32x32xbf16>, vector<8x32xf32> -> vector<8x32xf32>
    %c0_81 = arith.constant 0 : index
    %c0_82 = arith.constant 0 : index
    %c0_83 = arith.constant 0 : index
    %158 = vector.load %arg18[%c0_81, %c0_82, %c0_83] : memref<1x1x32xf32, #tpu.memory_space<vmem>>, vector<1x1x32xf32>
    %159 = vector.shape_cast %158 : vector<1x1x32xf32> to vector<1x32xf32>
    %160 = vector.broadcast %159 : vector<1x32xf32> to vector<8x32xf32>
    %161 = arith.addf %157, %160 : vector<8x32xf32>
    %c0_84 = arith.constant 0 : index
    %c0_85 = arith.constant 0 : index
    %c0_86 = arith.constant 0 : index
    %162 = vector.load %arg16[%c0_84, %c0_85, %c0_86] : memref<1x32x32xbf16, #tpu.memory_space<vmem>>, vector<1x32x32xbf16>
    %163 = vector.shape_cast %162 : vector<1x32x32xbf16> to vector<32x32xbf16>
    %cst_87 = arith.constant dense<0.000000e+00> : vector<8x32xf32>
    %164 = tpu.matmul %146, %163, %cst_87 {dimension_numbers = #tpu.dot_dimension_numbers<[1], [0], [0], [1], [0, 0, 1, 1], [], []>} : vector<8x32xbf16>, vector<32x32xbf16>, vector<8x32xf32> -> vector<8x32xf32>
    %c0_88 = arith.constant 0 : index
    %c0_89 = arith.constant 0 : index
    %c0_90 = arith.constant 0 : index
    %165 = vector.load %arg19[%c0_88, %c0_89, %c0_90] : memref<1x1x32xf32, #tpu.memory_space<vmem>>, vector<1x1x32xf32>
    %166 = vector.shape_cast %165 : vector<1x1x32xf32> to vector<1x32xf32>
    %167 = vector.broadcast %166 : vector<1x32xf32> to vector<8x32xf32>
    %168 = arith.addf %164, %167 : vector<8x32xf32>
    %169 = vector.extract_strided_slice %154 {offsets = [0, 0], sizes = [8, 8], strides = [1, 1]} : vector<8x32xf32> to vector<8x8xf32>
    %170 = arith.truncf %169 : vector<8x8xf32> to vector<8x8xbf16>
    %171 = vector.extract_strided_slice %161 {offsets = [0, 0], sizes = [8, 8], strides = [1, 1]} : vector<8x32xf32> to vector<8x8xf32>
    %172 = arith.truncf %171 : vector<8x8xf32> to vector<8x8xbf16>
    %173 = vector.extract_strided_slice %168 {offsets = [0, 0], sizes = [8, 8], strides = [1, 1]} : vector<8x32xf32> to vector<8x8xf32>
    %174 = arith.truncf %173 : vector<8x8xf32> to vector<8x8xbf16>
    %cst_91 = arith.constant dense<0.000000e+00> : vector<8x8xf32>
    %175 = tpu.matmul %170, %172, %cst_91 {dimension_numbers = #tpu.dot_dimension_numbers<[1], [1], [0], [0], [0, 0, 1, 0], [], []>} : vector<8x8xbf16>, vector<8x8xbf16>, vector<8x8xf32> -> vector<8x8xf32>
    %cst_92 = arith.constant 0.353553385 : f32
    %176 = vector.broadcast %cst_92 : f32 to vector<8x8xf32>
    %177 = arith.mulf %175, %176 : vector<8x8xf32>
    %cst_93 = arith.constant dense<0xFF800000> : vector<8xf32>
    %178 = vector.multi_reduction <maximumf>, %177, %cst_93 [1] : vector<8x8xf32> to vector<8xf32>
    %179 = vector.shape_cast %178 : vector<8xf32> to vector<8x1xf32>
    %180 = vector.broadcast %179 : vector<8x1xf32> to vector<8x8xf32>
    %181 = arith.subf %177, %180 : vector<8x8xf32>
    %182 = math.exp %181 : vector<8x8xf32>
    %cst_94 = arith.constant dense<0.000000e+00> : vector<8xf32>
    %183 = vector.multi_reduction <add>, %182, %cst_94 [1] : vector<8x8xf32> to vector<8xf32>
    %184 = vector.shape_cast %183 : vector<8xf32> to vector<8x1xf32>
    %185 = vector.broadcast %184 : vector<8x1xf32> to vector<8x8xf32>
    %186 = arith.divf %182, %185 : vector<8x8xf32>
    %187 = arith.truncf %186 : vector<8x8xf32> to vector<8x8xbf16>
    %cst_95 = arith.constant dense<0.000000e+00> : vector<8x8xf32>
    %188 = tpu.matmul %187, %174, %cst_95 {dimension_numbers = #tpu.dot_dimension_numbers<[1], [0], [0], [1], [0, 0, 1, 1], [], []>} : vector<8x8xbf16>, vector<8x8xbf16>, vector<8x8xf32> -> vector<8x8xf32>
    %c0_96 = arith.constant 0 : index
    %c0_97 = arith.constant 0 : index
    %189 = vector.load %arg32[%c0_96, %c0_97] : memref<8x32xf32, #tpu.memory_space<vmem>>, vector<8x8xf32>
    tpu.vector_store %arg32[%c0_96, %c0_97], %188 {strides = array<i32>} : memref<8x32xf32, #tpu.memory_space<vmem>>, vector<8x8xf32>,
    %190 = vector.extract_strided_slice %154 {offsets = [0, 8], sizes = [8, 8], strides = [1, 1]} : vector<8x32xf32> to vector<8x8xf32>
    %191 = arith.truncf %190 : vector<8x8xf32> to vector<8x8xbf16>
    %192 = vector.extract_strided_slice %161 {offsets = [0, 8], sizes = [8, 8], strides = [1, 1]} : vector<8x32xf32> to vector<8x8xf32>
    %193 = arith.truncf %192 : vector<8x8xf32> to vector<8x8xbf16>
    %194 = vector.extract_strided_slice %168 {offsets = [0, 8], sizes = [8, 8], strides = [1, 1]} : vector<8x32xf32> to vector<8x8xf32>
    %195 = arith.truncf %194 : vector<8x8xf32> to vector<8x8xbf16>
    %cst_98 = arith.constant dense<0.000000e+00> : vector<8x8xf32>
    %196 = tpu.matmul %191, %193, %cst_98 {dimension_numbers = #tpu.dot_dimension_numbers<[1], [1], [0], [0], [0, 0, 1, 0], [], []>} : vector<8x8xbf16>, vector<8x8xbf16>, vector<8x8xf32> -> vector<8x8xf32>
    %cst_99 = arith.constant 0.353553385 : f32
    %197 = vector.broadcast %cst_99 : f32 to vector<8x8xf32>
    %198 = arith.mulf %196, %197 : vector<8x8xf32>
    %cst_100 = arith.constant dense<0xFF800000> : vector<8xf32>
    %199 = vector.multi_reduction <maximumf>, %198, %cst_100 [1] : vector<8x8xf32> to vector<8xf32>
    %200 = vector.shape_cast %199 : vector<8xf32> to vector<8x1xf32>
    %201 = vector.broadcast %200 : vector<8x1xf32> to vector<8x8xf32>
    %202 = arith.subf %198, %201 : vector<8x8xf32>
    %203 = math.exp %202 : vector<8x8xf32>
    %cst_101 = arith.constant dense<0.000000e+00> : vector<8xf32>
    %204 = vector.multi_reduction <add>, %203, %cst_101 [1] : vector<8x8xf32> to vector<8xf32>
    %205 = vector.shape_cast %204 : vector<8xf32> to vector<8x1xf32>
    %206 = vector.broadcast %205 : vector<8x1xf32> to vector<8x8xf32>
    %207 = arith.divf %203, %206 : vector<8x8xf32>
    %208 = arith.truncf %207 : vector<8x8xf32> to vector<8x8xbf16>
    %cst_102 = arith.constant dense<0.000000e+00> : vector<8x8xf32>
    %209 = tpu.matmul %208, %195, %cst_102 {dimension_numbers = #tpu.dot_dimension_numbers<[1], [0], [0], [1], [0, 0, 1, 1], [], []>} : vector<8x8xbf16>, vector<8x8xbf16>, vector<8x8xf32> -> vector<8x8xf32>
    %c0_103 = arith.constant 0 : index
    %c8_104 = arith.constant 8 : index
    %210 = vector.load %arg32[%c0_103, %c8_104] : memref<8x32xf32, #tpu.memory_space<vmem>>, vector<8x8xf32>
    tpu.vector_store %arg32[%c0_103, %c8_104], %209 {strides = array<i32>} : memref<8x32xf32, #tpu.memory_space<vmem>>, vector<8x8xf32>,
    %211 = vector.extract_strided_slice %154 {offsets = [0, 16], sizes = [8, 8], strides = [1, 1]} : vector<8x32xf32> to vector<8x8xf32>
    %212 = arith.truncf %211 : vector<8x8xf32> to vector<8x8xbf16>
    %213 = vector.extract_strided_slice %161 {offsets = [0, 16], sizes = [8, 8], strides = [1, 1]} : vector<8x32xf32> to vector<8x8xf32>
    %214 = arith.truncf %213 : vector<8x8xf32> to vector<8x8xbf16>
    %215 = vector.extract_strided_slice %168 {offsets = [0, 16], sizes = [8, 8], strides = [1, 1]} : vector<8x32xf32> to vector<8x8xf32>
    %216 = arith.truncf %215 : vector<8x8xf32> to vector<8x8xbf16>
    %cst_105 = arith.constant dense<0.000000e+00> : vector<8x8xf32>
    %217 = tpu.matmul %212, %214, %cst_105 {dimension_numbers = #tpu.dot_dimension_numbers<[1], [1], [0], [0], [0, 0, 1, 0], [], []>} : vector<8x8xbf16>, vector<8x8xbf16>, vector<8x8xf32> -> vector<8x8xf32>
    %cst_106 = arith.constant 0.353553385 : f32
    %218 = vector.broadcast %cst_106 : f32 to vector<8x8xf32>
    %219 = arith.mulf %217, %218 : vector<8x8xf32>
    %cst_107 = arith.constant dense<0xFF800000> : vector<8xf32>
    %220 = vector.multi_reduction <maximumf>, %219, %cst_107 [1] : vector<8x8xf32> to vector<8xf32>
    %221 = vector.shape_cast %220 : vector<8xf32> to vector<8x1xf32>
    %222 = vector.broadcast %221 : vector<8x1xf32> to vector<8x8xf32>
    %223 = arith.subf %219, %222 : vector<8x8xf32>
    %224 = math.exp %223 : vector<8x8xf32>
    %cst_108 = arith.constant dense<0.000000e+00> : vector<8xf32>
    %225 = vector.multi_reduction <add>, %224, %cst_108 [1] : vector<8x8xf32> to vector<8xf32>
    %226 = vector.shape_cast %225 : vector<8xf32> to vector<8x1xf32>
    %227 = vector.broadcast %226 : vector<8x1xf32> to vector<8x8xf32>
    %228 = arith.divf %224, %227 : vector<8x8xf32>
    %229 = arith.truncf %228 : vector<8x8xf32> to vector<8x8xbf16>
    %cst_109 = arith.constant dense<0.000000e+00> : vector<8x8xf32>
    %230 = tpu.matmul %229, %216, %cst_109 {dimension_numbers = #tpu.dot_dimension_numbers<[1], [0], [0], [1], [0, 0, 1, 1], [], []>} : vector<8x8xbf16>, vector<8x8xbf16>, vector<8x8xf32> -> vector<8x8xf32>
    %c0_110 = arith.constant 0 : index
    %c16_111 = arith.constant 16 : index
    %231 = vector.load %arg32[%c0_110, %c16_111] : memref<8x32xf32, #tpu.memory_space<vmem>>, vector<8x8xf32>
    tpu.vector_store %arg32[%c0_110, %c16_111], %230 {strides = array<i32>} : memref<8x32xf32, #tpu.memory_space<vmem>>, vector<8x8xf32>,
    %232 = vector.extract_strided_slice %154 {offsets = [0, 24], sizes = [8, 8], strides = [1, 1]} : vector<8x32xf32> to vector<8x8xf32>
    %233 = arith.truncf %232 : vector<8x8xf32> to vector<8x8xbf16>
    %234 = vector.extract_strided_slice %161 {offsets = [0, 24], sizes = [8, 8], strides = [1, 1]} : vector<8x32xf32> to vector<8x8xf32>
    %235 = arith.truncf %234 : vector<8x8xf32> to vector<8x8xbf16>
    %236 = vector.extract_strided_slice %168 {offsets = [0, 24], sizes = [8, 8], strides = [1, 1]} : vector<8x32xf32> to vector<8x8xf32>
    %237 = arith.truncf %236 : vector<8x8xf32> to vector<8x8xbf16>
    %cst_112 = arith.constant dense<0.000000e+00> : vector<8x8xf32>
    %238 = tpu.matmul %233, %235, %cst_112 {dimension_numbers = #tpu.dot_dimension_numbers<[1], [1], [0], [0], [0, 0, 1, 0], [], []>} : vector<8x8xbf16>, vector<8x8xbf16>, vector<8x8xf32> -> vector<8x8xf32>
    %cst_113 = arith.constant 0.353553385 : f32
    %239 = vector.broadcast %cst_113 : f32 to vector<8x8xf32>
    %240 = arith.mulf %238, %239 : vector<8x8xf32>
    %cst_114 = arith.constant dense<0xFF800000> : vector<8xf32>
    %241 = vector.multi_reduction <maximumf>, %240, %cst_114 [1] : vector<8x8xf32> to vector<8xf32>
    %242 = vector.shape_cast %241 : vector<8xf32> to vector<8x1xf32>
    %243 = vector.broadcast %242 : vector<8x1xf32> to vector<8x8xf32>
    %244 = arith.subf %240, %243 : vector<8x8xf32>
    %245 = math.exp %244 : vector<8x8xf32>
    %cst_115 = arith.constant dense<0.000000e+00> : vector<8xf32>
    %246 = vector.multi_reduction <add>, %245, %cst_115 [1] : vector<8x8xf32> to vector<8xf32>
    %247 = vector.shape_cast %246 : vector<8xf32> to vector<8x1xf32>
    %248 = vector.broadcast %247 : vector<8x1xf32> to vector<8x8xf32>
    %249 = arith.divf %245, %248 : vector<8x8xf32>
    %250 = arith.truncf %249 : vector<8x8xf32> to vector<8x8xbf16>
    %cst_116 = arith.constant dense<0.000000e+00> : vector<8x8xf32>
    %251 = tpu.matmul %250, %237, %cst_116 {dimension_numbers = #tpu.dot_dimension_numbers<[1], [0], [0], [1], [0, 0, 1, 1], [], []>} : vector<8x8xbf16>, vector<8x8xbf16>, vector<8x8xf32> -> vector<8x8xf32>
    %c0_117 = arith.constant 0 : index
    %c24_118 = arith.constant 24 : index
    %252 = vector.load %arg32[%c0_117, %c24_118] : memref<8x32xf32, #tpu.memory_space<vmem>>, vector<8x8xf32>
    tpu.vector_store %arg32[%c0_117, %c24_118], %251 {strides = array<i32>} : memref<8x32xf32, #tpu.memory_space<vmem>>, vector<8x8xf32>,
    %c0_119 = arith.constant 0 : index
    %c0_120 = arith.constant 0 : index
    %253 = vector.load %arg32[%c0_119, %c0_120] : memref<8x32xf32, #tpu.memory_space<vmem>>, vector<8x32xf32>
    %254 = arith.truncf %253 : vector<8x32xf32> to vector<8x32xbf16>
    %c0_121 = arith.constant 0 : index
    %c0_122 = arith.constant 0 : index
    %c0_123 = arith.constant 0 : index
    %255 = vector.load %arg20[%c0_121, %c0_122, %c0_123] : memref<1x32x32xbf16, #tpu.memory_space<vmem>>, vector<1x32x32xbf16>
    %256 = vector.shape_cast %255 : vector<1x32x32xbf16> to vector<32x32xbf16>
    %cst_124 = arith.constant dense<0.000000e+00> : vector<8x32xf32>
    %257 = tpu.matmul %254, %256, %cst_124 {dimension_numbers = #tpu.dot_dimension_numbers<[1], [0], [0], [1], [0, 0, 1, 1], [], []>} : vector<8x32xbf16>, vector<32x32xbf16>, vector<8x32xf32> -> vector<8x32xf32>
    %c0_125 = arith.constant 0 : index
    %c0_126 = arith.constant 0 : index
    %c0_127 = arith.constant 0 : index
    %258 = vector.load %arg21[%c0_125, %c0_126, %c0_127] : memref<1x1x32xf32, #tpu.memory_space<vmem>>, vector<1x1x32xf32>
    %259 = vector.shape_cast %258 : vector<1x1x32xf32> to vector<1x32xf32>
    %260 = vector.broadcast %259 : vector<1x32xf32> to vector<8x32xf32>
    %261 = arith.addf %257, %260 : vector<8x32xf32>
    %262 = arith.addf %143, %261 : vector<8x32xf32>
    %c0_128 = arith.constant 0 : index
    %c0_129 = arith.constant 0 : index
    %c0_130 = arith.constant 0 : index
    %263 = vector.load %arg22[%c0_128, %c0_129, %c0_130] : memref<1x1x32xf32, #tpu.memory_space<vmem>>, vector<1x1x32xf32>
    %264 = vector.shape_cast %263 : vector<1x1x32xf32> to vector<1x32xf32>
    %c0_131 = arith.constant 0 : index
    %c0_132 = arith.constant 0 : index
    %c0_133 = arith.constant 0 : index
    %265 = vector.load %arg23[%c0_131, %c0_132, %c0_133] : memref<1x1x32xf32, #tpu.memory_space<vmem>>, vector<1x1x32xf32>
    %266 = vector.shape_cast %265 : vector<1x1x32xf32> to vector<1x32xf32>
    %cst_134 = arith.constant dense<0.000000e+00> : vector<8xf32>
    %267 = vector.multi_reduction <add>, %262, %cst_134 [1] : vector<8x32xf32> to vector<8xf32>
    %268 = vector.shape_cast %267 : vector<8xf32> to vector<8x1xf32>
    %cst_135 = arith.constant 3.200000e+01 : f32
    %269 = vector.broadcast %cst_135 : f32 to vector<8x1xf32>
    %270 = arith.divf %268, %269 : vector<8x1xf32>
    %271 = vector.broadcast %270 : vector<8x1xf32> to vector<8x32xf32>
    %272 = arith.subf %262, %271 : vector<8x32xf32>
    %273 = arith.mulf %272, %272 : vector<8x32xf32>
    %cst_136 = arith.constant dense<0.000000e+00> : vector<8xf32>
    %274 = vector.multi_reduction <add>, %273, %cst_136 [1] : vector<8x32xf32> to vector<8xf32>
    %275 = vector.shape_cast %274 : vector<8xf32> to vector<8x1xf32>
    %cst_137 = arith.constant 3.200000e+01 : f32
    %276 = vector.broadcast %cst_137 : f32 to vector<8x1xf32>
    %277 = arith.divf %275, %276 : vector<8x1xf32>
    %cst_138 = arith.constant 9.99999974E-6 : f32
    %278 = vector.broadcast %cst_138 : f32 to vector<8x1xf32>
    %279 = arith.addf %277, %278 : vector<8x1xf32>
    %280 = math.rsqrt %279 : vector<8x1xf32>
    %281 = vector.broadcast %280 : vector<8x1xf32> to vector<8x32xf32>
    %282 = arith.mulf %272, %281 : vector<8x32xf32>
    %283 = vector.broadcast %264 : vector<1x32xf32> to vector<8x32xf32>
    %284 = arith.mulf %282, %283 : vector<8x32xf32>
    %285 = vector.broadcast %266 : vector<1x32xf32> to vector<8x32xf32>
    %286 = arith.addf %284, %285 : vector<8x32xf32>
    %287 = arith.truncf %286 : vector<8x32xf32> to vector<8x32xbf16>
    %c0_139 = arith.constant 0 : index
    %c0_140 = arith.constant 0 : index
    %c0_141 = arith.constant 0 : index
    %288 = vector.load %arg24[%c0_139, %c0_140, %c0_141] : memref<1x32x64xbf16, #tpu.memory_space<vmem>>, vector<1x32x64xbf16>
    %289 = vector.shape_cast %288 : vector<1x32x64xbf16> to vector<32x64xbf16>
    %cst_142 = arith.constant dense<0.000000e+00> : vector<8x64xf32>
    %290 = tpu.matmul %287, %289, %cst_142 {dimension_numbers = #tpu.dot_dimension_numbers<[1], [0], [0], [1], [0, 0, 1, 1], [], []>} : vector<8x32xbf16>, vector<32x64xbf16>, vector<8x64xf32> -> vector<8x64xf32>
    %c0_143 = arith.constant 0 : index
    %c0_144 = arith.constant 0 : index
    %c0_145 = arith.constant 0 : index
    %291 = vector.load %arg25[%c0_143, %c0_144, %c0_145] : memref<1x1x64xf32, #tpu.memory_space<vmem>>, vector<1x1x64xf32>
    %292 = vector.shape_cast %291 : vector<1x1x64xf32> to vector<1x64xf32>
    %293 = vector.broadcast %292 : vector<1x64xf32> to vector<8x64xf32>
    %294 = arith.addf %290, %293 : vector<8x64xf32>
    %cst_146 = arith.constant 0.000000e+00 : f32
    %295 = vector.broadcast %cst_146 : f32 to vector<8x64xf32>
    %296 = arith.maximumf %294, %295 : vector<8x64xf32>
    %297 = arith.truncf %296 : vector<8x64xf32> to vector<8x64xbf16>
    %c0_147 = arith.constant 0 : index
    %c0_148 = arith.constant 0 : index
    %c0_149 = arith.constant 0 : index
    %298 = vector.load %arg26[%c0_147, %c0_148, %c0_149] : memref<1x64x32xbf16, #tpu.memory_space<vmem>>, vector<1x64x32xbf16>
    %299 = vector.shape_cast %298 : vector<1x64x32xbf16> to vector<64x32xbf16>
    %cst_150 = arith.constant dense<0.000000e+00> : vector<8x32xf32>
    %300 = tpu.matmul %297, %299, %cst_150 {dimension_numbers = #tpu.dot_dimension_numbers<[1], [0], [0], [1], [0, 0, 1, 1], [], []>} : vector<8x64xbf16>, vector<64x32xbf16>, vector<8x32xf32> -> vector<8x32xf32>
    %c0_151 = arith.constant 0 : index
    %c0_152 = arith.constant 0 : index
    %c0_153 = arith.constant 0 : index
    %301 = vector.load %arg27[%c0_151, %c0_152, %c0_153] : memref<1x1x32xf32, #tpu.memory_space<vmem>>, vector<1x1x32xf32>
    %302 = vector.shape_cast %301 : vector<1x1x32xf32> to vector<1x32xf32>
    %303 = vector.broadcast %302 : vector<1x32xf32> to vector<8x32xf32>
    %304 = arith.addf %300, %303 : vector<8x32xf32>
    %305 = arith.addf %286, %304 : vector<8x32xf32>
    %c0_154 = arith.constant 0 : index
    %c0_155 = arith.constant 0 : index
    %c0_156 = arith.constant 0 : index
    %306 = vector.load %arg28[%c0_154, %c0_155, %c0_156] : memref<1x1x32xf32, #tpu.memory_space<vmem>>, vector<1x1x32xf32>
    %307 = vector.shape_cast %306 : vector<1x1x32xf32> to vector<1x32xf32>
    %c0_157 = arith.constant 0 : index
    %c0_158 = arith.constant 0 : index
    %c0_159 = arith.constant 0 : index
    %308 = vector.load %arg29[%c0_157, %c0_158, %c0_159] : memref<1x1x32xf32, #tpu.memory_space<vmem>>, vector<1x1x32xf32>
    %309 = vector.shape_cast %308 : vector<1x1x32xf32> to vector<1x32xf32>
    %cst_160 = arith.constant dense<0.000000e+00> : vector<8xf32>
    %310 = vector.multi_reduction <add>, %305, %cst_160 [1] : vector<8x32xf32> to vector<8xf32>
    %311 = vector.shape_cast %310 : vector<8xf32> to vector<8x1xf32>
    %cst_161 = arith.constant 3.200000e+01 : f32
    %312 = vector.broadcast %cst_161 : f32 to vector<8x1xf32>
    %313 = arith.divf %311, %312 : vector<8x1xf32>
    %314 = vector.broadcast %313 : vector<8x1xf32> to vector<8x32xf32>
    %315 = arith.subf %305, %314 : vector<8x32xf32>
    %316 = arith.mulf %315, %315 : vector<8x32xf32>
    %cst_162 = arith.constant dense<0.000000e+00> : vector<8xf32>
    %317 = vector.multi_reduction <add>, %316, %cst_162 [1] : vector<8x32xf32> to vector<8xf32>
    %318 = vector.shape_cast %317 : vector<8xf32> to vector<8x1xf32>
    %cst_163 = arith.constant 3.200000e+01 : f32
    %319 = vector.broadcast %cst_163 : f32 to vector<8x1xf32>
    %320 = arith.divf %318, %319 : vector<8x1xf32>
    %cst_164 = arith.constant 9.99999974E-6 : f32
    %321 = vector.broadcast %cst_164 : f32 to vector<8x1xf32>
    %322 = arith.addf %320, %321 : vector<8x1xf32>
    %323 = math.rsqrt %322 : vector<8x1xf32>
    %324 = vector.broadcast %323 : vector<8x1xf32> to vector<8x32xf32>
    %325 = arith.mulf %315, %324 : vector<8x32xf32>
    %326 = vector.broadcast %307 : vector<1x32xf32> to vector<8x32xf32>
    %327 = arith.mulf %325, %326 : vector<8x32xf32>
    %328 = vector.broadcast %309 : vector<1x32xf32> to vector<8x32xf32>
    %329 = arith.addf %327, %328 : vector<8x32xf32>
    %c0_165 = arith.constant 0 : index
    %c0_166 = arith.constant 0 : index
    %330 = vector.load %arg31[%c0_165, %c0_166] : memref<8x32xf32, #tpu.memory_space<vmem>>, vector<8x32xf32>
    tpu.vector_store %arg31[%c0_165, %c0_166], %329 {strides = array<i32>} : memref<8x32xf32, #tpu.memory_space<vmem>>, vector<8x32xf32>,
    %c1_i32 = arith.constant 1 : i32
    %331 = arith.cmpi eq, %arg1, %c1_i32 : i32
    %332 = arith.extui %331 : i1 to i32
    %c0_i32_167 = arith.constant 0 : i32
    %333 = arith.cmpi ne, %332, %c0_i32_167 : i32
    scf.if %333 {
      %c0_168 = arith.constant 0 : index
      %c0_169 = arith.constant 0 : index
      %c0_170 = arith.constant 0 : index
      %334 = vector.load %arg30[%c0_168, %c0_169, %c0_170] : memref<1x8x32xf32, #tpu.memory_space<vmem>>, vector<1x8x32xf32>
      %335 = vector.shape_cast %334 : vector<1x8x32xf32> to vector<8x32xf32>
      %336 = vector.shape_cast %329 : vector<8x32xf32> to vector<1x8x32xf32>
      tpu.vector_store %arg30[%c0_168, %c0_169, %c0_170], %336 {strides = array<i32>} : memref<1x8x32xf32, #tpu.memory_space<vmem>>, vector<1x8x32xf32>,
    } else {
    }
    return
  }
  func.func @transform_0(%arg0: i32, %arg1: i32) -> (i32, i32, i32) {
    %c0_i32 = arith.constant 0 : i32
    %c0_i32_0 = arith.constant 0 : i32
    %c0_i32_1 = arith.constant 0 : i32
    return %arg0, %c0_i32, %c0_i32_0 : i32, i32, i32
  }
  func.func @transform_1(%arg0: i32, %arg1: i32) -> (i32, i32, i32) {
    %c0_i32 = arith.constant 0 : i32
    %c0_i32_0 = arith.constant 0 : i32
    %c0_i32_1 = arith.constant 0 : i32
    return %arg0, %c0_i32, %c0_i32_0 : i32, i32, i32
  }
  func.func @transform_2(%arg0: i32, %arg1: i32) -> (i32, i32, i32) {
    %c0_i32 = arith.constant 0 : i32
    %c0_i32_0 = arith.constant 0 : i32
    %c0_i32_1 = arith.constant 0 : i32
    return %arg1, %c0_i32, %c0_i32_0 : i32, i32, i32
  }
  func.func @transform_3(%arg0: i32, %arg1: i32) -> (i32, i32, i32) {
    %c0_i32 = arith.constant 0 : i32
    %c0_i32_0 = arith.constant 0 : i32
    %c0_i32_1 = arith.constant 0 : i32
    return %arg1, %c0_i32, %c0_i32_0 : i32, i32, i32
  }
  func.func @transform_4(%arg0: i32, %arg1: i32) -> (i32, i32, i32) {
    %c0_i32 = arith.constant 0 : i32
    %c0_i32_0 = arith.constant 0 : i32
    %c0_i32_1 = arith.constant 0 : i32
    return %arg1, %c0_i32, %c0_i32_0 : i32, i32, i32
  }
  func.func @transform_5(%arg0: i32, %arg1: i32) -> (i32, i32, i32) {
    %c0_i32 = arith.constant 0 : i32
    %c0_i32_0 = arith.constant 0 : i32
    %c0_i32_1 = arith.constant 0 : i32
    return %arg1, %c0_i32, %c0_i32_0 : i32, i32, i32
  }
  func.func @transform_6(%arg0: i32, %arg1: i32) -> (i32, i32, i32) {
    %c0_i32 = arith.constant 0 : i32
    %c0_i32_0 = arith.constant 0 : i32
    %c0_i32_1 = arith.constant 0 : i32
    return %arg1, %c0_i32, %c0_i32_0 : i32, i32, i32
  }
  func.func @transform_7(%arg0: i32, %arg1: i32) -> (i32, i32, i32) {
    %c0_i32 = arith.constant 0 : i32
    %c0_i32_0 = arith.constant 0 : i32
    %c0_i32_1 = arith.constant 0 : i32
    return %arg1, %c0_i32, %c0_i32_0 : i32, i32, i32
  }
  func.func @transform_8(%arg0: i32, %arg1: i32) -> (i32, i32, i32) {
    %c0_i32 = arith.constant 0 : i32
    %c0_i32_0 = arith.constant 0 : i32
    %c0_i32_1 = arith.constant 0 : i32
    return %arg1, %c0_i32, %c0_i32_0 : i32, i32, i32
  }
  func.func @transform_9(%arg0: i32, %arg1: i32) -> (i32, i32, i32) {
    %c0_i32 = arith.constant 0 : i32
    %c0_i32_0 = arith.constant 0 : i32
    %c0_i32_1 = arith.constant 0 : i32
    return %arg1, %c0_i32, %c0_i32_0 : i32, i32, i32
  }
  func.func @transform_10(%arg0: i32, %arg1: i32) -> (i32, i32, i32) {
    %c0_i32 = arith.constant 0 : i32
    %c0_i32_0 = arith.constant 0 : i32
    %c0_i32_1 = arith.constant 0 : i32
    return %arg1, %c0_i32, %c0_i32_0 : i32, i32, i32
  }
  func.func @transform_11(%arg0: i32, %arg1: i32) -> (i32, i32, i32) {
    %c0_i32 = arith.constant 0 : i32
    %c0_i32_0 = arith.constant 0 : i32
    %c0_i32_1 = arith.constant 0 : i32
    return %arg1, %c0_i32, %c0_i32_0 : i32, i32, i32
  }
  func.func @transform_12(%arg0: i32, %arg1: i32) -> (i32, i32, i32) {
    %c0_i32 = arith.constant 0 : i32
    %c0_i32_0 = arith.constant 0 : i32
    %c0_i32_1 = arith.constant 0 : i32
    return %arg1, %c0_i32, %c0_i32_0 : i32, i32, i32
  }
  func.func @transform_13(%arg0: i32, %arg1: i32) -> (i32, i32, i32) {
    %c0_i32 = arith.constant 0 : i32
    %c0_i32_0 = arith.constant 0 : i32
    %c0_i32_1 = arith.constant 0 : i32
    return %arg1, %c0_i32, %c0_i32_0 : i32, i32, i32
  }
  func.func @transform_14(%arg0: i32, %arg1: i32) -> (i32, i32, i32) {
    %c0_i32 = arith.constant 0 : i32
    %c0_i32_0 = arith.constant 0 : i32
    %c0_i32_1 = arith.constant 0 : i32
    return %arg1, %c0_i32, %c0_i32_0 : i32, i32, i32
  }
  func.func @transform_15(%arg0: i32, %arg1: i32) -> (i32, i32, i32) {
    %c0_i32 = arith.constant 0 : i32
    %c0_i32_0 = arith.constant 0 : i32
    %c0_i32_1 = arith.constant 0 : i32
    return %arg1, %c0_i32, %c0_i32_0 : i32, i32, i32
  }
  func.func @transform_16(%arg0: i32, %arg1: i32) -> (i32, i32, i32) {
    %c0_i32 = arith.constant 0 : i32
    %c0_i32_0 = arith.constant 0 : i32
    %c0_i32_1 = arith.constant 0 : i32
    return %arg1, %c0_i32, %c0_i32_0 : i32, i32, i32
  }
  func.func @transform_17(%arg0: i32, %arg1: i32) -> (i32, i32, i32) {
    %c0_i32 = arith.constant 0 : i32
    %c0_i32_0 = arith.constant 0 : i32
    %c0_i32_1 = arith.constant 0 : i32
    return %arg1, %c0_i32, %c0_i32_0 : i32, i32, i32
  }
  func.func @transform_18(%arg0: i32, %arg1: i32) -> (i32, i32, i32) {
    %c0_i32 = arith.constant 0 : i32
    %c0_i32_0 = arith.constant 0 : i32
    %c0_i32_1 = arith.constant 0 : i32
    return %arg1, %c0_i32, %c0_i32_0 : i32, i32, i32
  }
  func.func @transform_19(%arg0: i32, %arg1: i32) -> (i32, i32, i32) {
    %c0_i32 = arith.constant 0 : i32
    %c0_i32_0 = arith.constant 0 : i32
    %c0_i32_1 = arith.constant 0 : i32
    return %arg1, %c0_i32, %c0_i32_0 : i32, i32, i32
  }
  func.func @transform_20(%arg0: i32, %arg1: i32) -> (i32, i32, i32) {
    %c0_i32 = arith.constant 0 : i32
    %c0_i32_0 = arith.constant 0 : i32
    %c0_i32_1 = arith.constant 0 : i32
    return %arg1, %c0_i32, %c0_i32_0 : i32, i32, i32
  }
  func.func @transform_21(%arg0: i32, %arg1: i32) -> (i32, i32, i32) {
    %c0_i32 = arith.constant 0 : i32
    %c0_i32_0 = arith.constant 0 : i32
    %c0_i32_1 = arith.constant 0 : i32
    return %arg1, %c0_i32, %c0_i32_0 : i32, i32, i32
  }
  func.func @transform_22(%arg0: i32, %arg1: i32) -> (i32, i32, i32) {
    %c0_i32 = arith.constant 0 : i32
    %c0_i32_0 = arith.constant 0 : i32
    %c0_i32_1 = arith.constant 0 : i32
    return %arg1, %c0_i32, %c0_i32_0 : i32, i32, i32
  }
  func.func @transform_23(%arg0: i32, %arg1: i32) -> (i32, i32, i32) {
    %c0_i32 = arith.constant 0 : i32
    %c0_i32_0 = arith.constant 0 : i32
    %c0_i32_1 = arith.constant 0 : i32
    return %arg1, %c0_i32, %c0_i32_0 : i32, i32, i32
  }
  func.func @transform_24(%arg0: i32, %arg1: i32) -> (i32, i32, i32) {
    %c0_i32 = arith.constant 0 : i32
    %c0_i32_0 = arith.constant 0 : i32
    %c0_i32_1 = arith.constant 0 : i32
    return %arg1, %c0_i32, %c0_i32_0 : i32, i32, i32
  }
  func.func @transform_25(%arg0: i32, %arg1: i32) -> (i32, i32, i32) {
    %c0_i32 = arith.constant 0 : i32
    %c0_i32_0 = arith.constant 0 : i32
    %c0_i32_1 = arith.constant 0 : i32
    return %arg1, %c0_i32, %c0_i32_0 : i32, i32, i32
  }
  func.func @transform_26(%arg0: i32, %arg1: i32) -> (i32, i32, i32) {
    %c0_i32 = arith.constant 0 : i32
    %c0_i32_0 = arith.constant 0 : i32
    %c0_i32_1 = arith.constant 0 : i32
    return %arg1, %c0_i32, %c0_i32_0 : i32, i32, i32
  }
  func.func @transform_27(%arg0: i32, %arg1: i32) -> (i32, i32, i32) {
    %c0_i32 = arith.constant 0 : i32
    %c0_i32_0 = arith.constant 0 : i32
    %c0_i32_1 = arith.constant 0 : i32
    return %arg1, %c0_i32, %c0_i32_0 : i32, i32, i32
  }
  func.func @transform_28(%arg0: i32, %arg1: i32) -> (i32, i32, i32) {
    %c0_i32 = arith.constant 0 : i32
    %c0_i32_0 = arith.constant 0 : i32
    %c0_i32_1 = arith.constant 0 : i32
    return %arg0, %c0_i32, %c0_i32_0 : i32, i32, i32
  }
}

</mosaic_0001>

<llo_original>
// kernel: model_forward.5
$region0: #{model_forward.5}
  #allocation0 [shape = 'u32[]', space=smem, size = 0x4, offset = 0x4, fixed_abs, tag = 'smem constant byte address 0x4 - core index']
  #allocation1 [shape = 'u32[144,128]{1,0:T(1,128)}', space=vmem, size = 0x12000, scoped, tag = 'internal scratch']
  %s0 = inlined_call_operand.vmem [shape: f32[16,32], index: 0, kind: input, shape index: {}]
  %s1 = inlined_call_operand.vmem [shape: bf16[32,16], index: 1, kind: input, shape index: {}]
  %s2 = inlined_call_operand.vmem [shape: f32[1,16], index: 2, kind: input, shape index: {}]
  %s3 = inlined_call_operand.hbm [shape: f32[16,16], index: 3, kind: output, shape index: {}]
  %s4 = sld [smem:[#allocation0]]
  $region45: #{model_forward.5} parent=0
    _
  %s6 = ssub.s32 1, %s4
  %s7 = scalar_select 0, %s6, %s4
  $region1: #{model_forward.5} parent=0
    #allocation2 [shape = 'u8[8192]{0}', space=vmem, size = 0x2000, scoped, tag = 'output window, operand 0']
    #allocation3 [shape = 's32[2]{0}', space=sflag, size = 0x8, scoped, tag = 'scoped memory for model_forward.5']
    %8 = vsyncpa [#allocation3], 0
    %s9 = scalar_lea.sflag [#allocation3], 1
    %10 = vsyncpa %s9, 0
    loop: start=0, step=1, limit=4
    $region2: #{model_forward.5} parent=1 // loop_pre_header
      _
    $region3: #{model_forward.5} parent=1 // loop_header
      %s12 = sphi 0, %s16
      %p13 = scmp.ge.s32.totalorder %s12, 4
      %s22 = sphi 0, %s24
      %s25 = sphi 0, %s22
      %s26 = sphi 0, %s25
      %s42 = sphi 0, %s26
      %s46 = sphi 0, %s46
      %s48 = sphi 0, %s46
      %s49 = sphi 0, %s48
      %s63 = sphi 0, %s49
      %s67 = sphi 0, %s67
      %s69 = sphi 0, %s67
      %s70 = sphi 0, %s69
      %s84 = sphi 0, %s70
      %s90 = sphi 0, %s92
      %s93 = sphi 0, %s90
      %s94 = sphi 0, %s93
      %s110 = sphi 0, %s94
    $region4: #{model_forward.5} parent=1 // loop_header_branch
      %15 = sbr.rel (%p13) target = $region8
    $region5: #{model_forward.5} parent=1 // loop_body
      %s17 = ssub.s32 %s12, 1
      %s18 = ssub.s32 %s12, 2
      %s19 = sadd.s32 %s12, 1
      %s20 = ssub.s32 %s12, %s19
      %p21 = scmp.eq.s32.totalorder %s20, 0
      %s23 = sadd.s32 %s22, 1
      %s24 = scalar_select %p21, %s22, %s23
      %p27 = pneg %p21
      %p28 = scmp.eq.s32.totalorder %s12, 1
      %p29 = por %p27, %p28
      %p30 = scmp.ne.s32.totalorder %s22, %s25
      %p31 = scmp.eq.s32.totalorder %s12, 0
      %p32 = por %p30, %p31
      %p33 = scmp.ne.s32.totalorder %s22, %s25
      %p34 = scmp.eq.s32.totalorder %s17, 1
      %p35 = por %p33, %p34
      %p36 = scmp.ne.s32.totalorder %s25, %s26
      %p37 = scmp.eq.s32.totalorder %s17, 0
      %p38 = por %p36, %p37
      %p39 = scmp.ne.s32.totalorder %s25, %s26
      %p40 = scmp.eq.s32.totalorder %s18, 1
      %p41 = por %p39, %p40
      %p43 = scmp.ne.s32.totalorder %s26, %s42
      %p44 = scmp.eq.s32.totalorder %s18, 0
      %p45 = por %p43, %p44
      %s47 = sadd.s32 %s46, 1
      %p50 = scmp.eq.s32.totalorder %s12, 1
      %p51 = scmp.ne.s32.totalorder %s46, %s48
      %p52 = scmp.eq.s32.totalorder %s12, 0
      %p53 = por %p51, %p52
      %p54 = scmp.ne.s32.totalorder %s46, %s48
      %p55 = scmp.eq.s32.totalorder %s17, 1
      %p56 = por %p54, %p55
      %p57 = scmp.ne.s32.totalorder %s48, %s49
      %p58 = scmp.eq.s32.totalorder %s17, 0
      %p59 = por %p57, %p58
      %p60 = scmp.ne.s32.totalorder %s48, %s49
      %p61 = scmp.eq.s32.totalorder %s18, 1
      %p62 = por %p60, %p61
      %p64 = scmp.ne.s32.totalorder %s49, %s63
      %p65 = scmp.eq.s32.totalorder %s18, 0
      %p66 = por %p64, %p65
      %s68 = sadd.s32 %s67, 1
      %p71 = scmp.eq.s32.totalorder %s12, 1
      %p72 = scmp.ne.s32.totalorder %s67, %s69
      %p73 = scmp.eq.s32.totalorder %s12, 0
      %p74 = por %p72, %p73
      %p75 = scmp.ne.s32.totalorder %s67, %s69
      %p76 = scmp.eq.s32.totalorder %s17, 1
      %p77 = por %p75, %p76
      %p78 = scmp.ne.s32.totalorder %s69, %s70
      %p79 = scmp.eq.s32.totalorder %s17, 0
      %p80 = por %p78, %p79
      %p81 = scmp.ne.s32.totalorder %s69, %s70
      %p82 = scmp.eq.s32.totalorder %s18, 1
      %p83 = por %p81, %p82
      %p85 = scmp.ne.s32.totalorder %s70, %s84
      %p86 = scmp.eq.s32.totalorder %s18, 0
      %p87 = por %p85, %p86
      %s88 = ssub.s32 %s12, %s19
      %p89 = scmp.eq.s32.totalorder %s88, 0
      %s91 = sadd.s32 %s90, 1
      %s92 = scalar_select %p89, %s90, %s91
      %p95 = pneg %p89
      %p96 = scmp.eq.s32.totalorder %s12, 1
      %p97 = por %p95, %p96
      %p98 = scmp.ne.s32.totalorder %s90, %s93
      %p99 = scmp.eq.s32.totalorder %s12, 0
      %p100 = por %p98, %p99
      %p101 = scmp.ne.s32.totalorder %s90, %s93
      %p102 = scmp.eq.s32.totalorder %s17, 1
      %p103 = por %p101, %p102
      %p104 = scmp.ne.s32.totalorder %s93, %s94
      %p105 = scmp.eq.s32.totalorder %s17, 0
      %p106 = por %p104, %p105
      %p107 = scmp.ne.s32.totalorder %s93, %s94
      %p108 = scmp.eq.s32.totalorder %s18, 1
      %p109 = por %p107, %p108
      %p111 = scmp.ne.s32.totalorder %s94, %s110
      %p112 = scmp.eq.s32.totalorder %s18, 0
      %p113 = por %p111, %p112
      %p114 = scmp.le.s32.totalorder 1, %s12
      %p115 = scmp.lt.s32.totalorder %s12, 3
      %p116 = pnand %p114, %p115
      %p117 = pneg %p116
      // Predicated region
      $region9: #{model_forward.5} parent=5 // pred_check
        _
      $region10: #{model_forward.5} parent=5 // pred_check_branch
        %119 = sbr.rel (%p116) target = $region12
      $region11: #{model_forward.5} parent=5 // pred_region
        %s120 = ssub.s32 %s12, 1
        // Predicated region
        $region13: #{model_forward.5} parent=11 // pred_check
          %p121 = pneg %p59
        $region14: #{model_forward.5} parent=11 // pred_check_branch
          %123 = sbr.rel (%p121) target = $region16
        $region15: #{model_forward.5} parent=11 // pred_region
          _
        $region16: #{model_forward.5} parent=11 // pred_fallthru
          _
        // Predicated region
        $region17: #{model_forward.5} parent=11 // pred_check
          %p124 = pneg %p80
        $region18: #{model_forward.5} parent=11 // pred_check_branch
          %126 = sbr.rel (%p124) target = $region20
        $region19: #{model_forward.5} parent=11 // pred_region
          _
        $region20: #{model_forward.5} parent=11 // pred_fallthru
          _
      $region12: #{model_forward.5} parent=5 // pred_fallthru
        _
      %p127 = scmp.lt.s32.totalorder %s12, 2
      // Predicated region
      $region21: #{model_forward.5} parent=5 // pred_check
        %p128 = pneg %p127
      $region22: #{model_forward.5} parent=5 // pred_check_branch
        %130 = sbr.rel (%p128) target = $region24
      $region23: #{model_forward.5} parent=5 // pred_region
        // Predicated region
        $region25: #{model_forward.5} parent=23 // pred_check
          %p131 = pneg %p32
        $region26: #{model_forward.5} parent=23 // pred_check_branch
          %133 = sbr.rel (%p131) target = $region28
        $region27: #{model_forward.5} parent=23 // pred_region
          %p134 = scmp.lt.s32.totalorder %s12, 1
          %s135 = scalar_select %p134, %s12, 1
          %s136 = smul.addr %s135, 8
          %s137 = scalar_lea.vmem %s0, %s136
        $region28: #{model_forward.5} parent=23 // pred_fallthru
          _
      $region24: #{model_forward.5} parent=5 // pred_fallthru
        _
      %p138 = scmp.le.s32.totalorder 1, %s12
      %p139 = scmp.lt.s32.totalorder %s12, 3
      %p140 = pnand %p138, %p139
      %p141 = pneg %p140
      // Predicated region
      $region29: #{model_forward.5} parent=5 // pred_check
        _
      $region30: #{model_forward.5} parent=5 // pred_check_branch
        %143 = sbr.rel (%p140) target = $region32
      $region31: #{model_forward.5} parent=5 // pred_region
        %s144 = ssub.s32 %s12, 1
        %p145 = scmp.lt.s32.totalorder %s17, 1
        %s146 = scalar_select %p145, %s17, 1
        %s147 = smul.addr %s146, 8
        %s148 = scalar_lea.vmem %s0, %s147
        %p149 = pneg %p38
        %p150 = pneg %p35
        %p151 = pneg %p59
        %p152 = pneg %p56
        %p153 = pneg %p80
        %p154 = pneg %p77
        %p155 = pneg %p106
        %p156 = pneg %p103
        %s157 = sand.u32 %s93, 1
        %s158 = scalar_lea.sflag [#allocation3], %s157
        %s159 = sand.u32 %s93, 1
        %s160 = smul.addr %s159, 8
        %s161 = scalar_lea.vmem [#allocation2], %s160
        %p162 = scmp.lt.s32.totalorder %s17, 1
        %s163 = scalar_select %p162, %s17, 1
        %s164 = smul.addr %s163, 8
        %s165 = scalar_lea.vmem %s0, %s164
        %v167 = vld [vmem:[%s165] sm:$0xff]
        %v168 = vpack.c.bf16 %v167, %v167
        %v169 = vld [vmem:[%s1] sm:$0xf]
        %v170 = vld [vmem:[%s1 + $0x4] sm:$0xf]
        %v171 = vld [vmem:[%s1 + $0x8] sm:$0xf]
        %v172 = vld [vmem:[%s1 + $0xc] sm:$0xf]
        %v173 = vld [vmem:[%s2] sm:$0x1]
        %v175 = vlaneseq
        %v176 = vshrl.u32 %v175, 7
        %v177 = vsub.s32 0, %v176
        %v178 = vrot.slane %v173, %v177
        %v184 = vunpack.c.l.b16 %v169
        %v185 = vunpack.c.l.b16 %v170
        %v186 = vunpack.c.l.b16 %v171
        %v187 = vunpack.c.l.b16 %v172
        %v188 = vpack.c.b16 %v185, %v184
        %v189 = vpack.c.b16 %v187, %v186
        %vm192 = vcmask 261120
        %v194 = vsel %vm192, %v168, 0
        %196 = vmatprep.subr.bf16.mxu0 0
        %197 = vmatpush1.bf16.msra.mxu0 %v188
        %198 = vmatprep.subr.bf16.mxu0 0
        %199 = vmatpush1.bf16.msra.mxu0 %v189
        %200 = vmatprep.subr.bf16.mxu0 0
        %201 = vmatpush1.bf16.msra.mxu0 0
        %202 = vmatprep.subr.bf16.mxu0 0
        %203 = vmatpush1.bf16.msra.mxu0 0
        %204 = vmatprep.subr.bf16.mxu0 0
        %205 = vmatpush1.bf16.msra.mxu0 0
        %206 = vmatprep.subr.bf16.mxu0 0
        %207 = vmatpush1.bf16.msra.mxu0 0
        %208 = vmatprep.subr.bf16.mxu0 0
        %209 = vmatpush1.bf16.msra.mxu0 0
        %210 = vmatprep.subr.bf16.mxu0 0
        %211 = vmatpush1.bf16.msra.mxu0 0
        %212 = vmatprep.subr.bf16.mxu0 0
        %213 = vmatpush1.bf16.msra.mxu0 0
        %214 = vmatprep.subr.bf16.mxu0 0
        %215 = vmatpush1.bf16.msra.mxu0 0
        %216 = vmatprep.subr.bf16.mxu0 0
        %217 = vmatpush1.bf16.msra.mxu0 0
        %218 = vmatprep.subr.bf16.mxu0 0
        %219 = vmatpush1.bf16.msra.mxu0 0
        %220 = vmatprep.subr.bf16.mxu0 0
        %221 = vmatpush1.bf16.msra.mxu0 0
        %222 = vmatprep.subr.bf16.mxu0 0
        %223 = vmatpush1.bf16.msra.mxu0 0
        %224 = vmatprep.subr.bf16.mxu0 0
        %225 = vmatpush1.bf16.msra.mxu0 0
        %226 = vmatprep.subr.bf16.mxu0 0
        %227 = vmatpush1.bf16.msra.mxu0 0
        %228 = vmatprep.mubr.bf16.mxu0 0
        %229 = vmatmul.mubr.bf16.gmra.mrb[0].mxu0 %v194
        %v230 = vpop.f32.mrb[0].mxu0
        %v231 = vadd.f32 %v178, %v230
        %v232 = vpop.f32.mrb[0].mxu0
        %v233 = vpop.f32.mrb[0].mxu0
        %v234 = vpop.f32.mrb[0].mxu0
        %235 = vdwg.mxu0
        %vm236 = vcmask 130048
        %v237 = vsel %vm236, %v231, -inf
        %238 = vmax.xlane.f32.xlu0 %v237
        %v239 = vpop.xlane.xlu0 %238
        %v240 = vsub.f32 %v231, %v239
        %v241 = vmul.f32 %v240, 1.442695
        %v242 = vpow.pop %v241
        %v243 = vsel %vm236, %v242, 0.0
        %244 = vadd.xlane.f32.xlu0 %v243
        %v245 = vpop.xlane.xlu0 %244
        %v246 = vlog2.pop %v245
        %v247 = vmul.f32 %v246, 0.6931472
        %v248 = vsub.f32 %v240, %v247
        %249 = vst.msk [vmem:[%s161] sm:$0xff] %vm236, %v248
        %s250 = sand.u32 %s93, 1
        %s251 = scalar_lea.sflag [#allocation3], %s250
        %s252 = sand.u32 %s93, 1
        %s253 = smul.addr %s252, 8
        %s254 = scalar_lea.vmem [#allocation2], %s253
        // Predicated region
        $region33: #{model_forward.5} parent=31 // pred_check
          %p255 = pneg %p103
        $region34: #{model_forward.5} parent=31 // pred_check_branch
          %257 = sbr.rel (%p255) target = $region36
        $region35: #{model_forward.5} parent=31 // pred_region
          %s259 = ssub.s32 128, 128
          %260 = vsyncadd %s251, %s259
          %s261 = smul.addr %s17, 128
          %s262 = scalar_lea.hbm %s3, %s261
          %s264 = sshll.u32 %s254, 4
          %s265 = int_to_ptr.vmem [resolvable:$true] %s264
          %267 = dma.vmem_to_hbm [thread:$0]  %s265, 128, %s262, %s251
        $region36: #{model_forward.5} parent=31 // pred_fallthru
          _
      $region32: #{model_forward.5} parent=5 // pred_fallthru
        _
      %p268 = scmp.le.s32.totalorder 2, %s12
      // Predicated region
      $region37: #{model_forward.5} parent=5 // pred_check
        %p269 = pneg %p268
      $region38: #{model_forward.5} parent=5 // pred_check_branch
        %271 = sbr.rel (%p269) target = $region40
      $region39: #{model_forward.5} parent=5 // pred_region
        %s272 = ssub.s32 %s12, 2
        // Predicated region
        $region41: #{model_forward.5} parent=39 // pred_check
          %p273 = pneg %p109
        $region42: #{model_forward.5} parent=39 // pred_check_branch
          %275 = sbr.rel (%p273) target = $region44
        $region43: #{model_forward.5} parent=39 // pred_region
          %s276 = sand.u32 %s94, 1
          %s277 = scalar_lea.sflag [#allocation3], %s276
          %s278 = sand.u32 %s94, 1
          %s279 = smul.addr %s278, 8
          %s280 = scalar_lea.vmem [#allocation2], %s279
          %281 = dma.done %s277, 128
        $region44: #{model_forward.5} parent=39 // pred_fallthru
          _
      $region40: #{model_forward.5} parent=5 // pred_fallthru
        _
    $region6: #{model_forward.5} parent=1 // loop_footer
      %s16 = sadd.s32 1, %s12
    $region7: #{model_forward.5} parent=1 // loop_footer_branch
      %11 = sbr.rel target = $region3
    $region8: #{model_forward.5} parent=1 // loop_exit
      _
    %282 = vsyncpa [#allocation3], 1
    %s283 = scalar_lea.sflag [#allocation3], 1
    %284 = vsyncpa %s283, 1

// kernel: model_forward.3
$region0: #{model_forward.3}
  #allocation0 [shape = 'u32[]', space=smem, size = 0x4, offset = 0x4, fixed_abs, tag = 'smem constant byte address 0x4 - core index']
  #allocation1 [shape = 'u32[144,128]{1,0:T(1,128)}', space=vmem, size = 0x12000, scoped, tag = 'internal scratch']
  #allocation2 [shape = 'f32[8,32]{1,0:T(8,128)}', space=vmem, size = 0x1000, scoped, tag = 'scratch operand']
  #allocation3 [shape = 'f32[8,32]{1,0:T(8,128)}', space=vmem, size = 0x1000, scoped, tag = 'scratch operand']
  %s0 = inlined_call_operand.vmem [shape: f32[2,8,32], index: 0, kind: input, shape index: {}]
  %s1 = inlined_call_operand.vmem [shape: bf16[2,32,32], index: 1, kind: input, shape index: {}]
  %s2 = inlined_call_operand.vmem [shape: bf16[2,32,32], index: 2, kind: input, shape index: {}]
  %s3 = inlined_call_operand.vmem [shape: bf16[2,32,32], index: 3, kind: input, shape index: {}]
  %s4 = inlined_call_operand.vmem [shape: f32[2,1,32], index: 4, kind: input, shape index: {}]
  %s5 = inlined_call_operand.vmem [shape: f32[2,1,32], index: 5, kind: input, shape index: {}]
  %s6 = inlined_call_operand.vmem [shape: f32[2,1,32], index: 6, kind: input, shape index: {}]
  %s7 = inlined_call_operand.vmem [shape: bf16[2,32,32], index: 7, kind: input, shape index: {}]
  %s8 = inlined_call_operand.vmem [shape: f32[2,1,32], index: 8, kind: input, shape index: {}]
  %s9 = inlined_call_operand.vmem [shape: f32[2,1,32], index: 9, kind: input, shape index: {}]
  %s10 = inlined_call_operand.vmem [shape: f32[2,1,32], index: 10, kind: input, shape index: {}]
  %s11 = inlined_call_operand.vmem [shape: bf16[2,32,64], index: 11, kind: input, shape index: {}]
  %s12 = inlined_call_operand.vmem [shape: f32[2,1,64], index: 12, kind: input, shape index: {}]
  %s13 = inlined_call_operand.vmem [shape: bf16[2,64,32], index: 13, kind: input, shape index: {}]
  %s14 = inlined_call_operand.vmem [shape: f32[2,1,32], index: 14, kind: input, shape index: {}]
  %s15 = inlined_call_operand.vmem [shape: f32[2,1,32], index: 15, kind: input, shape index: {}]
  %s16 = inlined_call_operand.vmem [shape: f32[2,1,32], index: 16, kind: input, shape index: {}]
  %s17 = inlined_call_operand.vmem [shape: f32[2,8,32], index: 17, kind: output, shape index: {}]
  %s18 = sld [smem:[#allocation0]]
  $region109: #{model_forward.3} parent=0
    _
  %s20 = ssub.s32 1, %s18
  %s21 = scalar_select 0, %s20, %s18
  loop: start=0, step=1, limit=6
  $region2: #{model_forward.3} parent=0 // loop_pre_header
    _
  $region3: #{model_forward.3} parent=0 // loop_header
    %s23 = sphi 0, %s27
    %p24 = scmp.ge.s32.totalorder %s23, 6
    %s30 = sphi 0, %s42
    %s31 = sphi 0, %s38
    %s32 = sphi 0, %s30
    %s33 = sphi 0, %s31
    %s34 = sphi 0, %s32
    %s35 = sphi 0, %s33
    %s45 = sphi 0, %s47
    %s48 = sphi 0, %s45
    %s49 = sphi 0, %s48
    %s65 = sphi 0, %s49
    %s71 = sphi 0, %s73
    %s74 = sphi 0, %s71
    %s75 = sphi 0, %s74
    %s91 = sphi 0, %s75
    %s97 = sphi 0, %s99
    %s100 = sphi 0, %s97
    %s101 = sphi 0, %s100
    %s117 = sphi 0, %s101
    %s123 = sphi 0, %s125
    %s126 = sphi 0, %s123
    %s127 = sphi 0, %s126
    %s143 = sphi 0, %s127
    %s149 = sphi 0, %s151
    %s152 = sphi 0, %s149
    %s153 = sphi 0, %s152
    %s169 = sphi 0, %s153
    %s175 = sphi 0, %s177
    %s178 = sphi 0, %s175
    %s179 = sphi 0, %s178
    %s195 = sphi 0, %s179
    %s201 = sphi 0, %s203
    %s204 = sphi 0, %s201
    %s205 = sphi 0, %s204
    %s221 = sphi 0, %s205
    %s227 = sphi 0, %s229
    %s230 = sphi 0, %s227
    %s231 = sphi 0, %s230
    %s247 = sphi 0, %s231
    %s253 = sphi 0, %s255
    %s256 = sphi 0, %s253
    %s257 = sphi 0, %s256
    %s273 = sphi 0, %s257
    %s279 = sphi 0, %s281
    %s282 = sphi 0, %s279
    %s283 = sphi 0, %s282
    %s299 = sphi 0, %s283
    %s305 = sphi 0, %s307
    %s308 = sphi 0, %s305
    %s309 = sphi 0, %s308
    %s325 = sphi 0, %s309
    %s331 = sphi 0, %s333
    %s334 = sphi 0, %s331
    %s335 = sphi 0, %s334
    %s351 = sphi 0, %s335
    %s357 = sphi 0, %s359
    %s360 = sphi 0, %s357
    %s361 = sphi 0, %s360
    %s377 = sphi 0, %s361
    %s383 = sphi 0, %s385
    %s386 = sphi 0, %s383
    %s387 = sphi 0, %s386
    %s403 = sphi 0, %s387
    %s409 = sphi 0, %s411
    %s412 = sphi 0, %s409
    %s413 = sphi 0, %s412
    %s429 = sphi 0, %s413
    %s435 = sphi 0, %s437
    %s438 = sphi 0, %s435
    %s439 = sphi 0, %s438
    %s455 = sphi 0, %s439
    %s461 = sphi 0, %s463
    %s464 = sphi 0, %s461
    %s465 = sphi 0, %s464
    %s481 = sphi 0, %s465
    %s487 = sphi 0, %s489
    %s490 = sphi 0, %s487
    %s491 = sphi 0, %s490
    %s507 = sphi 0, %s491
  $region4: #{model_forward.3} parent=0 // loop_header_branch
    %26 = sbr.rel (%p24) target = $region8
  $region5: #{model_forward.3} parent=0 // loop_body
    %s28 = ssub.s32 %s23, 1
    %s29 = ssub.s32 %s23, 2
    %s36 = sadd.s32 1, %s31
    %p37 = scmp.ge.s32.totalorder %s36, 2
    %s38 = scalar_select %p37, 0, %s36
    %s39 = sadd.s32 1, %s30
    %s40 = scalar_select %p37, %s39, %s30
    %p41 = scmp.ge.s32.totalorder %s40, 2
    %s42 = scalar_select %p41, 0, %s40
    %s43 = ssub.s32 %s30, %s42
    %p44 = scmp.eq.s32.totalorder %s43, 0
    %s46 = sadd.s32 %s45, 1
    %s47 = scalar_select %p44, %s45, %s46
    %p50 = pneg %p44
    %p51 = scmp.eq.s32.totalorder %s23, 3
    %p52 = por %p50, %p51
    %p53 = scmp.ne.s32.totalorder %s45, %s48
    %p54 = scmp.eq.s32.totalorder %s23, 0
    %p55 = por %p53, %p54
    %p56 = scmp.ne.s32.totalorder %s45, %s48
    %p57 = scmp.eq.s32.totalorder %s28, 3
    %p58 = por %p56, %p57
    %p59 = scmp.ne.s32.totalorder %s48, %s49
    %p60 = scmp.eq.s32.totalorder %s28, 0
    %p61 = por %p59, %p60
    %p62 = scmp.ne.s32.totalorder %s48, %s49
    %p63 = scmp.eq.s32.totalorder %s29, 3
    %p64 = por %p62, %p63
    %p66 = scmp.ne.s32.totalorder %s49, %s65
    %p67 = scmp.eq.s32.totalorder %s29, 0
    %p68 = por %p66, %p67
    %s69 = ssub.s32 %s31, %s38
    %p70 = scmp.eq.s32.totalorder %s69, 0
    %s72 = sadd.s32 %s71, 1
    %s73 = scalar_select %p70, %s71, %s72
    %p76 = pneg %p70
    %p77 = scmp.eq.s32.totalorder %s23, 3
    %p78 = por %p76, %p77
    %p79 = scmp.ne.s32.totalorder %s71, %s74
    %p80 = scmp.eq.s32.totalorder %s23, 0
    %p81 = por %p79, %p80
    %p82 = scmp.ne.s32.totalorder %s71, %s74
    %p83 = scmp.eq.s32.totalorder %s28, 3
    %p84 = por %p82, %p83
    %p85 = scmp.ne.s32.totalorder %s74, %s75
    %p86 = scmp.eq.s32.totalorder %s28, 0
    %p87 = por %p85, %p86
    %p88 = scmp.ne.s32.totalorder %s74, %s75
    %p89 = scmp.eq.s32.totalorder %s29, 3
    %p90 = por %p88, %p89
    %p92 = scmp.ne.s32.totalorder %s75, %s91
    %p93 = scmp.eq.s32.totalorder %s29, 0
    %p94 = por %p92, %p93
    %s95 = ssub.s32 %s31, %s38
    %p96 = scmp.eq.s32.totalorder %s95, 0
    %s98 = sadd.s32 %s97, 1
    %s99 = scalar_select %p96, %s97, %s98
    %p102 = pneg %p96
    %p103 = scmp.eq.s32.totalorder %s23, 3
    %p104 = por %p102, %p103
    %p105 = scmp.ne.s32.totalorder %s97, %s100
    %p106 = scmp.eq.s32.totalorder %s23, 0
    %p107 = por %p105, %p106
    %p108 = scmp.ne.s32.totalorder %s97, %s100
    %p109 = scmp.eq.s32.totalorder %s28, 3
    %p110 = por %p108, %p109
    %p111 = scmp.ne.s32.totalorder %s100, %s101
    %p112 = scmp.eq.s32.totalorder %s28, 0
    %p113 = por %p111, %p112
    %p114 = scmp.ne.s32.totalorder %s100, %s101
    %p115 = scmp.eq.s32.totalorder %s29, 3
    %p116 = por %p114, %p115
    %p118 = scmp.ne.s32.totalorder %s101, %s117
    %p119 = scmp.eq.s32.totalorder %s29, 0
    %p120 = por %p118, %p119
    %s121 = ssub.s32 %s31, %s38
    %p122 = scmp.eq.s32.totalorder %s121, 0
    %s124 = sadd.s32 %s123, 1
    %s125 = scalar_select %p122, %s123, %s124
    %p128 = pneg %p122
    %p129 = scmp.eq.s32.totalorder %s23, 3
    %p130 = por %p128, %p129
    %p131 = scmp.ne.s32.totalorder %s123, %s126
    %p132 = scmp.eq.s32.totalorder %s23, 0
    %p133 = por %p131, %p132
    %p134 = scmp.ne.s32.totalorder %s123, %s126
    %p135 = scmp.eq.s32.totalorder %s28, 3
    %p136 = por %p134, %p135
    %p137 = scmp.ne.s32.totalorder %s126, %s127
    %p138 = scmp.eq.s32.totalorder %s28, 0
    %p139 = por %p137, %p138
    %p140 = scmp.ne.s32.totalorder %s126, %s127
    %p141 = scmp.eq.s32.totalorder %s29, 3
    %p142 = por %p140, %p141
    %p144 = scmp.ne.s32.totalorder %s127, %s143
    %p145 = scmp.eq.s32.totalorder %s29, 0
    %p146 = por %p144, %p145
    %s147 = ssub.s32 %s31, %s38
    %p148 = scmp.eq.s32.totalorder %s147, 0
    %s150 = sadd.s32 %s149, 1
    %s151 = scalar_select %p148, %s149, %s150
    %p154 = pneg %p148
    %p155 = scmp.eq.s32.totalorder %s23, 3
    %p156 = por %p154, %p155
    %p157 = scmp.ne.s32.totalorder %s149, %s152
    %p158 = scmp.eq.s32.totalorder %s23, 0
    %p159 = por %p157, %p158
    %p160 = scmp.ne.s32.totalorder %s149, %s152
    %p161 = scmp.eq.s32.totalorder %s28, 3
    %p162 = por %p160, %p161
    %p163 = scmp.ne.s32.totalorder %s152, %s153
    %p164 = scmp.eq.s32.totalorder %s28, 0
    %p165 = por %p163, %p164
    %p166 = scmp.ne.s32.totalorder %s152, %s153
    %p167 = scmp.eq.s32.totalorder %s29, 3
    %p168 = por %p166, %p167
    %p170 = scmp.ne.s32.totalorder %s153, %s169
    %p171 = scmp.eq.s32.totalorder %s29, 0
    %p172 = por %p170, %p171
    %s173 = ssub.s32 %s31, %s38
    %p174 = scmp.eq.s32.totalorder %s173, 0
    %s176 = sadd.s32 %s175, 1
    %s177 = scalar_select %p174, %s175, %s176
    %p180 = pneg %p174
    %p181 = scmp.eq.s32.totalorder %s23, 3
    %p182 = por %p180, %p181
    %p183 = scmp.ne.s32.totalorder %s175, %s178
    %p184 = scmp.eq.s32.totalorder %s23, 0
    %p185 = por %p183, %p184
    %p186 = scmp.ne.s32.totalorder %s175, %s178
    %p187 = scmp.eq.s32.totalorder %s28, 3
    %p188 = por %p186, %p187
    %p189 = scmp.ne.s32.totalorder %s178, %s179
    %p190 = scmp.eq.s32.totalorder %s28, 0
    %p191 = por %p189, %p190
    %p192 = scmp.ne.s32.totalorder %s178, %s179
    %p193 = scmp.eq.s32.totalorder %s29, 3
    %p194 = por %p192, %p193
    %p196 = scmp.ne.s32.totalorder %s179, %s195
    %p197 = scmp.eq.s32.totalorder %s29, 0
    %p198 = por %p196, %p197
    %s199 = ssub.s32 %s31, %s38
    %p200 = scmp.eq.s32.totalorder %s199, 0
    %s202 = sadd.s32 %s201, 1
    %s203 = scalar_select %p200, %s201, %s202
    %p206 = pneg %p200
    %p207 = scmp.eq.s32.totalorder %s23, 3
    %p208 = por %p206, %p207
    %p209 = scmp.ne.s32.totalorder %s201, %s204
    %p210 = scmp.eq.s32.totalorder %s23, 0
    %p211 = por %p209, %p210
    %p212 = scmp.ne.s32.totalorder %s201, %s204
    %p213 = scmp.eq.s32.totalorder %s28, 3
    %p214 = por %p212, %p213
    %p215 = scmp.ne.s32.totalorder %s204, %s205
    %p216 = scmp.eq.s32.totalorder %s28, 0
    %p217 = por %p215, %p216
    %p218 = scmp.ne.s32.totalorder %s204, %s205
    %p219 = scmp.eq.s32.totalorder %s29, 3
    %p220 = por %p218, %p219
    %p222 = scmp.ne.s32.totalorder %s205, %s221
    %p223 = scmp.eq.s32.totalorder %s29, 0
    %p224 = por %p222, %p223
    %s225 = ssub.s32 %s31, %s38
    %p226 = scmp.eq.s32.totalorder %s225, 0
    %s228 = sadd.s32 %s227, 1
    %s229 = scalar_select %p226, %s227, %s228
    %p232 = pneg %p226
    %p233 = scmp.eq.s32.totalorder %s23, 3
    %p234 = por %p232, %p233
    %p235 = scmp.ne.s32.totalorder %s227, %s230
    %p236 = scmp.eq.s32.totalorder %s23, 0
    %p237 = por %p235, %p236
    %p238 = scmp.ne.s32.totalorder %s227, %s230
    %p239 = scmp.eq.s32.totalorder %s28, 3
    %p240 = por %p238, %p239
    %p241 = scmp.ne.s32.totalorder %s230, %s231
    %p242 = scmp.eq.s32.totalorder %s28, 0
    %p243 = por %p241, %p242
    %p244 = scmp.ne.s32.totalorder %s230, %s231
    %p245 = scmp.eq.s32.totalorder %s29, 3
    %p246 = por %p244, %p245
    %p248 = scmp.ne.s32.totalorder %s231, %s247
    %p249 = scmp.eq.s32.totalorder %s29, 0
    %p250 = por %p248, %p249
    %s251 = ssub.s32 %s31, %s38
    %p252 = scmp.eq.s32.totalorder %s251, 0
    %s254 = sadd.s32 %s253, 1
    %s255 = scalar_select %p252, %s253, %s254
    %p258 = pneg %p252
    %p259 = scmp.eq.s32.totalorder %s23, 3
    %p260 = por %p258, %p259
    %p261 = scmp.ne.s32.totalorder %s253, %s256
    %p262 = scmp.eq.s32.totalorder %s23, 0
    %p263 = por %p261, %p262
    %p264 = scmp.ne.s32.totalorder %s253, %s256
    %p265 = scmp.eq.s32.totalorder %s28, 3
    %p266 = por %p264, %p265
    %p267 = scmp.ne.s32.totalorder %s256, %s257
    %p268 = scmp.eq.s32.totalorder %s28, 0
    %p269 = por %p267, %p268
    %p270 = scmp.ne.s32.totalorder %s256, %s257
    %p271 = scmp.eq.s32.totalorder %s29, 3
    %p272 = por %p270, %p271
    %p274 = scmp.ne.s32.totalorder %s257, %s273
    %p275 = scmp.eq.s32.totalorder %s29, 0
    %p276 = por %p274, %p275
    %s277 = ssub.s32 %s31, %s38
    %p278 = scmp.eq.s32.totalorder %s277, 0
    %s280 = sadd.s32 %s279, 1
    %s281 = scalar_select %p278, %s279, %s280
    %p284 = pneg %p278
    %p285 = scmp.eq.s32.totalorder %s23, 3
    %p286 = por %p284, %p285
    %p287 = scmp.ne.s32.totalorder %s279, %s282
    %p288 = scmp.eq.s32.totalorder %s23, 0
    %p289 = por %p287, %p288
    %p290 = scmp.ne.s32.totalorder %s279, %s282
    %p291 = scmp.eq.s32.totalorder %s28, 3
    %p292 = por %p290, %p291
    %p293 = scmp.ne.s32.totalorder %s282, %s283
    %p294 = scmp.eq.s32.totalorder %s28, 0
    %p295 = por %p293, %p294
    %p296 = scmp.ne.s32.totalorder %s282, %s283
    %p297 = scmp.eq.s32.totalorder %s29, 3
    %p298 = por %p296, %p297
    %p300 = scmp.ne.s32.totalorder %s283, %s299
    %p301 = scmp.eq.s32.totalorder %s29, 0
    %p302 = por %p300, %p301
    %s303 = ssub.s32 %s31, %s38
    %p304 = scmp.eq.s32.totalorder %s303, 0
    %s306 = sadd.s32 %s305, 1
    %s307 = scalar_select %p304, %s305, %s306
    %p310 = pneg %p304
    %p311 = scmp.eq.s32.totalorder %s23, 3
    %p312 = por %p310, %p311
    %p313 = scmp.ne.s32.totalorder %s305, %s308
    %p314 = scmp.eq.s32.totalorder %s23, 0
    %p315 = por %p313, %p314
    %p316 = scmp.ne.s32.totalorder %s305, %s308
    %p317 = scmp.eq.s32.totalorder %s28, 3
    %p318 = por %p316, %p317
    %p319 = scmp.ne.s32.totalorder %s308, %s309
    %p320 = scmp.eq.s32.totalorder %s28, 0
    %p321 = por %p319, %p320
    %p322 = scmp.ne.s32.totalorder %s308, %s309
    %p323 = scmp.eq.s32.totalorder %s29, 3
    %p324 = por %p322, %p323
    %p326 = scmp.ne.s32.totalorder %s309, %s325
    %p327 = scmp.eq.s32.totalorder %s29, 0
    %p328 = por %p326, %p327
    %s329 = ssub.s32 %s31, %s38
    %p330 = scmp.eq.s32.totalorder %s329, 0
    %s332 = sadd.s32 %s331, 1
    %s333 = scalar_select %p330, %s331, %s332
    %p336 = pneg %p330
    %p337 = scmp.eq.s32.totalorder %s23, 3
    %p338 = por %p336, %p337
    %p339 = scmp.ne.s32.totalorder %s331, %s334
    %p340 = scmp.eq.s32.totalorder %s23, 0
    %p341 = por %p339, %p340
    %p342 = scmp.ne.s32.totalorder %s331, %s334
    %p343 = scmp.eq.s32.totalorder %s28, 3
    %p344 = por %p342, %p343
    %p345 = scmp.ne.s32.totalorder %s334, %s335
    %p346 = scmp.eq.s32.totalorder %s28, 0
    %p347 = por %p345, %p346
    %p348 = scmp.ne.s32.totalorder %s334, %s335
    %p349 = scmp.eq.s32.totalorder %s29, 3
    %p350 = por %p348, %p349
    %p352 = scmp.ne.s32.totalorder %s335, %s351
    %p353 = scmp.eq.s32.totalorder %s29, 0
    %p354 = por %p352, %p353
    %s355 = ssub.s32 %s31, %s38
    %p356 = scmp.eq.s32.totalorder %s355, 0
    %s358 = sadd.s32 %s357, 1
    %s359 = scalar_select %p356, %s357, %s358
    %p362 = pneg %p356
    %p363 = scmp.eq.s32.totalorder %s23, 3
    %p364 = por %p362, %p363
    %p365 = scmp.ne.s32.totalorder %s357, %s360
    %p366 = scmp.eq.s32.totalorder %s23, 0
    %p367 = por %p365, %p366
    %p368 = scmp.ne.s32.totalorder %s357, %s360
    %p369 = scmp.eq.s32.totalorder %s28, 3
    %p370 = por %p368, %p369
    %p371 = scmp.ne.s32.totalorder %s360, %s361
    %p372 = scmp.eq.s32.totalorder %s28, 0
    %p373 = por %p371, %p372
    %p374 = scmp.ne.s32.totalorder %s360, %s361
    %p375 = scmp.eq.s32.totalorder %s29, 3
    %p376 = por %p374, %p375
    %p378 = scmp.ne.s32.totalorder %s361, %s377
    %p379 = scmp.eq.s32.totalorder %s29, 0
    %p380 = por %p378, %p379
    %s381 = ssub.s32 %s31, %s38
    %p382 = scmp.eq.s32.totalorder %s381, 0
    %s384 = sadd.s32 %s383, 1
    %s385 = scalar_select %p382, %s383, %s384
    %p388 = pneg %p382
    %p389 = scmp.eq.s32.totalorder %s23, 3
    %p390 = por %p388, %p389
    %p391 = scmp.ne.s32.totalorder %s383, %s386
    %p392 = scmp.eq.s32.totalorder %s23, 0
    %p393 = por %p391, %p392
    %p394 = scmp.ne.s32.totalorder %s383, %s386
    %p395 = scmp.eq.s32.totalorder %s28, 3
    %p396 = por %p394, %p395
    %p397 = scmp.ne.s32.totalorder %s386, %s387
    %p398 = scmp.eq.s32.totalorder %s28, 0
    %p399 = por %p397, %p398
    %p400 = scmp.ne.s32.totalorder %s386, %s387
    %p401 = scmp.eq.s32.totalorder %s29, 3
    %p402 = por %p400, %p401
    %p404 = scmp.ne.s32.totalorder %s387, %s403
    %p405 = scmp.eq.s32.totalorder %s29, 0
    %p406 = por %p404, %p405
    %s407 = ssub.s32 %s31, %s38
    %p408 = scmp.eq.s32.totalorder %s407, 0
    %s410 = sadd.s32 %s409, 1
    %s411 = scalar_select %p408, %s409, %s410
    %p414 = pneg %p408
    %p415 = scmp.eq.s32.totalorder %s23, 3
    %p416 = por %p414, %p415
    %p417 = scmp.ne.s32.totalorder %s409, %s412
    %p418 = scmp.eq.s32.totalorder %s23, 0
    %p419 = por %p417, %p418
    %p420 = scmp.ne.s32.totalorder %s409, %s412
    %p421 = scmp.eq.s32.totalorder %s28, 3
    %p422 = por %p420, %p421
    %p423 = scmp.ne.s32.totalorder %s412, %s413
    %p424 = scmp.eq.s32.totalorder %s28, 0
    %p425 = por %p423, %p424
    %p426 = scmp.ne.s32.totalorder %s412, %s413
    %p427 = scmp.eq.s32.totalorder %s29, 3
    %p428 = por %p426, %p427
    %p430 = scmp.ne.s32.totalorder %s413, %s429
    %p431 = scmp.eq.s32.totalorder %s29, 0
    %p432 = por %p430, %p431
    %s433 = ssub.s32 %s31, %s38
    %p434 = scmp.eq.s32.totalorder %s433, 0
    %s436 = sadd.s32 %s435, 1
    %s437 = scalar_select %p434, %s435, %s436
    %p440 = pneg %p434
    %p441 = scmp.eq.s32.totalorder %s23, 3
    %p442 = por %p440, %p441
    %p443 = scmp.ne.s32.totalorder %s435, %s438
    %p444 = scmp.eq.s32.totalorder %s23, 0
    %p445 = por %p443, %p444
    %p446 = scmp.ne.s32.totalorder %s435, %s438
    %p447 = scmp.eq.s32.totalorder %s28, 3
    %p448 = por %p446, %p447
    %p449 = scmp.ne.s32.totalorder %s438, %s439
    %p450 = scmp.eq.s32.totalorder %s28, 0
    %p451 = por %p449, %p450
    %p452 = scmp.ne.s32.totalorder %s438, %s439
    %p453 = scmp.eq.s32.totalorder %s29, 3
    %p454 = por %p452, %p453
    %p456 = scmp.ne.s32.totalorder %s439, %s455
    %p457 = scmp.eq.s32.totalorder %s29, 0
    %p458 = por %p456, %p457
    %s459 = ssub.s32 %s31, %s38
    %p460 = scmp.eq.s32.totalorder %s459, 0
    %s462 = sadd.s32 %s461, 1
    %s463 = scalar_select %p460, %s461, %s462
    %p466 = pneg %p460
    %p467 = scmp.eq.s32.totalorder %s23, 3
    %p468 = por %p466, %p467
    %p469 = scmp.ne.s32.totalorder %s461, %s464
    %p470 = scmp.eq.s32.totalorder %s23, 0
    %p471 = por %p469, %p470
    %p472 = scmp.ne.s32.totalorder %s461, %s464
    %p473 = scmp.eq.s32.totalorder %s28, 3
    %p474 = por %p472, %p473
    %p475 = scmp.ne.s32.totalorder %s464, %s465
    %p476 = scmp.eq.s32.totalorder %s28, 0
    %p477 = por %p475, %p476
    %p478 = scmp.ne.s32.totalorder %s464, %s465
    %p479 = scmp.eq.s32.totalorder %s29, 3
    %p480 = por %p478, %p479
    %p482 = scmp.ne.s32.totalorder %s465, %s481
    %p483 = scmp.eq.s32.totalorder %s29, 0
    %p484 = por %p482, %p483
    %s485 = ssub.s32 %s30, %s42
    %p486 = scmp.eq.s32.totalorder %s485, 0
    %s488 = sadd.s32 %s487, 1
    %s489 = scalar_select %p486, %s487, %s488
    %p492 = pneg %p486
    %p493 = scmp.eq.s32.totalorder %s23, 3
    %p494 = por %p492, %p493
    %p495 = scmp.ne.s32.totalorder %s487, %s490
    %p496 = scmp.eq.s32.totalorder %s23, 0
    %p497 = por %p495, %p496
    %p498 = scmp.ne.s32.totalorder %s487, %s490
    %p499 = scmp.eq.s32.totalorder %s28, 3
    %p500 = por %p498, %p499
    %p501 = scmp.ne.s32.totalorder %s490, %s491
    %p502 = scmp.eq.s32.totalorder %s28, 0
    %p503 = por %p501, %p502
    %p504 = scmp.ne.s32.totalorder %s490, %s491
    %p505 = scmp.eq.s32.totalorder %s29, 3
    %p506 = por %p504, %p505
    %p508 = scmp.ne.s32.totalorder %s491, %s507
    %p509 = scmp.eq.s32.totalorder %s29, 0
    %p510 = por %p508, %p509
    %p511 = scmp.le.s32.totalorder 1, %s23
    %p512 = scmp.lt.s32.totalorder %s23, 5
    %p513 = pnand %p511, %p512
    %p514 = pneg %p513
    // Predicated region
    $region9: #{model_forward.3} parent=5 // pred_check
      _
    $region10: #{model_forward.3} parent=5 // pred_check_branch
      %516 = sbr.rel (%p513) target = $region12
    $region11: #{model_forward.3} parent=5 // pred_region
      %s517 = ssub.s32 %s23, 1
    $region12: #{model_forward.3} parent=5 // pred_fallthru
      _
    %p518 = scmp.lt.s32.totalorder %s23, 4
    // Predicated region
    $region13: #{model_forward.3} parent=5 // pred_check
      %p519 = pneg %p518
    $region14: #{model_forward.3} parent=5 // pred_check_branch
      %521 = sbr.rel (%p519) target = $region16
    $region15: #{model_forward.3} parent=5 // pred_region
      // Predicated region
      $region17: #{model_forward.3} parent=15 // pred_check
        %p522 = pneg %p55
      $region18: #{model_forward.3} parent=15 // pred_check_branch
        %524 = sbr.rel (%p522) target = $region20
      $region19: #{model_forward.3} parent=15 // pred_region
        %p525 = scmp.lt.s32.totalorder %s30, 1
        %s526 = scalar_select %p525, %s30, 1
        %s527 = smul.addr %s526, 8
        %s528 = scalar_lea.vmem %s0, %s527
      $region20: #{model_forward.3} parent=15 // pred_fallthru
        _
      // Predicated region
      $region21: #{model_forward.3} parent=15 // pred_check
        %p529 = pneg %p81
      $region22: #{model_forward.3} parent=15 // pred_check_branch
        %531 = sbr.rel (%p529) target = $region24
      $region23: #{model_forward.3} parent=15 // pred_region
        %p532 = scmp.lt.s32.totalorder %s31, 1
        %s533 = scalar_select %p532, %s31, 1
        %s534 = smul.addr %s533, 4
        %s535 = smul.addr %s534, 4
        %s536 = scalar_lea.vmem %s1, %s535
      $region24: #{model_forward.3} parent=15 // pred_fallthru
        _
      // Predicated region
      $region25: #{model_forward.3} parent=15 // pred_check
        %p537 = pneg %p107
      $region26: #{model_forward.3} parent=15 // pred_check_branch
        %539 = sbr.rel (%p537) target = $region28
      $region27: #{model_forward.3} parent=15 // pred_region
        %p540 = scmp.lt.s32.totalorder %s31, 1
        %s541 = scalar_select %p540, %s31, 1
        %s542 = smul.addr %s541, 4
        %s543 = smul.addr %s542, 4
        %s544 = scalar_lea.vmem %s2, %s543
      $region28: #{model_forward.3} parent=15 // pred_fallthru
        _
      // Predicated region
      $region29: #{model_forward.3} parent=15 // pred_check
        %p545 = pneg %p133
      $region30: #{model_forward.3} parent=15 // pred_check_branch
        %547 = sbr.rel (%p545) target = $region32
      $region31: #{model_forward.3} parent=15 // pred_region
        %p548 = scmp.lt.s32.totalorder %s31, 1
        %s549 = scalar_select %p548, %s31, 1
        %s550 = smul.addr %s549, 4
        %s551 = smul.addr %s550, 4
        %s552 = scalar_lea.vmem %s3, %s551
      $region32: #{model_forward.3} parent=15 // pred_fallthru
        _
      // Predicated region
      $region33: #{model_forward.3} parent=15 // pred_check
        %p553 = pneg %p159
      $region34: #{model_forward.3} parent=15 // pred_check_branch
        %555 = sbr.rel (%p553) target = $region36
      $region35: #{model_forward.3} parent=15 // pred_region
        %p556 = scmp.lt.s32.totalorder %s31, 1
        %s557 = scalar_select %p556, %s31, 1
        %s558 = scalar_lea.vmem %s4, %s557
      $region36: #{model_forward.3} parent=15 // pred_fallthru
        _
      // Predicated region
      $region37: #{model_forward.3} parent=15 // pred_check
        %p559 = pneg %p185
      $region38: #{model_forward.3} parent=15 // pred_check_branch
        %561 = sbr.rel (%p559) target = $region40
      $region39: #{model_forward.3} parent=15 // pred_region
        %p562 = scmp.lt.s32.totalorder %s31, 1
        %s563 = scalar_select %p562, %s31, 1
        %s564 = scalar_lea.vmem %s5, %s563
      $region40: #{model_forward.3} parent=15 // pred_fallthru
        _
      // Predicated region
      $region41: #{model_forward.3} parent=15 // pred_check
        %p565 = pneg %p211
      $region42: #{model_forward.3} parent=15 // pred_check_branch
        %567 = sbr.rel (%p565) target = $region44
      $region43: #{model_forward.3} parent=15 // pred_region
        %p568 = scmp.lt.s32.totalorder %s31, 1
        %s569 = scalar_select %p568, %s31, 1
        %s570 = scalar_lea.vmem %s6, %s569
      $region44: #{model_forward.3} parent=15 // pred_fallthru
        _
      // Predicated region
      $region45: #{model_forward.3} parent=15 // pred_check
        %p571 = pneg %p237
      $region46: #{model_forward.3} parent=15 // pred_check_branch
        %573 = sbr.rel (%p571) target = $region48
      $region47: #{model_forward.3} parent=15 // pred_region
        %p574 = scmp.lt.s32.totalorder %s31, 1
        %s575 = scalar_select %p574, %s31, 1
        %s576 = smul.addr %s575, 4
        %s577 = smul.addr %s576, 4
        %s578 = scalar_lea.vmem %s7, %s577
      $region48: #{model_forward.3} parent=15 // pred_fallthru
        _
      // Predicated region
      $region49: #{model_forward.3} parent=15 // pred_check
        %p579 = pneg %p263
      $region50: #{model_forward.3} parent=15 // pred_check_branch
        %581 = sbr.rel (%p579) target = $region52
      $region51: #{model_forward.3} parent=15 // pred_region
        %p582 = scmp.lt.s32.totalorder %s31, 1
        %s583 = scalar_select %p582, %s31, 1
        %s584 = scalar_lea.vmem %s8, %s583
      $region52: #{model_forward.3} parent=15 // pred_fallthru
        _
      // Predicated region
      $region53: #{model_forward.3} parent=15 // pred_check
        %p585 = pneg %p289
      $region54: #{model_forward.3} parent=15 // pred_check_branch
        %587 = sbr.rel (%p585) target = $region56
      $region55: #{model_forward.3} parent=15 // pred_region
        %p588 = scmp.lt.s32.totalorder %s31, 1
        %s589 = scalar_select %p588, %s31, 1
        %s590 = scalar_lea.vmem %s9, %s589
      $region56: #{model_forward.3} parent=15 // pred_fallthru
        _
      // Predicated region
      $region57: #{model_forward.3} parent=15 // pred_check
        %p591 = pneg %p315
      $region58: #{model_forward.3} parent=15 // pred_check_branch
        %593 = sbr.rel (%p591) target = $region60
      $region59: #{model_forward.3} parent=15 // pred_region
        %p594 = scmp.lt.s32.totalorder %s31, 1
        %s595 = scalar_select %p594, %s31, 1
        %s596 = scalar_lea.vmem %s10, %s595
      $region60: #{model_forward.3} parent=15 // pred_fallthru
        _
      // Predicated region
      $region61: #{model_forward.3} parent=15 // pred_check
        %p597 = pneg %p341
      $region62: #{model_forward.3} parent=15 // pred_check_branch
        %599 = sbr.rel (%p597) target = $region64
      $region63: #{model_forward.3} parent=15 // pred_region
        %p600 = scmp.lt.s32.totalorder %s31, 1
        %s601 = scalar_select %p600, %s31, 1
        %s602 = smul.addr %s601, 4
        %s603 = smul.addr %s602, 4
        %s604 = scalar_lea.vmem %s11, %s603
      $region64: #{model_forward.3} parent=15 // pred_fallthru
        _
      // Predicated region
      $region65: #{model_forward.3} parent=15 // pred_check
        %p605 = pneg %p367
      $region66: #{model_forward.3} parent=15 // pred_check_branch
        %607 = sbr.rel (%p605) target = $region68
      $region67: #{model_forward.3} parent=15 // pred_region
        %p608 = scmp.lt.s32.totalorder %s31, 1
        %s609 = scalar_select %p608, %s31, 1
        %s610 = scalar_lea.vmem %s12, %s609
      $region68: #{model_forward.3} parent=15 // pred_fallthru
        _
      // Predicated region
      $region69: #{model_forward.3} parent=15 // pred_check
        %p611 = pneg %p393
      $region70: #{model_forward.3} parent=15 // pred_check_branch
        %613 = sbr.rel (%p611) target = $region72
      $region71: #{model_forward.3} parent=15 // pred_region
        %p614 = scmp.lt.s32.totalorder %s31, 1
        %s615 = scalar_select %p614, %s31, 1
        %s616 = smul.addr %s615, 8
        %s617 = smul.addr %s616, 4
        %s618 = scalar_lea.vmem %s13, %s617
      $region72: #{model_forward.3} parent=15 // pred_fallthru
        _
      // Predicated region
      $region73: #{model_forward.3} parent=15 // pred_check
        %p619 = pneg %p419
      $region74: #{model_forward.3} parent=15 // pred_check_branch
        %621 = sbr.rel (%p619) target = $region76
      $region75: #{model_forward.3} parent=15 // pred_region
        %p622 = scmp.lt.s32.totalorder %s31, 1
        %s623 = scalar_select %p622, %s31, 1
        %s624 = scalar_lea.vmem %s14, %s623
      $region76: #{model_forward.3} parent=15 // pred_fallthru
        _
      // Predicated region
      $region77: #{model_forward.3} parent=15 // pred_check
        %p625 = pneg %p445
      $region78: #{model_forward.3} parent=15 // pred_check_branch
        %627 = sbr.rel (%p625) target = $region80
      $region79: #{model_forward.3} parent=15 // pred_region
        %p628 = scmp.lt.s32.totalorder %s31, 1
        %s629 = scalar_select %p628, %s31, 1
        %s630 = scalar_lea.vmem %s15, %s629
      $region80: #{model_forward.3} parent=15 // pred_fallthru
        _
      // Predicated region
      $region81: #{model_forward.3} parent=15 // pred_check
        %p631 = pneg %p471
      $region82: #{model_forward.3} parent=15 // pred_check_branch
        %633 = sbr.rel (%p631) target = $region84
      $region83: #{model_forward.3} parent=15 // pred_region
        %p634 = scmp.lt.s32.totalorder %s31, 1
        %s635 = scalar_select %p634, %s31, 1
        %s636 = scalar_lea.vmem %s16, %s635
      $region84: #{model_forward.3} parent=15 // pred_fallthru
        _
    $region16: #{model_forward.3} parent=5 // pred_fallthru
      _
    %p637 = scmp.le.s32.totalorder 1, %s23
    %p638 = scmp.lt.s32.totalorder %s23, 5
    %p639 = pnand %p637, %p638
    %p640 = pneg %p639
    // Predicated region
    $region85: #{model_forward.3} parent=5 // pred_check
      _
    $region86: #{model_forward.3} parent=5 // pred_check_branch
      %642 = sbr.rel (%p639) target = $region88
    $region87: #{model_forward.3} parent=5 // pred_region
      %s643 = ssub.s32 %s23, 1
      %p644 = scmp.lt.s32.totalorder %s32, 1
      %s645 = scalar_select %p644, %s32, 1
      %s646 = smul.addr %s645, 8
      %s647 = scalar_lea.vmem %s0, %s646
      %p648 = pneg %p61
      %p649 = pneg %p58
      %p650 = scmp.lt.s32.totalorder %s33, 1
      %s651 = scalar_select %p650, %s33, 1
      %s652 = smul.addr %s651, 4
      %s653 = smul.addr %s652, 4
      %s654 = scalar_lea.vmem %s1, %s653
      %p655 = pneg %p87
      %p656 = pneg %p84
      %p657 = scmp.lt.s32.totalorder %s33, 1
      %s658 = scalar_select %p657, %s33, 1
      %s659 = smul.addr %s658, 4
      %s660 = smul.addr %s659, 4
      %s661 = scalar_lea.vmem %s2, %s660
      %p662 = pneg %p113
      %p663 = pneg %p110
      %p664 = scmp.lt.s32.totalorder %s33, 1
      %s665 = scalar_select %p664, %s33, 1
      %s666 = smul.addr %s665, 4
      %s667 = smul.addr %s666, 4
      %s668 = scalar_lea.vmem %s3, %s667
      %p669 = pneg %p139
      %p670 = pneg %p136
      %p671 = scmp.lt.s32.totalorder %s33, 1
      %s672 = scalar_select %p671, %s33, 1
      %s673 = scalar_lea.vmem %s4, %s672
      %p674 = pneg %p165
      %p675 = pneg %p162
      %p676 = scmp.lt.s32.totalorder %s33, 1
      %s677 = scalar_select %p676, %s33, 1
      %s678 = scalar_lea.vmem %s5, %s677
      %p679 = pneg %p191
      %p680 = pneg %p188
      %p681 = scmp.lt.s32.totalorder %s33, 1
      %s682 = scalar_select %p681, %s33, 1
      %s683 = scalar_lea.vmem %s6, %s682
      %p684 = pneg %p217
      %p685 = pneg %p214
      %p686 = scmp.lt.s32.totalorder %s33, 1
      %s687 = scalar_select %p686, %s33, 1
      %s688 = smul.addr %s687, 4
      %s689 = smul.addr %s688, 4
      %s690 = scalar_lea.vmem %s7, %s689
      %p691 = pneg %p243
      %p692 = pneg %p240
      %p693 = scmp.lt.s32.totalorder %s33, 1
      %s694 = scalar_select %p693, %s33, 1
      %s695 = scalar_lea.vmem %s8, %s694
      %p696 = pneg %p269
      %p697 = pneg %p266
      %p698 = scmp.lt.s32.totalorder %s33, 1
      %s699 = scalar_select %p698, %s33, 1
      %s700 = scalar_lea.vmem %s9, %s699
      %p701 = pneg %p295
      %p702 = pneg %p292
      %p703 = scmp.lt.s32.totalorder %s33, 1
      %s704 = scalar_select %p703, %s33, 1
      %s705 = scalar_lea.vmem %s10, %s704
      %p706 = pneg %p321
      %p707 = pneg %p318
      %p708 = scmp.lt.s32.totalorder %s33, 1
      %s709 = scalar_select %p708, %s33, 1
      %s710 = smul.addr %s709, 4
      %s711 = smul.addr %s710, 4
      %s712 = scalar_lea.vmem %s11, %s711
      %p713 = pneg %p347
      %p714 = pneg %p344
      %p715 = scmp.lt.s32.totalorder %s33, 1
      %s716 = scalar_select %p715, %s33, 1
      %s717 = scalar_lea.vmem %s12, %s716
      %p718 = pneg %p373
      %p719 = pneg %p370
      %p720 = scmp.lt.s32.totalorder %s33, 1
      %s721 = scalar_select %p720, %s33, 1
      %s722 = smul.addr %s721, 8
      %s723 = smul.addr %s722, 4
      %s724 = scalar_lea.vmem %s13, %s723
      %p725 = pneg %p399
      %p726 = pneg %p396
      %p727 = scmp.lt.s32.totalorder %s33, 1
      %s728 = scalar_select %p727, %s33, 1
      %s729 = scalar_lea.vmem %s14, %s728
      %p730 = pneg %p425
      %p731 = pneg %p422
      %p732 = scmp.lt.s32.totalorder %s33, 1
      %s733 = scalar_select %p732, %s33, 1
      %s734 = scalar_lea.vmem %s15, %s733
      %p735 = pneg %p451
      %p736 = pneg %p448
      %p737 = scmp.lt.s32.totalorder %s33, 1
      %s738 = scalar_select %p737, %s33, 1
      %s739 = scalar_lea.vmem %s16, %s738
      %p740 = pneg %p477
      %p741 = pneg %p474
      %p742 = pneg %p503
      %p743 = pneg %p500
      %p744 = scmp.lt.s32.totalorder %s32, 1
      %s745 = scalar_select %p744, %s32, 1
      %s746 = smul.addr %s745, 8
      %s747 = scalar_lea.vmem %s17, %s746
      %p748 = scmp.lt.s32.totalorder %s32, 1
      %s749 = scalar_select %p748, %s32, 1
      %s750 = smul.addr %s749, 8
      %s751 = scalar_lea.vmem %s0, %s750
      %p752 = scmp.lt.s32.totalorder %s33, 1
      %s753 = scalar_select %p752, %s33, 1
      %s754 = smul.addr %s753, 4
      %s755 = smul.addr %s754, 4
      %s756 = scalar_lea.vmem %s1, %s755
      %p757 = scmp.lt.s32.totalorder %s33, 1
      %s758 = scalar_select %p757, %s33, 1
      %s759 = smul.addr %s758, 4
      %s760 = smul.addr %s759, 4
      %s761 = scalar_lea.vmem %s2, %s760
      %p762 = scmp.lt.s32.totalorder %s33, 1
      %s763 = scalar_select %p762, %s33, 1
      %s764 = smul.addr %s763, 4
      %s765 = smul.addr %s764, 4
      %s766 = scalar_lea.vmem %s3, %s765
      %p767 = scmp.lt.s32.totalorder %s33, 1
      %s768 = scalar_select %p767, %s33, 1
      %s769 = scalar_lea.vmem %s4, %s768
      %p770 = scmp.lt.s32.totalorder %s33, 1
      %s771 = scalar_select %p770, %s33, 1
      %s772 = scalar_lea.vmem %s5, %s771
      %p773 = scmp.lt.s32.totalorder %s33, 1
      %s774 = scalar_select %p773, %s33, 1
      %s775 = scalar_lea.vmem %s6, %s774
      %p776 = scmp.lt.s32.totalorder %s33, 1
      %s777 = scalar_select %p776, %s33, 1
      %s778 = smul.addr %s777, 4
      %s779 = smul.addr %s778, 4
      %s780 = scalar_lea.vmem %s7, %s779
      %p781 = scmp.lt.s32.totalorder %s33, 1
      %s782 = scalar_select %p781, %s33, 1
      %s783 = scalar_lea.vmem %s8, %s782
      %p784 = scmp.lt.s32.totalorder %s33, 1
      %s785 = scalar_select %p784, %s33, 1
      %s786 = scalar_lea.vmem %s9, %s785
      %p787 = scmp.lt.s32.totalorder %s33, 1
      %s788 = scalar_select %p787, %s33, 1
      %s789 = scalar_lea.vmem %s10, %s788
      %p790 = scmp.lt.s32.totalorder %s33, 1
      %s791 = scalar_select %p790, %s33, 1
      %s792 = smul.addr %s791, 4
      %s793 = smul.addr %s792, 4
      %s794 = scalar_lea.vmem %s11, %s793
      %p795 = scmp.lt.s32.totalorder %s33, 1
      %s796 = scalar_select %p795, %s33, 1
      %s797 = scalar_lea.vmem %s12, %s796
      %p798 = scmp.lt.s32.totalorder %s33, 1
      %s799 = scalar_select %p798, %s33, 1
      %s800 = smul.addr %s799, 8
      %s801 = smul.addr %s800, 4
      %s802 = scalar_lea.vmem %s13, %s801
      %p803 = scmp.lt.s32.totalorder %s33, 1
      %s804 = scalar_select %p803, %s33, 1
      %s805 = scalar_lea.vmem %s14, %s804
      %p806 = scmp.lt.s32.totalorder %s33, 1
      %s807 = scalar_select %p806, %s33, 1
      %s808 = scalar_lea.vmem %s15, %s807
      %p809 = scmp.lt.s32.totalorder %s33, 1
      %s810 = scalar_select %p809, %s33, 1
      %s811 = scalar_lea.vmem %s16, %s810
      %p812 = scmp.lt.s32.totalorder %s32, 1
      %s813 = scalar_select %p812, %s32, 1
      %s814 = smul.addr %s813, 8
      %s815 = scalar_lea.vmem %s17, %s814
      %p817 = scmp.eq.s32.totalorder %s33, 0
      // Predicated region
      $region89: #{model_forward.3} parent=87 // pred_check
        %p818 = pneg %p817
      $region90: #{model_forward.3} parent=87 // pred_check_branch
        %820 = sbr.rel (%p818) target = $region92
      $region91: #{model_forward.3} parent=87 // pred_region
        %v821 = vld [vmem:[%s751] sm:$0xff]
        %vm822 = vcmask 261120
        %823 = vst.msk [vmem:[#allocation2] sm:$0xff] %vm822, %v821
      $region92: #{model_forward.3} parent=87 // pred_fallthru
        _
      %v824 = vld [vmem:[#allocation2] sm:$0xff]
      %v825 = vpack.c.bf16 %v824, %v824
      %v826 = vld [vmem:[%s756] sm:$0xf]
      %v827 = vld [vmem:[%s756 + $0x4] sm:$0xf]
      %v828 = vld [vmem:[%s756 + $0x8] sm:$0xf]
      %v829 = vld [vmem:[%s756 + $0xc] sm:$0xf]
      %v830 = vld [vmem:[%s769] sm:$0x1]
      %v832 = vlaneseq
      %v833 = vshrl.u32 %v832, 7
      %v834 = vsub.s32 0, %v833
      %v835 = vrot.slane %v830, %v834
      %v841 = vunpack.c.l.b16 %v826
      %v842 = vunpack.c.l.b16 %v827
      %v843 = vunpack.c.l.b16 %v828
      %v844 = vunpack.c.l.b16 %v829
      %v845 = vpack.c.b16 %v842, %v841
      %v846 = vpack.c.b16 %v844, %v843
      %vm849 = vcmask 261120
      %v851 = vsel %vm849, %v825, 0
      %853 = vmatprep.subr.bf16.mxu0 0
      %854 = vmatpush1.bf16.msra.mxu0 %v845
      %855 = vmatprep.subr.bf16.mxu0 0
      %856 = vmatpush1.bf16.msra.mxu0 %v846
      %857 = vmatprep.subr.bf16.mxu0 0
      %858 = vmatpush1.bf16.msra.mxu0 0
      %859 = vmatprep.subr.bf16.mxu0 0
      %860 = vmatpush1.bf16.msra.mxu0 0
      %861 = vmatprep.subr.bf16.mxu0 0
      %862 = vmatpush1.bf16.msra.mxu0 0
      %863 = vmatprep.subr.bf16.mxu0 0
      %864 = vmatpush1.bf16.msra.mxu0 0
      %865 = vmatprep.subr.bf16.mxu0 0
      %866 = vmatpush1.bf16.msra.mxu0 0
      %867 = vmatprep.subr.bf16.mxu0 0
      %868 = vmatpush1.bf16.msra.mxu0 0
      %869 = vmatprep.subr.bf16.mxu0 0
      %870 = vmatpush1.bf16.msra.mxu0 0
      %871 = vmatprep.subr.bf16.mxu0 0
      %872 = vmatpush1.bf16.msra.mxu0 0
      %873 = vmatprep.subr.bf16.mxu0 0
      %874 = vmatpush1.bf16.msra.mxu0 0
      %875 = vmatprep.subr.bf16.mxu0 0
      %876 = vmatpush1.bf16.msra.mxu0 0
      %877 = vmatprep.subr.bf16.mxu0 0
      %878 = vmatpush1.bf16.msra.mxu0 0
      %879 = vmatprep.subr.bf16.mxu0 0
      %880 = vmatpush1.bf16.msra.mxu0 0
      %881 = vmatprep.subr.bf16.mxu0 0
      %882 = vmatpush1.bf16.msra.mxu0 0
      %883 = vmatprep.subr.bf16.mxu0 0
      %884 = vmatpush1.bf16.msra.mxu0 0
      %885 = vmatprep.mubr.bf16.mxu0 0
      %886 = vmatmul.mubr.bf16.gmra.mrb[0].mxu0 %v851
      %v887 = vpop.f32.mrb[0].mxu0
      %v888 = vadd.f32 %v835, %v887
      %v889 = vpop.f32.mrb[0].mxu0
      %v890 = vpop.f32.mrb[0].mxu0
      %v891 = vpop.f32.mrb[0].mxu0
      %892 = vdwg.mxu0
      %v893 = vld [vmem:[%s761] sm:$0xf]
      %v894 = vld [vmem:[%s761 + $0x4] sm:$0xf]
      %v895 = vld [vmem:[%s761 + $0x8] sm:$0xf]
      %v896 = vld [vmem:[%s761 + $0xc] sm:$0xf]
      %v897 = vld [vmem:[%s772] sm:$0x1]
      %v899 = vlaneseq
      %v900 = vshrl.u32 %v899, 7
      %v901 = vsub.s32 0, %v900
      %v902 = vrot.slane %v897, %v901
      %v908 = vunpack.c.l.b16 %v893
      %v909 = vunpack.c.l.b16 %v894
      %v910 = vunpack.c.l.b16 %v895
      %v911 = vunpack.c.l.b16 %v896
      %v912 = vpack.c.b16 %v909, %v908
      %v913 = vpack.c.b16 %v911, %v910
      %916 = vmatprep.subr.bf16.mxu0 0
      %917 = vmatpush1.bf16.msra.mxu0 %v912
      %918 = vmatprep.subr.bf16.mxu0 0
      %919 = vmatpush1.bf16.msra.mxu0 %v913
      %920 = vmatprep.subr.bf16.mxu0 0
      %921 = vmatpush1.bf16.msra.mxu0 0
      %922 = vmatprep.subr.bf16.mxu0 0
      %923 = vmatpush1.bf16.msra.mxu0 0
      %924 = vmatprep.subr.bf16.mxu0 0
      %925 = vmatpush1.bf16.msra.mxu0 0
      %926 = vmatprep.subr.bf16.mxu0 0
      %927 = vmatpush1.bf16.msra.mxu0 0
      %928 = vmatprep.subr.bf16.mxu0 0
      %929 = vmatpush1.bf16.msra.mxu0 0
      %930 = vmatprep.subr.bf16.mxu0 0
      %931 = vmatpush1.bf16.msra.mxu0 0
      %932 = vmatprep.subr.bf16.mxu0 0
      %933 = vmatpush1.bf16.msra.mxu0 0
      %934 = vmatprep.subr.bf16.mxu0 0
      %935 = vmatpush1.bf16.msra.mxu0 0
      %936 = vmatprep.subr.bf16.mxu0 0
      %937 = vmatpush1.bf16.msra.mxu0 0
      %938 = vmatprep.subr.bf16.mxu0 0
      %939 = vmatpush1.bf16.msra.mxu0 0
      %940 = vmatprep.subr.bf16.mxu0 0
      %941 = vmatpush1.bf16.msra.mxu0 0
      %942 = vmatprep.subr.bf16.mxu0 0
      %943 = vmatpush1.bf16.msra.mxu0 0
      %944 = vmatprep.subr.bf16.mxu0 0
      %945 = vmatpush1.bf16.msra.mxu0 0
      %946 = vmatprep.subr.bf16.mxu0 0
      %947 = vmatpush1.bf16.msra.mxu0 0
      %948 = vmatprep.mubr.bf16.mxu0 0
      %949 = vmatmul.mubr.bf16.gmra.mrb[0].mxu0 %v851
      %v950 = vpop.f32.mrb[0].mxu0
      %v951 = vadd.f32 %v902, %v950
      %v952 = vpop.f32.mrb[0].mxu0
      %v953 = vpop.f32.mrb[0].mxu0
      %v954 = vpop.f32.mrb[0].mxu0
      %955 = vdwg.mxu0
      %v956 = vld [vmem:[%s766] sm:$0xf]
      %v957 = vld [vmem:[%s766 + $0x4] sm:$0xf]
      %v958 = vld [vmem:[%s766 + $0x8] sm:$0xf]
      %v959 = vld [vmem:[%s766 + $0xc] sm:$0xf]
      %v960 = vld [vmem:[%s775] sm:$0x1]
      %v962 = vlaneseq
      %v963 = vshrl.u32 %v962, 7
      %v964 = vsub.s32 0, %v963
      %v965 = vrot.slane %v960, %v964
      %v971 = vunpack.c.l.b16 %v956
      %v972 = vunpack.c.l.b16 %v957
      %v973 = vunpack.c.l.b16 %v958
      %v974 = vunpack.c.l.b16 %v959
      %v975 = vpack.c.b16 %v972, %v971
      %v976 = vpack.c.b16 %v974, %v973
      %979 = vmatprep.subr.bf16.mxu0 0
      %980 = vmatpush1.bf16.msra.mxu0 %v975
      %981 = vmatprep.subr.bf16.mxu0 0
      %982 = vmatpush1.bf16.msra.mxu0 %v976
      %983 = vmatprep.subr.bf16.mxu0 0
      %984 = vmatpush1.bf16.msra.mxu0 0
      %985 = vmatprep.subr.bf16.mxu0 0
      %986 = vmatpush1.bf16.msra.mxu0 0
      %987 = vmatprep.subr.bf16.mxu0 0
      %988 = vmatpush1.bf16.msra.mxu0 0
      %989 = vmatprep.subr.bf16.mxu0 0
      %990 = vmatpush1.bf16.msra.mxu0 0
      %991 = vmatprep.subr.bf16.mxu0 0
      %992 = vmatpush1.bf16.msra.mxu0 0
      %993 = vmatprep.subr.bf16.mxu0 0
      %994 = vmatpush1.bf16.msra.mxu0 0
      %995 = vmatprep.subr.bf16.mxu0 0
      %996 = vmatpush1.bf16.msra.mxu0 0
      %997 = vmatprep.subr.bf16.mxu0 0
      %998 = vmatpush1.bf16.msra.mxu0 0
      %999 = vmatprep.subr.bf16.mxu0 0
      %1000 = vmatpush1.bf16.msra.mxu0 0
      %1001 = vmatprep.subr.bf16.mxu0 0
      %1002 = vmatpush1.bf16.msra.mxu0 0
      %1003 = vmatprep.subr.bf16.mxu0 0
      %1004 = vmatpush1.bf16.msra.mxu0 0
      %1005 = vmatprep.subr.bf16.mxu0 0
      %1006 = vmatpush1.bf16.msra.mxu0 0
      %1007 = vmatprep.subr.bf16.mxu0 0
      %1008 = vmatpush1.bf16.msra.mxu0 0
      %1009 = vmatprep.subr.bf16.mxu0 0
      %1010 = vmatpush1.bf16.msra.mxu0 0
      %1011 = vmatprep.mubr.bf16.mxu0 0
      %1012 = vmatmul.mubr.bf16.gmra.mrb[0].mxu0 %v851
      %v1013 = vpop.f32.mrb[0].mxu0
      %v1014 = vadd.f32 %v965, %v1013
      %v1015 = vpop.f32.mrb[0].mxu0
      %v1016 = vpop.f32.mrb[0].mxu0
      %v1017 = vpop.f32.mrb[0].mxu0
      %1018 = vdwg.mxu0
      %v1019 = vpack.c.bf16 %v888, %v888
      %v1020 = vpack.c.bf16 %v951, %v951
      %v1021 = vpack.c.bf16 %v1014, %v1014
      %vm1022 = vcmask 64512
      %v1024 = vsel %vm1022, %v1019, 0
      %v1027 = vsel %vm1022, %v1020, 0
      %1029 = vmatprep.subr.bf16.mxu0 0
      %1030 = vmatpush1.bf16.xpose.msra.mxu0 %v1027
      %1031 = vmatprep.subr.bf16.mxu0 0
      %1032 = vmatpush1.bf16.xpose.msra.mxu0 0
      %1033 = vmatprep.subr.bf16.mxu0 0
      %1034 = vmatpush1.bf16.xpose.msra.mxu0 0
      %1035 = vmatprep.subr.bf16.mxu0 0
      %1036 = vmatpush1.bf16.xpose.msra.mxu0 0
      %1037 = vmatprep.subr.bf16.mxu0 0
      %1038 = vmatpush1.bf16.xpose.msra.mxu0 0
      %1039 = vmatprep.subr.bf16.mxu0 0
      %1040 = vmatpush1.bf16.xpose.msra.mxu0 0
      %1041 = vmatprep.subr.bf16.mxu0 0
      %1042 = vmatpush1.bf16.xpose.msra.mxu0 0
      %1043 = vmatprep.subr.bf16.mxu0 0
      %1044 = vmatpush1.bf16.xpose.msra.mxu0 0
      %1045 = vmatprep.subr.bf16.mxu0 0
      %1046 = vmatpush1.bf16.xpose.msra.mxu0 0
      %1047 = vmatprep.subr.bf16.mxu0 0
      %1048 = vmatpush1.bf16.xpose.msra.mxu0 0
      %1049 = vmatprep.subr.bf16.mxu0 0
      %1050 = vmatpush1.bf16.xpose.msra.mxu0 0
      %1051 = vmatprep.subr.bf16.mxu0 0
      %1052 = vmatpush1.bf16.xpose.msra.mxu0 0
      %1053 = vmatprep.subr.bf16.mxu0 0
      %1054 = vmatpush1.bf16.xpose.msra.mxu0 0
      %1055 = vmatprep.subr.bf16.mxu0 0
      %1056 = vmatpush1.bf16.xpose.msra.mxu0 0
      %1057 = vmatprep.subr.bf16.mxu0 0
      %1058 = vmatpush1.bf16.xpose.msra.mxu0 0
      %1059 = vmatprep.subr.bf16.mxu0 0
      %1060 = vmatpush1.bf16.xpose.msra.mxu0 0
      %1061 = vmatprep.mubr.bf16.mxu0 0
      %1062 = vmatmul.mubr.bf16.gmra.mrb[0].mxu0 %v1024
      %v1063 = vpop.f32.mrb[0].mxu0
      %v1064 = vadd.f32 0.0, %v1063
      %v1065 = vpop.f32.mrb[0].mxu0
      %v1066 = vpop.f32.mrb[0].mxu0
      %v1067 = vpop.f32.mrb[0].mxu0
      %1068 = vdwg.mxu0
      %v1069 = vmul.f32 %v1064, 0.35355338
      %v1070 = vsel %vm1022, %v1069, -inf
      %1071 = vmax.xlane.f32.xlu0 %v1070
      %v1072 = vpop.xlane.xlu0 %1071
      %v1073 = vsub.f32 %v1069, %v1072
      %v1074 = vmul.f32 %v1073, 1.442695
      %v1075 = vpow.pop %v1074
      %v1076 = vsel %vm1022, %v1075, 0.0
      %1077 = vadd.xlane.f32.xlu0 %v1076
      %v1078 = vpop.xlane.xlu0 %1077
      %v1079 = vrcp.pop %v1078
      %v1080 = vmul.f32 %v1075, %v1079
      %v1081 = vpack.c.bf16 %v1080, %v1080
      %v1083 = vsel %vm1022, %v1081, 0
      %vm1085 = vcmask 1043456
      %v1087 = vsel %vm1085, %v1021, 0
      %1089 = vmatprep.subr.bf16.mxu0 0
      %1090 = vmatpush1.bf16.msra.mxu0 %v1087
      %1091 = vmatprep.subr.bf16.mxu0 0
      %1092 = vmatpush1.bf16.msra.mxu0 0
      %1093 = vmatprep.subr.bf16.mxu0 0
      %1094 = vmatpush1.bf16.msra.mxu0 0
      %1095 = vmatprep.subr.bf16.mxu0 0
      %1096 = vmatpush1.bf16.msra.mxu0 0
      %1097 = vmatprep.subr.bf16.mxu0 0
      %1098 = vmatpush1.bf16.msra.mxu0 0
      %1099 = vmatprep.subr.bf16.mxu0 0
      %1100 = vmatpush1.bf16.msra.mxu0 0
      %1101 = vmatprep.subr.bf16.mxu0 0
      %1102 = vmatpush1.bf16.msra.mxu0 0
      %1103 = vmatprep.subr.bf16.mxu0 0
      %1104 = vmatpush1.bf16.msra.mxu0 0
      %1105 = vmatprep.subr.bf16.mxu0 0
      %1106 = vmatpush1.bf16.msra.mxu0 0
      %1107 = vmatprep.subr.bf16.mxu0 0
      %1108 = vmatpush1.bf16.msra.mxu0 0
      %1109 = vmatprep.subr.bf16.mxu0 0
      %1110 = vmatpush1.bf16.msra.mxu0 0
      %1111 = vmatprep.subr.bf16.mxu0 0
      %1112 = vmatpush1.bf16.msra.mxu0 0
      %1113 = vmatprep.subr.bf16.mxu0 0
      %1114 = vmatpush1.bf16.msra.mxu0 0
      %1115 = vmatprep.subr.bf16.mxu0 0
      %1116 = vmatpush1.bf16.msra.mxu0 0
      %1117 = vmatprep.subr.bf16.mxu0 0
      %1118 = vmatpush1.bf16.msra.mxu0 0
      %1119 = vmatprep.subr.bf16.mxu0 0
      %1120 = vmatpush1.bf16.msra.mxu0 0
      %1121 = vmatprep.mubr.bf16.mxu0 0
      %1122 = vmatmul.mubr.bf16.gmra.mrb[0].mxu0 %v1083
      %v1123 = vpop.f32.mrb[0].mxu0
      %v1124 = vadd.f32 0.0, %v1123
      %v1125 = vpop.f32.mrb[0].mxu0
      %v1126 = vpop.f32.mrb[0].mxu0
      %v1127 = vpop.f32.mrb[0].mxu0
      %1128 = vdwg.mxu0
      %1129 = vst.msk [vmem:[#allocation3] sm:$0xff] %vm1022, %v1124
      %1131 = vrot.lane.b32.xlu0 %v1019, 120
      %v1132 = vpop.permute.xlu0 %1131
      %1134 = vrot.lane.b32.xlu0 %v1020, 120
      %v1135 = vpop.permute.xlu0 %1134
      %v1137 = vsel %vm1022, %v1132, 0
      %v1140 = vsel %vm1022, %v1135, 0
      %1142 = vmatprep.subr.bf16.mxu0 0
      %1143 = vmatpush1.bf16.xpose.msra.mxu0 %v1140
      %1144 = vmatprep.subr.bf16.mxu0 0
      %1145 = vmatpush1.bf16.xpose.msra.mxu0 0
      %1146 = vmatprep.subr.bf16.mxu0 0
      %1147 = vmatpush1.bf16.xpose.msra.mxu0 0
      %1148 = vmatprep.subr.bf16.mxu0 0
      %1149 = vmatpush1.bf16.xpose.msra.mxu0 0
      %1150 = vmatprep.subr.bf16.mxu0 0
      %1151 = vmatpush1.bf16.xpose.msra.mxu0 0
      %1152 = vmatprep.subr.bf16.mxu0 0
      %1153 = vmatpush1.bf16.xpose.msra.mxu0 0
      %1154 = vmatprep.subr.bf16.mxu0 0
      %1155 = vmatpush1.bf16.xpose.msra.mxu0 0
      %1156 = vmatprep.subr.bf16.mxu0 0
      %1157 = vmatpush1.bf16.xpose.msra.mxu0 0
      %1158 = vmatprep.subr.bf16.mxu0 0
      %1159 = vmatpush1.bf16.xpose.msra.mxu0 0
      %1160 = vmatprep.subr.bf16.mxu0 0
      %1161 = vmatpush1.bf16.xpose.msra.mxu0 0
      %1162 = vmatprep.subr.bf16.mxu0 0
      %1163 = vmatpush1.bf16.xpose.msra.mxu0 0
      %1164 = vmatprep.subr.bf16.mxu0 0
      %1165 = vmatpush1.bf16.xpose.msra.mxu0 0
      %1166 = vmatprep.subr.bf16.mxu0 0
      %1167 = vmatpush1.bf16.xpose.msra.mxu0 0
      %1168 = vmatprep.subr.bf16.mxu0 0
      %1169 = vmatpush1.bf16.xpose.msra.mxu0 0
      %1170 = vmatprep.subr.bf16.mxu0 0
      %1171 = vmatpush1.bf16.xpose.msra.mxu0 0
      %1172 = vmatprep.subr.bf16.mxu0 0
      %1173 = vmatpush1.bf16.xpose.msra.mxu0 0
      %1174 = vmatprep.mubr.bf16.mxu0 0
      %1175 = vmatmul.mubr.bf16.gmra.mrb[0].mxu0 %v1137
      %v1176 = vpop.f32.mrb[0].mxu0
      %v1177 = vadd.f32 0.0, %v1176
      %v1178 = vpop.f32.mrb[0].mxu0
      %v1179 = vpop.f32.mrb[0].mxu0
      %v1180 = vpop.f32.mrb[0].mxu0
      %1181 = vdwg.mxu0
      %v1182 = vmul.f32 %v1177, 0.35355338
      %v1183 = vsel %vm1022, %v1182, -inf
      %1184 = vmax.xlane.f32.xlu0 %v1183
      %v1185 = vpop.xlane.xlu0 %1184
      %v1186 = vsub.f32 %v1182, %v1185
      %v1187 = vmul.f32 %v1186, 1.442695
      %v1188 = vpow.pop %v1187
      %v1189 = vsel %vm1022, %v1188, 0.0
      %1190 = vadd.xlane.f32.xlu0 %v1189
      %v1191 = vpop.xlane.xlu0 %1190
      %v1192 = vrcp.pop %v1191
      %v1193 = vmul.f32 %v1188, %v1192
      %v1194 = vpack.c.bf16 %v1193, %v1193
      %1196 = vrot.lane.b32.xlu0 %v1021, 120
      %v1197 = vpop.permute.xlu0 %1196
      %v1199 = vsel %vm1022, %v1194, 0
      %v1202 = vsel %vm1085, %v1197, 0
      %1204 = vmatprep.subr.bf16.mxu0 0
      %1205 = vmatpush1.bf16.msra.mxu0 %v1202
      %1206 = vmatprep.subr.bf16.mxu0 0
      %1207 = vmatpush1.bf16.msra.mxu0 0
      %1208 = vmatprep.subr.bf16.mxu0 0
      %1209 = vmatpush1.bf16.msra.mxu0 0
      %1210 = vmatprep.subr.bf16.mxu0 0
      %1211 = vmatpush1.bf16.msra.mxu0 0
      %1212 = vmatprep.subr.bf16.mxu0 0
      %1213 = vmatpush1.bf16.msra.mxu0 0
      %1214 = vmatprep.subr.bf16.mxu0 0
      %1215 = vmatpush1.bf16.msra.mxu0 0
      %1216 = vmatprep.subr.bf16.mxu0 0
      %1217 = vmatpush1.bf16.msra.mxu0 0
      %1218 = vmatprep.subr.bf16.mxu0 0
      %1219 = vmatpush1.bf16.msra.mxu0 0
      %1220 = vmatprep.subr.bf16.mxu0 0
      %1221 = vmatpush1.bf16.msra.mxu0 0
      %1222 = vmatprep.subr.bf16.mxu0 0
      %1223 = vmatpush1.bf16.msra.mxu0 0
      %1224 = vmatprep.subr.bf16.mxu0 0
      %1225 = vmatpush1.bf16.msra.mxu0 0
      %1226 = vmatprep.subr.bf16.mxu0 0
      %1227 = vmatpush1.bf16.msra.mxu0 0
      %1228 = vmatprep.subr.bf16.mxu0 0
      %1229 = vmatpush1.bf16.msra.mxu0 0
      %1230 = vmatprep.subr.bf16.mxu0 0
      %1231 = vmatpush1.bf16.msra.mxu0 0
      %1232 = vmatprep.subr.bf16.mxu0 0
      %1233 = vmatpush1.bf16.msra.mxu0 0
      %1234 = vmatprep.subr.bf16.mxu0 0
      %1235 = vmatpush1.bf16.msra.mxu0 0
      %1236 = vmatprep.mubr.bf16.mxu0 0
      %1237 = vmatmul.mubr.bf16.gmra.mrb[0].mxu0 %v1199
      %v1238 = vpop.f32.mrb[0].mxu0
      %v1239 = vadd.f32 0.0, %v1238
      %v1240 = vpop.f32.mrb[0].mxu0
      %v1241 = vpop.f32.mrb[0].mxu0
      %v1242 = vpop.f32.mrb[0].mxu0
      %1243 = vdwg.mxu0
      %1245 = vrot.lane.b32.xlu0 %v1239, 8
      %v1246 = vpop.permute.xlu0 %1245
      %vm1248 = vcmask 130112
      %1249 = vst.msk [vmem:[#allocation3] sm:$0xff] %vm1248, %v1246
      %1250 = vrot.lane.b32.xlu0 %v1019, 112
      %v1251 = vpop.permute.xlu0 %1250
      %1252 = vrot.lane.b32.xlu0 %v1020, 112
      %v1253 = vpop.permute.xlu0 %1252
      %v1255 = vsel %vm1022, %v1251, 0
      %v1258 = vsel %vm1022, %v1253, 0
      %1260 = vmatprep.subr.bf16.mxu0 0
      %1261 = vmatpush1.bf16.xpose.msra.mxu0 %v1258
      %1262 = vmatprep.subr.bf16.mxu0 0
      %1263 = vmatpush1.bf16.xpose.msra.mxu0 0
      %1264 = vmatprep.subr.bf16.mxu0 0
      %1265 = vmatpush1.bf16.xpose.msra.mxu0 0
      %1266 = vmatprep.subr.bf16.mxu0 0
      %1267 = vmatpush1.bf16.xpose.msra.mxu0 0
      %1268 = vmatprep.subr.bf16.mxu0 0
      %1269 = vmatpush1.bf16.xpose.msra.mxu0 0
      %1270 = vmatprep.subr.bf16.mxu0 0
      %1271 = vmatpush1.bf16.xpose.msra.mxu0 0
      %1272 = vmatprep.subr.bf16.mxu0 0
      %1273 = vmatpush1.bf16.xpose.msra.mxu0 0
      %1274 = vmatprep.subr.bf16.mxu0 0
      %1275 = vmatpush1.bf16.xpose.msra.mxu0 0
      %1276 = vmatprep.subr.bf16.mxu0 0
      %1277 = vmatpush1.bf16.xpose.msra.mxu0 0
      %1278 = vmatprep.subr.bf16.mxu0 0
      %1279 = vmatpush1.bf16.xpose.msra.mxu0 0
      %1280 = vmatprep.subr.bf16.mxu0 0
      %1281 = vmatpush1.bf16.xpose.msra.mxu0 0
      %1282 = vmatprep.subr.bf16.mxu0 0
      %1283 = vmatpush1.bf16.xpose.msra.mxu0 0
      %1284 = vmatprep.subr.bf16.mxu0 0
      %1285 = vmatpush1.bf16.xpose.msra.mxu0 0
      %1286 = vmatprep.subr.bf16.mxu0 0
      %1287 = vmatpush1.bf16.xpose.msra.mxu0 0
      %1288 = vmatprep.subr.bf16.mxu0 0
      %1289 = vmatpush1.bf16.xpose.msra.mxu0 0
      %1290 = vmatprep.subr.bf16.mxu0 0
      %1291 = vmatpush1.bf16.xpose.msra.mxu0 0
      %1292 = vmatprep.mubr.bf16.mxu0 0
      %1293 = vmatmul.mubr.bf16.gmra.mrb[0].mxu0 %v1255
      %v1294 = vpop.f32.mrb[0].mxu0
      %v1295 = vadd.f32 0.0, %v1294
      %v1296 = vpop.f32.mrb[0].mxu0
      %v1297 = vpop.f32.mrb[0].mxu0
      %v1298 = vpop.f32.mrb[0].mxu0
      %1299 = vdwg.mxu0
      %v1300 = vmul.f32 %v1295, 0.35355338
      %v1301 = vsel %vm1022, %v1300, -inf
      %1302 = vmax.xlane.f32.xlu0 %v1301
      %v1303 = vpop.xlane.xlu0 %1302
      %v1304 = vsub.f32 %v1300, %v1303
      %v1305 = vmul.f32 %v1304, 1.442695
      %v1306 = vpow.pop %v1305
      %v1307 = vsel %vm1022, %v1306, 0.0
      %1308 = vadd.xlane.f32.xlu0 %v1307
      %v1309 = vpop.xlane.xlu0 %1308
      %v1310 = vrcp.pop %v1309
      %v1311 = vmul.f32 %v1306, %v1310
      %v1312 = vpack.c.bf16 %v1311, %v1311
      %1313 = vrot.lane.b32.xlu0 %v1021, 112
      %v1314 = vpop.permute.xlu0 %1313
      %v1316 = vsel %vm1022, %v1312, 0
      %v1319 = vsel %vm1085, %v1314, 0
      %1321 = vmatprep.subr.bf16.mxu0 0
      %1322 = vmatpush1.bf16.msra.mxu0 %v1319
      %1323 = vmatprep.subr.bf16.mxu0 0
      %1324 = vmatpush1.bf16.msra.mxu0 0
      %1325 = vmatprep.subr.bf16.mxu0 0
      %1326 = vmatpush1.bf16.msra.mxu0 0
      %1327 = vmatprep.subr.bf16.mxu0 0
      %1328 = vmatpush1.bf16.msra.mxu0 0
      %1329 = vmatprep.subr.bf16.mxu0 0
      %1330 = vmatpush1.bf16.msra.mxu0 0
      %1331 = vmatprep.subr.bf16.mxu0 0
      %1332 = vmatpush1.bf16.msra.mxu0 0
      %1333 = vmatprep.subr.bf16.mxu0 0
      %1334 = vmatpush1.bf16.msra.mxu0 0
      %1335 = vmatprep.subr.bf16.mxu0 0
      %1336 = vmatpush1.bf16.msra.mxu0 0
      %1337 = vmatprep.subr.bf16.mxu0 0
      %1338 = vmatpush1.bf16.msra.mxu0 0
      %1339 = vmatprep.subr.bf16.mxu0 0
      %1340 = vmatpush1.bf16.msra.mxu0 0
      %1341 = vmatprep.subr.bf16.mxu0 0
      %1342 = vmatpush1.bf16.msra.mxu0 0
      %1343 = vmatprep.subr.bf16.mxu0 0
      %1344 = vmatpush1.bf16.msra.mxu0 0
      %1345 = vmatprep.subr.bf16.mxu0 0
      %1346 = vmatpush1.bf16.msra.mxu0 0
      %1347 = vmatprep.subr.bf16.mxu0 0
      %1348 = vmatpush1.bf16.msra.mxu0 0
      %1349 = vmatprep.subr.bf16.mxu0 0
      %1350 = vmatpush1.bf16.msra.mxu0 0
      %1351 = vmatprep.subr.bf16.mxu0 0
      %1352 = vmatpush1.bf16.msra.mxu0 0
      %1353 = vmatprep.mubr.bf16.mxu0 0
      %1354 = vmatmul.mubr.bf16.gmra.mrb[0].mxu0 %v1316
      %v1355 = vpop.f32.mrb[0].mxu0
      %v1356 = vadd.f32 0.0, %v1355
      %v1357 = vpop.f32.mrb[0].mxu0
      %v1358 = vpop.f32.mrb[0].mxu0
      %v1359 = vpop.f32.mrb[0].mxu0
      %1360 = vdwg.mxu0
      %1362 = vrot.lane.b32.xlu0 %v1356, 16
      %v1363 = vpop.permute.xlu0 %1362
      %vm1365 = vcmask 195712
      %1366 = vst.msk [vmem:[#allocation3] sm:$0xff] %vm1365, %v1363
      %1367 = vrot.lane.b32.xlu0 %v1019, 104
      %v1368 = vpop.permute.xlu0 %1367
      %1369 = vrot.lane.b32.xlu0 %v1020, 104
      %v1370 = vpop.permute.xlu0 %1369
      %v1372 = vsel %vm1022, %v1368, 0
      %v1375 = vsel %vm1022, %v1370, 0
      %1377 = vmatprep.subr.bf16.mxu0 0
      %1378 = vmatpush1.bf16.xpose.msra.mxu0 %v1375
      %1379 = vmatprep.subr.bf16.mxu0 0
      %1380 = vmatpush1.bf16.xpose.msra.mxu0 0
      %1381 = vmatprep.subr.bf16.mxu0 0
      %1382 = vmatpush1.bf16.xpose.msra.mxu0 0
      %1383 = vmatprep.subr.bf16.mxu0 0
      %1384 = vmatpush1.bf16.xpose.msra.mxu0 0
      %1385 = vmatprep.subr.bf16.mxu0 0
      %1386 = vmatpush1.bf16.xpose.msra.mxu0 0
      %1387 = vmatprep.subr.bf16.mxu0 0
      %1388 = vmatpush1.bf16.xpose.msra.mxu0 0
      %1389 = vmatprep.subr.bf16.mxu0 0
      %1390 = vmatpush1.bf16.xpose.msra.mxu0 0
      %1391 = vmatprep.subr.bf16.mxu0 0
      %1392 = vmatpush1.bf16.xpose.msra.mxu0 0
      %1393 = vmatprep.subr.bf16.mxu0 0
      %1394 = vmatpush1.bf16.xpose.msra.mxu0 0
      %1395 = vmatprep.subr.bf16.mxu0 0
      %1396 = vmatpush1.bf16.xpose.msra.mxu0 0
      %1397 = vmatprep.subr.bf16.mxu0 0
      %1398 = vmatpush1.bf16.xpose.msra.mxu0 0
      %1399 = vmatprep.subr.bf16.mxu0 0
      %1400 = vmatpush1.bf16.xpose.msra.mxu0 0
      %1401 = vmatprep.subr.bf16.mxu0 0
      %1402 = vmatpush1.bf16.xpose.msra.mxu0 0
      %1403 = vmatprep.subr.bf16.mxu0 0
      %1404 = vmatpush1.bf16.xpose.msra.mxu0 0
      %1405 = vmatprep.subr.bf16.mxu0 0
      %1406 = vmatpush1.bf16.xpose.msra.mxu0 0
      %1407 = vmatprep.subr.bf16.mxu0 0
      %1408 = vmatpush1.bf16.xpose.msra.mxu0 0
      %1409 = vmatprep.mubr.bf16.mxu0 0
      %1410 = vmatmul.mubr.bf16.gmra.mrb[0].mxu0 %v1372
      %v1411 = vpop.f32.mrb[0].mxu0
      %v1412 = vadd.f32 0.0, %v1411
      %v1413 = vpop.f32.mrb[0].mxu0
      %v1414 = vpop.f32.mrb[0].mxu0
      %v1415 = vpop.f32.mrb[0].mxu0
      %1416 = vdwg.mxu0
      %v1417 = vmul.f32 %v1412, 0.35355338
      %v1418 = vsel %vm1022, %v1417, -inf
      %1419 = vmax.xlane.f32.xlu0 %v1418
      %v1420 = vpop.xlane.xlu0 %1419
      %v1421 = vsub.f32 %v1417, %v1420
      %v1422 = vmul.f32 %v1421, 1.442695
      %v1423 = vpow.pop %v1422
      %v1424 = vsel %vm1022, %v1423, 0.0
      %1425 = vadd.xlane.f32.xlu0 %v1424
      %v1426 = vpop.xlane.xlu0 %1425
      %v1427 = vrcp.pop %v1426
      %v1428 = vmul.f32 %v1423, %v1427
      %v1429 = vpack.c.bf16 %v1428, %v1428
      %1430 = vrot.lane.b32.xlu0 %v1021, 104
      %v1431 = vpop.permute.xlu0 %1430
      %v1433 = vsel %vm1022, %v1429, 0
      %v1436 = vsel %vm1085, %v1431, 0
      %1438 = vmatprep.subr.bf16.mxu0 0
      %1439 = vmatpush1.bf16.msra.mxu0 %v1436
      %1440 = vmatprep.subr.bf16.mxu0 0
      %1441 = vmatpush1.bf16.msra.mxu0 0
      %1442 = vmatprep.subr.bf16.mxu0 0
      %1443 = vmatpush1.bf16.msra.mxu0 0
      %1444 = vmatprep.subr.bf16.mxu0 0
      %1445 = vmatpush1.bf16.msra.mxu0 0
      %1446 = vmatprep.subr.bf16.mxu0 0
      %1447 = vmatpush1.bf16.msra.mxu0 0
      %1448 = vmatprep.subr.bf16.mxu0 0
      %1449 = vmatpush1.bf16.msra.mxu0 0
      %1450 = vmatprep.subr.bf16.mxu0 0
      %1451 = vmatpush1.bf16.msra.mxu0 0
      %1452 = vmatprep.subr.bf16.mxu0 0
      %1453 = vmatpush1.bf16.msra.mxu0 0
      %1454 = vmatprep.subr.bf16.mxu0 0
      %1455 = vmatpush1.bf16.msra.mxu0 0
      %1456 = vmatprep.subr.bf16.mxu0 0
      %1457 = vmatpush1.bf16.msra.mxu0 0
      %1458 = vmatprep.subr.bf16.mxu0 0
      %1459 = vmatpush1.bf16.msra.mxu0 0
      %1460 = vmatprep.subr.bf16.mxu0 0
      %1461 = vmatpush1.bf16.msra.mxu0 0
      %1462 = vmatprep.subr.bf16.mxu0 0
      %1463 = vmatpush1.bf16.msra.mxu0 0
      %1464 = vmatprep.subr.bf16.mxu0 0
      %1465 = vmatpush1.bf16.msra.mxu0 0
      %1466 = vmatprep.subr.bf16.mxu0 0
      %1467 = vmatpush1.bf16.msra.mxu0 0
      %1468 = vmatprep.subr.bf16.mxu0 0
      %1469 = vmatpush1.bf16.msra.mxu0 0
      %1470 = vmatprep.mubr.bf16.mxu0 0
      %1471 = vmatmul.mubr.bf16.gmra.mrb[0].mxu0 %v1433
      %v1472 = vpop.f32.mrb[0].mxu0
      %v1473 = vadd.f32 0.0, %v1472
      %v1474 = vpop.f32.mrb[0].mxu0
      %v1475 = vpop.f32.mrb[0].mxu0
      %v1476 = vpop.f32.mrb[0].mxu0
      %1477 = vdwg.mxu0
      %1479 = vrot.lane.b32.xlu0 %v1473, 24
      %v1480 = vpop.permute.xlu0 %1479
      %vm1482 = vcmask 261312
      %1483 = vst.msk [vmem:[#allocation3] sm:$0xff] %vm1482, %v1480
      %v1484 = vld [vmem:[#allocation3] sm:$0xff]
      %v1485 = vpack.c.bf16 %v1484, %v1484
      %v1486 = vld [vmem:[%s780] sm:$0xf]
      %v1487 = vld [vmem:[%s780 + $0x4] sm:$0xf]
      %v1488 = vld [vmem:[%s780 + $0x8] sm:$0xf]
      %v1489 = vld [vmem:[%s780 + $0xc] sm:$0xf]
      %v1490 = vld [vmem:[%s783] sm:$0x1]
      %v1492 = vlaneseq
      %v1493 = vshrl.u32 %v1492, 7
      %v1494 = vsub.s32 0, %v1493
      %v1495 = vrot.slane %v1490, %v1494
      %v1501 = vunpack.c.l.b16 %v1486
      %v1502 = vunpack.c.l.b16 %v1487
      %v1503 = vunpack.c.l.b16 %v1488
      %v1504 = vunpack.c.l.b16 %v1489
      %v1505 = vpack.c.b16 %v1502, %v1501
      %v1506 = vpack.c.b16 %v1504, %v1503
      %v1510 = vsel %vm849, %v1485, 0
      %1512 = vmatprep.subr.bf16.mxu0 0
      %1513 = vmatpush1.bf16.msra.mxu0 %v1505
      %1514 = vmatprep.subr.bf16.mxu0 0
      %1515 = vmatpush1.bf16.msra.mxu0 %v1506
      %1516 = vmatprep.subr.bf16.mxu0 0
      %1517 = vmatpush1.bf16.msra.mxu0 0
      %1518 = vmatprep.subr.bf16.mxu0 0
      %1519 = vmatpush1.bf16.msra.mxu0 0
      %1520 = vmatprep.subr.bf16.mxu0 0
      %1521 = vmatpush1.bf16.msra.mxu0 0
      %1522 = vmatprep.subr.bf16.mxu0 0
      %1523 = vmatpush1.bf16.msra.mxu0 0
      %1524 = vmatprep.subr.bf16.mxu0 0
      %1525 = vmatpush1.bf16.msra.mxu0 0
      %1526 = vmatprep.subr.bf16.mxu0 0
      %1527 = vmatpush1.bf16.msra.mxu0 0
      %1528 = vmatprep.subr.bf16.mxu0 0
      %1529 = vmatpush1.bf16.msra.mxu0 0
      %1530 = vmatprep.subr.bf16.mxu0 0
      %1531 = vmatpush1.bf16.msra.mxu0 0
      %1532 = vmatprep.subr.bf16.mxu0 0
      %1533 = vmatpush1.bf16.msra.mxu0 0
      %1534 = vmatprep.subr.bf16.mxu0 0
      %1535 = vmatpush1.bf16.msra.mxu0 0
      %1536 = vmatprep.subr.bf16.mxu0 0
      %1537 = vmatpush1.bf16.msra.mxu0 0
      %1538 = vmatprep.subr.bf16.mxu0 0
      %1539 = vmatpush1.bf16.msra.mxu0 0
      %1540 = vmatprep.subr.bf16.mxu0 0
      %1541 = vmatpush1.bf16.msra.mxu0 0
      %1542 = vmatprep.subr.bf16.mxu0 0
      %1543 = vmatpush1.bf16.msra.mxu0 0
      %1544 = vmatprep.mubr.bf16.mxu0 0
      %1545 = vmatmul.mubr.bf16.gmra.mrb[0].mxu0 %v1510
      %v1546 = vpop.f32.mrb[0].mxu0
      %v1547 = vadd.f32 %v1495, %v1546
      %v1548 = vpop.f32.mrb[0].mxu0
      %v1549 = vpop.f32.mrb[0].mxu0
      %v1550 = vpop.f32.mrb[0].mxu0
      %1551 = vdwg.mxu0
      %v1552 = vadd.f32 %v824, %v1547
      %v1553 = vld [vmem:[%s786] sm:$0x1]
      %v1554 = vld [vmem:[%s789] sm:$0x1]
      %v1555 = vsel %vm849, %v1552, 0.0
      %1556 = vadd.xlane.f32.xlu0 %v1555
      %v1557 = vpop.xlane.xlu0 %1556
      %v1558 = vrcp.pop 32.0
      %v1559 = vmul.f32 %v1557, %v1558
      %v1560 = vsub.f32 %v1552, %v1559
      %v1561 = vmul.f32 %v1560, %v1560
      %v1562 = vsel %vm849, %v1561, 0.0
      %1563 = vadd.xlane.f32.xlu0 %v1562
      %v1564 = vpop.xlane.xlu0 %1563
      %v1565 = vmul.f32 %v1564, %v1558
      %v1566 = vadd.f32 %v1565, 1e-05
      %v1567 = vrsqrt.pop %v1566
      %v1568 = vmul.f32 %v1560, %v1567
      %v1570 = vlaneseq
      %v1571 = vshrl.u32 %v1570, 7
      %v1572 = vsub.s32 0, %v1571
      %v1573 = vrot.slane %v1553, %v1572
      %v1575 = vmul.f32 %v1568, %v1573
      %v1577 = vlaneseq
      %v1578 = vshrl.u32 %v1577, 7
      %v1579 = vsub.s32 0, %v1578
      %v1580 = vrot.slane %v1554, %v1579
      %v1582 = vadd.f32 %v1575, %v1580
      %v1583 = vpack.c.bf16 %v1582, %v1582
      %v1584 = vld [vmem:[%s794] sm:$0xf]
      %v1585 = vld [vmem:[%s794 + $0x4] sm:$0xf]
      %v1586 = vld [vmem:[%s794 + $0x8] sm:$0xf]
      %v1587 = vld [vmem:[%s794 + $0xc] sm:$0xf]
      %v1588 = vld [vmem:[%s797] sm:$0x1]
      %v1590 = vlaneseq
      %v1591 = vshrl.u32 %v1590, 7
      %v1592 = vsub.s32 0, %v1591
      %v1593 = vrot.slane %v1588, %v1592
      %v1599 = vunpack.c.l.b16 %v1584
      %v1600 = vunpack.c.l.b16 %v1585
      %v1601 = vunpack.c.l.b16 %v1586
      %v1602 = vunpack.c.l.b16 %v1587
      %v1603 = vpack.c.b16 %v1600, %v1599
      %v1604 = vpack.c.b16 %v1602, %v1601
      %v1608 = vsel %vm849, %v1583, 0
      %1610 = vmatprep.subr.bf16.mxu0 0
      %1611 = vmatpush1.bf16.msra.mxu0 %v1603
      %1612 = vmatprep.subr.bf16.mxu0 0
      %1613 = vmatpush1.bf16.msra.mxu0 %v1604
      %1614 = vmatprep.subr.bf16.mxu0 0
      %1615 = vmatpush1.bf16.msra.mxu0 0
      %1616 = vmatprep.subr.bf16.mxu0 0
      %1617 = vmatpush1.bf16.msra.mxu0 0
      %1618 = vmatprep.subr.bf16.mxu0 0
      %1619 = vmatpush1.bf16.msra.mxu0 0
      %1620 = vmatprep.subr.bf16.mxu0 0
      %1621 = vmatpush1.bf16.msra.mxu0 0
      %1622 = vmatprep.subr.bf16.mxu0 0
      %1623 = vmatpush1.bf16.msra.mxu0 0
      %1624 = vmatprep.subr.bf16.mxu0 0
      %1625 = vmatpush1.bf16.msra.mxu0 0
      %1626 = vmatprep.subr.bf16.mxu0 0
      %1627 = vmatpush1.bf16.msra.mxu0 0
      %1628 = vmatprep.subr.bf16.mxu0 0
      %1629 = vmatpush1.bf16.msra.mxu0 0
      %1630 = vmatprep.subr.bf16.mxu0 0
      %1631 = vmatpush1.bf16.msra.mxu0 0
      %1632 = vmatprep.subr.bf16.mxu0 0
      %1633 = vmatpush1.bf16.msra.mxu0 0
      %1634 = vmatprep.subr.bf16.mxu0 0
      %1635 = vmatpush1.bf16.msra.mxu0 0
      %1636 = vmatprep.subr.bf16.mxu0 0
      %1637 = vmatpush1.bf16.msra.mxu0 0
      %1638 = vmatprep.subr.bf16.mxu0 0
      %1639 = vmatpush1.bf16.msra.mxu0 0
      %1640 = vmatprep.subr.bf16.mxu0 0
      %1641 = vmatpush1.bf16.msra.mxu0 0
      %1642 = vmatprep.mubr.bf16.mxu0 0
      %1643 = vmatmul.mubr.bf16.gmra.mrb[0].mxu0 %v1608
      %v1644 = vpop.f32.mrb[0].mxu0
      %v1645 = vadd.f32 %v1593, %v1644
      %v1646 = vpop.f32.mrb[0].mxu0
      %v1647 = vpop.f32.mrb[0].mxu0
      %v1648 = vpop.f32.mrb[0].mxu0
      %1649 = vdwg.mxu0
      %v1650 = vmax.f32 %v1645, 0.0
      %v1651 = vpack.c.bf16 %v1650, %v1650
      %v1652 = vld [vmem:[%s802] sm:$0xf]
      %v1653 = vld [vmem:[%s802 + $0x4] sm:$0xf]
      %v1654 = vld [vmem:[%s802 + $0x8] sm:$0xf]
      %v1655 = vld [vmem:[%s802 + $0xc] sm:$0xf]
      %v1656 = vld [vmem:[%s802 + $0x10] sm:$0xf]
      %v1657 = vld [vmem:[%s802 + $0x14] sm:$0xf]
      %v1658 = vld [vmem:[%s802 + $0x18] sm:$0xf]
      %v1659 = vld [vmem:[%s802 + $0x1c] sm:$0xf]
      %v1660 = vld [vmem:[%s805] sm:$0x1]
      %v1662 = vlaneseq
      %v1663 = vshrl.u32 %v1662, 7
      %v1664 = vsub.s32 0, %v1663
      %v1665 = vrot.slane %v1660, %v1664
      %v1675 = vunpack.c.l.b16 %v1652
      %v1676 = vunpack.c.l.b16 %v1653
      %v1677 = vunpack.c.l.b16 %v1654
      %v1678 = vunpack.c.l.b16 %v1655
      %v1679 = vunpack.c.l.b16 %v1656
      %v1680 = vunpack.c.l.b16 %v1657
      %v1681 = vunpack.c.l.b16 %v1658
      %v1682 = vunpack.c.l.b16 %v1659
      %v1683 = vpack.c.b16 %v1676, %v1675
      %v1684 = vpack.c.b16 %v1678, %v1677
      %v1685 = vpack.c.b16 %v1680, %v1679
      %v1686 = vpack.c.b16 %v1682, %v1681
      %vm1691 = vcmask 523264
      %v1693 = vsel %vm1691, %v1651, 0
      %1695 = vmatprep.subr.bf16.mxu0 0
      %1696 = vmatpush1.bf16.msra.mxu0 %v1683
      %1697 = vmatprep.subr.bf16.mxu0 0
      %1698 = vmatpush1.bf16.msra.mxu0 %v1684
      %1699 = vmatprep.subr.bf16.mxu0 0
      %1700 = vmatpush1.bf16.msra.mxu0 %v1685
      %1701 = vmatprep.subr.bf16.mxu0 0
      %1702 = vmatpush1.bf16.msra.mxu0 %v1686
      %1703 = vmatprep.subr.bf16.mxu0 0
      %1704 = vmatpush1.bf16.msra.mxu0 0
      %1705 = vmatprep.subr.bf16.mxu0 0
      %1706 = vmatpush1.bf16.msra.mxu0 0
      %1707 = vmatprep.subr.bf16.mxu0 0
      %1708 = vmatpush1.bf16.msra.mxu0 0
      %1709 = vmatprep.subr.bf16.mxu0 0
      %1710 = vmatpush1.bf16.msra.mxu0 0
      %1711 = vmatprep.subr.bf16.mxu0 0
      %1712 = vmatpush1.bf16.msra.mxu0 0
      %1713 = vmatprep.subr.bf16.mxu0 0
      %1714 = vmatpush1.bf16.msra.mxu0 0
      %1715 = vmatprep.subr.bf16.mxu0 0
      %1716 = vmatpush1.bf16.msra.mxu0 0
      %1717 = vmatprep.subr.bf16.mxu0 0
      %1718 = vmatpush1.bf16.msra.mxu0 0
      %1719 = vmatprep.subr.bf16.mxu0 0
      %1720 = vmatpush1.bf16.msra.mxu0 0
      %1721 = vmatprep.subr.bf16.mxu0 0
      %1722 = vmatpush1.bf16.msra.mxu0 0
      %1723 = vmatprep.subr.bf16.mxu0 0
      %1724 = vmatpush1.bf16.msra.mxu0 0
      %1725 = vmatprep.subr.bf16.mxu0 0
      %1726 = vmatpush1.bf16.msra.mxu0 0
      %1727 = vmatprep.mubr.bf16.mxu0 0
      %1728 = vmatmul.mubr.bf16.gmra.mrb[0].mxu0 %v1693
      %v1729 = vpop.f32.mrb[0].mxu0
      %v1730 = vadd.f32 %v1665, %v1729
      %v1731 = vpop.f32.mrb[0].mxu0
      %v1732 = vpop.f32.mrb[0].mxu0
      %v1733 = vpop.f32.mrb[0].mxu0
      %1734 = vdwg.mxu0
      %v1735 = vadd.f32 %v1582, %v1730
      %v1736 = vld [vmem:[%s808] sm:$0x1]
      %v1737 = vld [vmem:[%s811] sm:$0x1]
      %v1738 = vsel %vm849, %v1735, 0.0
      %1739 = vadd.xlane.f32.xlu0 %v1738
      %v1740 = vpop.xlane.xlu0 %1739
      %v1741 = vmul.f32 %v1740, %v1558
      %v1742 = vsub.f32 %v1735, %v1741
      %v1743 = vmul.f32 %v1742, %v1742
      %v1744 = vsel %vm849, %v1743, 0.0
      %1745 = vadd.xlane.f32.xlu0 %v1744
      %v1746 = vpop.xlane.xlu0 %1745
      %v1747 = vmul.f32 %v1746, %v1558
      %v1748 = vadd.f32 %v1747, 1e-05
      %v1749 = vrsqrt.pop %v1748
      %v1750 = vmul.f32 %v1742, %v1749
      %v1752 = vlaneseq
      %v1753 = vshrl.u32 %v1752, 7
      %v1754 = vsub.s32 0, %v1753
      %v1755 = vrot.slane %v1736, %v1754
      %v1757 = vmul.f32 %v1750, %v1755
      %v1759 = vlaneseq
      %v1760 = vshrl.u32 %v1759, 7
      %v1761 = vsub.s32 0, %v1760
      %v1762 = vrot.slane %v1737, %v1761
      %v1764 = vadd.f32 %v1757, %v1762
      %1765 = vst.msk [vmem:[#allocation2] sm:$0xff] %vm849, %v1764
      %p1766 = scmp.eq.s32.totalorder %s33, 1
      // Predicated region
      $region93: #{model_forward.3} parent=87 // pred_check
        %p1767 = pneg %p1766
      $region94: #{model_forward.3} parent=87 // pred_check_branch
        %1769 = sbr.rel (%p1767) target = $region96
      $region95: #{model_forward.3} parent=87 // pred_region
        %1770 = vst.msk [vmem:[%s815] sm:$0xff] %vm849, %v1764
      $region96: #{model_forward.3} parent=87 // pred_fallthru
        _
      %p1771 = scmp.lt.s32.totalorder %s32, 1
      %s1772 = scalar_select %p1771, %s32, 1
      %s1773 = smul.addr %s1772, 8
      %s1774 = scalar_lea.vmem %s17, %s1773
      // Predicated region
      $region97: #{model_forward.3} parent=87 // pred_check
        %p1775 = pneg %p500
      $region98: #{model_forward.3} parent=87 // pred_check_branch
        %1777 = sbr.rel (%p1775) target = $region100
      $region99: #{model_forward.3} parent=87 // pred_region
        _
      $region100: #{model_forward.3} parent=87 // pred_fallthru
        _
    $region88: #{model_forward.3} parent=5 // pred_fallthru
      _
    %p1778 = scmp.le.s32.totalorder 2, %s23
    // Predicated region
    $region101: #{model_forward.3} parent=5 // pred_check
      %p1779 = pneg %p1778
    $region102: #{model_forward.3} parent=5 // pred_check_branch
      %1781 = sbr.rel (%p1779) target = $region104
    $region103: #{model_forward.3} parent=5 // pred_region
      %s1782 = ssub.s32 %s23, 2
      // Predicated region
      $region105: #{model_forward.3} parent=103 // pred_check
        %p1783 = pneg %p506
      $region106: #{model_forward.3} parent=103 // pred_check_branch
        %1785 = sbr.rel (%p1783) target = $region108
      $region107: #{model_forward.3} parent=103 // pred_region
        %p1786 = scmp.lt.s32.totalorder %s34, 1
        %s1787 = scalar_select %p1786, %s34, 1
        %s1788 = smul.addr %s1787, 8
        %s1789 = scalar_lea.vmem %s17, %s1788
      $region108: #{model_forward.3} parent=103 // pred_fallthru
        _
    $region104: #{model_forward.3} parent=5 // pred_fallthru
      _
  $region6: #{model_forward.3} parent=0 // loop_footer
    %s27 = sadd.s32 1, %s23
  $region7: #{model_forward.3} parent=0 // loop_footer_branch
    %22 = sbr.rel target = $region3
  $region8: #{model_forward.3} parent=0 // loop_exit
    _

// kernel: model_forward.4
$region0: #{model_forward.4}
  #allocation0 [shape = 'u32[]', space=smem, size = 0x4, offset = 0x4, fixed_abs, tag = 'smem constant byte address 0x4 - core index']
  #allocation1 [shape = 'u32[144,128]{1,0:T(1,128)}', space=vmem, size = 0x12000, scoped, tag = 'internal scratch']
  #allocation2 [shape = 'f32[8,32]{1,0:T(8,128)}', space=vmem, size = 0x1000, scoped, tag = 'scratch operand']
  #allocation3 [shape = 'f32[8,32]{1,0:T(8,128)}', space=vmem, size = 0x1000, scoped, tag = 'scratch operand']
  %s0 = inlined_call_operand.vmem [shape: f32[2,8,32], index: 0, kind: input, shape index: {}]
  %s1 = inlined_call_operand.vmem [shape: f32[2,8,32], index: 1, kind: input, shape index: {}]
  %s2 = inlined_call_operand.vmem [shape: bf16[2,32,32], index: 2, kind: input, shape index: {}]
  %s3 = inlined_call_operand.vmem [shape: bf16[2,32,32], index: 3, kind: input, shape index: {}]
  %s4 = inlined_call_operand.vmem [shape: bf16[2,32,32], index: 4, kind: input, shape index: {}]
  %s5 = inlined_call_operand.vmem [shape: f32[2,1,32], index: 5, kind: input, shape index: {}]
  %s6 = inlined_call_operand.vmem [shape: f32[2,1,32], index: 6, kind: input, shape index: {}]
  %s7 = inlined_call_operand.vmem [shape: f32[2,1,32], index: 7, kind: input, shape index: {}]
  %s8 = inlined_call_operand.vmem [shape: bf16[2,32,32], index: 8, kind: input, shape index: {}]
  %s9 = inlined_call_operand.vmem [shape: f32[2,1,32], index: 9, kind: input, shape index: {}]
  %s10 = inlined_call_operand.vmem [shape: f32[2,1,32], index: 10, kind: input, shape index: {}]
  %s11 = inlined_call_operand.vmem [shape: f32[2,1,32], index: 11, kind: input, shape index: {}]
  %s12 = inlined_call_operand.vmem [shape: bf16[2,32,32], index: 12, kind: input, shape index: {}]
  %s13 = inlined_call_operand.vmem [shape: bf16[2,32,32], index: 13, kind: input, shape index: {}]
  %s14 = inlined_call_operand.vmem [shape: bf16[2,32,32], index: 14, kind: input, shape index: {}]
  %s15 = inlined_call_operand.vmem [shape: f32[2,1,32], index: 15, kind: input, shape index: {}]
  %s16 = inlined_call_operand.vmem [shape: f32[2,1,32], index: 16, kind: input, shape index: {}]
  %s17 = inlined_call_operand.vmem [shape: f32[2,1,32], index: 17, kind: input, shape index: {}]
  %s18 = inlined_call_operand.vmem [shape: bf16[2,32,32], index: 18, kind: input, shape index: {}]
  %s19 = inlined_call_operand.vmem [shape: f32[2,1,32], index: 19, kind: input, shape index: {}]
  %s20 = inlined_call_operand.vmem [shape: f32[2,1,32], index: 20, kind: input, shape index: {}]
  %s21 = inlined_call_operand.vmem [shape: f32[2,1,32], index: 21, kind: input, shape index: {}]
  %s22 = inlined_call_operand.vmem [shape: bf16[2,32,64], index: 22, kind: input, shape index: {}]
  %s23 = inlined_call_operand.vmem [shape: f32[2,1,64], index: 23, kind: input, shape index: {}]
  %s24 = inlined_call_operand.vmem [shape: bf16[2,64,32], index: 24, kind: input, shape index: {}]
  %s25 = inlined_call_operand.vmem [shape: f32[2,1,32], index: 25, kind: input, shape index: {}]
  %s26 = inlined_call_operand.hbm [shape: f32[2,1,32], index: 26, kind: input, shape index: {}]
  %s27 = inlined_call_operand.hbm [shape: f32[2,1,32], index: 27, kind: input, shape index: {}]
  %s28 = inlined_call_operand.vmem [shape: f32[2,8,32], index: 28, kind: output, shape index: {}]
  %s29 = sld [smem:[#allocation0]]
  $region161: #{model_forward.4} parent=0
    _
  %s31 = ssub.s32 1, %s29
  %s32 = scalar_select 0, %s31, %s29
  $region1: #{model_forward.4} parent=0
    #allocation4 [shape = 'u8[1024]{0}', space=vmem, size = 0x400, scoped, tag = 'input window, operand 26']
    #allocation5 [shape = 's32[2]{0}', space=sflag, size = 0x8, scoped, tag = 'scoped memory for model_forward.4']
    #allocation6 [shape = 'u8[1024]{0}', space=vmem, size = 0x400, scoped, tag = 'input window, operand 27']
    #allocation7 [shape = 's32[2]{0}', space=sflag, size = 0x8, scoped, tag = 'scoped memory for model_forward.4']
    %33 = vsyncpa [#allocation5], 0
    %s34 = scalar_lea.sflag [#allocation5], 1
    %35 = vsyncpa %s34, 0
    %36 = vsyncpa [#allocation7], 0
    %s37 = scalar_lea.sflag [#allocation7], 1
    %38 = vsyncpa %s37, 0
    loop: start=0, step=1, limit=6
    $region2: #{model_forward.4} parent=1 // loop_pre_header
      _
    $region3: #{model_forward.4} parent=1 // loop_header
      %s40 = sphi 0, %s44
      %p41 = scmp.ge.s32.totalorder %s40, 6
      %s47 = sphi 0, %s59
      %s48 = sphi 0, %s55
      %s49 = sphi 0, %s47
      %s50 = sphi 0, %s48
      %s51 = sphi 0, %s49
      %s52 = sphi 0, %s50
      %s62 = sphi 0, %s64
      %s65 = sphi 0, %s62
      %s66 = sphi 0, %s65
      %s82 = sphi 0, %s66
      %s88 = sphi 0, %s90
      %s91 = sphi 0, %s88
      %s92 = sphi 0, %s91
      %s108 = sphi 0, %s92
      %s114 = sphi 0, %s116
      %s117 = sphi 0, %s114
      %s118 = sphi 0, %s117
      %s134 = sphi 0, %s118
      %s140 = sphi 0, %s142
      %s143 = sphi 0, %s140
      %s144 = sphi 0, %s143
      %s160 = sphi 0, %s144
      %s166 = sphi 0, %s168
      %s169 = sphi 0, %s166
      %s170 = sphi 0, %s169
      %s186 = sphi 0, %s170
      %s192 = sphi 0, %s194
      %s195 = sphi 0, %s192
      %s196 = sphi 0, %s195
      %s212 = sphi 0, %s196
      %s218 = sphi 0, %s220
      %s221 = sphi 0, %s218
      %s222 = sphi 0, %s221
      %s238 = sphi 0, %s222
      %s244 = sphi 0, %s246
      %s247 = sphi 0, %s244
      %s248 = sphi 0, %s247
      %s264 = sphi 0, %s248
      %s270 = sphi 0, %s272
      %s273 = sphi 0, %s270
      %s274 = sphi 0, %s273
      %s290 = sphi 0, %s274
      %s296 = sphi 0, %s298
      %s299 = sphi 0, %s296
      %s300 = sphi 0, %s299
      %s316 = sphi 0, %s300
      %s322 = sphi 0, %s324
      %s325 = sphi 0, %s322
      %s326 = sphi 0, %s325
      %s342 = sphi 0, %s326
      %s348 = sphi 0, %s350
      %s351 = sphi 0, %s348
      %s352 = sphi 0, %s351
      %s368 = sphi 0, %s352
      %s374 = sphi 0, %s376
      %s377 = sphi 0, %s374
      %s378 = sphi 0, %s377
      %s394 = sphi 0, %s378
      %s400 = sphi 0, %s402
      %s403 = sphi 0, %s400
      %s404 = sphi 0, %s403
      %s420 = sphi 0, %s404
      %s426 = sphi 0, %s428
      %s429 = sphi 0, %s426
      %s430 = sphi 0, %s429
      %s446 = sphi 0, %s430
      %s452 = sphi 0, %s454
      %s455 = sphi 0, %s452
      %s456 = sphi 0, %s455
      %s472 = sphi 0, %s456
      %s478 = sphi 0, %s480
      %s481 = sphi 0, %s478
      %s482 = sphi 0, %s481
      %s498 = sphi 0, %s482
      %s504 = sphi 0, %s506
      %s507 = sphi 0, %s504
      %s508 = sphi 0, %s507
      %s524 = sphi 0, %s508
      %s530 = sphi 0, %s532
      %s533 = sphi 0, %s530
      %s534 = sphi 0, %s533
      %s550 = sphi 0, %s534
      %s556 = sphi 0, %s558
      %s559 = sphi 0, %s556
      %s560 = sphi 0, %s559
      %s576 = sphi 0, %s560
      %s582 = sphi 0, %s584
      %s585 = sphi 0, %s582
      %s586 = sphi 0, %s585
      %s602 = sphi 0, %s586
      %s608 = sphi 0, %s610
      %s611 = sphi 0, %s608
      %s612 = sphi 0, %s611
      %s628 = sphi 0, %s612
      %s634 = sphi 0, %s636
      %s637 = sphi 0, %s634
      %s638 = sphi 0, %s637
      %s654 = sphi 0, %s638
      %s660 = sphi 0, %s662
      %s663 = sphi 0, %s660
      %s664 = sphi 0, %s663
      %s680 = sphi 0, %s664
      %s686 = sphi 0, %s688
      %s689 = sphi 0, %s686
      %s690 = sphi 0, %s689
      %s706 = sphi 0, %s690
      %s712 = sphi 0, %s714
      %s715 = sphi 0, %s712
      %s716 = sphi 0, %s715
      %s732 = sphi 0, %s716
      %s738 = sphi 0, %s740
      %s741 = sphi 0, %s738
      %s742 = sphi 0, %s741
      %s758 = sphi 0, %s742
      %s764 = sphi 0, %s766
      %s767 = sphi 0, %s764
      %s768 = sphi 0, %s767
      %s784 = sphi 0, %s768
      %s790 = sphi 0, %s792
      %s793 = sphi 0, %s790
      %s794 = sphi 0, %s793
      %s810 = sphi 0, %s794
    $region4: #{model_forward.4} parent=1 // loop_header_branch
      %43 = sbr.rel (%p41) target = $region8
    $region5: #{model_forward.4} parent=1 // loop_body
      %s45 = ssub.s32 %s40, 1
      %s46 = ssub.s32 %s40, 2
      %s53 = sadd.s32 1, %s48
      %p54 = scmp.ge.s32.totalorder %s53, 2
      %s55 = scalar_select %p54, 0, %s53
      %s56 = sadd.s32 1, %s47
      %s57 = scalar_select %p54, %s56, %s47
      %p58 = scmp.ge.s32.totalorder %s57, 2
      %s59 = scalar_select %p58, 0, %s57
      %s60 = ssub.s32 %s47, %s59
      %p61 = scmp.eq.s32.totalorder %s60, 0
      %s63 = sadd.s32 %s62, 1
      %s64 = scalar_select %p61, %s62, %s63
      %p67 = pneg %p61
      %p68 = scmp.eq.s32.totalorder %s40, 3
      %p69 = por %p67, %p68
      %p70 = scmp.ne.s32.totalorder %s62, %s65
      %p71 = scmp.eq.s32.totalorder %s40, 0
      %p72 = por %p70, %p71
      %p73 = scmp.ne.s32.totalorder %s62, %s65
      %p74 = scmp.eq.s32.totalorder %s45, 3
      %p75 = por %p73, %p74
      %p76 = scmp.ne.s32.totalorder %s65, %s66
      %p77 = scmp.eq.s32.totalorder %s45, 0
      %p78 = por %p76, %p77
      %p79 = scmp.ne.s32.totalorder %s65, %s66
      %p80 = scmp.eq.s32.totalorder %s46, 3
      %p81 = por %p79, %p80
      %p83 = scmp.ne.s32.totalorder %s66, %s82
      %p84 = scmp.eq.s32.totalorder %s46, 0
      %p85 = por %p83, %p84
      %s86 = ssub.s32 %s47, %s59
      %p87 = scmp.eq.s32.totalorder %s86, 0
      %s89 = sadd.s32 %s88, 1
      %s90 = scalar_select %p87, %s88, %s89
      %p93 = pneg %p87
      %p94 = scmp.eq.s32.totalorder %s40, 3
      %p95 = por %p93, %p94
      %p96 = scmp.ne.s32.totalorder %s88, %s91
      %p97 = scmp.eq.s32.totalorder %s40, 0
      %p98 = por %p96, %p97
      %p99 = scmp.ne.s32.totalorder %s88, %s91
      %p100 = scmp.eq.s32.totalorder %s45, 3
      %p101 = por %p99, %p100
      %p102 = scmp.ne.s32.totalorder %s91, %s92
      %p103 = scmp.eq.s32.totalorder %s45, 0
      %p104 = por %p102, %p103
      %p105 = scmp.ne.s32.totalorder %s91, %s92
      %p106 = scmp.eq.s32.totalorder %s46, 3
      %p107 = por %p105, %p106
      %p109 = scmp.ne.s32.totalorder %s92, %s108
      %p110 = scmp.eq.s32.totalorder %s46, 0
      %p111 = por %p109, %p110
      %s112 = ssub.s32 %s48, %s55
      %p113 = scmp.eq.s32.totalorder %s112, 0
      %s115 = sadd.s32 %s114, 1
      %s116 = scalar_select %p113, %s114, %s115
      %p119 = pneg %p113
      %p120 = scmp.eq.s32.totalorder %s40, 3
      %p121 = por %p119, %p120
      %p122 = scmp.ne.s32.totalorder %s114, %s117
      %p123 = scmp.eq.s32.totalorder %s40, 0
      %p124 = por %p122, %p123
      %p125 = scmp.ne.s32.totalorder %s114, %s117
      %p126 = scmp.eq.s32.totalorder %s45, 3
      %p127 = por %p125, %p126
      %p128 = scmp.ne.s32.totalorder %s117, %s118
      %p129 = scmp.eq.s32.totalorder %s45, 0
      %p130 = por %p128, %p129
      %p131 = scmp.ne.s32.totalorder %s117, %s118
      %p132 = scmp.eq.s32.totalorder %s46, 3
      %p133 = por %p131, %p132
      %p135 = scmp.ne.s32.totalorder %s118, %s134
      %p136 = scmp.eq.s32.totalorder %s46, 0
      %p137 = por %p135, %p136
      %s138 = ssub.s32 %s48, %s55
      %p139 = scmp.eq.s32.totalorder %s138, 0
      %s141 = sadd.s32 %s140, 1
      %s142 = scalar_select %p139, %s140, %s141
      %p145 = pneg %p139
      %p146 = scmp.eq.s32.totalorder %s40, 3
      %p147 = por %p145, %p146
      %p148 = scmp.ne.s32.totalorder %s140, %s143
      %p149 = scmp.eq.s32.totalorder %s40, 0
      %p150 = por %p148, %p149
      %p151 = scmp.ne.s32.totalorder %s140, %s143
      %p152 = scmp.eq.s32.totalorder %s45, 3
      %p153 = por %p151, %p152
      %p154 = scmp.ne.s32.totalorder %s143, %s144
      %p155 = scmp.eq.s32.totalorder %s45, 0
      %p156 = por %p154, %p155
      %p157 = scmp.ne.s32.totalorder %s143, %s144
      %p158 = scmp.eq.s32.totalorder %s46, 3
      %p159 = por %p157, %p158
      %p161 = scmp.ne.s32.totalorder %s144, %s160
      %p162 = scmp.eq.s32.totalorder %s46, 0
      %p163 = por %p161, %p162
      %s164 = ssub.s32 %s48, %s55
      %p165 = scmp.eq.s32.totalorder %s164, 0
      %s167 = sadd.s32 %s166, 1
      %s168 = scalar_select %p165, %s166, %s167
      %p171 = pneg %p165
      %p172 = scmp.eq.s32.totalorder %s40, 3
      %p173 = por %p171, %p172
      %p174 = scmp.ne.s32.totalorder %s166, %s169
      %p175 = scmp.eq.s32.totalorder %s40, 0
      %p176 = por %p174, %p175
      %p177 = scmp.ne.s32.totalorder %s166, %s169
      %p178 = scmp.eq.s32.totalorder %s45, 3
      %p179 = por %p177, %p178
      %p180 = scmp.ne.s32.totalorder %s169, %s170
      %p181 = scmp.eq.s32.totalorder %s45, 0
      %p182 = por %p180, %p181
      %p183 = scmp.ne.s32.totalorder %s169, %s170
      %p184 = scmp.eq.s32.totalorder %s46, 3
      %p185 = por %p183, %p184
      %p187 = scmp.ne.s32.totalorder %s170, %s186
      %p188 = scmp.eq.s32.totalorder %s46, 0
      %p189 = por %p187, %p188
      %s190 = ssub.s32 %s48, %s55
      %p191 = scmp.eq.s32.totalorder %s190, 0
      %s193 = sadd.s32 %s192, 1
      %s194 = scalar_select %p191, %s192, %s193
      %p197 = pneg %p191
      %p198 = scmp.eq.s32.totalorder %s40, 3
      %p199 = por %p197, %p198
      %p200 = scmp.ne.s32.totalorder %s192, %s195
      %p201 = scmp.eq.s32.totalorder %s40, 0
      %p202 = por %p200, %p201
      %p203 = scmp.ne.s32.totalorder %s192, %s195
      %p204 = scmp.eq.s32.totalorder %s45, 3
      %p205 = por %p203, %p204
      %p206 = scmp.ne.s32.totalorder %s195, %s196
      %p207 = scmp.eq.s32.totalorder %s45, 0
      %p208 = por %p206, %p207
      %p209 = scmp.ne.s32.totalorder %s195, %s196
      %p210 = scmp.eq.s32.totalorder %s46, 3
      %p211 = por %p209, %p210
      %p213 = scmp.ne.s32.totalorder %s196, %s212
      %p214 = scmp.eq.s32.totalorder %s46, 0
      %p215 = por %p213, %p214
      %s216 = ssub.s32 %s48, %s55
      %p217 = scmp.eq.s32.totalorder %s216, 0
      %s219 = sadd.s32 %s218, 1
      %s220 = scalar_select %p217, %s218, %s219
      %p223 = pneg %p217
      %p224 = scmp.eq.s32.totalorder %s40, 3
      %p225 = por %p223, %p224
      %p226 = scmp.ne.s32.totalorder %s218, %s221
      %p227 = scmp.eq.s32.totalorder %s40, 0
      %p228 = por %p226, %p227
      %p229 = scmp.ne.s32.totalorder %s218, %s221
      %p230 = scmp.eq.s32.totalorder %s45, 3
      %p231 = por %p229, %p230
      %p232 = scmp.ne.s32.totalorder %s221, %s222
      %p233 = scmp.eq.s32.totalorder %s45, 0
      %p234 = por %p232, %p233
      %p235 = scmp.ne.s32.totalorder %s221, %s222
      %p236 = scmp.eq.s32.totalorder %s46, 3
      %p237 = por %p235, %p236
      %p239 = scmp.ne.s32.totalorder %s222, %s238
      %p240 = scmp.eq.s32.totalorder %s46, 0
      %p241 = por %p239, %p240
      %s242 = ssub.s32 %s48, %s55
      %p243 = scmp.eq.s32.totalorder %s242, 0
      %s245 = sadd.s32 %s244, 1
      %s246 = scalar_select %p243, %s244, %s245
      %p249 = pneg %p243
      %p250 = scmp.eq.s32.totalorder %s40, 3
      %p251 = por %p249, %p250
      %p252 = scmp.ne.s32.totalorder %s244, %s247
      %p253 = scmp.eq.s32.totalorder %s40, 0
      %p254 = por %p252, %p253
      %p255 = scmp.ne.s32.totalorder %s244, %s247
      %p256 = scmp.eq.s32.totalorder %s45, 3
      %p257 = por %p255, %p256
      %p258 = scmp.ne.s32.totalorder %s247, %s248
      %p259 = scmp.eq.s32.totalorder %s45, 0
      %p260 = por %p258, %p259
      %p261 = scmp.ne.s32.totalorder %s247, %s248
      %p262 = scmp.eq.s32.totalorder %s46, 3
      %p263 = por %p261, %p262
      %p265 = scmp.ne.s32.totalorder %s248, %s264
      %p266 = scmp.eq.s32.totalorder %s46, 0
      %p267 = por %p265, %p266
      %s268 = ssub.s32 %s48, %s55
      %p269 = scmp.eq.s32.totalorder %s268, 0
      %s271 = sadd.s32 %s270, 1
      %s272 = scalar_select %p269, %s270, %s271
      %p275 = pneg %p269
      %p276 = scmp.eq.s32.totalorder %s40, 3
      %p277 = por %p275, %p276
      %p278 = scmp.ne.s32.totalorder %s270, %s273
      %p279 = scmp.eq.s32.totalorder %s40, 0
      %p280 = por %p278, %p279
      %p281 = scmp.ne.s32.totalorder %s270, %s273
      %p282 = scmp.eq.s32.totalorder %s45, 3
      %p283 = por %p281, %p282
      %p284 = scmp.ne.s32.totalorder %s273, %s274
      %p285 = scmp.eq.s32.totalorder %s45, 0
      %p286 = por %p284, %p285
      %p287 = scmp.ne.s32.totalorder %s273, %s274
      %p288 = scmp.eq.s32.totalorder %s46, 3
      %p289 = por %p287, %p288
      %p291 = scmp.ne.s32.totalorder %s274, %s290
      %p292 = scmp.eq.s32.totalorder %s46, 0
      %p293 = por %p291, %p292
      %s294 = ssub.s32 %s48, %s55
      %p295 = scmp.eq.s32.totalorder %s294, 0
      %s297 = sadd.s32 %s296, 1
      %s298 = scalar_select %p295, %s296, %s297
      %p301 = pneg %p295
      %p302 = scmp.eq.s32.totalorder %s40, 3
      %p303 = por %p301, %p302
      %p304 = scmp.ne.s32.totalorder %s296, %s299
      %p305 = scmp.eq.s32.totalorder %s40, 0
      %p306 = por %p304, %p305
      %p307 = scmp.ne.s32.totalorder %s296, %s299
      %p308 = scmp.eq.s32.totalorder %s45, 3
      %p309 = por %p307, %p308
      %p310 = scmp.ne.s32.totalorder %s299, %s300
      %p311 = scmp.eq.s32.totalorder %s45, 0
      %p312 = por %p310, %p311
      %p313 = scmp.ne.s32.totalorder %s299, %s300
      %p314 = scmp.eq.s32.totalorder %s46, 3
      %p315 = por %p313, %p314
      %p317 = scmp.ne.s32.totalorder %s300, %s316
      %p318 = scmp.eq.s32.totalorder %s46, 0
      %p319 = por %p317, %p318
      %s320 = ssub.s32 %s48, %s55
      %p321 = scmp.eq.s32.totalorder %s320, 0
      %s323 = sadd.s32 %s322, 1
      %s324 = scalar_select %p321, %s322, %s323
      %p327 = pneg %p321
      %p328 = scmp.eq.s32.totalorder %s40, 3
      %p329 = por %p327, %p328
      %p330 = scmp.ne.s32.totalorder %s322, %s325
      %p331 = scmp.eq.s32.totalorder %s40, 0
      %p332 = por %p330, %p331
      %p333 = scmp.ne.s32.totalorder %s322, %s325
      %p334 = scmp.eq.s32.totalorder %s45, 3
      %p335 = por %p333, %p334
      %p336 = scmp.ne.s32.totalorder %s325, %s326
      %p337 = scmp.eq.s32.totalorder %s45, 0
      %p338 = por %p336, %p337
      %p339 = scmp.ne.s32.totalorder %s325, %s326
      %p340 = scmp.eq.s32.totalorder %s46, 3
      %p341 = por %p339, %p340
      %p343 = scmp.ne.s32.totalorder %s326, %s342
      %p344 = scmp.eq.s32.totalorder %s46, 0
      %p345 = por %p343, %p344
      %s346 = ssub.s32 %s48, %s55
      %p347 = scmp.eq.s32.totalorder %s346, 0
      %s349 = sadd.s32 %s348, 1
      %s350 = scalar_select %p347, %s348, %s349
      %p353 = pneg %p347
      %p354 = scmp.eq.s32.totalorder %s40, 3
      %p355 = por %p353, %p354
      %p356 = scmp.ne.s32.totalorder %s348, %s351
      %p357 = scmp.eq.s32.totalorder %s40, 0
      %p358 = por %p356, %p357
      %p359 = scmp.ne.s32.totalorder %s348, %s351
      %p360 = scmp.eq.s32.totalorder %s45, 3
      %p361 = por %p359, %p360
      %p362 = scmp.ne.s32.totalorder %s351, %s352
      %p363 = scmp.eq.s32.totalorder %s45, 0
      %p364 = por %p362, %p363
      %p365 = scmp.ne.s32.totalorder %s351, %s352
      %p366 = scmp.eq.s32.totalorder %s46, 3
      %p367 = por %p365, %p366
      %p369 = scmp.ne.s32.totalorder %s352, %s368
      %p370 = scmp.eq.s32.totalorder %s46, 0
      %p371 = por %p369, %p370
      %s372 = ssub.s32 %s48, %s55
      %p373 = scmp.eq.s32.totalorder %s372, 0
      %s375 = sadd.s32 %s374, 1
      %s376 = scalar_select %p373, %s374, %s375
      %p379 = pneg %p373
      %p380 = scmp.eq.s32.totalorder %s40, 3
      %p381 = por %p379, %p380
      %p382 = scmp.ne.s32.totalorder %s374, %s377
      %p383 = scmp.eq.s32.totalorder %s40, 0
      %p384 = por %p382, %p383
      %p385 = scmp.ne.s32.totalorder %s374, %s377
      %p386 = scmp.eq.s32.totalorder %s45, 3
      %p387 = por %p385, %p386
      %p388 = scmp.ne.s32.totalorder %s377, %s378
      %p389 = scmp.eq.s32.totalorder %s45, 0
      %p390 = por %p388, %p389
      %p391 = scmp.ne.s32.totalorder %s377, %s378
      %p392 = scmp.eq.s32.totalorder %s46, 3
      %p393 = por %p391, %p392
      %p395 = scmp.ne.s32.totalorder %s378, %s394
      %p396 = scmp.eq.s32.totalorder %s46, 0
      %p397 = por %p395, %p396
      %s398 = ssub.s32 %s48, %s55
      %p399 = scmp.eq.s32.totalorder %s398, 0
      %s401 = sadd.s32 %s400, 1
      %s402 = scalar_select %p399, %s400, %s401
      %p405 = pneg %p399
      %p406 = scmp.eq.s32.totalorder %s40, 3
      %p407 = por %p405, %p406
      %p408 = scmp.ne.s32.totalorder %s400, %s403
      %p409 = scmp.eq.s32.totalorder %s40, 0
      %p410 = por %p408, %p409
      %p411 = scmp.ne.s32.totalorder %s400, %s403
      %p412 = scmp.eq.s32.totalorder %s45, 3
      %p413 = por %p411, %p412
      %p414 = scmp.ne.s32.totalorder %s403, %s404
      %p415 = scmp.eq.s32.totalorder %s45, 0
      %p416 = por %p414, %p415
      %p417 = scmp.ne.s32.totalorder %s403, %s404
      %p418 = scmp.eq.s32.totalorder %s46, 3
      %p419 = por %p417, %p418
      %p421 = scmp.ne.s32.totalorder %s404, %s420
      %p422 = scmp.eq.s32.totalorder %s46, 0
      %p423 = por %p421, %p422
      %s424 = ssub.s32 %s48, %s55
      %p425 = scmp.eq.s32.totalorder %s424, 0
      %s427 = sadd.s32 %s426, 1
      %s428 = scalar_select %p425, %s426, %s427
      %p431 = pneg %p425
      %p432 = scmp.eq.s32.totalorder %s40, 3
      %p433 = por %p431, %p432
      %p434 = scmp.ne.s32.totalorder %s426, %s429
      %p435 = scmp.eq.s32.totalorder %s40, 0
      %p436 = por %p434, %p435
      %p437 = scmp.ne.s32.totalorder %s426, %s429
      %p438 = scmp.eq.s32.totalorder %s45, 3
      %p439 = por %p437, %p438
      %p440 = scmp.ne.s32.totalorder %s429, %s430
      %p441 = scmp.eq.s32.totalorder %s45, 0
      %p442 = por %p440, %p441
      %p443 = scmp.ne.s32.totalorder %s429, %s430
      %p444 = scmp.eq.s32.totalorder %s46, 3
      %p445 = por %p443, %p444
      %p447 = scmp.ne.s32.totalorder %s430, %s446
      %p448 = scmp.eq.s32.totalorder %s46, 0
      %p449 = por %p447, %p448
      %s450 = ssub.s32 %s48, %s55
      %p451 = scmp.eq.s32.totalorder %s450, 0
      %s453 = sadd.s32 %s452, 1
      %s454 = scalar_select %p451, %s452, %s453
      %p457 = pneg %p451
      %p458 = scmp.eq.s32.totalorder %s40, 3
      %p459 = por %p457, %p458
      %p460 = scmp.ne.s32.totalorder %s452, %s455
      %p461 = scmp.eq.s32.totalorder %s40, 0
      %p462 = por %p460, %p461
      %p463 = scmp.ne.s32.totalorder %s452, %s455
      %p464 = scmp.eq.s32.totalorder %s45, 3
      %p465 = por %p463, %p464
      %p466 = scmp.ne.s32.totalorder %s455, %s456
      %p467 = scmp.eq.s32.totalorder %s45, 0
      %p468 = por %p466, %p467
      %p469 = scmp.ne.s32.totalorder %s455, %s456
      %p470 = scmp.eq.s32.totalorder %s46, 3
      %p471 = por %p469, %p470
      %p473 = scmp.ne.s32.totalorder %s456, %s472
      %p474 = scmp.eq.s32.totalorder %s46, 0
      %p475 = por %p473, %p474
      %s476 = ssub.s32 %s48, %s55
      %p477 = scmp.eq.s32.totalorder %s476, 0
      %s479 = sadd.s32 %s478, 1
      %s480 = scalar_select %p477, %s478, %s479
      %p483 = pneg %p477
      %p484 = scmp.eq.s32.totalorder %s40, 3
      %p485 = por %p483, %p484
      %p486 = scmp.ne.s32.totalorder %s478, %s481
      %p487 = scmp.eq.s32.totalorder %s40, 0
      %p488 = por %p486, %p487
      %p489 = scmp.ne.s32.totalorder %s478, %s481
      %p490 = scmp.eq.s32.totalorder %s45, 3
      %p491 = por %p489, %p490
      %p492 = scmp.ne.s32.totalorder %s481, %s482
      %p493 = scmp.eq.s32.totalorder %s45, 0
      %p494 = por %p492, %p493
      %p495 = scmp.ne.s32.totalorder %s481, %s482
      %p496 = scmp.eq.s32.totalorder %s46, 3
      %p497 = por %p495, %p496
      %p499 = scmp.ne.s32.totalorder %s482, %s498
      %p500 = scmp.eq.s32.totalorder %s46, 0
      %p501 = por %p499, %p500
      %s502 = ssub.s32 %s48, %s55
      %p503 = scmp.eq.s32.totalorder %s502, 0
      %s505 = sadd.s32 %s504, 1
      %s506 = scalar_select %p503, %s504, %s505
      %p509 = pneg %p503
      %p510 = scmp.eq.s32.totalorder %s40, 3
      %p511 = por %p509, %p510
      %p512 = scmp.ne.s32.totalorder %s504, %s507
      %p513 = scmp.eq.s32.totalorder %s40, 0
      %p514 = por %p512, %p513
      %p515 = scmp.ne.s32.totalorder %s504, %s507
      %p516 = scmp.eq.s32.totalorder %s45, 3
      %p517 = por %p515, %p516
      %p518 = scmp.ne.s32.totalorder %s507, %s508
      %p519 = scmp.eq.s32.totalorder %s45, 0
      %p520 = por %p518, %p519
      %p521 = scmp.ne.s32.totalorder %s507, %s508
      %p522 = scmp.eq.s32.totalorder %s46, 3
      %p523 = por %p521, %p522
      %p525 = scmp.ne.s32.totalorder %s508, %s524
      %p526 = scmp.eq.s32.totalorder %s46, 0
      %p527 = por %p525, %p526
      %s528 = ssub.s32 %s48, %s55
      %p529 = scmp.eq.s32.totalorder %s528, 0
      %s531 = sadd.s32 %s530, 1
      %s532 = scalar_select %p529, %s530, %s531
      %p535 = pneg %p529
      %p536 = scmp.eq.s32.totalorder %s40, 3
      %p537 = por %p535, %p536
      %p538 = scmp.ne.s32.totalorder %s530, %s533
      %p539 = scmp.eq.s32.totalorder %s40, 0
      %p540 = por %p538, %p539
      %p541 = scmp.ne.s32.totalorder %s530, %s533
      %p542 = scmp.eq.s32.totalorder %s45, 3
      %p543 = por %p541, %p542
      %p544 = scmp.ne.s32.totalorder %s533, %s534
      %p545 = scmp.eq.s32.totalorder %s45, 0
      %p546 = por %p544, %p545
      %p547 = scmp.ne.s32.totalorder %s533, %s534
      %p548 = scmp.eq.s32.totalorder %s46, 3
      %p549 = por %p547, %p548
      %p551 = scmp.ne.s32.totalorder %s534, %s550
      %p552 = scmp.eq.s32.totalorder %s46, 0
      %p553 = por %p551, %p552
      %s554 = ssub.s32 %s48, %s55
      %p555 = scmp.eq.s32.totalorder %s554, 0
      %s557 = sadd.s32 %s556, 1
      %s558 = scalar_select %p555, %s556, %s557
      %p561 = pneg %p555
      %p562 = scmp.eq.s32.totalorder %s40, 3
      %p563 = por %p561, %p562
      %p564 = scmp.ne.s32.totalorder %s556, %s559
      %p565 = scmp.eq.s32.totalorder %s40, 0
      %p566 = por %p564, %p565
      %p567 = scmp.ne.s32.totalorder %s556, %s559
      %p568 = scmp.eq.s32.totalorder %s45, 3
      %p569 = por %p567, %p568
      %p570 = scmp.ne.s32.totalorder %s559, %s560
      %p571 = scmp.eq.s32.totalorder %s45, 0
      %p572 = por %p570, %p571
      %p573 = scmp.ne.s32.totalorder %s559, %s560
      %p574 = scmp.eq.s32.totalorder %s46, 3
      %p575 = por %p573, %p574
      %p577 = scmp.ne.s32.totalorder %s560, %s576
      %p578 = scmp.eq.s32.totalorder %s46, 0
      %p579 = por %p577, %p578
      %s580 = ssub.s32 %s48, %s55
      %p581 = scmp.eq.s32.totalorder %s580, 0
      %s583 = sadd.s32 %s582, 1
      %s584 = scalar_select %p581, %s582, %s583
      %p587 = pneg %p581
      %p588 = scmp.eq.s32.totalorder %s40, 3
      %p589 = por %p587, %p588
      %p590 = scmp.ne.s32.totalorder %s582, %s585
      %p591 = scmp.eq.s32.totalorder %s40, 0
      %p592 = por %p590, %p591
      %p593 = scmp.ne.s32.totalorder %s582, %s585
      %p594 = scmp.eq.s32.totalorder %s45, 3
      %p595 = por %p593, %p594
      %p596 = scmp.ne.s32.totalorder %s585, %s586
      %p597 = scmp.eq.s32.totalorder %s45, 0
      %p598 = por %p596, %p597
      %p599 = scmp.ne.s32.totalorder %s585, %s586
      %p600 = scmp.eq.s32.totalorder %s46, 3
      %p601 = por %p599, %p600
      %p603 = scmp.ne.s32.totalorder %s586, %s602
      %p604 = scmp.eq.s32.totalorder %s46, 0
      %p605 = por %p603, %p604
      %s606 = ssub.s32 %s48, %s55
      %p607 = scmp.eq.s32.totalorder %s606, 0
      %s609 = sadd.s32 %s608, 1
      %s610 = scalar_select %p607, %s608, %s609
      %p613 = pneg %p607
      %p614 = scmp.eq.s32.totalorder %s40, 3
      %p615 = por %p613, %p614
      %p616 = scmp.ne.s32.totalorder %s608, %s611
      %p617 = scmp.eq.s32.totalorder %s40, 0
      %p618 = por %p616, %p617
      %p619 = scmp.ne.s32.totalorder %s608, %s611
      %p620 = scmp.eq.s32.totalorder %s45, 3
      %p621 = por %p619, %p620
      %p622 = scmp.ne.s32.totalorder %s611, %s612
      %p623 = scmp.eq.s32.totalorder %s45, 0
      %p624 = por %p622, %p623
      %p625 = scmp.ne.s32.totalorder %s611, %s612
      %p626 = scmp.eq.s32.totalorder %s46, 3
      %p627 = por %p625, %p626
      %p629 = scmp.ne.s32.totalorder %s612, %s628
      %p630 = scmp.eq.s32.totalorder %s46, 0
      %p631 = por %p629, %p630
      %s632 = ssub.s32 %s48, %s55
      %p633 = scmp.eq.s32.totalorder %s632, 0
      %s635 = sadd.s32 %s634, 1
      %s636 = scalar_select %p633, %s634, %s635
      %p639 = pneg %p633
      %p640 = scmp.eq.s32.totalorder %s40, 3
      %p641 = por %p639, %p640
      %p642 = scmp.ne.s32.totalorder %s634, %s637
      %p643 = scmp.eq.s32.totalorder %s40, 0
      %p644 = por %p642, %p643
      %p645 = scmp.ne.s32.totalorder %s634, %s637
      %p646 = scmp.eq.s32.totalorder %s45, 3
      %p647 = por %p645, %p646
      %p648 = scmp.ne.s32.totalorder %s637, %s638
      %p649 = scmp.eq.s32.totalorder %s45, 0
      %p650 = por %p648, %p649
      %p651 = scmp.ne.s32.totalorder %s637, %s638
      %p652 = scmp.eq.s32.totalorder %s46, 3
      %p653 = por %p651, %p652
      %p655 = scmp.ne.s32.totalorder %s638, %s654
      %p656 = scmp.eq.s32.totalorder %s46, 0
      %p657 = por %p655, %p656
      %s658 = ssub.s32 %s48, %s55
      %p659 = scmp.eq.s32.totalorder %s658, 0
      %s661 = sadd.s32 %s660, 1
      %s662 = scalar_select %p659, %s660, %s661
      %p665 = pneg %p659
      %p666 = scmp.eq.s32.totalorder %s40, 3
      %p667 = por %p665, %p666
      %p668 = scmp.ne.s32.totalorder %s660, %s663
      %p669 = scmp.eq.s32.totalorder %s40, 0
      %p670 = por %p668, %p669
      %p671 = scmp.ne.s32.totalorder %s660, %s663
      %p672 = scmp.eq.s32.totalorder %s45, 3
      %p673 = por %p671, %p672
      %p674 = scmp.ne.s32.totalorder %s663, %s664
      %p675 = scmp.eq.s32.totalorder %s45, 0
      %p676 = por %p674, %p675
      %p677 = scmp.ne.s32.totalorder %s663, %s664
      %p678 = scmp.eq.s32.totalorder %s46, 3
      %p679 = por %p677, %p678
      %p681 = scmp.ne.s32.totalorder %s664, %s680
      %p682 = scmp.eq.s32.totalorder %s46, 0
      %p683 = por %p681, %p682
      %s684 = ssub.s32 %s48, %s55
      %p685 = scmp.eq.s32.totalorder %s684, 0
      %s687 = sadd.s32 %s686, 1
      %s688 = scalar_select %p685, %s686, %s687
      %p691 = pneg %p685
      %p692 = scmp.eq.s32.totalorder %s40, 3
      %p693 = por %p691, %p692
      %p694 = scmp.ne.s32.totalorder %s686, %s689
      %p695 = scmp.eq.s32.totalorder %s40, 0
      %p696 = por %p694, %p695
      %p697 = scmp.ne.s32.totalorder %s686, %s689
      %p698 = scmp.eq.s32.totalorder %s45, 3
      %p699 = por %p697, %p698
      %p700 = scmp.ne.s32.totalorder %s689, %s690
      %p701 = scmp.eq.s32.totalorder %s45, 0
      %p702 = por %p700, %p701
      %p703 = scmp.ne.s32.totalorder %s689, %s690
      %p704 = scmp.eq.s32.totalorder %s46, 3
      %p705 = por %p703, %p704
      %p707 = scmp.ne.s32.totalorder %s690, %s706
      %p708 = scmp.eq.s32.totalorder %s46, 0
      %p709 = por %p707, %p708
      %s710 = ssub.s32 %s48, %s55
      %p711 = scmp.eq.s32.totalorder %s710, 0
      %s713 = sadd.s32 %s712, 1
      %s714 = scalar_select %p711, %s712, %s713
      %p717 = pneg %p711
      %p718 = scmp.eq.s32.totalorder %s40, 3
      %p719 = por %p717, %p718
      %p720 = scmp.ne.s32.totalorder %s712, %s715
      %p721 = scmp.eq.s32.totalorder %s40, 0
      %p722 = por %p720, %p721
      %p723 = scmp.ne.s32.totalorder %s712, %s715
      %p724 = scmp.eq.s32.totalorder %s45, 3
      %p725 = por %p723, %p724
      %p726 = scmp.ne.s32.totalorder %s715, %s716
      %p727 = scmp.eq.s32.totalorder %s45, 0
      %p728 = por %p726, %p727
      %p729 = scmp.ne.s32.totalorder %s715, %s716
      %p730 = scmp.eq.s32.totalorder %s46, 3
      %p731 = por %p729, %p730
      %p733 = scmp.ne.s32.totalorder %s716, %s732
      %p734 = scmp.eq.s32.totalorder %s46, 0
      %p735 = por %p733, %p734
      %s736 = ssub.s32 %s48, %s55
      %p737 = scmp.eq.s32.totalorder %s736, 0
      %s739 = sadd.s32 %s738, 1
      %s740 = scalar_select %p737, %s738, %s739
      %p743 = pneg %p737
      %p744 = scmp.eq.s32.totalorder %s40, 3
      %p745 = por %p743, %p744
      %p746 = scmp.ne.s32.totalorder %s738, %s741
      %p747 = scmp.eq.s32.totalorder %s40, 0
      %p748 = por %p746, %p747
      %p749 = scmp.ne.s32.totalorder %s738, %s741
      %p750 = scmp.eq.s32.totalorder %s45, 3
      %p751 = por %p749, %p750
      %p752 = scmp.ne.s32.totalorder %s741, %s742
      %p753 = scmp.eq.s32.totalorder %s45, 0
      %p754 = por %p752, %p753
      %p755 = scmp.ne.s32.totalorder %s741, %s742
      %p756 = scmp.eq.s32.totalorder %s46, 3
      %p757 = por %p755, %p756
      %p759 = scmp.ne.s32.totalorder %s742, %s758
      %p760 = scmp.eq.s32.totalorder %s46, 0
      %p761 = por %p759, %p760
      %s762 = ssub.s32 %s48, %s55
      %p763 = scmp.eq.s32.totalorder %s762, 0
      %s765 = sadd.s32 %s764, 1
      %s766 = scalar_select %p763, %s764, %s765
      %p769 = pneg %p763
      %p770 = scmp.eq.s32.totalorder %s40, 3
      %p771 = por %p769, %p770
      %p772 = scmp.ne.s32.totalorder %s764, %s767
      %p773 = scmp.eq.s32.totalorder %s40, 0
      %p774 = por %p772, %p773
      %p775 = scmp.ne.s32.totalorder %s764, %s767
      %p776 = scmp.eq.s32.totalorder %s45, 3
      %p777 = por %p775, %p776
      %p778 = scmp.ne.s32.totalorder %s767, %s768
      %p779 = scmp.eq.s32.totalorder %s45, 0
      %p780 = por %p778, %p779
      %p781 = scmp.ne.s32.totalorder %s767, %s768
      %p782 = scmp.eq.s32.totalorder %s46, 3
      %p783 = por %p781, %p782
      %p785 = scmp.ne.s32.totalorder %s768, %s784
      %p786 = scmp.eq.s32.totalorder %s46, 0
      %p787 = por %p785, %p786
      %s788 = ssub.s32 %s47, %s59
      %p789 = scmp.eq.s32.totalorder %s788, 0
      %s791 = sadd.s32 %s790, 1
      %s792 = scalar_select %p789, %s790, %s791
      %p795 = pneg %p789
      %p796 = scmp.eq.s32.totalorder %s40, 3
      %p797 = por %p795, %p796
      %p798 = scmp.ne.s32.totalorder %s790, %s793
      %p799 = scmp.eq.s32.totalorder %s40, 0
      %p800 = por %p798, %p799
      %p801 = scmp.ne.s32.totalorder %s790, %s793
      %p802 = scmp.eq.s32.totalorder %s45, 3
      %p803 = por %p801, %p802
      %p804 = scmp.ne.s32.totalorder %s793, %s794
      %p805 = scmp.eq.s32.totalorder %s45, 0
      %p806 = por %p804, %p805
      %p807 = scmp.ne.s32.totalorder %s793, %s794
      %p808 = scmp.eq.s32.totalorder %s46, 3
      %p809 = por %p807, %p808
      %p811 = scmp.ne.s32.totalorder %s794, %s810
      %p812 = scmp.eq.s32.totalorder %s46, 0
      %p813 = por %p811, %p812
      %p814 = scmp.le.s32.totalorder 1, %s40
      %p815 = scmp.lt.s32.totalorder %s40, 5
      %p816 = pnand %p814, %p815
      %p817 = pneg %p816
      // Predicated region
      $region9: #{model_forward.4} parent=5 // pred_check
        _
      $region10: #{model_forward.4} parent=5 // pred_check_branch
        %819 = sbr.rel (%p816) target = $region12
      $region11: #{model_forward.4} parent=5 // pred_region
        %s820 = ssub.s32 %s40, 1
      $region12: #{model_forward.4} parent=5 // pred_fallthru
        _
      %p821 = scmp.lt.s32.totalorder %s40, 4
      // Predicated region
      $region13: #{model_forward.4} parent=5 // pred_check
        %p822 = pneg %p821
      $region14: #{model_forward.4} parent=5 // pred_check_branch
        %824 = sbr.rel (%p822) target = $region16
      $region15: #{model_forward.4} parent=5 // pred_region
        // Predicated region
        $region17: #{model_forward.4} parent=15 // pred_check
          %p825 = pneg %p72
        $region18: #{model_forward.4} parent=15 // pred_check_branch
          %827 = sbr.rel (%p825) target = $region20
        $region19: #{model_forward.4} parent=15 // pred_region
          %p828 = scmp.lt.s32.totalorder %s47, 1
          %s829 = scalar_select %p828, %s47, 1
          %s830 = smul.addr %s829, 8
          %s831 = scalar_lea.vmem %s0, %s830
        $region20: #{model_forward.4} parent=15 // pred_fallthru
          _
        // Predicated region
        $region21: #{model_forward.4} parent=15 // pred_check
          %p832 = pneg %p98
        $region22: #{model_forward.4} parent=15 // pred_check_branch
          %834 = sbr.rel (%p832) target = $region24
        $region23: #{model_forward.4} parent=15 // pred_region
          %p835 = scmp.lt.s32.totalorder %s47, 1
          %s836 = scalar_select %p835, %s47, 1
          %s837 = smul.addr %s836, 8
          %s838 = scalar_lea.vmem %s1, %s837
        $region24: #{model_forward.4} parent=15 // pred_fallthru
          _
        // Predicated region
        $region25: #{model_forward.4} parent=15 // pred_check
          %p839 = pneg %p124
        $region26: #{model_forward.4} parent=15 // pred_check_branch
          %841 = sbr.rel (%p839) target = $region28
        $region27: #{model_forward.4} parent=15 // pred_region
          %p842 = scmp.lt.s32.totalorder %s48, 1
          %s843 = scalar_select %p842, %s48, 1
          %s844 = smul.addr %s843, 4
          %s845 = smul.addr %s844, 4
          %s846 = scalar_lea.vmem %s2, %s845
        $region28: #{model_forward.4} parent=15 // pred_fallthru
          _
        // Predicated region
        $region29: #{model_forward.4} parent=15 // pred_check
          %p847 = pneg %p150
        $region30: #{model_forward.4} parent=15 // pred_check_branch
          %849 = sbr.rel (%p847) target = $region32
        $region31: #{model_forward.4} parent=15 // pred_region
          %p850 = scmp.lt.s32.totalorder %s48, 1
          %s851 = scalar_select %p850, %s48, 1
          %s852 = smul.addr %s851, 4
          %s853 = smul.addr %s852, 4
          %s854 = scalar_lea.vmem %s3, %s853
        $region32: #{model_forward.4} parent=15 // pred_fallthru
          _
        // Predicated region
        $region33: #{model_forward.4} parent=15 // pred_check
          %p855 = pneg %p176
        $region34: #{model_forward.4} parent=15 // pred_check_branch
          %857 = sbr.rel (%p855) target = $region36
        $region35: #{model_forward.4} parent=15 // pred_region
          %p858 = scmp.lt.s32.totalorder %s48, 1
          %s859 = scalar_select %p858, %s48, 1
          %s860 = smul.addr %s859, 4
          %s861 = smul.addr %s860, 4
          %s862 = scalar_lea.vmem %s4, %s861
        $region36: #{model_forward.4} parent=15 // pred_fallthru
          _
        // Predicated region
        $region37: #{model_forward.4} parent=15 // pred_check
          %p863 = pneg %p202
        $region38: #{model_forward.4} parent=15 // pred_check_branch
          %865 = sbr.rel (%p863) target = $region40
        $region39: #{model_forward.4} parent=15 // pred_region
          %p866 = scmp.lt.s32.totalorder %s48, 1
          %s867 = scalar_select %p866, %s48, 1
          %s868 = scalar_lea.vmem %s5, %s867
        $region40: #{model_forward.4} parent=15 // pred_fallthru
          _
        // Predicated region
        $region41: #{model_forward.4} parent=15 // pred_check
          %p869 = pneg %p228
        $region42: #{model_forward.4} parent=15 // pred_check_branch
          %871 = sbr.rel (%p869) target = $region44
        $region43: #{model_forward.4} parent=15 // pred_region
          %p872 = scmp.lt.s32.totalorder %s48, 1
          %s873 = scalar_select %p872, %s48, 1
          %s874 = scalar_lea.vmem %s6, %s873
        $region44: #{model_forward.4} parent=15 // pred_fallthru
          _
        // Predicated region
        $region45: #{model_forward.4} parent=15 // pred_check
          %p875 = pneg %p254
        $region46: #{model_forward.4} parent=15 // pred_check_branch
          %877 = sbr.rel (%p875) target = $region48
        $region47: #{model_forward.4} parent=15 // pred_region
          %p878 = scmp.lt.s32.totalorder %s48, 1
          %s879 = scalar_select %p878, %s48, 1
          %s880 = scalar_lea.vmem %s7, %s879
        $region48: #{model_forward.4} parent=15 // pred_fallthru
          _
        // Predicated region
        $region49: #{model_forward.4} parent=15 // pred_check
          %p881 = pneg %p280
        $region50: #{model_forward.4} parent=15 // pred_check_branch
          %883 = sbr.rel (%p881) target = $region52
        $region51: #{model_forward.4} parent=15 // pred_region
          %p884 = scmp.lt.s32.totalorder %s48, 1
          %s885 = scalar_select %p884, %s48, 1
          %s886 = smul.addr %s885, 4
          %s887 = smul.addr %s886, 4
          %s888 = scalar_lea.vmem %s8, %s887
        $region52: #{model_forward.4} parent=15 // pred_fallthru
          _
        // Predicated region
        $region53: #{model_forward.4} parent=15 // pred_check
          %p889 = pneg %p306
        $region54: #{model_forward.4} parent=15 // pred_check_branch
          %891 = sbr.rel (%p889) target = $region56
        $region55: #{model_forward.4} parent=15 // pred_region
          %p892 = scmp.lt.s32.totalorder %s48, 1
          %s893 = scalar_select %p892, %s48, 1
          %s894 = scalar_lea.vmem %s9, %s893
        $region56: #{model_forward.4} parent=15 // pred_fallthru
          _
        // Predicated region
        $region57: #{model_forward.4} parent=15 // pred_check
          %p895 = pneg %p332
        $region58: #{model_forward.4} parent=15 // pred_check_branch
          %897 = sbr.rel (%p895) target = $region60
        $region59: #{model_forward.4} parent=15 // pred_region
          %p898 = scmp.lt.s32.totalorder %s48, 1
          %s899 = scalar_select %p898, %s48, 1
          %s900 = scalar_lea.vmem %s10, %s899
        $region60: #{model_forward.4} parent=15 // pred_fallthru
          _
        // Predicated region
        $region61: #{model_forward.4} parent=15 // pred_check
          %p901 = pneg %p358
        $region62: #{model_forward.4} parent=15 // pred_check_branch
          %903 = sbr.rel (%p901) target = $region64
        $region63: #{model_forward.4} parent=15 // pred_region
          %p904 = scmp.lt.s32.totalorder %s48, 1
          %s905 = scalar_select %p904, %s48, 1
          %s906 = scalar_lea.vmem %s11, %s905
        $region64: #{model_forward.4} parent=15 // pred_fallthru
          _
        // Predicated region
        $region65: #{model_forward.4} parent=15 // pred_check
          %p907 = pneg %p384
        $region66: #{model_forward.4} parent=15 // pred_check_branch
          %909 = sbr.rel (%p907) target = $region68
        $region67: #{model_forward.4} parent=15 // pred_region
          %p910 = scmp.lt.s32.totalorder %s48, 1
          %s911 = scalar_select %p910, %s48, 1
          %s912 = smul.addr %s911, 4
          %s913 = smul.addr %s912, 4
          %s914 = scalar_lea.vmem %s12, %s913
        $region68: #{model_forward.4} parent=15 // pred_fallthru
          _
        // Predicated region
        $region69: #{model_forward.4} parent=15 // pred_check
          %p915 = pneg %p410
        $region70: #{model_forward.4} parent=15 // pred_check_branch
          %917 = sbr.rel (%p915) target = $region72
        $region71: #{model_forward.4} parent=15 // pred_region
          %p918 = scmp.lt.s32.totalorder %s48, 1
          %s919 = scalar_select %p918, %s48, 1
          %s920 = smul.addr %s919, 4
          %s921 = smul.addr %s920, 4
          %s922 = scalar_lea.vmem %s13, %s921
        $region72: #{model_forward.4} parent=15 // pred_fallthru
          _
        // Predicated region
        $region73: #{model_forward.4} parent=15 // pred_check
          %p923 = pneg %p436
        $region74: #{model_forward.4} parent=15 // pred_check_branch
          %925 = sbr.rel (%p923) target = $region76
        $region75: #{model_forward.4} parent=15 // pred_region
          %p926 = scmp.lt.s32.totalorder %s48, 1
          %s927 = scalar_select %p926, %s48, 1
          %s928 = smul.addr %s927, 4
          %s929 = smul.addr %s928, 4
          %s930 = scalar_lea.vmem %s14, %s929
        $region76: #{model_forward.4} parent=15 // pred_fallthru
          _
        // Predicated region
        $region77: #{model_forward.4} parent=15 // pred_check
          %p931 = pneg %p462
        $region78: #{model_forward.4} parent=15 // pred_check_branch
          %933 = sbr.rel (%p931) target = $region80
        $region79: #{model_forward.4} parent=15 // pred_region
          %p934 = scmp.lt.s32.totalorder %s48, 1
          %s935 = scalar_select %p934, %s48, 1
          %s936 = scalar_lea.vmem %s15, %s935
        $region80: #{model_forward.4} parent=15 // pred_fallthru
          _
        // Predicated region
        $region81: #{model_forward.4} parent=15 // pred_check
          %p937 = pneg %p488
        $region82: #{model_forward.4} parent=15 // pred_check_branch
          %939 = sbr.rel (%p937) target = $region84
        $region83: #{model_forward.4} parent=15 // pred_region
          %p940 = scmp.lt.s32.totalorder %s48, 1
          %s941 = scalar_select %p940, %s48, 1
          %s942 = scalar_lea.vmem %s16, %s941
        $region84: #{model_forward.4} parent=15 // pred_fallthru
          _
        // Predicated region
        $region85: #{model_forward.4} parent=15 // pred_check
          %p943 = pneg %p514
        $region86: #{model_forward.4} parent=15 // pred_check_branch
          %945 = sbr.rel (%p943) target = $region88
        $region87: #{model_forward.4} parent=15 // pred_region
          %p946 = scmp.lt.s32.totalorder %s48, 1
          %s947 = scalar_select %p946, %s48, 1
          %s948 = scalar_lea.vmem %s17, %s947
        $region88: #{model_forward.4} parent=15 // pred_fallthru
          _
        // Predicated region
        $region89: #{model_forward.4} parent=15 // pred_check
          %p949 = pneg %p540
        $region90: #{model_forward.4} parent=15 // pred_check_branch
          %951 = sbr.rel (%p949) target = $region92
        $region91: #{model_forward.4} parent=15 // pred_region
          %p952 = scmp.lt.s32.totalorder %s48, 1
          %s953 = scalar_select %p952, %s48, 1
          %s954 = smul.addr %s953, 4
          %s955 = smul.addr %s954, 4
          %s956 = scalar_lea.vmem %s18, %s955
        $region92: #{model_forward.4} parent=15 // pred_fallthru
          _
        // Predicated region
        $region93: #{model_forward.4} parent=15 // pred_check
          %p957 = pneg %p566
        $region94: #{model_forward.4} parent=15 // pred_check_branch
          %959 = sbr.rel (%p957) target = $region96
        $region95: #{model_forward.4} parent=15 // pred_region
          %p960 = scmp.lt.s32.totalorder %s48, 1
          %s961 = scalar_select %p960, %s48, 1
          %s962 = scalar_lea.vmem %s19, %s961
        $region96: #{model_forward.4} parent=15 // pred_fallthru
          _
        // Predicated region
        $region97: #{model_forward.4} parent=15 // pred_check
          %p963 = pneg %p592
        $region98: #{model_forward.4} parent=15 // pred_check_branch
          %965 = sbr.rel (%p963) target = $region100
        $region99: #{model_forward.4} parent=15 // pred_region
          %p966 = scmp.lt.s32.totalorder %s48, 1
          %s967 = scalar_select %p966, %s48, 1
          %s968 = scalar_lea.vmem %s20, %s967
        $region100: #{model_forward.4} parent=15 // pred_fallthru
          _
        // Predicated region
        $region101: #{model_forward.4} parent=15 // pred_check
          %p969 = pneg %p618
        $region102: #{model_forward.4} parent=15 // pred_check_branch
          %971 = sbr.rel (%p969) target = $region104
        $region103: #{model_forward.4} parent=15 // pred_region
          %p972 = scmp.lt.s32.totalorder %s48, 1
          %s973 = scalar_select %p972, %s48, 1
          %s974 = scalar_lea.vmem %s21, %s973
        $region104: #{model_forward.4} parent=15 // pred_fallthru
          _
        // Predicated region
        $region105: #{model_forward.4} parent=15 // pred_check
          %p975 = pneg %p644
        $region106: #{model_forward.4} parent=15 // pred_check_branch
          %977 = sbr.rel (%p975) target = $region108
        $region107: #{model_forward.4} parent=15 // pred_region
          %p978 = scmp.lt.s32.totalorder %s48, 1
          %s979 = scalar_select %p978, %s48, 1
          %s980 = smul.addr %s979, 4
          %s981 = smul.addr %s980, 4
          %s982 = scalar_lea.vmem %s22, %s981
        $region108: #{model_forward.4} parent=15 // pred_fallthru
          _
        // Predicated region
        $region109: #{model_forward.4} parent=15 // pred_check
          %p983 = pneg %p670
        $region110: #{model_forward.4} parent=15 // pred_check_branch
          %985 = sbr.rel (%p983) target = $region112
        $region111: #{model_forward.4} parent=15 // pred_region
          %p986 = scmp.lt.s32.totalorder %s48, 1
          %s987 = scalar_select %p986, %s48, 1
          %s988 = scalar_lea.vmem %s23, %s987
        $region112: #{model_forward.4} parent=15 // pred_fallthru
          _
        // Predicated region
        $region113: #{model_forward.4} parent=15 // pred_check
          %p989 = pneg %p696
        $region114: #{model_forward.4} parent=15 // pred_check_branch
          %991 = sbr.rel (%p989) target = $region116
        $region115: #{model_forward.4} parent=15 // pred_region
          %p992 = scmp.lt.s32.totalorder %s48, 1
          %s993 = scalar_select %p992, %s48, 1
          %s994 = smul.addr %s993, 8
          %s995 = smul.addr %s994, 4
          %s996 = scalar_lea.vmem %s24, %s995
        $region116: #{model_forward.4} parent=15 // pred_fallthru
          _
        // Predicated region
        $region117: #{model_forward.4} parent=15 // pred_check
          %p997 = pneg %p722
        $region118: #{model_forward.4} parent=15 // pred_check_branch
          %999 = sbr.rel (%p997) target = $region120
        $region119: #{model_forward.4} parent=15 // pred_region
          %p1000 = scmp.lt.s32.totalorder %s48, 1
          %s1001 = scalar_select %p1000, %s48, 1
          %s1002 = scalar_lea.vmem %s25, %s1001
        $region120: #{model_forward.4} parent=15 // pred_fallthru
          _
        // Predicated region
        $region121: #{model_forward.4} parent=15 // pred_check
          %p1003 = pneg %p748
        $region122: #{model_forward.4} parent=15 // pred_check_branch
          %1005 = sbr.rel (%p1003) target = $region124
        $region123: #{model_forward.4} parent=15 // pred_region
          %s1006 = sand.u32 %s738, 1
          %s1007 = scalar_lea.sflag [#allocation5], %s1006
          %s1008 = sand.u32 %s738, 1
          %s1009 = scalar_lea.vmem [#allocation4], %s1008
          %s1011 = ssub.s32 16, 16
          %1012 = vsyncadd %s1007, %s1011
          %s1013 = smul.addr %s48, 16
          %s1014 = scalar_lea.hbm %s26, %s1013
          %s1016 = sshll.u32 %s1009, 4
          %s1017 = int_to_ptr.vmem [resolvable:$true] %s1016
          %1019 = dma.hbm_to_vmem [thread:$0]  %s1014, 16, %s1017, %s1007
        $region124: #{model_forward.4} parent=15 // pred_fallthru
          _
        // Predicated region
        $region125: #{model_forward.4} parent=15 // pred_check
          %p1020 = pneg %p774
        $region126: #{model_forward.4} parent=15 // pred_check_branch
          %1022 = sbr.rel (%p1020) target = $region128
        $region127: #{model_forward.4} parent=15 // pred_region
          %s1023 = sand.u32 %s764, 1
          %s1024 = scalar_lea.sflag [#allocation7], %s1023
          %s1025 = sand.u32 %s764, 1
          %s1026 = scalar_lea.vmem [#allocation6], %s1025
          %s1028 = ssub.s32 16, 16
          %1029 = vsyncadd %s1024, %s1028
          %s1030 = smul.addr %s48, 16
          %s1031 = scalar_lea.hbm %s27, %s1030
          %s1033 = sshll.u32 %s1026, 4
          %s1034 = int_to_ptr.vmem [resolvable:$true] %s1033
          %1036 = dma.hbm_to_vmem [thread:$0]  %s1031, 16, %s1034, %s1024
        $region128: #{model_forward.4} parent=15 // pred_fallthru
          _
      $region16: #{model_forward.4} parent=5 // pred_fallthru
        _
      %p1037 = scmp.le.s32.totalorder 1, %s40
      %p1038 = scmp.lt.s32.totalorder %s40, 5
      %p1039 = pnand %p1037, %p1038
      %p1040 = pneg %p1039
      // Predicated region
      $region129: #{model_forward.4} parent=5 // pred_check
        _
      $region130: #{model_forward.4} parent=5 // pred_check_branch
        %1042 = sbr.rel (%p1039) target = $region132
      $region131: #{model_forward.4} parent=5 // pred_region
        %s1043 = ssub.s32 %s40, 1
        %s1044 = sand.u32 %s741, 1
        %s1045 = scalar_lea.sflag [#allocation5], %s1044
        %s1046 = sand.u32 %s741, 1
        %s1047 = scalar_lea.vmem [#allocation4], %s1046
        // Predicated region
        $region133: #{model_forward.4} parent=131 // pred_check
          %p1048 = pneg %p754
        $region134: #{model_forward.4} parent=131 // pred_check_branch
          %1050 = sbr.rel (%p1048) target = $region136
        $region135: #{model_forward.4} parent=131 // pred_region
          %1051 = dma.done %s1045, 16
        $region136: #{model_forward.4} parent=131 // pred_fallthru
          _
        %s1052 = sand.u32 %s767, 1
        %s1053 = scalar_lea.sflag [#allocation7], %s1052
        %s1054 = sand.u32 %s767, 1
        %s1055 = scalar_lea.vmem [#allocation6], %s1054
        // Predicated region
        $region137: #{model_forward.4} parent=131 // pred_check
          %p1056 = pneg %p780
        $region138: #{model_forward.4} parent=131 // pred_check_branch
          %1058 = sbr.rel (%p1056) target = $region140
        $region139: #{model_forward.4} parent=131 // pred_region
          %1059 = dma.done %s1053, 16
        $region140: #{model_forward.4} parent=131 // pred_fallthru
          _
        %p1060 = scmp.lt.s32.totalorder %s49, 1
        %s1061 = scalar_select %p1060, %s49, 1
        %s1062 = smul.addr %s1061, 8
        %s1063 = scalar_lea.vmem %s0, %s1062
        %p1064 = pneg %p78
        %p1065 = pneg %p75
        %p1066 = scmp.lt.s32.totalorder %s49, 1
        %s1067 = scalar_select %p1066, %s49, 1
        %s1068 = smul.addr %s1067, 8
        %s1069 = scalar_lea.vmem %s1, %s1068
        %p1070 = pneg %p104
        %p1071 = pneg %p101
        %p1072 = scmp.lt.s32.totalorder %s50, 1
        %s1073 = scalar_select %p1072, %s50, 1
        %s1074 = smul.addr %s1073, 4
        %s1075 = smul.addr %s1074, 4
        %s1076 = scalar_lea.vmem %s2, %s1075
        %p1077 = pneg %p130
        %p1078 = pneg %p127
        %p1079 = scmp.lt.s32.totalorder %s50, 1
        %s1080 = scalar_select %p1079, %s50, 1
        %s1081 = smul.addr %s1080, 4
        %s1082 = smul.addr %s1081, 4
        %s1083 = scalar_lea.vmem %s3, %s1082
        %p1084 = pneg %p156
        %p1085 = pneg %p153
        %p1086 = scmp.lt.s32.totalorder %s50, 1
        %s1087 = scalar_select %p1086, %s50, 1
        %s1088 = smul.addr %s1087, 4
        %s1089 = smul.addr %s1088, 4
        %s1090 = scalar_lea.vmem %s4, %s1089
        %p1091 = pneg %p182
        %p1092 = pneg %p179
        %p1093 = scmp.lt.s32.totalorder %s50, 1
        %s1094 = scalar_select %p1093, %s50, 1
        %s1095 = scalar_lea.vmem %s5, %s1094
        %p1096 = pneg %p208
        %p1097 = pneg %p205
        %p1098 = scmp.lt.s32.totalorder %s50, 1
        %s1099 = scalar_select %p1098, %s50, 1
        %s1100 = scalar_lea.vmem %s6, %s1099
        %p1101 = pneg %p234
        %p1102 = pneg %p231
        %p1103 = scmp.lt.s32.totalorder %s50, 1
        %s1104 = scalar_select %p1103, %s50, 1
        %s1105 = scalar_lea.vmem %s7, %s1104
        %p1106 = pneg %p260
        %p1107 = pneg %p257
        %p1108 = scmp.lt.s32.totalorder %s50, 1
        %s1109 = scalar_select %p1108, %s50, 1
        %s1110 = smul.addr %s1109, 4
        %s1111 = smul.addr %s1110, 4
        %s1112 = scalar_lea.vmem %s8, %s1111
        %p1113 = pneg %p286
        %p1114 = pneg %p283
        %p1115 = scmp.lt.s32.totalorder %s50, 1
        %s1116 = scalar_select %p1115, %s50, 1
        %s1117 = scalar_lea.vmem %s9, %s1116
        %p1118 = pneg %p312
        %p1119 = pneg %p309
        %p1120 = scmp.lt.s32.totalorder %s50, 1
        %s1121 = scalar_select %p1120, %s50, 1
        %s1122 = scalar_lea.vmem %s10, %s1121
        %p1123 = pneg %p338
        %p1124 = pneg %p335
        %p1125 = scmp.lt.s32.totalorder %s50, 1
        %s1126 = scalar_select %p1125, %s50, 1
        %s1127 = scalar_lea.vmem %s11, %s1126
        %p1128 = pneg %p364
        %p1129 = pneg %p361
        %p1130 = scmp.lt.s32.totalorder %s50, 1
        %s1131 = scalar_select %p1130, %s50, 1
        %s1132 = smul.addr %s1131, 4
        %s1133 = smul.addr %s1132, 4
        %s1134 = scalar_lea.vmem %s12, %s1133
        %p1135 = pneg %p390
        %p1136 = pneg %p387
        %p1137 = scmp.lt.s32.totalorder %s50, 1
        %s1138 = scalar_select %p1137, %s50, 1
        %s1139 = smul.addr %s1138, 4
        %s1140 = smul.addr %s1139, 4
        %s1141 = scalar_lea.vmem %s13, %s1140
        %p1142 = pneg %p416
        %p1143 = pneg %p413
        %p1144 = scmp.lt.s32.totalorder %s50, 1
        %s1145 = scalar_select %p1144, %s50, 1
        %s1146 = smul.addr %s1145, 4
        %s1147 = smul.addr %s1146, 4
        %s1148 = scalar_lea.vmem %s14, %s1147
        %p1149 = pneg %p442
        %p1150 = pneg %p439
        %p1151 = scmp.lt.s32.totalorder %s50, 1
        %s1152 = scalar_select %p1151, %s50, 1
        %s1153 = scalar_lea.vmem %s15, %s1152
        %p1154 = pneg %p468
        %p1155 = pneg %p465
        %p1156 = scmp.lt.s32.totalorder %s50, 1
        %s1157 = scalar_select %p1156, %s50, 1
        %s1158 = scalar_lea.vmem %s16, %s1157
        %p1159 = pneg %p494
        %p1160 = pneg %p491
        %p1161 = scmp.lt.s32.totalorder %s50, 1
        %s1162 = scalar_select %p1161, %s50, 1
        %s1163 = scalar_lea.vmem %s17, %s1162
        %p1164 = pneg %p520
        %p1165 = pneg %p517
        %p1166 = scmp.lt.s32.totalorder %s50, 1
        %s1167 = scalar_select %p1166, %s50, 1
        %s1168 = smul.addr %s1167, 4
        %s1169 = smul.addr %s1168, 4
        %s1170 = scalar_lea.vmem %s18, %s1169
        %p1171 = pneg %p546
        %p1172 = pneg %p543
        %p1173 = scmp.lt.s32.totalorder %s50, 1
        %s1174 = scalar_select %p1173, %s50, 1
        %s1175 = scalar_lea.vmem %s19, %s1174
        %p1176 = pneg %p572
        %p1177 = pneg %p569
        %p1178 = scmp.lt.s32.totalorder %s50, 1
        %s1179 = scalar_select %p1178, %s50, 1
        %s1180 = scalar_lea.vmem %s20, %s1179
        %p1181 = pneg %p598
        %p1182 = pneg %p595
        %p1183 = scmp.lt.s32.totalorder %s50, 1
        %s1184 = scalar_select %p1183, %s50, 1
        %s1185 = scalar_lea.vmem %s21, %s1184
        %p1186 = pneg %p624
        %p1187 = pneg %p621
        %p1188 = scmp.lt.s32.totalorder %s50, 1
        %s1189 = scalar_select %p1188, %s50, 1
        %s1190 = smul.addr %s1189, 4
        %s1191 = smul.addr %s1190, 4
        %s1192 = scalar_lea.vmem %s22, %s1191
        %p1193 = pneg %p650
        %p1194 = pneg %p647
        %p1195 = scmp.lt.s32.totalorder %s50, 1
        %s1196 = scalar_select %p1195, %s50, 1
        %s1197 = scalar_lea.vmem %s23, %s1196
        %p1198 = pneg %p676
        %p1199 = pneg %p673
        %p1200 = scmp.lt.s32.totalorder %s50, 1
        %s1201 = scalar_select %p1200, %s50, 1
        %s1202 = smul.addr %s1201, 8
        %s1203 = smul.addr %s1202, 4
        %s1204 = scalar_lea.vmem %s24, %s1203
        %p1205 = pneg %p702
        %p1206 = pneg %p699
        %p1207 = scmp.lt.s32.totalorder %s50, 1
        %s1208 = scalar_select %p1207, %s50, 1
        %s1209 = scalar_lea.vmem %s25, %s1208
        %p1210 = pneg %p728
        %p1211 = pneg %p725
        %s1212 = sand.u32 %s741, 1
        %s1213 = scalar_lea.sflag [#allocation5], %s1212
        %s1214 = sand.u32 %s741, 1
        %s1215 = scalar_lea.vmem [#allocation4], %s1214
        %p1216 = pneg %p754
        %p1217 = pneg %p751
        %s1218 = sand.u32 %s767, 1
        %s1219 = scalar_lea.sflag [#allocation7], %s1218
        %s1220 = sand.u32 %s767, 1
        %s1221 = scalar_lea.vmem [#allocation6], %s1220
        %p1222 = pneg %p780
        %p1223 = pneg %p777
        %p1224 = pneg %p806
        %p1225 = pneg %p803
        %p1226 = scmp.lt.s32.totalorder %s49, 1
        %s1227 = scalar_select %p1226, %s49, 1
        %s1228 = smul.addr %s1227, 8
        %s1229 = scalar_lea.vmem %s28, %s1228
        %p1230 = scmp.lt.s32.totalorder %s49, 1
        %s1231 = scalar_select %p1230, %s49, 1
        %s1232 = smul.addr %s1231, 8
        %s1233 = scalar_lea.vmem %s0, %s1232
        %p1234 = scmp.lt.s32.totalorder %s49, 1
        %s1235 = scalar_select %p1234, %s49, 1
        %s1236 = smul.addr %s1235, 8
        %s1237 = scalar_lea.vmem %s1, %s1236
        %p1238 = scmp.lt.s32.totalorder %s50, 1
        %s1239 = scalar_select %p1238, %s50, 1
        %s1240 = smul.addr %s1239, 4
        %s1241 = smul.addr %s1240, 4
        %s1242 = scalar_lea.vmem %s2, %s1241
        %p1243 = scmp.lt.s32.totalorder %s50, 1
        %s1244 = scalar_select %p1243, %s50, 1
        %s1245 = smul.addr %s1244, 4
        %s1246 = smul.addr %s1245, 4
        %s1247 = scalar_lea.vmem %s3, %s1246
        %p1248 = scmp.lt.s32.totalorder %s50, 1
        %s1249 = scalar_select %p1248, %s50, 1
        %s1250 = smul.addr %s1249, 4
        %s1251 = smul.addr %s1250, 4
        %s1252 = scalar_lea.vmem %s4, %s1251
        %p1253 = scmp.lt.s32.totalorder %s50, 1
        %s1254 = scalar_select %p1253, %s50, 1
        %s1255 = scalar_lea.vmem %s5, %s1254
        %p1256 = scmp.lt.s32.totalorder %s50, 1
        %s1257 = scalar_select %p1256, %s50, 1
        %s1258 = scalar_lea.vmem %s6, %s1257
        %p1259 = scmp.lt.s32.totalorder %s50, 1
        %s1260 = scalar_select %p1259, %s50, 1
        %s1261 = scalar_lea.vmem %s7, %s1260
        %p1262 = scmp.lt.s32.totalorder %s50, 1
        %s1263 = scalar_select %p1262, %s50, 1
        %s1264 = smul.addr %s1263, 4
        %s1265 = smul.addr %s1264, 4
        %s1266 = scalar_lea.vmem %s8, %s1265
        %p1267 = scmp.lt.s32.totalorder %s50, 1
        %s1268 = scalar_select %p1267, %s50, 1
        %s1269 = scalar_lea.vmem %s9, %s1268
        %p1270 = scmp.lt.s32.totalorder %s50, 1
        %s1271 = scalar_select %p1270, %s50, 1
        %s1272 = scalar_lea.vmem %s10, %s1271
        %p1273 = scmp.lt.s32.totalorder %s50, 1
        %s1274 = scalar_select %p1273, %s50, 1
        %s1275 = scalar_lea.vmem %s11, %s1274
        %p1276 = scmp.lt.s32.totalorder %s50, 1
        %s1277 = scalar_select %p1276, %s50, 1
        %s1278 = smul.addr %s1277, 4
        %s1279 = smul.addr %s1278, 4
        %s1280 = scalar_lea.vmem %s12, %s1279
        %p1281 = scmp.lt.s32.totalorder %s50, 1
        %s1282 = scalar_select %p1281, %s50, 1
        %s1283 = smul.addr %s1282, 4
        %s1284 = smul.addr %s1283, 4
        %s1285 = scalar_lea.vmem %s13, %s1284
        %p1286 = scmp.lt.s32.totalorder %s50, 1
        %s1287 = scalar_select %p1286, %s50, 1
        %s1288 = smul.addr %s1287, 4
        %s1289 = smul.addr %s1288, 4
        %s1290 = scalar_lea.vmem %s14, %s1289
        %p1291 = scmp.lt.s32.totalorder %s50, 1
        %s1292 = scalar_select %p1291, %s50, 1
        %s1293 = scalar_lea.vmem %s15, %s1292
        %p1294 = scmp.lt.s32.totalorder %s50, 1
        %s1295 = scalar_select %p1294, %s50, 1
        %s1296 = scalar_lea.vmem %s16, %s1295
        %p1297 = scmp.lt.s32.totalorder %s50, 1
        %s1298 = scalar_select %p1297, %s50, 1
        %s1299 = scalar_lea.vmem %s17, %s1298
        %p1300 = scmp.lt.s32.totalorder %s50, 1
        %s1301 = scalar_select %p1300, %s50, 1
        %s1302 = smul.addr %s1301, 4
        %s1303 = smul.addr %s1302, 4
        %s1304 = scalar_lea.vmem %s18, %s1303
        %p1305 = scmp.lt.s32.totalorder %s50, 1
        %s1306 = scalar_select %p1305, %s50, 1
        %s1307 = scalar_lea.vmem %s19, %s1306
        %p1308 = scmp.lt.s32.totalorder %s50, 1
        %s1309 = scalar_select %p1308, %s50, 1
        %s1310 = scalar_lea.vmem %s20, %s1309
        %p1311 = scmp.lt.s32.totalorder %s50, 1
        %s1312 = scalar_select %p1311, %s50, 1
        %s1313 = scalar_lea.vmem %s21, %s1312
        %p1314 = scmp.lt.s32.totalorder %s50, 1
        %s1315 = scalar_select %p1314, %s50, 1
        %s1316 = smul.addr %s1315, 4
        %s1317 = smul.addr %s1316, 4
        %s1318 = scalar_lea.vmem %s22, %s1317
        %p1319 = scmp.lt.s32.totalorder %s50, 1
        %s1320 = scalar_select %p1319, %s50, 1
        %s1321 = scalar_lea.vmem %s23, %s1320
        %p1322 = scmp.lt.s32.totalorder %s50, 1
        %s1323 = scalar_select %p1322, %s50, 1
        %s1324 = smul.addr %s1323, 8
        %s1325 = smul.addr %s1324, 4
        %s1326 = scalar_lea.vmem %s24, %s1325
        %p1327 = scmp.lt.s32.totalorder %s50, 1
        %s1328 = scalar_select %p1327, %s50, 1
        %s1329 = scalar_lea.vmem %s25, %s1328
        %p1330 = scmp.lt.s32.totalorder %s49, 1
        %s1331 = scalar_select %p1330, %s49, 1
        %s1332 = smul.addr %s1331, 8
        %s1333 = scalar_lea.vmem %s28, %s1332
        %p1335 = scmp.eq.s32.totalorder %s50, 0
        // Predicated region
        $region141: #{model_forward.4} parent=131 // pred_check
          %p1336 = pneg %p1335
        $region142: #{model_forward.4} parent=131 // pred_check_branch
          %1338 = sbr.rel (%p1336) target = $region144
        $region143: #{model_forward.4} parent=131 // pred_region
          %v1339 = vld [vmem:[%s1233] sm:$0xff]
          %vm1340 = vcmask 261120
          %1341 = vst.msk [vmem:[#allocation2] sm:$0xff] %vm1340, %v1339
        $region144: #{model_forward.4} parent=131 // pred_fallthru
          _
        %v1342 = vld [vmem:[#allocation2] sm:$0xff]
        %v1343 = vpack.c.bf16 %v1342, %v1342
        %v1344 = vld [vmem:[%s1242] sm:$0xf]
        %v1345 = vld [vmem:[%s1242 + $0x4] sm:$0xf]
        %v1346 = vld [vmem:[%s1242 + $0x8] sm:$0xf]
        %v1347 = vld [vmem:[%s1242 + $0xc] sm:$0xf]
        %v1348 = vld [vmem:[%s1255] sm:$0x1]
        %v1350 = vlaneseq
        %v1351 = vshrl.u32 %v1350, 7
        %v1352 = vsub.s32 0, %v1351
        %v1353 = vrot.slane %v1348, %v1352
        %v1359 = vunpack.c.l.b16 %v1344
        %v1360 = vunpack.c.l.b16 %v1345
        %v1361 = vunpack.c.l.b16 %v1346
        %v1362 = vunpack.c.l.b16 %v1347
        %v1363 = vpack.c.b16 %v1360, %v1359
        %v1364 = vpack.c.b16 %v1362, %v1361
        %vm1367 = vcmask 261120
        %v1369 = vsel %vm1367, %v1343, 0
        %1371 = vmatprep.subr.bf16.mxu0 0
        %1372 = vmatpush1.bf16.msra.mxu0 %v1363
        %1373 = vmatprep.subr.bf16.mxu0 0
        %1374 = vmatpush1.bf16.msra.mxu0 %v1364
        %1375 = vmatprep.subr.bf16.mxu0 0
        %1376 = vmatpush1.bf16.msra.mxu0 0
        %1377 = vmatprep.subr.bf16.mxu0 0
        %1378 = vmatpush1.bf16.msra.mxu0 0
        %1379 = vmatprep.subr.bf16.mxu0 0
        %1380 = vmatpush1.bf16.msra.mxu0 0
        %1381 = vmatprep.subr.bf16.mxu0 0
        %1382 = vmatpush1.bf16.msra.mxu0 0
        %1383 = vmatprep.subr.bf16.mxu0 0
        %1384 = vmatpush1.bf16.msra.mxu0 0
        %1385 = vmatprep.subr.bf16.mxu0 0
        %1386 = vmatpush1.bf16.msra.mxu0 0
        %1387 = vmatprep.subr.bf16.mxu0 0
        %1388 = vmatpush1.bf16.msra.mxu0 0
        %1389 = vmatprep.subr.bf16.mxu0 0
        %1390 = vmatpush1.bf16.msra.mxu0 0
        %1391 = vmatprep.subr.bf16.mxu0 0
        %1392 = vmatpush1.bf16.msra.mxu0 0
        %1393 = vmatprep.subr.bf16.mxu0 0
        %1394 = vmatpush1.bf16.msra.mxu0 0
        %1395 = vmatprep.subr.bf16.mxu0 0
        %1396 = vmatpush1.bf16.msra.mxu0 0
        %1397 = vmatprep.subr.bf16.mxu0 0
        %1398 = vmatpush1.bf16.msra.mxu0 0
        %1399 = vmatprep.subr.bf16.mxu0 0
        %1400 = vmatpush1.bf16.msra.mxu0 0
        %1401 = vmatprep.subr.bf16.mxu0 0
        %1402 = vmatpush1.bf16.msra.mxu0 0
        %1403 = vmatprep.mubr.bf16.mxu0 0
        %1404 = vmatmul.mubr.bf16.gmra.mrb[0].mxu0 %v1369
        %v1405 = vpop.f32.mrb[0].mxu0
        %v1406 = vadd.f32 %v1353, %v1405
        %v1407 = vpop.f32.mrb[0].mxu0
        %v1408 = vpop.f32.mrb[0].mxu0
        %v1409 = vpop.f32.mrb[0].mxu0
        %1410 = vdwg.mxu0
        %v1411 = vld [vmem:[%s1247] sm:$0xf]
        %v1412 = vld [vmem:[%s1247 + $0x4] sm:$0xf]
        %v1413 = vld [vmem:[%s1247 + $0x8] sm:$0xf]
        %v1414 = vld [vmem:[%s1247 + $0xc] sm:$0xf]
        %v1415 = vld [vmem:[%s1258] sm:$0x1]
        %v1417 = vlaneseq
        %v1418 = vshrl.u32 %v1417, 7
        %v1419 = vsub.s32 0, %v1418
        %v1420 = vrot.slane %v1415, %v1419
        %v1426 = vunpack.c.l.b16 %v1411
        %v1427 = vunpack.c.l.b16 %v1412
        %v1428 = vunpack.c.l.b16 %v1413
        %v1429 = vunpack.c.l.b16 %v1414
        %v1430 = vpack.c.b16 %v1427, %v1426
        %v1431 = vpack.c.b16 %v1429, %v1428
        %1434 = vmatprep.subr.bf16.mxu0 0
        %1435 = vmatpush1.bf16.msra.mxu0 %v1430
        %1436 = vmatprep.subr.bf16.mxu0 0
        %1437 = vmatpush1.bf16.msra.mxu0 %v1431
        %1438 = vmatprep.subr.bf16.mxu0 0
        %1439 = vmatpush1.bf16.msra.mxu0 0
        %1440 = vmatprep.subr.bf16.mxu0 0
        %1441 = vmatpush1.bf16.msra.mxu0 0
        %1442 = vmatprep.subr.bf16.mxu0 0
        %1443 = vmatpush1.bf16.msra.mxu0 0
        %1444 = vmatprep.subr.bf16.mxu0 0
        %1445 = vmatpush1.bf16.msra.mxu0 0
        %1446 = vmatprep.subr.bf16.mxu0 0
        %1447 = vmatpush1.bf16.msra.mxu0 0
        %1448 = vmatprep.subr.bf16.mxu0 0
        %1449 = vmatpush1.bf16.msra.mxu0 0
        %1450 = vmatprep.subr.bf16.mxu0 0
        %1451 = vmatpush1.bf16.msra.mxu0 0
        %1452 = vmatprep.subr.bf16.mxu0 0
        %1453 = vmatpush1.bf16.msra.mxu0 0
        %1454 = vmatprep.subr.bf16.mxu0 0
        %1455 = vmatpush1.bf16.msra.mxu0 0
        %1456 = vmatprep.subr.bf16.mxu0 0
        %1457 = vmatpush1.bf16.msra.mxu0 0
        %1458 = vmatprep.subr.bf16.mxu0 0
        %1459 = vmatpush1.bf16.msra.mxu0 0
        %1460 = vmatprep.subr.bf16.mxu0 0
        %1461 = vmatpush1.bf16.msra.mxu0 0
        %1462 = vmatprep.subr.bf16.mxu0 0
        %1463 = vmatpush1.bf16.msra.mxu0 0
        %1464 = vmatprep.subr.bf16.mxu0 0
        %1465 = vmatpush1.bf16.msra.mxu0 0
        %1466 = vmatprep.mubr.bf16.mxu0 0
        %1467 = vmatmul.mubr.bf16.gmra.mrb[0].mxu0 %v1369
        %v1468 = vpop.f32.mrb[0].mxu0
        %v1469 = vadd.f32 %v1420, %v1468
        %v1470 = vpop.f32.mrb[0].mxu0
        %v1471 = vpop.f32.mrb[0].mxu0
        %v1472 = vpop.f32.mrb[0].mxu0
        %1473 = vdwg.mxu0
        %v1474 = vld [vmem:[%s1252] sm:$0xf]
        %v1475 = vld [vmem:[%s1252 + $0x4] sm:$0xf]
        %v1476 = vld [vmem:[%s1252 + $0x8] sm:$0xf]
        %v1477 = vld [vmem:[%s1252 + $0xc] sm:$0xf]
        %v1478 = vld [vmem:[%s1261] sm:$0x1]
        %v1480 = vlaneseq
        %v1481 = vshrl.u32 %v1480, 7
        %v1482 = vsub.s32 0, %v1481
        %v1483 = vrot.slane %v1478, %v1482
        %v1489 = vunpack.c.l.b16 %v1474
        %v1490 = vunpack.c.l.b16 %v1475
        %v1491 = vunpack.c.l.b16 %v1476
        %v1492 = vunpack.c.l.b16 %v1477
        %v1493 = vpack.c.b16 %v1490, %v1489
        %v1494 = vpack.c.b16 %v1492, %v1491
        %1497 = vmatprep.subr.bf16.mxu0 0
        %1498 = vmatpush1.bf16.msra.mxu0 %v1493
        %1499 = vmatprep.subr.bf16.mxu0 0
        %1500 = vmatpush1.bf16.msra.mxu0 %v1494
        %1501 = vmatprep.subr.bf16.mxu0 0
        %1502 = vmatpush1.bf16.msra.mxu0 0
        %1503 = vmatprep.subr.bf16.mxu0 0
        %1504 = vmatpush1.bf16.msra.mxu0 0
        %1505 = vmatprep.subr.bf16.mxu0 0
        %1506 = vmatpush1.bf16.msra.mxu0 0
        %1507 = vmatprep.subr.bf16.mxu0 0
        %1508 = vmatpush1.bf16.msra.mxu0 0
        %1509 = vmatprep.subr.bf16.mxu0 0
        %1510 = vmatpush1.bf16.msra.mxu0 0
        %1511 = vmatprep.subr.bf16.mxu0 0
        %1512 = vmatpush1.bf16.msra.mxu0 0
        %1513 = vmatprep.subr.bf16.mxu0 0
        %1514 = vmatpush1.bf16.msra.mxu0 0
        %1515 = vmatprep.subr.bf16.mxu0 0
        %1516 = vmatpush1.bf16.msra.mxu0 0
        %1517 = vmatprep.subr.bf16.mxu0 0
        %1518 = vmatpush1.bf16.msra.mxu0 0
        %1519 = vmatprep.subr.bf16.mxu0 0
        %1520 = vmatpush1.bf16.msra.mxu0 0
        %1521 = vmatprep.subr.bf16.mxu0 0
        %1522 = vmatpush1.bf16.msra.mxu0 0
        %1523 = vmatprep.subr.bf16.mxu0 0
        %1524 = vmatpush1.bf16.msra.mxu0 0
        %1525 = vmatprep.subr.bf16.mxu0 0
        %1526 = vmatpush1.bf16.msra.mxu0 0
        %1527 = vmatprep.subr.bf16.mxu0 0
        %1528 = vmatpush1.bf16.msra.mxu0 0
        %1529 = vmatprep.mubr.bf16.mxu0 0
        %1530 = vmatmul.mubr.bf16.gmra.mrb[0].mxu0 %v1369
        %v1531 = vpop.f32.mrb[0].mxu0
        %v1532 = vadd.f32 %v1483, %v1531
        %v1533 = vpop.f32.mrb[0].mxu0
        %v1534 = vpop.f32.mrb[0].mxu0
        %v1535 = vpop.f32.mrb[0].mxu0
        %1536 = vdwg.mxu0
        %v1537 = vpack.c.bf16 %v1406, %v1406
        %v1538 = vpack.c.bf16 %v1469, %v1469
        %v1539 = vpack.c.bf16 %v1532, %v1532
        %vm1540 = vcmask 64512
        %v1542 = vsel %vm1540, %v1537, 0
        %v1545 = vsel %vm1540, %v1538, 0
        %1547 = vmatprep.subr.bf16.mxu0 0
        %1548 = vmatpush1.bf16.xpose.msra.mxu0 %v1545
        %1549 = vmatprep.subr.bf16.mxu0 0
        %1550 = vmatpush1.bf16.xpose.msra.mxu0 0
        %1551 = vmatprep.subr.bf16.mxu0 0
        %1552 = vmatpush1.bf16.xpose.msra.mxu0 0
        %1553 = vmatprep.subr.bf16.mxu0 0
        %1554 = vmatpush1.bf16.xpose.msra.mxu0 0
        %1555 = vmatprep.subr.bf16.mxu0 0
        %1556 = vmatpush1.bf16.xpose.msra.mxu0 0
        %1557 = vmatprep.subr.bf16.mxu0 0
        %1558 = vmatpush1.bf16.xpose.msra.mxu0 0
        %1559 = vmatprep.subr.bf16.mxu0 0
        %1560 = vmatpush1.bf16.xpose.msra.mxu0 0
        %1561 = vmatprep.subr.bf16.mxu0 0
        %1562 = vmatpush1.bf16.xpose.msra.mxu0 0
        %1563 = vmatprep.subr.bf16.mxu0 0
        %1564 = vmatpush1.bf16.xpose.msra.mxu0 0
        %1565 = vmatprep.subr.bf16.mxu0 0
        %1566 = vmatpush1.bf16.xpose.msra.mxu0 0
        %1567 = vmatprep.subr.bf16.mxu0 0
        %1568 = vmatpush1.bf16.xpose.msra.mxu0 0
        %1569 = vmatprep.subr.bf16.mxu0 0
        %1570 = vmatpush1.bf16.xpose.msra.mxu0 0
        %1571 = vmatprep.subr.bf16.mxu0 0
        %1572 = vmatpush1.bf16.xpose.msra.mxu0 0
        %1573 = vmatprep.subr.bf16.mxu0 0
        %1574 = vmatpush1.bf16.xpose.msra.mxu0 0
        %1575 = vmatprep.subr.bf16.mxu0 0
        %1576 = vmatpush1.bf16.xpose.msra.mxu0 0
        %1577 = vmatprep.subr.bf16.mxu0 0
        %1578 = vmatpush1.bf16.xpose.msra.mxu0 0
        %1579 = vmatprep.mubr.bf16.mxu0 0
        %1580 = vmatmul.mubr.bf16.gmra.mrb[0].mxu0 %v1542
        %v1581 = vpop.f32.mrb[0].mxu0
        %v1582 = vadd.f32 0.0, %v1581
        %v1583 = vpop.f32.mrb[0].mxu0
        %v1584 = vpop.f32.mrb[0].mxu0
        %v1585 = vpop.f32.mrb[0].mxu0
        %1586 = vdwg.mxu0
        %v1587 = vmul.f32 %v1582, 0.35355338
        %v1588 = vsel %vm1540, %v1587, -inf
        %1589 = vmax.xlane.f32.xlu0 %v1588
        %v1590 = vpop.xlane.xlu0 %1589
        %v1591 = vsub.f32 %v1587, %v1590
        %v1592 = vmul.f32 %v1591, 1.442695
        %v1593 = vpow.pop %v1592
        %v1594 = vsel %vm1540, %v1593, 0.0
        %1595 = vadd.xlane.f32.xlu0 %v1594
        %v1596 = vpop.xlane.xlu0 %1595
        %v1597 = vrcp.pop %v1596
        %v1598 = vmul.f32 %v1593, %v1597
        %v1599 = vpack.c.bf16 %v1598, %v1598
        %v1601 = vsel %vm1540, %v1599, 0
        %vm1603 = vcmask 1043456
        %v1605 = vsel %vm1603, %v1539, 0
        %1607 = vmatprep.subr.bf16.mxu0 0
        %1608 = vmatpush1.bf16.msra.mxu0 %v1605
        %1609 = vmatprep.subr.bf16.mxu0 0
        %1610 = vmatpush1.bf16.msra.mxu0 0
        %1611 = vmatprep.subr.bf16.mxu0 0
        %1612 = vmatpush1.bf16.msra.mxu0 0
        %1613 = vmatprep.subr.bf16.mxu0 0
        %1614 = vmatpush1.bf16.msra.mxu0 0
        %1615 = vmatprep.subr.bf16.mxu0 0
        %1616 = vmatpush1.bf16.msra.mxu0 0
        %1617 = vmatprep.subr.bf16.mxu0 0
        %1618 = vmatpush1.bf16.msra.mxu0 0
        %1619 = vmatprep.subr.bf16.mxu0 0
        %1620 = vmatpush1.bf16.msra.mxu0 0
        %1621 = vmatprep.subr.bf16.mxu0 0
        %1622 = vmatpush1.bf16.msra.mxu0 0
        %1623 = vmatprep.subr.bf16.mxu0 0
        %1624 = vmatpush1.bf16.msra.mxu0 0
        %1625 = vmatprep.subr.bf16.mxu0 0
        %1626 = vmatpush1.bf16.msra.mxu0 0
        %1627 = vmatprep.subr.bf16.mxu0 0
        %1628 = vmatpush1.bf16.msra.mxu0 0
        %1629 = vmatprep.subr.bf16.mxu0 0
        %1630 = vmatpush1.bf16.msra.mxu0 0
        %1631 = vmatprep.subr.bf16.mxu0 0
        %1632 = vmatpush1.bf16.msra.mxu0 0
        %1633 = vmatprep.subr.bf16.mxu0 0
        %1634 = vmatpush1.bf16.msra.mxu0 0
        %1635 = vmatprep.subr.bf16.mxu0 0
        %1636 = vmatpush1.bf16.msra.mxu0 0
        %1637 = vmatprep.subr.bf16.mxu0 0
        %1638 = vmatpush1.bf16.msra.mxu0 0
        %1639 = vmatprep.mubr.bf16.mxu0 0
        %1640 = vmatmul.mubr.bf16.gmra.mrb[0].mxu0 %v1601
        %v1641 = vpop.f32.mrb[0].mxu0
        %v1642 = vadd.f32 0.0, %v1641
        %v1643 = vpop.f32.mrb[0].mxu0
        %v1644 = vpop.f32.mrb[0].mxu0
        %v1645 = vpop.f32.mrb[0].mxu0
        %1646 = vdwg.mxu0
        %1647 = vst.msk [vmem:[#allocation3] sm:$0xff] %vm1540, %v1642
        %1649 = vrot.lane.b32.xlu0 %v1537, 120
        %v1650 = vpop.permute.xlu0 %1649
        %1652 = vrot.lane.b32.xlu0 %v1538, 120
        %v1653 = vpop.permute.xlu0 %1652
        %v1655 = vsel %vm1540, %v1650, 0
        %v1658 = vsel %vm1540, %v1653, 0
        %1660 = vmatprep.subr.bf16.mxu0 0
        %1661 = vmatpush1.bf16.xpose.msra.mxu0 %v1658
        %1662 = vmatprep.subr.bf16.mxu0 0
        %1663 = vmatpush1.bf16.xpose.msra.mxu0 0
        %1664 = vmatprep.subr.bf16.mxu0 0
        %1665 = vmatpush1.bf16.xpose.msra.mxu0 0
        %1666 = vmatprep.subr.bf16.mxu0 0
        %1667 = vmatpush1.bf16.xpose.msra.mxu0 0
        %1668 = vmatprep.subr.bf16.mxu0 0
        %1669 = vmatpush1.bf16.xpose.msra.mxu0 0
        %1670 = vmatprep.subr.bf16.mxu0 0
        %1671 = vmatpush1.bf16.xpose.msra.mxu0 0
        %1672 = vmatprep.subr.bf16.mxu0 0
        %1673 = vmatpush1.bf16.xpose.msra.mxu0 0
        %1674 = vmatprep.subr.bf16.mxu0 0
        %1675 = vmatpush1.bf16.xpose.msra.mxu0 0
        %1676 = vmatprep.subr.bf16.mxu0 0
        %1677 = vmatpush1.bf16.xpose.msra.mxu0 0
        %1678 = vmatprep.subr.bf16.mxu0 0
        %1679 = vmatpush1.bf16.xpose.msra.mxu0 0
        %1680 = vmatprep.subr.bf16.mxu0 0
        %1681 = vmatpush1.bf16.xpose.msra.mxu0 0
        %1682 = vmatprep.subr.bf16.mxu0 0
        %1683 = vmatpush1.bf16.xpose.msra.mxu0 0
        %1684 = vmatprep.subr.bf16.mxu0 0
        %1685 = vmatpush1.bf16.xpose.msra.mxu0 0
        %1686 = vmatprep.subr.bf16.mxu0 0
        %1687 = vmatpush1.bf16.xpose.msra.mxu0 0
        %1688 = vmatprep.subr.bf16.mxu0 0
        %1689 = vmatpush1.bf16.xpose.msra.mxu0 0
        %1690 = vmatprep.subr.bf16.mxu0 0
        %1691 = vmatpush1.bf16.xpose.msra.mxu0 0
        %1692 = vmatprep.mubr.bf16.mxu0 0
        %1693 = vmatmul.mubr.bf16.gmra.mrb[0].mxu0 %v1655
        %v1694 = vpop.f32.mrb[0].mxu0
        %v1695 = vadd.f32 0.0, %v1694
        %v1696 = vpop.f32.mrb[0].mxu0
        %v1697 = vpop.f32.mrb[0].mxu0
        %v1698 = vpop.f32.mrb[0].mxu0
        %1699 = vdwg.mxu0
        %v1700 = vmul.f32 %v1695, 0.35355338
        %v1701 = vsel %vm1540, %v1700, -inf
        %1702 = vmax.xlane.f32.xlu0 %v1701
        %v1703 = vpop.xlane.xlu0 %1702
        %v1704 = vsub.f32 %v1700, %v1703
        %v1705 = vmul.f32 %v1704, 1.442695
        %v1706 = vpow.pop %v1705
        %v1707 = vsel %vm1540, %v1706, 0.0
        %1708 = vadd.xlane.f32.xlu0 %v1707
        %v1709 = vpop.xlane.xlu0 %1708
        %v1710 = vrcp.pop %v1709
        %v1711 = vmul.f32 %v1706, %v1710
        %v1712 = vpack.c.bf16 %v1711, %v1711
        %1714 = vrot.lane.b32.xlu0 %v1539, 120
        %v1715 = vpop.permute.xlu0 %1714
        %v1717 = vsel %vm1540, %v1712, 0
        %v1720 = vsel %vm1603, %v1715, 0
        %1722 = vmatprep.subr.bf16.mxu0 0
        %1723 = vmatpush1.bf16.msra.mxu0 %v1720
        %1724 = vmatprep.subr.bf16.mxu0 0
        %1725 = vmatpush1.bf16.msra.mxu0 0
        %1726 = vmatprep.subr.bf16.mxu0 0
        %1727 = vmatpush1.bf16.msra.mxu0 0
        %1728 = vmatprep.subr.bf16.mxu0 0
        %1729 = vmatpush1.bf16.msra.mxu0 0
        %1730 = vmatprep.subr.bf16.mxu0 0
        %1731 = vmatpush1.bf16.msra.mxu0 0
        %1732 = vmatprep.subr.bf16.mxu0 0
        %1733 = vmatpush1.bf16.msra.mxu0 0
        %1734 = vmatprep.subr.bf16.mxu0 0
        %1735 = vmatpush1.bf16.msra.mxu0 0
        %1736 = vmatprep.subr.bf16.mxu0 0
        %1737 = vmatpush1.bf16.msra.mxu0 0
        %1738 = vmatprep.subr.bf16.mxu0 0
        %1739 = vmatpush1.bf16.msra.mxu0 0
        %1740 = vmatprep.subr.bf16.mxu0 0
        %1741 = vmatpush1.bf16.msra.mxu0 0
        %1742 = vmatprep.subr.bf16.mxu0 0
        %1743 = vmatpush1.bf16.msra.mxu0 0
        %1744 = vmatprep.subr.bf16.mxu0 0
        %1745 = vmatpush1.bf16.msra.mxu0 0
        %1746 = vmatprep.subr.bf16.mxu0 0
        %1747 = vmatpush1.bf16.msra.mxu0 0
        %1748 = vmatprep.subr.bf16.mxu0 0
        %1749 = vmatpush1.bf16.msra.mxu0 0
        %1750 = vmatprep.subr.bf16.mxu0 0
        %1751 = vmatpush1.bf16.msra.mxu0 0
        %1752 = vmatprep.subr.bf16.mxu0 0
        %1753 = vmatpush1.bf16.msra.mxu0 0
        %1754 = vmatprep.mubr.bf16.mxu0 0
        %1755 = vmatmul.mubr.bf16.gmra.mrb[0].mxu0 %v1717
        %v1756 = vpop.f32.mrb[0].mxu0
        %v1757 = vadd.f32 0.0, %v1756
        %v1758 = vpop.f32.mrb[0].mxu0
        %v1759 = vpop.f32.mrb[0].mxu0
        %v1760 = vpop.f32.mrb[0].mxu0
        %1761 = vdwg.mxu0
        %1763 = vrot.lane.b32.xlu0 %v1757, 8
        %v1764 = vpop.permute.xlu0 %1763
        %vm1766 = vcmask 130112
        %1767 = vst.msk [vmem:[#allocation3] sm:$0xff] %vm1766, %v1764
        %1768 = vrot.lane.b32.xlu0 %v1537, 112
        %v1769 = vpop.permute.xlu0 %1768
        %1770 = vrot.lane.b32.xlu0 %v1538, 112
        %v1771 = vpop.permute.xlu0 %1770
        %v1773 = vsel %vm1540, %v1769, 0
        %v1776 = vsel %vm1540, %v1771, 0
        %1778 = vmatprep.subr.bf16.mxu0 0
        %1779 = vmatpush1.bf16.xpose.msra.mxu0 %v1776
        %1780 = vmatprep.subr.bf16.mxu0 0
        %1781 = vmatpush1.bf16.xpose.msra.mxu0 0
        %1782 = vmatprep.subr.bf16.mxu0 0
        %1783 = vmatpush1.bf16.xpose.msra.mxu0 0
        %1784 = vmatprep.subr.bf16.mxu0 0
        %1785 = vmatpush1.bf16.xpose.msra.mxu0 0
        %1786 = vmatprep.subr.bf16.mxu0 0
        %1787 = vmatpush1.bf16.xpose.msra.mxu0 0
        %1788 = vmatprep.subr.bf16.mxu0 0
        %1789 = vmatpush1.bf16.xpose.msra.mxu0 0
        %1790 = vmatprep.subr.bf16.mxu0 0
        %1791 = vmatpush1.bf16.xpose.msra.mxu0 0
        %1792 = vmatprep.subr.bf16.mxu0 0
        %1793 = vmatpush1.bf16.xpose.msra.mxu0 0
        %1794 = vmatprep.subr.bf16.mxu0 0
        %1795 = vmatpush1.bf16.xpose.msra.mxu0 0
        %1796 = vmatprep.subr.bf16.mxu0 0
        %1797 = vmatpush1.bf16.xpose.msra.mxu0 0
        %1798 = vmatprep.subr.bf16.mxu0 0
        %1799 = vmatpush1.bf16.xpose.msra.mxu0 0
        %1800 = vmatprep.subr.bf16.mxu0 0
        %1801 = vmatpush1.bf16.xpose.msra.mxu0 0
        %1802 = vmatprep.subr.bf16.mxu0 0
        %1803 = vmatpush1.bf16.xpose.msra.mxu0 0
        %1804 = vmatprep.subr.bf16.mxu0 0
        %1805 = vmatpush1.bf16.xpose.msra.mxu0 0
        %1806 = vmatprep.subr.bf16.mxu0 0
        %1807 = vmatpush1.bf16.xpose.msra.mxu0 0
        %1808 = vmatprep.subr.bf16.mxu0 0
        %1809 = vmatpush1.bf16.xpose.msra.mxu0 0
        %1810 = vmatprep.mubr.bf16.mxu0 0
        %1811 = vmatmul.mubr.bf16.gmra.mrb[0].mxu0 %v1773
        %v1812 = vpop.f32.mrb[0].mxu0
        %v1813 = vadd.f32 0.0, %v1812
        %v1814 = vpop.f32.mrb[0].mxu0
        %v1815 = vpop.f32.mrb[0].mxu0
        %v1816 = vpop.f32.mrb[0].mxu0
        %1817 = vdwg.mxu0
        %v1818 = vmul.f32 %v1813, 0.35355338
        %v1819 = vsel %vm1540, %v1818, -inf
        %1820 = vmax.xlane.f32.xlu0 %v1819
        %v1821 = vpop.xlane.xlu0 %1820
        %v1822 = vsub.f32 %v1818, %v1821
        %v1823 = vmul.f32 %v1822, 1.442695
        %v1824 = vpow.pop %v1823
        %v1825 = vsel %vm1540, %v1824, 0.0
        %1826 = vadd.xlane.f32.xlu0 %v1825
        %v1827 = vpop.xlane.xlu0 %1826
        %v1828 = vrcp.pop %v1827
        %v1829 = vmul.f32 %v1824, %v1828
        %v1830 = vpack.c.bf16 %v1829, %v1829
        %1831 = vrot.lane.b32.xlu0 %v1539, 112
        %v1832 = vpop.permute.xlu0 %1831
        %v1834 = vsel %vm1540, %v1830, 0
        %v1837 = vsel %vm1603, %v1832, 0
        %1839 = vmatprep.subr.bf16.mxu0 0
        %1840 = vmatpush1.bf16.msra.mxu0 %v1837
        %1841 = vmatprep.subr.bf16.mxu0 0
        %1842 = vmatpush1.bf16.msra.mxu0 0
        %1843 = vmatprep.subr.bf16.mxu0 0
        %1844 = vmatpush1.bf16.msra.mxu0 0
        %1845 = vmatprep.subr.bf16.mxu0 0
        %1846 = vmatpush1.bf16.msra.mxu0 0
        %1847 = vmatprep.subr.bf16.mxu0 0
        %1848 = vmatpush1.bf16.msra.mxu0 0
        %1849 = vmatprep.subr.bf16.mxu0 0
        %1850 = vmatpush1.bf16.msra.mxu0 0
        %1851 = vmatprep.subr.bf16.mxu0 0
        %1852 = vmatpush1.bf16.msra.mxu0 0
        %1853 = vmatprep.subr.bf16.mxu0 0
        %1854 = vmatpush1.bf16.msra.mxu0 0
        %1855 = vmatprep.subr.bf16.mxu0 0
        %1856 = vmatpush1.bf16.msra.mxu0 0
        %1857 = vmatprep.subr.bf16.mxu0 0
        %1858 = vmatpush1.bf16.msra.mxu0 0
        %1859 = vmatprep.subr.bf16.mxu0 0
        %1860 = vmatpush1.bf16.msra.mxu0 0
        %1861 = vmatprep.subr.bf16.mxu0 0
        %1862 = vmatpush1.bf16.msra.mxu0 0
        %1863 = vmatprep.subr.bf16.mxu0 0
        %1864 = vmatpush1.bf16.msra.mxu0 0
        %1865 = vmatprep.subr.bf16.mxu0 0
        %1866 = vmatpush1.bf16.msra.mxu0 0
        %1867 = vmatprep.subr.bf16.mxu0 0
        %1868 = vmatpush1.bf16.msra.mxu0 0
        %1869 = vmatprep.subr.bf16.mxu0 0
        %1870 = vmatpush1.bf16.msra.mxu0 0
        %1871 = vmatprep.mubr.bf16.mxu0 0
        %1872 = vmatmul.mubr.bf16.gmra.mrb[0].mxu0 %v1834
        %v1873 = vpop.f32.mrb[0].mxu0
        %v1874 = vadd.f32 0.0, %v1873
        %v1875 = vpop.f32.mrb[0].mxu0
        %v1876 = vpop.f32.mrb[0].mxu0
        %v1877 = vpop.f32.mrb[0].mxu0
        %1878 = vdwg.mxu0
        %1880 = vrot.lane.b32.xlu0 %v1874, 16
        %v1881 = vpop.permute.xlu0 %1880
        %vm1883 = vcmask 195712
        %1884 = vst.msk [vmem:[#allocation3] sm:$0xff] %vm1883, %v1881
        %1885 = vrot.lane.b32.xlu0 %v1537, 104
        %v1886 = vpop.permute.xlu0 %1885
        %1887 = vrot.lane.b32.xlu0 %v1538, 104
        %v1888 = vpop.permute.xlu0 %1887
        %v1890 = vsel %vm1540, %v1886, 0
        %v1893 = vsel %vm1540, %v1888, 0
        %1895 = vmatprep.subr.bf16.mxu0 0
        %1896 = vmatpush1.bf16.xpose.msra.mxu0 %v1893
        %1897 = vmatprep.subr.bf16.mxu0 0
        %1898 = vmatpush1.bf16.xpose.msra.mxu0 0
        %1899 = vmatprep.subr.bf16.mxu0 0
        %1900 = vmatpush1.bf16.xpose.msra.mxu0 0
        %1901 = vmatprep.subr.bf16.mxu0 0
        %1902 = vmatpush1.bf16.xpose.msra.mxu0 0
        %1903 = vmatprep.subr.bf16.mxu0 0
        %1904 = vmatpush1.bf16.xpose.msra.mxu0 0
        %1905 = vmatprep.subr.bf16.mxu0 0
        %1906 = vmatpush1.bf16.xpose.msra.mxu0 0
        %1907 = vmatprep.subr.bf16.mxu0 0
        %1908 = vmatpush1.bf16.xpose.msra.mxu0 0
        %1909 = vmatprep.subr.bf16.mxu0 0
        %1910 = vmatpush1.bf16.xpose.msra.mxu0 0
        %1911 = vmatprep.subr.bf16.mxu0 0
        %1912 = vmatpush1.bf16.xpose.msra.mxu0 0
        %1913 = vmatprep.subr.bf16.mxu0 0
        %1914 = vmatpush1.bf16.xpose.msra.mxu0 0
        %1915 = vmatprep.subr.bf16.mxu0 0
        %1916 = vmatpush1.bf16.xpose.msra.mxu0 0
        %1917 = vmatprep.subr.bf16.mxu0 0
        %1918 = vmatpush1.bf16.xpose.msra.mxu0 0
        %1919 = vmatprep.subr.bf16.mxu0 0
        %1920 = vmatpush1.bf16.xpose.msra.mxu0 0
        %1921 = vmatprep.subr.bf16.mxu0 0
        %1922 = vmatpush1.bf16.xpose.msra.mxu0 0
        %1923 = vmatprep.subr.bf16.mxu0 0
        %1924 = vmatpush1.bf16.xpose.msra.mxu0 0
        %1925 = vmatprep.subr.bf16.mxu0 0
        %1926 = vmatpush1.bf16.xpose.msra.mxu0 0
        %1927 = vmatprep.mubr.bf16.mxu0 0
        %1928 = vmatmul.mubr.bf16.gmra.mrb[0].mxu0 %v1890
        %v1929 = vpop.f32.mrb[0].mxu0
        %v1930 = vadd.f32 0.0, %v1929
        %v1931 = vpop.f32.mrb[0].mxu0
        %v1932 = vpop.f32.mrb[0].mxu0
        %v1933 = vpop.f32.mrb[0].mxu0
        %1934 = vdwg.mxu0
        %v1935 = vmul.f32 %v1930, 0.35355338
        %v1936 = vsel %vm1540, %v1935, -inf
        %1937 = vmax.xlane.f32.xlu0 %v1936
        %v1938 = vpop.xlane.xlu0 %1937
        %v1939 = vsub.f32 %v1935, %v1938
        %v1940 = vmul.f32 %v1939, 1.442695
        %v1941 = vpow.pop %v1940
        %v1942 = vsel %vm1540, %v1941, 0.0
        %1943 = vadd.xlane.f32.xlu0 %v1942
        %v1944 = vpop.xlane.xlu0 %1943
        %v1945 = vrcp.pop %v1944
        %v1946 = vmul.f32 %v1941, %v1945
        %v1947 = vpack.c.bf16 %v1946, %v1946
        %1948 = vrot.lane.b32.xlu0 %v1539, 104
        %v1949 = vpop.permute.xlu0 %1948
        %v1951 = vsel %vm1540, %v1947, 0
        %v1954 = vsel %vm1603, %v1949, 0
        %1956 = vmatprep.subr.bf16.mxu0 0
        %1957 = vmatpush1.bf16.msra.mxu0 %v1954
        %1958 = vmatprep.subr.bf16.mxu0 0
        %1959 = vmatpush1.bf16.msra.mxu0 0
        %1960 = vmatprep.subr.bf16.mxu0 0
        %1961 = vmatpush1.bf16.msra.mxu0 0
        %1962 = vmatprep.subr.bf16.mxu0 0
        %1963 = vmatpush1.bf16.msra.mxu0 0
        %1964 = vmatprep.subr.bf16.mxu0 0
        %1965 = vmatpush1.bf16.msra.mxu0 0
        %1966 = vmatprep.subr.bf16.mxu0 0
        %1967 = vmatpush1.bf16.msra.mxu0 0
        %1968 = vmatprep.subr.bf16.mxu0 0
        %1969 = vmatpush1.bf16.msra.mxu0 0
        %1970 = vmatprep.subr.bf16.mxu0 0
        %1971 = vmatpush1.bf16.msra.mxu0 0
        %1972 = vmatprep.subr.bf16.mxu0 0
        %1973 = vmatpush1.bf16.msra.mxu0 0
        %1974 = vmatprep.subr.bf16.mxu0 0
        %1975 = vmatpush1.bf16.msra.mxu0 0
        %1976 = vmatprep.subr.bf16.mxu0 0
        %1977 = vmatpush1.bf16.msra.mxu0 0
        %1978 = vmatprep.subr.bf16.mxu0 0
        %1979 = vmatpush1.bf16.msra.mxu0 0
        %1980 = vmatprep.subr.bf16.mxu0 0
        %1981 = vmatpush1.bf16.msra.mxu0 0
        %1982 = vmatprep.subr.bf16.mxu0 0
        %1983 = vmatpush1.bf16.msra.mxu0 0
        %1984 = vmatprep.subr.bf16.mxu0 0
        %1985 = vmatpush1.bf16.msra.mxu0 0
        %1986 = vmatprep.subr.bf16.mxu0 0
        %1987 = vmatpush1.bf16.msra.mxu0 0
        %1988 = vmatprep.mubr.bf16.mxu0 0
        %1989 = vmatmul.mubr.bf16.gmra.mrb[0].mxu0 %v1951
        %v1990 = vpop.f32.mrb[0].mxu0
        %v1991 = vadd.f32 0.0, %v1990
        %v1992 = vpop.f32.mrb[0].mxu0
        %v1993 = vpop.f32.mrb[0].mxu0
        %v1994 = vpop.f32.mrb[0].mxu0
        %1995 = vdwg.mxu0
        %1997 = vrot.lane.b32.xlu0 %v1991, 24
        %v1998 = vpop.permute.xlu0 %1997
        %vm2000 = vcmask 261312
        %2001 = vst.msk [vmem:[#allocation3] sm:$0xff] %vm2000, %v1998
        %v2002 = vld [vmem:[#allocation3] sm:$0xff]
        %v2003 = vpack.c.bf16 %v2002, %v2002
        %v2004 = vld [vmem:[%s1266] sm:$0xf]
        %v2005 = vld [vmem:[%s1266 + $0x4] sm:$0xf]
        %v2006 = vld [vmem:[%s1266 + $0x8] sm:$0xf]
        %v2007 = vld [vmem:[%s1266 + $0xc] sm:$0xf]
        %v2008 = vld [vmem:[%s1269] sm:$0x1]
        %v2010 = vlaneseq
        %v2011 = vshrl.u32 %v2010, 7
        %v2012 = vsub.s32 0, %v2011
        %v2013 = vrot.slane %v2008, %v2012
        %v2019 = vunpack.c.l.b16 %v2004
        %v2020 = vunpack.c.l.b16 %v2005
        %v2021 = vunpack.c.l.b16 %v2006
        %v2022 = vunpack.c.l.b16 %v2007
        %v2023 = vpack.c.b16 %v2020, %v2019
        %v2024 = vpack.c.b16 %v2022, %v2021
        %v2028 = vsel %vm1367, %v2003, 0
        %2030 = vmatprep.subr.bf16.mxu0 0
        %2031 = vmatpush1.bf16.msra.mxu0 %v2023
        %2032 = vmatprep.subr.bf16.mxu0 0
        %2033 = vmatpush1.bf16.msra.mxu0 %v2024
        %2034 = vmatprep.subr.bf16.mxu0 0
        %2035 = vmatpush1.bf16.msra.mxu0 0
        %2036 = vmatprep.subr.bf16.mxu0 0
        %2037 = vmatpush1.bf16.msra.mxu0 0
        %2038 = vmatprep.subr.bf16.mxu0 0
        %2039 = vmatpush1.bf16.msra.mxu0 0
        %2040 = vmatprep.subr.bf16.mxu0 0
        %2041 = vmatpush1.bf16.msra.mxu0 0
        %2042 = vmatprep.subr.bf16.mxu0 0
        %2043 = vmatpush1.bf16.msra.mxu0 0
        %2044 = vmatprep.subr.bf16.mxu0 0
        %2045 = vmatpush1.bf16.msra.mxu0 0
        %2046 = vmatprep.subr.bf16.mxu0 0
        %2047 = vmatpush1.bf16.msra.mxu0 0
        %2048 = vmatprep.subr.bf16.mxu0 0
        %2049 = vmatpush1.bf16.msra.mxu0 0
        %2050 = vmatprep.subr.bf16.mxu0 0
        %2051 = vmatpush1.bf16.msra.mxu0 0
        %2052 = vmatprep.subr.bf16.mxu0 0
        %2053 = vmatpush1.bf16.msra.mxu0 0
        %2054 = vmatprep.subr.bf16.mxu0 0
        %2055 = vmatpush1.bf16.msra.mxu0 0
        %2056 = vmatprep.subr.bf16.mxu0 0
        %2057 = vmatpush1.bf16.msra.mxu0 0
        %2058 = vmatprep.subr.bf16.mxu0 0
        %2059 = vmatpush1.bf16.msra.mxu0 0
        %2060 = vmatprep.subr.bf16.mxu0 0
        %2061 = vmatpush1.bf16.msra.mxu0 0
        %2062 = vmatprep.mubr.bf16.mxu0 0
        %2063 = vmatmul.mubr.bf16.gmra.mrb[0].mxu0 %v2028
        %v2064 = vpop.f32.mrb[0].mxu0
        %v2065 = vadd.f32 %v2013, %v2064
        %v2066 = vpop.f32.mrb[0].mxu0
        %v2067 = vpop.f32.mrb[0].mxu0
        %v2068 = vpop.f32.mrb[0].mxu0
        %2069 = vdwg.mxu0
        %v2070 = vadd.f32 %v1342, %v2065
        %v2071 = vld [vmem:[%s1272] sm:$0x1]
        %v2072 = vld [vmem:[%s1275] sm:$0x1]
        %v2073 = vsel %vm1367, %v2070, 0.0
        %2074 = vadd.xlane.f32.xlu0 %v2073
        %v2075 = vpop.xlane.xlu0 %2074
        %v2076 = vrcp.pop 32.0
        %v2077 = vmul.f32 %v2075, %v2076
        %v2078 = vsub.f32 %v2070, %v2077
        %v2079 = vmul.f32 %v2078, %v2078
        %v2080 = vsel %vm1367, %v2079, 0.0
        %2081 = vadd.xlane.f32.xlu0 %v2080
        %v2082 = vpop.xlane.xlu0 %2081
        %v2083 = vmul.f32 %v2082, %v2076
        %v2084 = vadd.f32 %v2083, 1e-05
        %v2085 = vrsqrt.pop %v2084
        %v2086 = vmul.f32 %v2078, %v2085
        %v2088 = vlaneseq
        %v2089 = vshrl.u32 %v2088, 7
        %v2090 = vsub.s32 0, %v2089
        %v2091 = vrot.slane %v2071, %v2090
        %v2093 = vmul.f32 %v2086, %v2091
        %v2095 = vlaneseq
        %v2096 = vshrl.u32 %v2095, 7
        %v2097 = vsub.s32 0, %v2096
        %v2098 = vrot.slane %v2072, %v2097
        %v2100 = vadd.f32 %v2093, %v2098
        %v2101 = vld [vmem:[%s1237] sm:$0xff]
        %v2102 = vpack.c.bf16 %v2101, %v2101
        %v2103 = vpack.c.bf16 %v2100, %v2100
        %v2104 = vld [vmem:[%s1280] sm:$0xf]
        %v2105 = vld [vmem:[%s1280 + $0x4] sm:$0xf]
        %v2106 = vld [vmem:[%s1280 + $0x8] sm:$0xf]
        %v2107 = vld [vmem:[%s1280 + $0xc] sm:$0xf]
        %v2108 = vld [vmem:[%s1293] sm:$0x1]
        %v2110 = vlaneseq
        %v2111 = vshrl.u32 %v2110, 7
        %v2112 = vsub.s32 0, %v2111
        %v2113 = vrot.slane %v2108, %v2112
        %v2119 = vunpack.c.l.b16 %v2104
        %v2120 = vunpack.c.l.b16 %v2105
        %v2121 = vunpack.c.l.b16 %v2106
        %v2122 = vunpack.c.l.b16 %v2107
        %v2123 = vpack.c.b16 %v2120, %v2119
        %v2124 = vpack.c.b16 %v2122, %v2121
        %v2128 = vsel %vm1367, %v2103, 0
        %2130 = vmatprep.subr.bf16.mxu0 0
        %2131 = vmatpush1.bf16.msra.mxu0 %v2123
        %2132 = vmatprep.subr.bf16.mxu0 0
        %2133 = vmatpush1.bf16.msra.mxu0 %v2124
        %2134 = vmatprep.subr.bf16.mxu0 0
        %2135 = vmatpush1.bf16.msra.mxu0 0
        %2136 = vmatprep.subr.bf16.mxu0 0
        %2137 = vmatpush1.bf16.msra.mxu0 0
        %2138 = vmatprep.subr.bf16.mxu0 0
        %2139 = vmatpush1.bf16.msra.mxu0 0
        %2140 = vmatprep.subr.bf16.mxu0 0
        %2141 = vmatpush1.bf16.msra.mxu0 0
        %2142 = vmatprep.subr.bf16.mxu0 0
        %2143 = vmatpush1.bf16.msra.mxu0 0
        %2144 = vmatprep.subr.bf16.mxu0 0
        %2145 = vmatpush1.bf16.msra.mxu0 0
        %2146 = vmatprep.subr.bf16.mxu0 0
        %2147 = vmatpush1.bf16.msra.mxu0 0
        %2148 = vmatprep.subr.bf16.mxu0 0
        %2149 = vmatpush1.bf16.msra.mxu0 0
        %2150 = vmatprep.subr.bf16.mxu0 0
        %2151 = vmatpush1.bf16.msra.mxu0 0
        %2152 = vmatprep.subr.bf16.mxu0 0
        %2153 = vmatpush1.bf16.msra.mxu0 0
        %2154 = vmatprep.subr.bf16.mxu0 0
        %2155 = vmatpush1.bf16.msra.mxu0 0
        %2156 = vmatprep.subr.bf16.mxu0 0
        %2157 = vmatpush1.bf16.msra.mxu0 0
        %2158 = vmatprep.subr.bf16.mxu0 0
        %2159 = vmatpush1.bf16.msra.mxu0 0
        %2160 = vmatprep.subr.bf16.mxu0 0
        %2161 = vmatpush1.bf16.msra.mxu0 0
        %2162 = vmatprep.mubr.bf16.mxu0 0
        %2163 = vmatmul.mubr.bf16.gmra.mrb[0].mxu0 %v2128
        %v2164 = vpop.f32.mrb[0].mxu0
        %v2165 = vadd.f32 %v2113, %v2164
        %v2166 = vpop.f32.mrb[0].mxu0
        %v2167 = vpop.f32.mrb[0].mxu0
        %v2168 = vpop.f32.mrb[0].mxu0
        %2169 = vdwg.mxu0
        %v2170 = vld [vmem:[%s1285] sm:$0xf]
        %v2171 = vld [vmem:[%s1285 + $0x4] sm:$0xf]
        %v2172 = vld [vmem:[%s1285 + $0x8] sm:$0xf]
        %v2173 = vld [vmem:[%s1285 + $0xc] sm:$0xf]
        %v2174 = vld [vmem:[%s1296] sm:$0x1]
        %v2176 = vlaneseq
        %v2177 = vshrl.u32 %v2176, 7
        %v2178 = vsub.s32 0, %v2177
        %v2179 = vrot.slane %v2174, %v2178
        %v2185 = vunpack.c.l.b16 %v2170
        %v2186 = vunpack.c.l.b16 %v2171
        %v2187 = vunpack.c.l.b16 %v2172
        %v2188 = vunpack.c.l.b16 %v2173
        %v2189 = vpack.c.b16 %v2186, %v2185
        %v2190 = vpack.c.b16 %v2188, %v2187
        %v2194 = vsel %vm1367, %v2102, 0
        %2196 = vmatprep.subr.bf16.mxu0 0
        %2197 = vmatpush1.bf16.msra.mxu0 %v2189
        %2198 = vmatprep.subr.bf16.mxu0 0
        %2199 = vmatpush1.bf16.msra.mxu0 %v2190
        %2200 = vmatprep.subr.bf16.mxu0 0
        %2201 = vmatpush1.bf16.msra.mxu0 0
        %2202 = vmatprep.subr.bf16.mxu0 0
        %2203 = vmatpush1.bf16.msra.mxu0 0
        %2204 = vmatprep.subr.bf16.mxu0 0
        %2205 = vmatpush1.bf16.msra.mxu0 0
        %2206 = vmatprep.subr.bf16.mxu0 0
        %2207 = vmatpush1.bf16.msra.mxu0 0
        %2208 = vmatprep.subr.bf16.mxu0 0
        %2209 = vmatpush1.bf16.msra.mxu0 0
        %2210 = vmatprep.subr.bf16.mxu0 0
        %2211 = vmatpush1.bf16.msra.mxu0 0
        %2212 = vmatprep.subr.bf16.mxu0 0
        %2213 = vmatpush1.bf16.msra.mxu0 0
        %2214 = vmatprep.subr.bf16.mxu0 0
        %2215 = vmatpush1.bf16.msra.mxu0 0
        %2216 = vmatprep.subr.bf16.mxu0 0
        %2217 = vmatpush1.bf16.msra.mxu0 0
        %2218 = vmatprep.subr.bf16.mxu0 0
        %2219 = vmatpush1.bf16.msra.mxu0 0
        %2220 = vmatprep.subr.bf16.mxu0 0
        %2221 = vmatpush1.bf16.msra.mxu0 0
        %2222 = vmatprep.subr.bf16.mxu0 0
        %2223 = vmatpush1.bf16.msra.mxu0 0
        %2224 = vmatprep.subr.bf16.mxu0 0
        %2225 = vmatpush1.bf16.msra.mxu0 0
        %2226 = vmatprep.subr.bf16.mxu0 0
        %2227 = vmatpush1.bf16.msra.mxu0 0
        %2228 = vmatprep.mubr.bf16.mxu0 0
        %2229 = vmatmul.mubr.bf16.gmra.mrb[0].mxu0 %v2194
        %v2230 = vpop.f32.mrb[0].mxu0
        %v2231 = vadd.f32 %v2179, %v2230
        %v2232 = vpop.f32.mrb[0].mxu0
        %v2233 = vpop.f32.mrb[0].mxu0
        %v2234 = vpop.f32.mrb[0].mxu0
        %2235 = vdwg.mxu0
        %v2236 = vld [vmem:[%s1290] sm:$0xf]
        %v2237 = vld [vmem:[%s1290 + $0x4] sm:$0xf]
        %v2238 = vld [vmem:[%s1290 + $0x8] sm:$0xf]
        %v2239 = vld [vmem:[%s1290 + $0xc] sm:$0xf]
        %v2240 = vld [vmem:[%s1299] sm:$0x1]
        %v2242 = vlaneseq
        %v2243 = vshrl.u32 %v2242, 7
        %v2244 = vsub.s32 0, %v2243
        %v2245 = vrot.slane %v2240, %v2244
        %v2251 = vunpack.c.l.b16 %v2236
        %v2252 = vunpack.c.l.b16 %v2237
        %v2253 = vunpack.c.l.b16 %v2238
        %v2254 = vunpack.c.l.b16 %v2239
        %v2255 = vpack.c.b16 %v2252, %v2251
        %v2256 = vpack.c.b16 %v2254, %v2253
        %2259 = vmatprep.subr.bf16.mxu0 0
        %2260 = vmatpush1.bf16.msra.mxu0 %v2255
        %2261 = vmatprep.subr.bf16.mxu0 0
        %2262 = vmatpush1.bf16.msra.mxu0 %v2256
        %2263 = vmatprep.subr.bf16.mxu0 0
        %2264 = vmatpush1.bf16.msra.mxu0 0
        %2265 = vmatprep.subr.bf16.mxu0 0
        %2266 = vmatpush1.bf16.msra.mxu0 0
        %2267 = vmatprep.subr.bf16.mxu0 0
        %2268 = vmatpush1.bf16.msra.mxu0 0
        %2269 = vmatprep.subr.bf16.mxu0 0
        %2270 = vmatpush1.bf16.msra.mxu0 0
        %2271 = vmatprep.subr.bf16.mxu0 0
        %2272 = vmatpush1.bf16.msra.mxu0 0
        %2273 = vmatprep.subr.bf16.mxu0 0
        %2274 = vmatpush1.bf16.msra.mxu0 0
        %2275 = vmatprep.subr.bf16.mxu0 0
        %2276 = vmatpush1.bf16.msra.mxu0 0
        %2277 = vmatprep.subr.bf16.mxu0 0
        %2278 = vmatpush1.bf16.msra.mxu0 0
        %2279 = vmatprep.subr.bf16.mxu0 0
        %2280 = vmatpush1.bf16.msra.mxu0 0
        %2281 = vmatprep.subr.bf16.mxu0 0
        %2282 = vmatpush1.bf16.msra.mxu0 0
        %2283 = vmatprep.subr.bf16.mxu0 0
        %2284 = vmatpush1.bf16.msra.mxu0 0
        %2285 = vmatprep.subr.bf16.mxu0 0
        %2286 = vmatpush1.bf16.msra.mxu0 0
        %2287 = vmatprep.subr.bf16.mxu0 0
        %2288 = vmatpush1.bf16.msra.mxu0 0
        %2289 = vmatprep.subr.bf16.mxu0 0
        %2290 = vmatpush1.bf16.msra.mxu0 0
        %2291 = vmatprep.mubr.bf16.mxu0 0
        %2292 = vmatmul.mubr.bf16.gmra.mrb[0].mxu0 %v2194
        %v2293 = vpop.f32.mrb[0].mxu0
        %v2294 = vadd.f32 %v2245, %v2293
        %v2295 = vpop.f32.mrb[0].mxu0
        %v2296 = vpop.f32.mrb[0].mxu0
        %v2297 = vpop.f32.mrb[0].mxu0
        %2298 = vdwg.mxu0
        %v2299 = vpack.c.bf16 %v2165, %v2165
        %v2300 = vpack.c.bf16 %v2231, %v2231
        %v2301 = vpack.c.bf16 %v2294, %v2294
        %v2303 = vsel %vm1540, %v2299, 0
        %v2306 = vsel %vm1540, %v2300, 0
        %2308 = vmatprep.subr.bf16.mxu0 0
        %2309 = vmatpush1.bf16.xpose.msra.mxu0 %v2306
        %2310 = vmatprep.subr.bf16.mxu0 0
        %2311 = vmatpush1.bf16.xpose.msra.mxu0 0
        %2312 = vmatprep.subr.bf16.mxu0 0
        %2313 = vmatpush1.bf16.xpose.msra.mxu0 0
        %2314 = vmatprep.subr.bf16.mxu0 0
        %2315 = vmatpush1.bf16.xpose.msra.mxu0 0
        %2316 = vmatprep.subr.bf16.mxu0 0
        %2317 = vmatpush1.bf16.xpose.msra.mxu0 0
        %2318 = vmatprep.subr.bf16.mxu0 0
        %2319 = vmatpush1.bf16.xpose.msra.mxu0 0
        %2320 = vmatprep.subr.bf16.mxu0 0
        %2321 = vmatpush1.bf16.xpose.msra.mxu0 0
        %2322 = vmatprep.subr.bf16.mxu0 0
        %2323 = vmatpush1.bf16.xpose.msra.mxu0 0
        %2324 = vmatprep.subr.bf16.mxu0 0
        %2325 = vmatpush1.bf16.xpose.msra.mxu0 0
        %2326 = vmatprep.subr.bf16.mxu0 0
        %2327 = vmatpush1.bf16.xpose.msra.mxu0 0
        %2328 = vmatprep.subr.bf16.mxu0 0
        %2329 = vmatpush1.bf16.xpose.msra.mxu0 0
        %2330 = vmatprep.subr.bf16.mxu0 0
        %2331 = vmatpush1.bf16.xpose.msra.mxu0 0
        %2332 = vmatprep.subr.bf16.mxu0 0
        %2333 = vmatpush1.bf16.xpose.msra.mxu0 0
        %2334 = vmatprep.subr.bf16.mxu0 0
        %2335 = vmatpush1.bf16.xpose.msra.mxu0 0
        %2336 = vmatprep.subr.bf16.mxu0 0
        %2337 = vmatpush1.bf16.xpose.msra.mxu0 0
        %2338 = vmatprep.subr.bf16.mxu0 0
        %2339 = vmatpush1.bf16.xpose.msra.mxu0 0
        %2340 = vmatprep.mubr.bf16.mxu0 0
        %2341 = vmatmul.mubr.bf16.gmra.mrb[0].mxu0 %v2303
        %v2342 = vpop.f32.mrb[0].mxu0
        %v2343 = vadd.f32 0.0, %v2342
        %v2344 = vpop.f32.mrb[0].mxu0
        %v2345 = vpop.f32.mrb[0].mxu0
        %v2346 = vpop.f32.mrb[0].mxu0
        %2347 = vdwg.mxu0
        %v2348 = vmul.f32 %v2343, 0.35355338
        %v2349 = vsel %vm1540, %v2348, -inf
        %2350 = vmax.xlane.f32.xlu0 %v2349
        %v2351 = vpop.xlane.xlu0 %2350
        %v2352 = vsub.f32 %v2348, %v2351
        %v2353 = vmul.f32 %v2352, 1.442695
        %v2354 = vpow.pop %v2353
        %v2355 = vsel %vm1540, %v2354, 0.0
        %2356 = vadd.xlane.f32.xlu0 %v2355
        %v2357 = vpop.xlane.xlu0 %2356
        %v2358 = vrcp.pop %v2357
        %v2359 = vmul.f32 %v2354, %v2358
        %v2360 = vpack.c.bf16 %v2359, %v2359
        %v2362 = vsel %vm1540, %v2360, 0
        %v2365 = vsel %vm1603, %v2301, 0
        %2367 = vmatprep.subr.bf16.mxu0 0
        %2368 = vmatpush1.bf16.msra.mxu0 %v2365
        %2369 = vmatprep.subr.bf16.mxu0 0
        %2370 = vmatpush1.bf16.msra.mxu0 0
        %2371 = vmatprep.subr.bf16.mxu0 0
        %2372 = vmatpush1.bf16.msra.mxu0 0
        %2373 = vmatprep.subr.bf16.mxu0 0
        %2374 = vmatpush1.bf16.msra.mxu0 0
        %2375 = vmatprep.subr.bf16.mxu0 0
        %2376 = vmatpush1.bf16.msra.mxu0 0
        %2377 = vmatprep.subr.bf16.mxu0 0
        %2378 = vmatpush1.bf16.msra.mxu0 0
        %2379 = vmatprep.subr.bf16.mxu0 0
        %2380 = vmatpush1.bf16.msra.mxu0 0
        %2381 = vmatprep.subr.bf16.mxu0 0
        %2382 = vmatpush1.bf16.msra.mxu0 0
        %2383 = vmatprep.subr.bf16.mxu0 0
        %2384 = vmatpush1.bf16.msra.mxu0 0
        %2385 = vmatprep.subr.bf16.mxu0 0
        %2386 = vmatpush1.bf16.msra.mxu0 0
        %2387 = vmatprep.subr.bf16.mxu0 0
        %2388 = vmatpush1.bf16.msra.mxu0 0
        %2389 = vmatprep.subr.bf16.mxu0 0
        %2390 = vmatpush1.bf16.msra.mxu0 0
        %2391 = vmatprep.subr.bf16.mxu0 0
        %2392 = vmatpush1.bf16.msra.mxu0 0
        %2393 = vmatprep.subr.bf16.mxu0 0
        %2394 = vmatpush1.bf16.msra.mxu0 0
        %2395 = vmatprep.subr.bf16.mxu0 0
        %2396 = vmatpush1.bf16.msra.mxu0 0
        %2397 = vmatprep.subr.bf16.mxu0 0
        %2398 = vmatpush1.bf16.msra.mxu0 0
        %2399 = vmatprep.mubr.bf16.mxu0 0
        %2400 = vmatmul.mubr.bf16.gmra.mrb[0].mxu0 %v2362
        %v2401 = vpop.f32.mrb[0].mxu0
        %v2402 = vadd.f32 0.0, %v2401
        %v2403 = vpop.f32.mrb[0].mxu0
        %v2404 = vpop.f32.mrb[0].mxu0
        %v2405 = vpop.f32.mrb[0].mxu0
        %2406 = vdwg.mxu0
        %2407 = vst.msk [vmem:[#allocation3] sm:$0xff] %vm1540, %v2402
        %2409 = vrot.lane.b32.xlu0 %v2299, 120
        %v2410 = vpop.permute.xlu0 %2409
        %2412 = vrot.lane.b32.xlu0 %v2300, 120
        %v2413 = vpop.permute.xlu0 %2412
        %v2415 = vsel %vm1540, %v2410, 0
        %v2418 = vsel %vm1540, %v2413, 0
        %2420 = vmatprep.subr.bf16.mxu0 0
        %2421 = vmatpush1.bf16.xpose.msra.mxu0 %v2418
        %2422 = vmatprep.subr.bf16.mxu0 0
        %2423 = vmatpush1.bf16.xpose.msra.mxu0 0
        %2424 = vmatprep.subr.bf16.mxu0 0
        %2425 = vmatpush1.bf16.xpose.msra.mxu0 0
        %2426 = vmatprep.subr.bf16.mxu0 0
        %2427 = vmatpush1.bf16.xpose.msra.mxu0 0
        %2428 = vmatprep.subr.bf16.mxu0 0
        %2429 = vmatpush1.bf16.xpose.msra.mxu0 0
        %2430 = vmatprep.subr.bf16.mxu0 0
        %2431 = vmatpush1.bf16.xpose.msra.mxu0 0
        %2432 = vmatprep.subr.bf16.mxu0 0
        %2433 = vmatpush1.bf16.xpose.msra.mxu0 0
        %2434 = vmatprep.subr.bf16.mxu0 0
        %2435 = vmatpush1.bf16.xpose.msra.mxu0 0
        %2436 = vmatprep.subr.bf16.mxu0 0
        %2437 = vmatpush1.bf16.xpose.msra.mxu0 0
        %2438 = vmatprep.subr.bf16.mxu0 0
        %2439 = vmatpush1.bf16.xpose.msra.mxu0 0
        %2440 = vmatprep.subr.bf16.mxu0 0
        %2441 = vmatpush1.bf16.xpose.msra.mxu0 0
        %2442 = vmatprep.subr.bf16.mxu0 0
        %2443 = vmatpush1.bf16.xpose.msra.mxu0 0
        %2444 = vmatprep.subr.bf16.mxu0 0
        %2445 = vmatpush1.bf16.xpose.msra.mxu0 0
        %2446 = vmatprep.subr.bf16.mxu0 0
        %2447 = vmatpush1.bf16.xpose.msra.mxu0 0
        %2448 = vmatprep.subr.bf16.mxu0 0
        %2449 = vmatpush1.bf16.xpose.msra.mxu0 0
        %2450 = vmatprep.subr.bf16.mxu0 0
        %2451 = vmatpush1.bf16.xpose.msra.mxu0 0
        %2452 = vmatprep.mubr.bf16.mxu0 0
        %2453 = vmatmul.mubr.bf16.gmra.mrb[0].mxu0 %v2415
        %v2454 = vpop.f32.mrb[0].mxu0
        %v2455 = vadd.f32 0.0, %v2454
        %v2456 = vpop.f32.mrb[0].mxu0
        %v2457 = vpop.f32.mrb[0].mxu0
        %v2458 = vpop.f32.mrb[0].mxu0
        %2459 = vdwg.mxu0
        %v2460 = vmul.f32 %v2455, 0.35355338
        %v2461 = vsel %vm1540, %v2460, -inf
        %2462 = vmax.xlane.f32.xlu0 %v2461
        %v2463 = vpop.xlane.xlu0 %2462
        %v2464 = vsub.f32 %v2460, %v2463
        %v2465 = vmul.f32 %v2464, 1.442695
        %v2466 = vpow.pop %v2465
        %v2467 = vsel %vm1540, %v2466, 0.0
        %2468 = vadd.xlane.f32.xlu0 %v2467
        %v2469 = vpop.xlane.xlu0 %2468
        %v2470 = vrcp.pop %v2469
        %v2471 = vmul.f32 %v2466, %v2470
        %v2472 = vpack.c.bf16 %v2471, %v2471
        %2474 = vrot.lane.b32.xlu0 %v2301, 120
        %v2475 = vpop.permute.xlu0 %2474
        %v2477 = vsel %vm1540, %v2472, 0
        %v2480 = vsel %vm1603, %v2475, 0
        %2482 = vmatprep.subr.bf16.mxu0 0
        %2483 = vmatpush1.bf16.msra.mxu0 %v2480
        %2484 = vmatprep.subr.bf16.mxu0 0
        %2485 = vmatpush1.bf16.msra.mxu0 0
        %2486 = vmatprep.subr.bf16.mxu0 0
        %2487 = vmatpush1.bf16.msra.mxu0 0
        %2488 = vmatprep.subr.bf16.mxu0 0
        %2489 = vmatpush1.bf16.msra.mxu0 0
        %2490 = vmatprep.subr.bf16.mxu0 0
        %2491 = vmatpush1.bf16.msra.mxu0 0
        %2492 = vmatprep.subr.bf16.mxu0 0
        %2493 = vmatpush1.bf16.msra.mxu0 0
        %2494 = vmatprep.subr.bf16.mxu0 0
        %2495 = vmatpush1.bf16.msra.mxu0 0
        %2496 = vmatprep.subr.bf16.mxu0 0
        %2497 = vmatpush1.bf16.msra.mxu0 0
        %2498 = vmatprep.subr.bf16.mxu0 0
        %2499 = vmatpush1.bf16.msra.mxu0 0
        %2500 = vmatprep.subr.bf16.mxu0 0
        %2501 = vmatpush1.bf16.msra.mxu0 0
        %2502 = vmatprep.subr.bf16.mxu0 0
        %2503 = vmatpush1.bf16.msra.mxu0 0
        %2504 = vmatprep.subr.bf16.mxu0 0
        %2505 = vmatpush1.bf16.msra.mxu0 0
        %2506 = vmatprep.subr.bf16.mxu0 0
        %2507 = vmatpush1.bf16.msra.mxu0 0
        %2508 = vmatprep.subr.bf16.mxu0 0
        %2509 = vmatpush1.bf16.msra.mxu0 0
        %2510 = vmatprep.subr.bf16.mxu0 0
        %2511 = vmatpush1.bf16.msra.mxu0 0
        %2512 = vmatprep.subr.bf16.mxu0 0
        %2513 = vmatpush1.bf16.msra.mxu0 0
        %2514 = vmatprep.mubr.bf16.mxu0 0
        %2515 = vmatmul.mubr.bf16.gmra.mrb[0].mxu0 %v2477
        %v2516 = vpop.f32.mrb[0].mxu0
        %v2517 = vadd.f32 0.0, %v2516
        %v2518 = vpop.f32.mrb[0].mxu0
        %v2519 = vpop.f32.mrb[0].mxu0
        %v2520 = vpop.f32.mrb[0].mxu0
        %2521 = vdwg.mxu0
        %2523 = vrot.lane.b32.xlu0 %v2517, 8
        %v2524 = vpop.permute.xlu0 %2523
        %2526 = vst.msk [vmem:[#allocation3] sm:$0xff] %vm1766, %v2524
        %2527 = vrot.lane.b32.xlu0 %v2299, 112
        %v2528 = vpop.permute.xlu0 %2527
        %2529 = vrot.lane.b32.xlu0 %v2300, 112
        %v2530 = vpop.permute.xlu0 %2529
        %v2532 = vsel %vm1540, %v2528, 0
        %v2535 = vsel %vm1540, %v2530, 0
        %2537 = vmatprep.subr.bf16.mxu0 0
        %2538 = vmatpush1.bf16.xpose.msra.mxu0 %v2535
        %2539 = vmatprep.subr.bf16.mxu0 0
        %2540 = vmatpush1.bf16.xpose.msra.mxu0 0
        %2541 = vmatprep.subr.bf16.mxu0 0
        %2542 = vmatpush1.bf16.xpose.msra.mxu0 0
        %2543 = vmatprep.subr.bf16.mxu0 0
        %2544 = vmatpush1.bf16.xpose.msra.mxu0 0
        %2545 = vmatprep.subr.bf16.mxu0 0
        %2546 = vmatpush1.bf16.xpose.msra.mxu0 0
        %2547 = vmatprep.subr.bf16.mxu0 0
        %2548 = vmatpush1.bf16.xpose.msra.mxu0 0
        %2549 = vmatprep.subr.bf16.mxu0 0
        %2550 = vmatpush1.bf16.xpose.msra.mxu0 0
        %2551 = vmatprep.subr.bf16.mxu0 0
        %2552 = vmatpush1.bf16.xpose.msra.mxu0 0
        %2553 = vmatprep.subr.bf16.mxu0 0
        %2554 = vmatpush1.bf16.xpose.msra.mxu0 0
        %2555 = vmatprep.subr.bf16.mxu0 0
        %2556 = vmatpush1.bf16.xpose.msra.mxu0 0
        %2557 = vmatprep.subr.bf16.mxu0 0
        %2558 = vmatpush1.bf16.xpose.msra.mxu0 0
        %2559 = vmatprep.subr.bf16.mxu0 0
        %2560 = vmatpush1.bf16.xpose.msra.mxu0 0
        %2561 = vmatprep.subr.bf16.mxu0 0
        %2562 = vmatpush1.bf16.xpose.msra.mxu0 0
        %2563 = vmatprep.subr.bf16.mxu0 0
        %2564 = vmatpush1.bf16.xpose.msra.mxu0 0
        %2565 = vmatprep.subr.bf16.mxu0 0
        %2566 = vmatpush1.bf16.xpose.msra.mxu0 0
        %2567 = vmatprep.subr.bf16.mxu0 0
        %2568 = vmatpush1.bf16.xpose.msra.mxu0 0
        %2569 = vmatprep.mubr.bf16.mxu0 0
        %2570 = vmatmul.mubr.bf16.gmra.mrb[0].mxu0 %v2532
        %v2571 = vpop.f32.mrb[0].mxu0
        %v2572 = vadd.f32 0.0, %v2571
        %v2573 = vpop.f32.mrb[0].mxu0
        %v2574 = vpop.f32.mrb[0].mxu0
        %v2575 = vpop.f32.mrb[0].mxu0
        %2576 = vdwg.mxu0
        %v2577 = vmul.f32 %v2572, 0.35355338
        %v2578 = vsel %vm1540, %v2577, -inf
        %2579 = vmax.xlane.f32.xlu0 %v2578
        %v2580 = vpop.xlane.xlu0 %2579
        %v2581 = vsub.f32 %v2577, %v2580
        %v2582 = vmul.f32 %v2581, 1.442695
        %v2583 = vpow.pop %v2582
        %v2584 = vsel %vm1540, %v2583, 0.0
        %2585 = vadd.xlane.f32.xlu0 %v2584
        %v2586 = vpop.xlane.xlu0 %2585
        %v2587 = vrcp.pop %v2586
        %v2588 = vmul.f32 %v2583, %v2587
        %v2589 = vpack.c.bf16 %v2588, %v2588
        %2590 = vrot.lane.b32.xlu0 %v2301, 112
        %v2591 = vpop.permute.xlu0 %2590
        %v2593 = vsel %vm1540, %v2589, 0
        %v2596 = vsel %vm1603, %v2591, 0
        %2598 = vmatprep.subr.bf16.mxu0 0
        %2599 = vmatpush1.bf16.msra.mxu0 %v2596
        %2600 = vmatprep.subr.bf16.mxu0 0
        %2601 = vmatpush1.bf16.msra.mxu0 0
        %2602 = vmatprep.subr.bf16.mxu0 0
        %2603 = vmatpush1.bf16.msra.mxu0 0
        %2604 = vmatprep.subr.bf16.mxu0 0
        %2605 = vmatpush1.bf16.msra.mxu0 0
        %2606 = vmatprep.subr.bf16.mxu0 0
        %2607 = vmatpush1.bf16.msra.mxu0 0
        %2608 = vmatprep.subr.bf16.mxu0 0
        %2609 = vmatpush1.bf16.msra.mxu0 0
        %2610 = vmatprep.subr.bf16.mxu0 0
        %2611 = vmatpush1.bf16.msra.mxu0 0
        %2612 = vmatprep.subr.bf16.mxu0 0
        %2613 = vmatpush1.bf16.msra.mxu0 0
        %2614 = vmatprep.subr.bf16.mxu0 0
        %2615 = vmatpush1.bf16.msra.mxu0 0
        %2616 = vmatprep.subr.bf16.mxu0 0
        %2617 = vmatpush1.bf16.msra.mxu0 0
        %2618 = vmatprep.subr.bf16.mxu0 0
        %2619 = vmatpush1.bf16.msra.mxu0 0
        %2620 = vmatprep.subr.bf16.mxu0 0
        %2621 = vmatpush1.bf16.msra.mxu0 0
        %2622 = vmatprep.subr.bf16.mxu0 0
        %2623 = vmatpush1.bf16.msra.mxu0 0
        %2624 = vmatprep.subr.bf16.mxu0 0
        %2625 = vmatpush1.bf16.msra.mxu0 0
        %2626 = vmatprep.subr.bf16.mxu0 0
        %2627 = vmatpush1.bf16.msra.mxu0 0
        %2628 = vmatprep.subr.bf16.mxu0 0
        %2629 = vmatpush1.bf16.msra.mxu0 0
        %2630 = vmatprep.mubr.bf16.mxu0 0
        %2631 = vmatmul.mubr.bf16.gmra.mrb[0].mxu0 %v2593
        %v2632 = vpop.f32.mrb[0].mxu0
        %v2633 = vadd.f32 0.0, %v2632
        %v2634 = vpop.f32.mrb[0].mxu0
        %v2635 = vpop.f32.mrb[0].mxu0
        %v2636 = vpop.f32.mrb[0].mxu0
        %2637 = vdwg.mxu0
        %2639 = vrot.lane.b32.xlu0 %v2633, 16
        %v2640 = vpop.permute.xlu0 %2639
        %2642 = vst.msk [vmem:[#allocation3] sm:$0xff] %vm1883, %v2640
        %2643 = vrot.lane.b32.xlu0 %v2299, 104
        %v2644 = vpop.permute.xlu0 %2643
        %2645 = vrot.lane.b32.xlu0 %v2300, 104
        %v2646 = vpop.permute.xlu0 %2645
        %v2648 = vsel %vm1540, %v2644, 0
        %v2651 = vsel %vm1540, %v2646, 0
        %2653 = vmatprep.subr.bf16.mxu0 0
        %2654 = vmatpush1.bf16.xpose.msra.mxu0 %v2651
        %2655 = vmatprep.subr.bf16.mxu0 0
        %2656 = vmatpush1.bf16.xpose.msra.mxu0 0
        %2657 = vmatprep.subr.bf16.mxu0 0
        %2658 = vmatpush1.bf16.xpose.msra.mxu0 0
        %2659 = vmatprep.subr.bf16.mxu0 0
        %2660 = vmatpush1.bf16.xpose.msra.mxu0 0
        %2661 = vmatprep.subr.bf16.mxu0 0
        %2662 = vmatpush1.bf16.xpose.msra.mxu0 0
        %2663 = vmatprep.subr.bf16.mxu0 0
        %2664 = vmatpush1.bf16.xpose.msra.mxu0 0
        %2665 = vmatprep.subr.bf16.mxu0 0
        %2666 = vmatpush1.bf16.xpose.msra.mxu0 0
        %2667 = vmatprep.subr.bf16.mxu0 0
        %2668 = vmatpush1.bf16.xpose.msra.mxu0 0
        %2669 = vmatprep.subr.bf16.mxu0 0
        %2670 = vmatpush1.bf16.xpose.msra.mxu0 0
        %2671 = vmatprep.subr.bf16.mxu0 0
        %2672 = vmatpush1.bf16.xpose.msra.mxu0 0
        %2673 = vmatprep.subr.bf16.mxu0 0
        %2674 = vmatpush1.bf16.xpose.msra.mxu0 0
        %2675 = vmatprep.subr.bf16.mxu0 0
        %2676 = vmatpush1.bf16.xpose.msra.mxu0 0
        %2677 = vmatprep.subr.bf16.mxu0 0
        %2678 = vmatpush1.bf16.xpose.msra.mxu0 0
        %2679 = vmatprep.subr.bf16.mxu0 0
        %2680 = vmatpush1.bf16.xpose.msra.mxu0 0
        %2681 = vmatprep.subr.bf16.mxu0 0
        %2682 = vmatpush1.bf16.xpose.msra.mxu0 0
        %2683 = vmatprep.subr.bf16.mxu0 0
        %2684 = vmatpush1.bf16.xpose.msra.mxu0 0
        %2685 = vmatprep.mubr.bf16.mxu0 0
        %2686 = vmatmul.mubr.bf16.gmra.mrb[0].mxu0 %v2648
        %v2687 = vpop.f32.mrb[0].mxu0
        %v2688 = vadd.f32 0.0, %v2687
        %v2689 = vpop.f32.mrb[0].mxu0
        %v2690 = vpop.f32.mrb[0].mxu0
        %v2691 = vpop.f32.mrb[0].mxu0
        %2692 = vdwg.mxu0
        %v2693 = vmul.f32 %v2688, 0.35355338
        %v2694 = vsel %vm1540, %v2693, -inf
        %2695 = vmax.xlane.f32.xlu0 %v2694
        %v2696 = vpop.xlane.xlu0 %2695
        %v2697 = vsub.f32 %v2693, %v2696
        %v2698 = vmul.f32 %v2697, 1.442695
        %v2699 = vpow.pop %v2698
        %v2700 = vsel %vm1540, %v2699, 0.0
        %2701 = vadd.xlane.f32.xlu0 %v2700
        %v2702 = vpop.xlane.xlu0 %2701
        %v2703 = vrcp.pop %v2702
        %v2704 = vmul.f32 %v2699, %v2703
        %v2705 = vpack.c.bf16 %v2704, %v2704
        %2706 = vrot.lane.b32.xlu0 %v2301, 104
        %v2707 = vpop.permute.xlu0 %2706
        %v2709 = vsel %vm1540, %v2705, 0
        %v2712 = vsel %vm1603, %v2707, 0
        %2714 = vmatprep.subr.bf16.mxu0 0
        %2715 = vmatpush1.bf16.msra.mxu0 %v2712
        %2716 = vmatprep.subr.bf16.mxu0 0
        %2717 = vmatpush1.bf16.msra.mxu0 0
        %2718 = vmatprep.subr.bf16.mxu0 0
        %2719 = vmatpush1.bf16.msra.mxu0 0
        %2720 = vmatprep.subr.bf16.mxu0 0
        %2721 = vmatpush1.bf16.msra.mxu0 0
        %2722 = vmatprep.subr.bf16.mxu0 0
        %2723 = vmatpush1.bf16.msra.mxu0 0
        %2724 = vmatprep.subr.bf16.mxu0 0
        %2725 = vmatpush1.bf16.msra.mxu0 0
        %2726 = vmatprep.subr.bf16.mxu0 0
        %2727 = vmatpush1.bf16.msra.mxu0 0
        %2728 = vmatprep.subr.bf16.mxu0 0
        %2729 = vmatpush1.bf16.msra.mxu0 0
        %2730 = vmatprep.subr.bf16.mxu0 0
        %2731 = vmatpush1.bf16.msra.mxu0 0
        %2732 = vmatprep.subr.bf16.mxu0 0
        %2733 = vmatpush1.bf16.msra.mxu0 0
        %2734 = vmatprep.subr.bf16.mxu0 0
        %2735 = vmatpush1.bf16.msra.mxu0 0
        %2736 = vmatprep.subr.bf16.mxu0 0
        %2737 = vmatpush1.bf16.msra.mxu0 0
        %2738 = vmatprep.subr.bf16.mxu0 0
        %2739 = vmatpush1.bf16.msra.mxu0 0
        %2740 = vmatprep.subr.bf16.mxu0 0
        %2741 = vmatpush1.bf16.msra.mxu0 0
        %2742 = vmatprep.subr.bf16.mxu0 0
        %2743 = vmatpush1.bf16.msra.mxu0 0
        %2744 = vmatprep.subr.bf16.mxu0 0
        %2745 = vmatpush1.bf16.msra.mxu0 0
        %2746 = vmatprep.mubr.bf16.mxu0 0
        %2747 = vmatmul.mubr.bf16.gmra.mrb[0].mxu0 %v2709
        %v2748 = vpop.f32.mrb[0].mxu0
        %v2749 = vadd.f32 0.0, %v2748
        %v2750 = vpop.f32.mrb[0].mxu0
        %v2751 = vpop.f32.mrb[0].mxu0
        %v2752 = vpop.f32.mrb[0].mxu0
        %2753 = vdwg.mxu0
        %2755 = vrot.lane.b32.xlu0 %v2749, 24
        %v2756 = vpop.permute.xlu0 %2755
        %2758 = vst.msk [vmem:[#allocation3] sm:$0xff] %vm2000, %v2756
        %v2759 = vld [vmem:[#allocation3] sm:$0xff]
        %v2760 = vpack.c.bf16 %v2759, %v2759
        %v2761 = vld [vmem:[%s1304] sm:$0xf]
        %v2762 = vld [vmem:[%s1304 + $0x4] sm:$0xf]
        %v2763 = vld [vmem:[%s1304 + $0x8] sm:$0xf]
        %v2764 = vld [vmem:[%s1304 + $0xc] sm:$0xf]
        %v2765 = vld [vmem:[%s1307] sm:$0x1]
        %v2767 = vlaneseq
        %v2768 = vshrl.u32 %v2767, 7
        %v2769 = vsub.s32 0, %v2768
        %v2770 = vrot.slane %v2765, %v2769
        %v2776 = vunpack.c.l.b16 %v2761
        %v2777 = vunpack.c.l.b16 %v2762
        %v2778 = vunpack.c.l.b16 %v2763
        %v2779 = vunpack.c.l.b16 %v2764
        %v2780 = vpack.c.b16 %v2777, %v2776
        %v2781 = vpack.c.b16 %v2779, %v2778
        %v2785 = vsel %vm1367, %v2760, 0
        %2787 = vmatprep.subr.bf16.mxu0 0
        %2788 = vmatpush1.bf16.msra.mxu0 %v2780
        %2789 = vmatprep.subr.bf16.mxu0 0
        %2790 = vmatpush1.bf16.msra.mxu0 %v2781
        %2791 = vmatprep.subr.bf16.mxu0 0
        %2792 = vmatpush1.bf16.msra.mxu0 0
        %2793 = vmatprep.subr.bf16.mxu0 0
        %2794 = vmatpush1.bf16.msra.mxu0 0
        %2795 = vmatprep.subr.bf16.mxu0 0
        %2796 = vmatpush1.bf16.msra.mxu0 0
        %2797 = vmatprep.subr.bf16.mxu0 0
        %2798 = vmatpush1.bf16.msra.mxu0 0
        %2799 = vmatprep.subr.bf16.mxu0 0
        %2800 = vmatpush1.bf16.msra.mxu0 0
        %2801 = vmatprep.subr.bf16.mxu0 0
        %2802 = vmatpush1.bf16.msra.mxu0 0
        %2803 = vmatprep.subr.bf16.mxu0 0
        %2804 = vmatpush1.bf16.msra.mxu0 0
        %2805 = vmatprep.subr.bf16.mxu0 0
        %2806 = vmatpush1.bf16.msra.mxu0 0
        %2807 = vmatprep.subr.bf16.mxu0 0
        %2808 = vmatpush1.bf16.msra.mxu0 0
        %2809 = vmatprep.subr.bf16.mxu0 0
        %2810 = vmatpush1.bf16.msra.mxu0 0
        %2811 = vmatprep.subr.bf16.mxu0 0
        %2812 = vmatpush1.bf16.msra.mxu0 0
        %2813 = vmatprep.subr.bf16.mxu0 0
        %2814 = vmatpush1.bf16.msra.mxu0 0
        %2815 = vmatprep.subr.bf16.mxu0 0
        %2816 = vmatpush1.bf16.msra.mxu0 0
        %2817 = vmatprep.subr.bf16.mxu0 0
        %2818 = vmatpush1.bf16.msra.mxu0 0
        %2819 = vmatprep.mubr.bf16.mxu0 0
        %2820 = vmatmul.mubr.bf16.gmra.mrb[0].mxu0 %v2785
        %v2821 = vpop.f32.mrb[0].mxu0
        %v2822 = vadd.f32 %v2770, %v2821
        %v2823 = vpop.f32.mrb[0].mxu0
        %v2824 = vpop.f32.mrb[0].mxu0
        %v2825 = vpop.f32.mrb[0].mxu0
        %2826 = vdwg.mxu0
        %v2827 = vadd.f32 %v2100, %v2822
        %v2828 = vld [vmem:[%s1310] sm:$0x1]
        %v2829 = vld [vmem:[%s1313] sm:$0x1]
        %v2830 = vsel %vm1367, %v2827, 0.0
        %2831 = vadd.xlane.f32.xlu0 %v2830
        %v2832 = vpop.xlane.xlu0 %2831
        %v2833 = vmul.f32 %v2832, %v2076
        %v2834 = vsub.f32 %v2827, %v2833
        %v2835 = vmul.f32 %v2834, %v2834
        %v2836 = vsel %vm1367, %v2835, 0.0
        %2837 = vadd.xlane.f32.xlu0 %v2836
        %v2838 = vpop.xlane.xlu0 %2837
        %v2839 = vmul.f32 %v2838, %v2076
        %v2840 = vadd.f32 %v2839, 1e-05
        %v2841 = vrsqrt.pop %v2840
        %v2842 = vmul.f32 %v2834, %v2841
        %v2844 = vlaneseq
        %v2845 = vshrl.u32 %v2844, 7
        %v2846 = vsub.s32 0, %v2845
        %v2847 = vrot.slane %v2828, %v2846
        %v2849 = vmul.f32 %v2842, %v2847
        %v2851 = vlaneseq
        %v2852 = vshrl.u32 %v2851, 7
        %v2853 = vsub.s32 0, %v2852
        %v2854 = vrot.slane %v2829, %v2853
        %v2856 = vadd.f32 %v2849, %v2854
        %v2857 = vpack.c.bf16 %v2856, %v2856
        %v2858 = vld [vmem:[%s1318] sm:$0xf]
        %v2859 = vld [vmem:[%s1318 + $0x4] sm:$0xf]
        %v2860 = vld [vmem:[%s1318 + $0x8] sm:$0xf]
        %v2861 = vld [vmem:[%s1318 + $0xc] sm:$0xf]
        %v2862 = vld [vmem:[%s1321] sm:$0x1]
        %v2864 = vlaneseq
        %v2865 = vshrl.u32 %v2864, 7
        %v2866 = vsub.s32 0, %v2865
        %v2867 = vrot.slane %v2862, %v2866
        %v2873 = vunpack.c.l.b16 %v2858
        %v2874 = vunpack.c.l.b16 %v2859
        %v2875 = vunpack.c.l.b16 %v2860
        %v2876 = vunpack.c.l.b16 %v2861
        %v2877 = vpack.c.b16 %v2874, %v2873
        %v2878 = vpack.c.b16 %v2876, %v2875
        %v2882 = vsel %vm1367, %v2857, 0
        %2884 = vmatprep.subr.bf16.mxu0 0
        %2885 = vmatpush1.bf16.msra.mxu0 %v2877
        %2886 = vmatprep.subr.bf16.mxu0 0
        %2887 = vmatpush1.bf16.msra.mxu0 %v2878
        %2888 = vmatprep.subr.bf16.mxu0 0
        %2889 = vmatpush1.bf16.msra.mxu0 0
        %2890 = vmatprep.subr.bf16.mxu0 0
        %2891 = vmatpush1.bf16.msra.mxu0 0
        %2892 = vmatprep.subr.bf16.mxu0 0
        %2893 = vmatpush1.bf16.msra.mxu0 0
        %2894 = vmatprep.subr.bf16.mxu0 0
        %2895 = vmatpush1.bf16.msra.mxu0 0
        %2896 = vmatprep.subr.bf16.mxu0 0
        %2897 = vmatpush1.bf16.msra.mxu0 0
        %2898 = vmatprep.subr.bf16.mxu0 0
        %2899 = vmatpush1.bf16.msra.mxu0 0
        %2900 = vmatprep.subr.bf16.mxu0 0
        %2901 = vmatpush1.bf16.msra.mxu0 0
        %2902 = vmatprep.subr.bf16.mxu0 0
        %2903 = vmatpush1.bf16.msra.mxu0 0
        %2904 = vmatprep.subr.bf16.mxu0 0
        %2905 = vmatpush1.bf16.msra.mxu0 0
        %2906 = vmatprep.subr.bf16.mxu0 0
        %2907 = vmatpush1.bf16.msra.mxu0 0
        %2908 = vmatprep.subr.bf16.mxu0 0
        %2909 = vmatpush1.bf16.msra.mxu0 0
        %2910 = vmatprep.subr.bf16.mxu0 0
        %2911 = vmatpush1.bf16.msra.mxu0 0
        %2912 = vmatprep.subr.bf16.mxu0 0
        %2913 = vmatpush1.bf16.msra.mxu0 0
        %2914 = vmatprep.subr.bf16.mxu0 0
        %2915 = vmatpush1.bf16.msra.mxu0 0
        %2916 = vmatprep.mubr.bf16.mxu0 0
        %2917 = vmatmul.mubr.bf16.gmra.mrb[0].mxu0 %v2882
        %v2918 = vpop.f32.mrb[0].mxu0
        %v2919 = vadd.f32 %v2867, %v2918
        %v2920 = vpop.f32.mrb[0].mxu0
        %v2921 = vpop.f32.mrb[0].mxu0
        %v2922 = vpop.f32.mrb[0].mxu0
        %2923 = vdwg.mxu0
        %v2924 = vmax.f32 %v2919, 0.0
        %v2925 = vpack.c.bf16 %v2924, %v2924
        %v2926 = vld [vmem:[%s1326] sm:$0xf]
        %v2927 = vld [vmem:[%s1326 + $0x4] sm:$0xf]
        %v2928 = vld [vmem:[%s1326 + $0x8] sm:$0xf]
        %v2929 = vld [vmem:[%s1326 + $0xc] sm:$0xf]
        %v2930 = vld [vmem:[%s1326 + $0x10] sm:$0xf]
        %v2931 = vld [vmem:[%s1326 + $0x14] sm:$0xf]
        %v2932 = vld [vmem:[%s1326 + $0x18] sm:$0xf]
        %v2933 = vld [vmem:[%s1326 + $0x1c] sm:$0xf]
        %v2934 = vld [vmem:[%s1329] sm:$0x1]
        %v2936 = vlaneseq
        %v2937 = vshrl.u32 %v2936, 7
        %v2938 = vsub.s32 0, %v2937
        %v2939 = vrot.slane %v2934, %v2938
        %v2949 = vunpack.c.l.b16 %v2926
        %v2950 = vunpack.c.l.b16 %v2927
        %v2951 = vunpack.c.l.b16 %v2928
        %v2952 = vunpack.c.l.b16 %v2929
        %v2953 = vunpack.c.l.b16 %v2930
        %v2954 = vunpack.c.l.b16 %v2931
        %v2955 = vunpack.c.l.b16 %v2932
        %v2956 = vunpack.c.l.b16 %v2933
        %v2957 = vpack.c.b16 %v2950, %v2949
        %v2958 = vpack.c.b16 %v2952, %v2951
        %v2959 = vpack.c.b16 %v2954, %v2953
        %v2960 = vpack.c.b16 %v2956, %v2955
        %vm2965 = vcmask 523264
        %v2967 = vsel %vm2965, %v2925, 0
        %2969 = vmatprep.subr.bf16.mxu0 0
        %2970 = vmatpush1.bf16.msra.mxu0 %v2957
        %2971 = vmatprep.subr.bf16.mxu0 0
        %2972 = vmatpush1.bf16.msra.mxu0 %v2958
        %2973 = vmatprep.subr.bf16.mxu0 0
        %2974 = vmatpush1.bf16.msra.mxu0 %v2959
        %2975 = vmatprep.subr.bf16.mxu0 0
        %2976 = vmatpush1.bf16.msra.mxu0 %v2960
        %2977 = vmatprep.subr.bf16.mxu0 0
        %2978 = vmatpush1.bf16.msra.mxu0 0
        %2979 = vmatprep.subr.bf16.mxu0 0
        %2980 = vmatpush1.bf16.msra.mxu0 0
        %2981 = vmatprep.subr.bf16.mxu0 0
        %2982 = vmatpush1.bf16.msra.mxu0 0
        %2983 = vmatprep.subr.bf16.mxu0 0
        %2984 = vmatpush1.bf16.msra.mxu0 0
        %2985 = vmatprep.subr.bf16.mxu0 0
        %2986 = vmatpush1.bf16.msra.mxu0 0
        %2987 = vmatprep.subr.bf16.mxu0 0
        %2988 = vmatpush1.bf16.msra.mxu0 0
        %2989 = vmatprep.subr.bf16.mxu0 0
        %2990 = vmatpush1.bf16.msra.mxu0 0
        %2991 = vmatprep.subr.bf16.mxu0 0
        %2992 = vmatpush1.bf16.msra.mxu0 0
        %2993 = vmatprep.subr.bf16.mxu0 0
        %2994 = vmatpush1.bf16.msra.mxu0 0
        %2995 = vmatprep.subr.bf16.mxu0 0
        %2996 = vmatpush1.bf16.msra.mxu0 0
        %2997 = vmatprep.subr.bf16.mxu0 0
        %2998 = vmatpush1.bf16.msra.mxu0 0
        %2999 = vmatprep.subr.bf16.mxu0 0
        %3000 = vmatpush1.bf16.msra.mxu0 0
        %3001 = vmatprep.mubr.bf16.mxu0 0
        %3002 = vmatmul.mubr.bf16.gmra.mrb[0].mxu0 %v2967
        %v3003 = vpop.f32.mrb[0].mxu0
        %v3004 = vadd.f32 %v2939, %v3003
        %v3005 = vpop.f32.mrb[0].mxu0
        %v3006 = vpop.f32.mrb[0].mxu0
        %v3007 = vpop.f32.mrb[0].mxu0
        %3008 = vdwg.mxu0
        %v3009 = vadd.f32 %v2856, %v3004
        %v3010 = vld [vmem:[%s1047] sm:$0x1]
        %v3011 = vld [vmem:[%s1055] sm:$0x1]
        %v3012 = vsel %vm1367, %v3009, 0.0
        %3013 = vadd.xlane.f32.xlu0 %v3012
        %v3014 = vpop.xlane.xlu0 %3013
        %v3015 = vmul.f32 %v3014, %v2076
        %v3016 = vsub.f32 %v3009, %v3015
        %v3017 = vmul.f32 %v3016, %v3016
        %v3018 = vsel %vm1367, %v3017, 0.0
        %3019 = vadd.xlane.f32.xlu0 %v3018
        %v3020 = vpop.xlane.xlu0 %3019
        %v3021 = vmul.f32 %v3020, %v2076
        %v3022 = vadd.f32 %v3021, 1e-05
        %v3023 = vrsqrt.pop %v3022
        %v3024 = vmul.f32 %v3016, %v3023
        %v3026 = vlaneseq
        %v3027 = vshrl.u32 %v3026, 7
        %v3028 = vsub.s32 0, %v3027
        %v3029 = vrot.slane %v3010, %v3028
        %v3031 = vmul.f32 %v3024, %v3029
        %v3033 = vlaneseq
        %v3034 = vshrl.u32 %v3033, 7
        %v3035 = vsub.s32 0, %v3034
        %v3036 = vrot.slane %v3011, %v3035
        %v3038 = vadd.f32 %v3031, %v3036
        %3039 = vst.msk [vmem:[#allocation2] sm:$0xff] %vm1367, %v3038
        %p3040 = scmp.eq.s32.totalorder %s50, 1
        // Predicated region
        $region145: #{model_forward.4} parent=131 // pred_check
          %p3041 = pneg %p3040
        $region146: #{model_forward.4} parent=131 // pred_check_branch
          %3043 = sbr.rel (%p3041) target = $region148
        $region147: #{model_forward.4} parent=131 // pred_region
          %3044 = vst.msk [vmem:[%s1333] sm:$0xff] %vm1367, %v3038
        $region148: #{model_forward.4} parent=131 // pred_fallthru
          _
        %p3045 = scmp.lt.s32.totalorder %s49, 1
        %s3046 = scalar_select %p3045, %s49, 1
        %s3047 = smul.addr %s3046, 8
        %s3048 = scalar_lea.vmem %s28, %s3047
        // Predicated region
        $region149: #{model_forward.4} parent=131 // pred_check
          %p3049 = pneg %p803
        $region150: #{model_forward.4} parent=131 // pred_check_branch
          %3051 = sbr.rel (%p3049) target = $region152
        $region151: #{model_forward.4} parent=131 // pred_region
          _
        $region152: #{model_forward.4} parent=131 // pred_fallthru
          _
      $region132: #{model_forward.4} parent=5 // pred_fallthru
        _
      %p3052 = scmp.le.s32.totalorder 2, %s40
      // Predicated region
      $region153: #{model_forward.4} parent=5 // pred_check
        %p3053 = pneg %p3052
      $region154: #{model_forward.4} parent=5 // pred_check_branch
        %3055 = sbr.rel (%p3053) target = $region156
      $region155: #{model_forward.4} parent=5 // pred_region
        %s3056 = ssub.s32 %s40, 2
        // Predicated region
        $region157: #{model_forward.4} parent=155 // pred_check
          %p3057 = pneg %p809
        $region158: #{model_forward.4} parent=155 // pred_check_branch
          %3059 = sbr.rel (%p3057) target = $region160
        $region159: #{model_forward.4} parent=155 // pred_region
          %p3060 = scmp.lt.s32.totalorder %s51, 1
          %s3061 = scalar_select %p3060, %s51, 1
          %s3062 = smul.addr %s3061, 8
          %s3063 = scalar_lea.vmem %s28, %s3062
        $region160: #{model_forward.4} parent=155 // pred_fallthru
          _
      $region156: #{model_forward.4} parent=5 // pred_fallthru
        _
    $region6: #{model_forward.4} parent=1 // loop_footer
      %s44 = sadd.s32 1, %s40
    $region7: #{model_forward.4} parent=1 // loop_footer_branch
      %39 = sbr.rel target = $region3
    $region8: #{model_forward.4} parent=1 // loop_exit
      _
    %3064 = vsyncpa [#allocation5], 1
    %s3065 = scalar_lea.sflag [#allocation5], 1
    %3066 = vsyncpa %s3065, 1
    %3067 = vsyncpa [#allocation7], 1
    %s3068 = scalar_lea.sflag [#allocation7], 1
    %3069 = vsyncpa %s3068, 1

</llo_original>
